<compile_context>
chip_gen: v7x
topology: tpu7x:2x2x1
jax: 0.10.0
libtpu: 0.0.40
codegen_flags: <defaults>
</compile_context>

<pallas_src>
import numpy as np
import jax
import jax.numpy as jnp
from jax import lax
from jax.experimental import pallas as pl
from jax.experimental.pallas import tpu as pltpu

EPS = 1e-5      # nn.InstanceNorm2d default eps
KS = 3          # kernel size
KS2 = KS * KS   # number of taps


# ------------------- host-side constants: per-tap 0/1 gather matrices -----------------
def _conv_gathers(h_in, w_in, stride, padding):
    """G[t] (HW_in, HW_out) for a forward conv with zero padding."""
    h_out = (h_in + 2 * padding - KS) // stride + 1
    w_out = (w_in + 2 * padding - KS) // stride + 1
    g = np.zeros((KS2, h_in * w_in, h_out * w_out), np.float32)
    for ki in range(KS):
        for kj in range(KS):
            t = ki * KS + kj
            for ho in range(h_out):
                hi = stride * ho + ki - padding
                if hi < 0 or hi >= h_in:
                    continue
                for wo in range(w_out):
                    wi = stride * wo + kj - padding
                    if wi < 0 or wi >= w_in:
                        continue
                    g[t, hi * w_in + wi, ho * w_out + wo] = 1.0
    return g, h_out, w_out


def _convT_gathers(h_in, w_in, stride, padding, output_padding):
    """G[t] (HW_in, HW_out) with PyTorch ConvTranspose2d semantics."""
    h_out = (h_in - 1) * stride - 2 * padding + KS + output_padding
    w_out = (w_in - 1) * stride - 2 * padding + KS + output_padding
    g = np.zeros((KS2, h_in * w_in, h_out * w_out), np.float32)
    for ki in range(KS):
        for kj in range(KS):
            t = ki * KS + kj
            for hi in range(h_in):
                ho = stride * hi + ki - padding
                if ho < 0 or ho >= h_out:
                    continue
                for wi in range(w_in):
                    wo = stride * wi + kj - padding
                    if wo < 0 or wo >= w_out:
                        continue
                    g[t, hi * w_in + wi, ho * w_out + wo] = 1.0
    return g, h_out, w_out


def _check_selection(g):
    # Invariant required for the lossless bf16 handling of gathered slabs:
    # every per-tap gather column is a pure 0/1 selection with at most one nonzero.
    assert ((g == 0.0) | (g == 1.0)).all(), "gather matrices must be 0/1"
    assert (g.sum(axis=1) <= 1.0).all(), "gather columns must have at most one nonzero"


# ---------------------------- host-side weight packing --------------------------------
def _round_up(a, m):
    return (a + m - 1) // m * m


def _conv_w_taps(w_oihw):    # Conv2d weight (C_out, C_in, 3, 3) -> (9, C_out, C_in)
    co, ci = w_oihw.shape[0], w_oihw.shape[1]
    return jnp.transpose(w_oihw, (2, 3, 0, 1)).reshape(KS2, co, ci)


def _convT_w_taps(w_iohw):   # ConvTranspose2d weight (C_in, C_out, 3, 3) -> (9, C_out, C_in)
    ci, co = w_iohw.shape[0], w_iohw.shape[1]
    return jnp.transpose(w_iohw, (2, 3, 1, 0)).reshape(KS2, co, ci)


def _blockdiag_taps(w_taps, bb):
    """(9, Co, Ci) -> (9, bb*Co, bb*Ci): per-tap I_bb (x) W_t (sample-major rows)."""
    eye = jnp.eye(bb, dtype=w_taps.dtype)
    t, co, ci = w_taps.shape
    bd = jnp.einsum('pq,toc->tpoqc', eye, w_taps)          # (9, bb, Co, bb, Ci)
    return bd.reshape(t, bb * co, bb * ci)


def _mix_first_stack(w_taps, bb, row_blk):
    """(9, Co, Cp) -> (9*row_blk, bb*Cp): per-tap block-diag mixes, rows padded to
    row_blk (multiple of 8) so per-tap slices in the kernel are sublane-aligned."""
    bd = _blockdiag_taps(w_taps, bb)                       # (9, bb*Co, bb*Cp)
    t, rows, cols = bd.shape
    bd = jnp.pad(bd, ((0, 0), (0, row_blk - rows), (0, 0)))
    return bd.reshape(t * row_blk, cols)


def _tile_bias(b, bb):
    return jnp.tile(b, bb).reshape(bb * b.shape[0], 1).astype(jnp.float32)


def _pick_block(n, max_block=8):
    """Largest divisor of n that is <= max_block (samples per grid step)."""
    bb = 1
    for cand in range(1, min(n, max_block) + 1):
        if n % cand == 0:
            bb = cand
    return bb


# ----------------------------------- Pallas kernel ------------------------------------
def _unet_kernel(alpha_ref, x_ref,
                 g1, w1, b1, g2, w2, b2, g3, w3, b3,
                 g4, w4a, w4b, b4, g5, w5a, w5b, b5, o_ref):
    bf = jnp.bfloat16

    def norm_act(y, alpha):
        # two-pass InstanceNorm (per row = per (sample, channel)) + PReLU, all f32
        inv = 1.0 / y.shape[1]
        mean = jnp.sum(y, axis=1, keepdims=True) * inv
        yc = y - mean
        var = jnp.sum(yc * yc, axis=1, keepdims=True) * inv
        y = yc * lax.rsqrt(var + EPS)
        return jnp.where(y >= 0.0, y, alpha * y)

    def conv_gather_first(x_bf, gcat_ref, w_ref, b_ref):
        # x_bf: (B*Ci, HWi) bf16; gcat: (HWi, 9*HWo) bf16 0/1; w: (9, B*Co, B*Ci) bf16
        hw_out = gcat_ref.shape[1] // KS2
        # one tap-batched gather matmul; 0/1 selection => exact, so one bf16 cast is lossless
        gx = jnp.dot(x_bf, gcat_ref[...],
                     preferred_element_type=jnp.float32).astype(bf)   # (B*Ci, 9*HWo)
        acc = jnp.dot(w_ref[0], gx[:, 0:hw_out], preferred_element_type=jnp.float32)
        for t in range(1, KS2):                                        # chained acc +=
            acc += jnp.dot(w_ref[t], gx[:, t * hw_out:(t + 1) * hw_out],
                           preferred_element_type=jnp.float32)
        return acc + b_ref[...]

    def conv_mix_first(parts_bf, g_ref, w_refs, b_ref):
        # parts_bf[p]: (B*Cp, HWi) bf16 (split-K skip parts, concat never materialized)
        # w_refs[p]:  (9*R, B*Cp) bf16 stacked block-diag mixes; g_ref: (9, HWi, HWo)
        rows = b_ref.shape[0]                 # B*Co real rows
        r_blk = w_refs[0].shape[0] // KS2     # padded per-tap row block (multiple of 8)
        m_all = jnp.dot(w_refs[0][...], parts_bf[0], preferred_element_type=jnp.float32)
        for xp, w_ref in zip(parts_bf[1:], w_refs[1:]):
            m_all = m_all + jnp.dot(w_ref[...], xp, preferred_element_type=jnp.float32)
        m_bf = m_all.astype(bf)               # single cast of the mixed slab
        acc = jnp.dot(m_bf[0:rows, :], g_ref[0], preferred_element_type=jnp.float32)
        for t in range(1, KS2):
            acc += jnp.dot(m_bf[t * r_blk:t * r_blk + rows, :], g_ref[t],
                           preferred_element_type=jnp.float32)
        return acc + b_ref[...]

    # activations cast to bf16 exactly once each
    x_bf = x_ref[...].astype(bf)                                          # (B*Cin, HW)
    d1 = norm_act(conv_gather_first(x_bf, g1, w1, b1), alpha_ref[0])
    d1_bf = d1.astype(bf)
    d2 = norm_act(conv_gather_first(d1_bf, g2, w2, b2), alpha_ref[1])
    d2_bf = d2.astype(bf)
    bt = norm_act(conv_gather_first(d2_bf, g3, w3, b3), alpha_ref[2])
    bt_bf = bt.astype(bf)
    u2 = norm_act(conv_mix_first([d2_bf, bt_bf], g4, [w4a, w4b], b4), alpha_ref[3])
    u2_bf = u2.astype(bf)
    yo = conv_mix_first([d1_bf, u2_bf], g5, [w5a, w5b], b5)               # top: conv_only
    o_ref[...] = yo.astype(o_ref.dtype)                                   # lane-dense store


# ----------------------------------- forward wrapper ----------------------------------
def unet_forward(params, x, *, max_samples_per_block=8):
    n, c_in, h, w = x.shape
    assert h % 4 == 0 and w % 4 == 0, "spatial dims must be multiples of 2**len(strides)"

    c1 = params["down1_w"].shape[0]
    c2 = params["down2_w"].shape[0]
    c3 = params["bottom_w"].shape[0]
    c_out = params["up1_w"].shape[1]

    bb = _pick_block(n, max_samples_per_block)   # samples per grid step (sublane stacking)
    nb = n // bb

    # gather matrices are shape-only trace-time constants (numpy)
    g1_np, h1, w1d = _conv_gathers(h, w, 2, 1)
    g2_np, h2, w2d = _conv_gathers(h1, w1d, 2, 1)
    g3_np, h3, w3d = _conv_gathers(h2, w2d, 1, 1)
    g4_np, h4, w4d = _convT_gathers(h2, w2d, 2, 1, 1)
    g5_np, h5, w5d = _convT_gathers(h4, w4d, 2, 1, 1)
    assert (h3, w3d) == (h2, w2d) and (h4, w4d) == (h1, w1d) and (h5, w5d) == (h, w)
    for g in (g1_np, g2_np, g3_np, g4_np, g5_np):
        _check_selection(g)

    bf = jnp.bfloat16
    # down path (gather-first): taps batched along HW_out -> single gather matmul
    g1c = jnp.asarray(np.transpose(g1_np, (1, 0, 2)).reshape(h * w, KS2 * h1 * w1d), bf)
    g2c = jnp.asarray(np.transpose(g2_np, (1, 0, 2)).reshape(h1 * w1d, KS2 * h2 * w2d), bf)
    g3c = jnp.asarray(np.transpose(g3_np, (1, 0, 2)).reshape(h2 * w2d, KS2 * h2 * w2d), bf)
    # up path (mix-first): per-tap gather matrices
    g4 = jnp.asarray(g4_np, bf)
    g5 = jnp.asarray(g5_np, bf)

    # channel-mix weights: block-diagonal over the bb stacked samples (all-2D matmuls)
    w1 = _blockdiag_taps(_conv_w_taps(params["down1_w"]), bb).astype(bf)   # (9, bb*c1, bb*cin)
    w2 = _blockdiag_taps(_conv_w_taps(params["down2_w"]), bb).astype(bf)
    w3 = _blockdiag_taps(_conv_w_taps(params["bottom_w"]), bb).astype(bf)

    w4t = _convT_w_taps(params["up2_w"])            # (9, c1, c2+c3), split-K: [d2 | bottom]
    r4 = _round_up(bb * c1, 8)
    w4a = _mix_first_stack(w4t[:, :, :c2], bb, r4).astype(bf)              # (9*r4, bb*c2)
    w4b = _mix_first_stack(w4t[:, :, c2:], bb, r4).astype(bf)              # (9*r4, bb*c3)

    w5t = _convT_w_taps(params["up1_w"])            # (9, c_out, 2*c1), split-K: [d1 | up2]
    r5 = _round_up(bb * c_out, 8)
    w5a = _mix_first_stack(w5t[:, :, :c1], bb, r5).astype(bf)              # (9*r5, bb*c1)
    w5b = _mix_first_stack(w5t[:, :, c1:], bb, r5).astype(bf)

    b1 = _tile_bias(params["down1_b"], bb)
    b2 = _tile_bias(params["down2_b"], bb)
    b3 = _tile_bias(params["bottom_b"], bb)
    b4 = _tile_bias(params["up2_b"], bb)
    b5 = _tile_bias(params["up1_b"], bb)

    alphas = jnp.stack([params["down1_a"], params["down2_a"], params["bottom_a"],
                        params["up2_a"], params["up1_a"]]).astype(jnp.float32)

    hw = h * w
    # flattened NCHW == sample-major (bb*C, HW) sublane stacking -> free reshape
    x2 = x.reshape(nb, bb * c_in, hw)

    consts = [g1c, w1, b1, g2c, w2, b2, g3c, w3, b3,
              g4, w4a, w4b, b4, g5, w5a, w5b, b5]

    def full_spec(a):                                # whole array resident across grid
        nd = a.ndim
        return pl.BlockSpec(a.shape, lambda i: (0,) * nd)

    out = pl.pallas_call(
        _unet_kernel,
        out_shape=jax.ShapeDtypeStruct((nb, bb * c_out, hw), jnp.float32),
        grid=(nb,),                                  # one grid step per sample block
        in_specs=[pl.BlockSpec(memory_space=pltpu.MemorySpace.SMEM)]          # PReLU alphas
                 + [pl.BlockSpec((None, bb * c_in, hw), lambda i: (i, 0, 0))]  # x, per block
                 + [full_spec(c) for c in consts],
        out_specs=pl.BlockSpec((None, bb * c_out, hw), lambda i: (i, 0, 0)),   # lane-dense
        compiler_params=pltpu.CompilerParams(
            dimension_semantics=("parallel",),       # blocks independent -> 2 TCs on v7x
            vmem_limit_bytes=32 * 1024 * 1024),
    )(alphas, x2, *consts)

    return out.reshape(n, c_out, h, w)


# ----------------------------- parameters (same init as before) -----------------------
def init_unet_params(key, in_channels, out_channels, channels):
    c1, c2, c3 = channels
    ks = jax.random.split(key, 10)
    def w(k, co, ci): return 0.1 * jax.random.normal(k, (co, ci, 3, 3), jnp.float32)
    def b(k, co): return 0.05 * jax.random.normal(k, (co,), jnp.float32)
    return {
        "down1_w": w(ks[0], c1, in_channels), "down1_b": b(ks[1], c1), "down1_a": jnp.float32(0.25),
        "down2_w": w(ks[2], c2, c1),          "down2_b": b(ks[3], c2), "down2_a": jnp.float32(0.25),
        "bottom_w": w(ks[4], c3, c2),         "bottom_b": b(ks[5], c3), "bottom_a": jnp.float32(0.25),
        # transposed convs use PyTorch (C_in, C_out, KH, KW) layout
        "up2_w": 0.1 * jax.random.normal(ks[6], (c2 + c3, c1, 3, 3), jnp.float32),
        "up2_b": b(ks[7], c1), "up2_a": jnp.float32(0.25),
        "up1_w": 0.1 * jax.random.normal(ks[8], (2 * c1, out_channels, 3, 3), jnp.float32),
        "up1_b": b(ks[9], out_channels), "up1_a": jnp.float32(0.25),
    }


# ----------------------------- pure-JAX reference ------------------------------------
def _ref_forward(params, x):
    def norm(t):
        m = t.mean(axis=(2, 3), keepdims=True)
        v = ((t - m) ** 2).mean(axis=(2, 3), keepdims=True)
        return (t - m) * lax.rsqrt(v + EPS)

    def prelu(t, a):
        return jnp.where(t >= 0, t, a * t)

    def conv(t, w, b, s, p):
        y = lax.conv_general_dilated(t, w, (s, s), [(p, p), (p, p)],
                                     dimension_numbers=("NCHW", "OIHW", "NCHW"),
                                     precision=lax.Precision.HIGHEST)
        return y + b[None, :, None, None]

    def convT(t, w, b, s, p, op):
        kh = w.shape[2]
        w_c = jnp.transpose(w[:, :, ::-1, ::-1], (1, 0, 2, 3))
        pad = (kh - 1 - p, kh - 1 - p + op)
        y = lax.conv_general_dilated(t, w_c, (1, 1), [pad, pad], lhs_dilation=(s, s),
                                     dimension_numbers=("NCHW", "OIHW", "NCHW"),
                                     precision=lax.Precision.HIGHEST)
        return y + b[None, :, None, None]

    d1 = prelu(norm(conv(x, params["down1_w"], params["down1_b"], 2, 1)), params["down1_a"])
    d2 = prelu(norm(conv(d1, params["down2_w"], params["down2_b"], 2, 1)), params["down2_a"])
    bt = prelu(norm(conv(d2, params["bottom_w"], params["bottom_b"], 1, 1)), params["bottom_a"])
    s2 = jnp.concatenate([d2, bt], axis=1)
    u2 = prelu(norm(convT(s2, params["up2_w"], params["up2_b"], 2, 1, 1)), params["up2_a"])
    s1 = jnp.concatenate([d1, u2], axis=1)
    return convT(s1, params["up1_w"], params["up1_b"], 2, 1, 1)


# ----------------------------- main ----------------------------------------------------
if __name__ == "__main__":
    key = jax.random.PRNGKey(0)
    kx, kp = jax.random.split(key)

    N, C_IN, H, W = 2, 4, 16, 16
    C_OUT = 2
    CHANNELS = (8, 16, 32)

    x = jax.random.normal(kx, (N, C_IN, H, W), jnp.float32)
    params = init_unet_params(kp, in_channels=C_IN, out_channels=C_OUT, channels=CHANNELS)

    fwd = jax.jit(unet_forward)
    out = jax.block_until_ready(fwd(params, x))

    assert out.shape == (N, C_OUT, H, W), out.shape
    assert bool(jnp.all(jnp.isfinite(out)))

    ref = _ref_forward(params, x)
    np.testing.assert_allclose(np.asarray(out), np.asarray(ref), rtol=5e-2, atol=5e-2)

    print("KERNEL_OK")
</pallas_src>

<mosaic_0001>
module attributes {stable_mosaic.version = 11 : i64} {
  func.func @_unet_kernel(%arg0: i32, %arg1: memref<5xf32, #tpu.memory_space<smem>>, %arg2: memref<1x8x256xf32, #tpu.memory_space<vmem>>, %arg3: memref<256x576xbf16, #tpu.memory_space<vmem>>, %arg4: memref<9x16x8xbf16, #tpu.memory_space<vmem>>, %arg5: memref<16x1xf32, #tpu.memory_space<vmem>>, %arg6: memref<64x144xbf16, #tpu.memory_space<vmem>>, %arg7: memref<9x32x16xbf16, #tpu.memory_space<vmem>>, %arg8: memref<32x1xf32, #tpu.memory_space<vmem>>, %arg9: memref<16x144xbf16, #tpu.memory_space<vmem>>, %arg10: memref<9x64x32xbf16, #tpu.memory_space<vmem>>, %arg11: memref<64x1xf32, #tpu.memory_space<vmem>>, %arg12: memref<9x16x64xbf16, #tpu.memory_space<vmem>>, %arg13: memref<144x32xbf16, #tpu.memory_space<vmem>>, %arg14: memref<144x64xbf16, #tpu.memory_space<vmem>>, %arg15: memref<16x1xf32, #tpu.memory_space<vmem>>, %arg16: memref<9x64x256xbf16, #tpu.memory_space<vmem>>, %arg17: memref<72x16xbf16, #tpu.memory_space<vmem>>, %arg18: memref<72x16xbf16, #tpu.memory_space<vmem>>, %arg19: memref<4x1xf32, #tpu.memory_space<vmem>>, %arg20: memref<1x4x256xf32, #tpu.memory_space<vmem>>) attributes {dimension_semantics = [#tpu.dimension_semantics<parallel>], iteration_bounds = array<i64: 1>, scalar_prefetch = 0 : i64, scratch_operands = 0 : i64, tpu.core_type = #tpu.core_type<tc>, window_params = [{transform_indices = @transform_0, window_bounds = array<i64: 5>}, {transform_indices = @transform_1, window_bounds = array<i64: 1, 8, 256>}, {pipeline_mode = #tpu.pipeline_mode<synchronous>, transform_indices = @transform_2, window_bounds = array<i64: 256, 576>}, {pipeline_mode = #tpu.pipeline_mode<synchronous>, transform_indices = @transform_3, window_bounds = array<i64: 9, 16, 8>}, {pipeline_mode = #tpu.pipeline_mode<synchronous>, transform_indices = @transform_4, window_bounds = array<i64: 16, 1>}, {pipeline_mode = #tpu.pipeline_mode<synchronous>, transform_indices = @transform_5, window_bounds = array<i64: 64, 144>}, {pipeline_mode = #tpu.pipeline_mode<synchronous>, transform_indices = @transform_6, window_bounds = array<i64: 9, 32, 16>}, {pipeline_mode = #tpu.pipeline_mode<synchronous>, transform_indices = @transform_7, window_bounds = array<i64: 32, 1>}, {pipeline_mode = #tpu.pipeline_mode<synchronous>, transform_indices = @transform_8, window_bounds = array<i64: 16, 144>}, {pipeline_mode = #tpu.pipeline_mode<synchronous>, transform_indices = @transform_9, window_bounds = array<i64: 9, 64, 32>}, {pipeline_mode = #tpu.pipeline_mode<synchronous>, transform_indices = @transform_10, window_bounds = array<i64: 64, 1>}, {pipeline_mode = #tpu.pipeline_mode<synchronous>, transform_indices = @transform_11, window_bounds = array<i64: 9, 16, 64>}, {pipeline_mode = #tpu.pipeline_mode<synchronous>, transform_indices = @transform_12, window_bounds = array<i64: 144, 32>}, {pipeline_mode = #tpu.pipeline_mode<synchronous>, transform_indices = @transform_13, window_bounds = array<i64: 144, 64>}, {pipeline_mode = #tpu.pipeline_mode<synchronous>, transform_indices = @transform_14, window_bounds = array<i64: 16, 1>}, {pipeline_mode = #tpu.pipeline_mode<synchronous>, transform_indices = @transform_15, window_bounds = array<i64: 9, 64, 256>}, {pipeline_mode = #tpu.pipeline_mode<synchronous>, transform_indices = @transform_16, window_bounds = array<i64: 72, 16>}, {pipeline_mode = #tpu.pipeline_mode<synchronous>, transform_indices = @transform_17, window_bounds = array<i64: 72, 16>}, {pipeline_mode = #tpu.pipeline_mode<synchronous>, transform_indices = @transform_18, window_bounds = array<i64: 4, 1>}, {transform_indices = @transform_19, window_bounds = array<i64: 1, 4, 256>}]} {
    %c0 = arith.constant 0 : index
    %c0_0 = arith.constant 0 : index
    %c0_1 = arith.constant 0 : index
    %0 = vector.load %arg2[%c0, %c0_0, %c0_1] : memref<1x8x256xf32, #tpu.memory_space<vmem>>, vector<1x8x256xf32>
    %1 = vector.shape_cast %0 : vector<1x8x256xf32> to vector<8x256xf32>
    %2 = arith.truncf %1 : vector<8x256xf32> to vector<8x256xbf16>
    %c0_2 = arith.constant 0 : index
    %c0_3 = arith.constant 0 : index
    %3 = vector.load %arg3[%c0_2, %c0_3] : memref<256x576xbf16, #tpu.memory_space<vmem>>, vector<256x576xbf16>
    %cst = arith.constant dense<0.000000e+00> : vector<8x576xf32>
    %4 = tpu.matmul %2, %3, %cst {dimension_numbers = #tpu.dot_dimension_numbers<[1], [0], [0], [1], [0, 0, 1, 1], [], []>} : vector<8x256xbf16>, vector<256x576xbf16>, vector<8x576xf32> -> vector<8x576xf32>
    %5 = arith.truncf %4 : vector<8x576xf32> to vector<8x576xbf16>
    %c0_4 = arith.constant 0 : index
    %c0_5 = arith.constant 0 : index
    %c0_6 = arith.constant 0 : index
    %6 = vector.load %arg4[%c0_4, %c0_5, %c0_6] : memref<9x16x8xbf16, #tpu.memory_space<vmem>>, vector<1x16x8xbf16>
    %7 = vector.shape_cast %6 : vector<1x16x8xbf16> to vector<16x8xbf16>
    %8 = vector.extract_strided_slice %5 {offsets = [0, 0], sizes = [8, 64], strides = [1, 1]} : vector<8x576xbf16> to vector<8x64xbf16>
    %cst_7 = arith.constant dense<0.000000e+00> : vector<16x64xf32>
    %9 = tpu.matmul %7, %8, %cst_7 {dimension_numbers = #tpu.dot_dimension_numbers<[1], [0], [0], [1], [0, 0, 1, 1], [], []>} : vector<16x8xbf16>, vector<8x64xbf16>, vector<16x64xf32> -> vector<16x64xf32>
    %c1 = arith.constant 1 : index
    %c0_8 = arith.constant 0 : index
    %c0_9 = arith.constant 0 : index
    %10 = vector.load %arg4[%c1, %c0_8, %c0_9] : memref<9x16x8xbf16, #tpu.memory_space<vmem>>, vector<1x16x8xbf16>
    %11 = vector.shape_cast %10 : vector<1x16x8xbf16> to vector<16x8xbf16>
    %12 = vector.extract_strided_slice %5 {offsets = [0, 64], sizes = [8, 64], strides = [1, 1]} : vector<8x576xbf16> to vector<8x64xbf16>
    %cst_10 = arith.constant dense<0.000000e+00> : vector<16x64xf32>
    %13 = tpu.matmul %11, %12, %cst_10 {dimension_numbers = #tpu.dot_dimension_numbers<[1], [0], [0], [1], [0, 0, 1, 1], [], []>} : vector<16x8xbf16>, vector<8x64xbf16>, vector<16x64xf32> -> vector<16x64xf32>
    %14 = arith.addf %9, %13 : vector<16x64xf32>
    %c2 = arith.constant 2 : index
    %c0_11 = arith.constant 0 : index
    %c0_12 = arith.constant 0 : index
    %15 = vector.load %arg4[%c2, %c0_11, %c0_12] : memref<9x16x8xbf16, #tpu.memory_space<vmem>>, vector<1x16x8xbf16>
    %16 = vector.shape_cast %15 : vector<1x16x8xbf16> to vector<16x8xbf16>
    %17 = vector.extract_strided_slice %5 {offsets = [0, 128], sizes = [8, 64], strides = [1, 1]} : vector<8x576xbf16> to vector<8x64xbf16>
    %cst_13 = arith.constant dense<0.000000e+00> : vector<16x64xf32>
    %18 = tpu.matmul %16, %17, %cst_13 {dimension_numbers = #tpu.dot_dimension_numbers<[1], [0], [0], [1], [0, 0, 1, 1], [], []>} : vector<16x8xbf16>, vector<8x64xbf16>, vector<16x64xf32> -> vector<16x64xf32>
    %19 = arith.addf %14, %18 : vector<16x64xf32>
    %c3 = arith.constant 3 : index
    %c0_14 = arith.constant 0 : index
    %c0_15 = arith.constant 0 : index
    %20 = vector.load %arg4[%c3, %c0_14, %c0_15] : memref<9x16x8xbf16, #tpu.memory_space<vmem>>, vector<1x16x8xbf16>
    %21 = vector.shape_cast %20 : vector<1x16x8xbf16> to vector<16x8xbf16>
    %22 = vector.extract_strided_slice %5 {offsets = [0, 192], sizes = [8, 64], strides = [1, 1]} : vector<8x576xbf16> to vector<8x64xbf16>
    %cst_16 = arith.constant dense<0.000000e+00> : vector<16x64xf32>
    %23 = tpu.matmul %21, %22, %cst_16 {dimension_numbers = #tpu.dot_dimension_numbers<[1], [0], [0], [1], [0, 0, 1, 1], [], []>} : vector<16x8xbf16>, vector<8x64xbf16>, vector<16x64xf32> -> vector<16x64xf32>
    %24 = arith.addf %19, %23 : vector<16x64xf32>
    %c4 = arith.constant 4 : index
    %c0_17 = arith.constant 0 : index
    %c0_18 = arith.constant 0 : index
    %25 = vector.load %arg4[%c4, %c0_17, %c0_18] : memref<9x16x8xbf16, #tpu.memory_space<vmem>>, vector<1x16x8xbf16>
    %26 = vector.shape_cast %25 : vector<1x16x8xbf16> to vector<16x8xbf16>
    %27 = vector.extract_strided_slice %5 {offsets = [0, 256], sizes = [8, 64], strides = [1, 1]} : vector<8x576xbf16> to vector<8x64xbf16>
    %cst_19 = arith.constant dense<0.000000e+00> : vector<16x64xf32>
    %28 = tpu.matmul %26, %27, %cst_19 {dimension_numbers = #tpu.dot_dimension_numbers<[1], [0], [0], [1], [0, 0, 1, 1], [], []>} : vector<16x8xbf16>, vector<8x64xbf16>, vector<16x64xf32> -> vector<16x64xf32>
    %29 = arith.addf %24, %28 : vector<16x64xf32>
    %c5 = arith.constant 5 : index
    %c0_20 = arith.constant 0 : index
    %c0_21 = arith.constant 0 : index
    %30 = vector.load %arg4[%c5, %c0_20, %c0_21] : memref<9x16x8xbf16, #tpu.memory_space<vmem>>, vector<1x16x8xbf16>
    %31 = vector.shape_cast %30 : vector<1x16x8xbf16> to vector<16x8xbf16>
    %32 = vector.extract_strided_slice %5 {offsets = [0, 320], sizes = [8, 64], strides = [1, 1]} : vector<8x576xbf16> to vector<8x64xbf16>
    %cst_22 = arith.constant dense<0.000000e+00> : vector<16x64xf32>
    %33 = tpu.matmul %31, %32, %cst_22 {dimension_numbers = #tpu.dot_dimension_numbers<[1], [0], [0], [1], [0, 0, 1, 1], [], []>} : vector<16x8xbf16>, vector<8x64xbf16>, vector<16x64xf32> -> vector<16x64xf32>
    %34 = arith.addf %29, %33 : vector<16x64xf32>
    %c6 = arith.constant 6 : index
    %c0_23 = arith.constant 0 : index
    %c0_24 = arith.constant 0 : index
    %35 = vector.load %arg4[%c6, %c0_23, %c0_24] : memref<9x16x8xbf16, #tpu.memory_space<vmem>>, vector<1x16x8xbf16>
    %36 = vector.shape_cast %35 : vector<1x16x8xbf16> to vector<16x8xbf16>
    %37 = vector.extract_strided_slice %5 {offsets = [0, 384], sizes = [8, 64], strides = [1, 1]} : vector<8x576xbf16> to vector<8x64xbf16>
    %cst_25 = arith.constant dense<0.000000e+00> : vector<16x64xf32>
    %38 = tpu.matmul %36, %37, %cst_25 {dimension_numbers = #tpu.dot_dimension_numbers<[1], [0], [0], [1], [0, 0, 1, 1], [], []>} : vector<16x8xbf16>, vector<8x64xbf16>, vector<16x64xf32> -> vector<16x64xf32>
    %39 = arith.addf %34, %38 : vector<16x64xf32>
    %c7 = arith.constant 7 : index
    %c0_26 = arith.constant 0 : index
    %c0_27 = arith.constant 0 : index
    %40 = vector.load %arg4[%c7, %c0_26, %c0_27] : memref<9x16x8xbf16, #tpu.memory_space<vmem>>, vector<1x16x8xbf16>
    %41 = vector.shape_cast %40 : vector<1x16x8xbf16> to vector<16x8xbf16>
    %42 = vector.extract_strided_slice %5 {offsets = [0, 448], sizes = [8, 64], strides = [1, 1]} : vector<8x576xbf16> to vector<8x64xbf16>
    %cst_28 = arith.constant dense<0.000000e+00> : vector<16x64xf32>
    %43 = tpu.matmul %41, %42, %cst_28 {dimension_numbers = #tpu.dot_dimension_numbers<[1], [0], [0], [1], [0, 0, 1, 1], [], []>} : vector<16x8xbf16>, vector<8x64xbf16>, vector<16x64xf32> -> vector<16x64xf32>
    %44 = arith.addf %39, %43 : vector<16x64xf32>
    %c8 = arith.constant 8 : index
    %c0_29 = arith.constant 0 : index
    %c0_30 = arith.constant 0 : index
    %45 = vector.load %arg4[%c8, %c0_29, %c0_30] : memref<9x16x8xbf16, #tpu.memory_space<vmem>>, vector<1x16x8xbf16>
    %46 = vector.shape_cast %45 : vector<1x16x8xbf16> to vector<16x8xbf16>
    %47 = vector.extract_strided_slice %5 {offsets = [0, 512], sizes = [8, 64], strides = [1, 1]} : vector<8x576xbf16> to vector<8x64xbf16>
    %cst_31 = arith.constant dense<0.000000e+00> : vector<16x64xf32>
    %48 = tpu.matmul %46, %47, %cst_31 {dimension_numbers = #tpu.dot_dimension_numbers<[1], [0], [0], [1], [0, 0, 1, 1], [], []>} : vector<16x8xbf16>, vector<8x64xbf16>, vector<16x64xf32> -> vector<16x64xf32>
    %49 = arith.addf %44, %48 : vector<16x64xf32>
    %c0_32 = arith.constant 0 : index
    %c0_33 = arith.constant 0 : index
    %50 = vector.load %arg5[%c0_32, %c0_33] : memref<16x1xf32, #tpu.memory_space<vmem>>, vector<16x1xf32>
    %51 = vector.broadcast %50 : vector<16x1xf32> to vector<16x64xf32>
    %52 = arith.addf %49, %51 : vector<16x64xf32>
    %c0_34 = arith.constant 0 : index
    %53 = memref.load %arg1[%c0_34] : memref<5xf32, #tpu.memory_space<smem>>
    %cst_35 = arith.constant dense<0.000000e+00> : vector<16xf32>
    %54 = vector.multi_reduction <add>, %52, %cst_35 [1] : vector<16x64xf32> to vector<16xf32>
    %55 = vector.shape_cast %54 : vector<16xf32> to vector<16x1xf32>
    %cst_36 = arith.constant 1.562500e-02 : f32
    %56 = vector.broadcast %cst_36 : f32 to vector<16x1xf32>
    %57 = arith.mulf %55, %56 : vector<16x1xf32>
    %58 = vector.broadcast %57 : vector<16x1xf32> to vector<16x64xf32>
    %59 = arith.subf %52, %58 : vector<16x64xf32>
    %60 = arith.mulf %59, %59 : vector<16x64xf32>
    %cst_37 = arith.constant dense<0.000000e+00> : vector<16xf32>
    %61 = vector.multi_reduction <add>, %60, %cst_37 [1] : vector<16x64xf32> to vector<16xf32>
    %62 = vector.shape_cast %61 : vector<16xf32> to vector<16x1xf32>
    %cst_38 = arith.constant 1.562500e-02 : f32
    %63 = vector.broadcast %cst_38 : f32 to vector<16x1xf32>
    %64 = arith.mulf %62, %63 : vector<16x1xf32>
    %cst_39 = arith.constant 9.99999974E-6 : f32
    %65 = vector.broadcast %cst_39 : f32 to vector<16x1xf32>
    %66 = arith.addf %64, %65 : vector<16x1xf32>
    %67 = math.rsqrt %66 : vector<16x1xf32>
    %68 = vector.broadcast %67 : vector<16x1xf32> to vector<16x64xf32>
    %69 = arith.mulf %59, %68 : vector<16x64xf32>
    %cst_40 = arith.constant 0.000000e+00 : f32
    %70 = vector.broadcast %cst_40 : f32 to vector<16x64xf32>
    %71 = arith.cmpf oge, %69, %70 : vector<16x64xf32>
    %72 = vector.broadcast %53 : f32 to vector<16x64xf32>
    %73 = arith.mulf %72, %69 : vector<16x64xf32>
    %74 = arith.select %71, %69, %73 : vector<16x64xi1>, vector<16x64xf32>
    %75 = arith.truncf %74 : vector<16x64xf32> to vector<16x64xbf16>
    %c0_41 = arith.constant 0 : index
    %c0_42 = arith.constant 0 : index
    %76 = vector.load %arg6[%c0_41, %c0_42] : memref<64x144xbf16, #tpu.memory_space<vmem>>, vector<64x144xbf16>
    %cst_43 = arith.constant dense<0.000000e+00> : vector<16x144xf32>
    %77 = tpu.matmul %75, %76, %cst_43 {dimension_numbers = #tpu.dot_dimension_numbers<[1], [0], [0], [1], [0, 0, 1, 1], [], []>} : vector<16x64xbf16>, vector<64x144xbf16>, vector<16x144xf32> -> vector<16x144xf32>
    %78 = arith.truncf %77 : vector<16x144xf32> to vector<16x144xbf16>
    %c0_44 = arith.constant 0 : index
    %c0_45 = arith.constant 0 : index
    %c0_46 = arith.constant 0 : index
    %79 = vector.load %arg7[%c0_44, %c0_45, %c0_46] : memref<9x32x16xbf16, #tpu.memory_space<vmem>>, vector<1x32x16xbf16>
    %80 = vector.shape_cast %79 : vector<1x32x16xbf16> to vector<32x16xbf16>
    %81 = vector.extract_strided_slice %78 {offsets = [0, 0], sizes = [16, 16], strides = [1, 1]} : vector<16x144xbf16> to vector<16x16xbf16>
    %cst_47 = arith.constant dense<0.000000e+00> : vector<32x16xf32>
    %82 = tpu.matmul %80, %81, %cst_47 {dimension_numbers = #tpu.dot_dimension_numbers<[1], [0], [0], [1], [0, 0, 1, 1], [], []>} : vector<32x16xbf16>, vector<16x16xbf16>, vector<32x16xf32> -> vector<32x16xf32>
    %c1_48 = arith.constant 1 : index
    %c0_49 = arith.constant 0 : index
    %c0_50 = arith.constant 0 : index
    %83 = vector.load %arg7[%c1_48, %c0_49, %c0_50] : memref<9x32x16xbf16, #tpu.memory_space<vmem>>, vector<1x32x16xbf16>
    %84 = vector.shape_cast %83 : vector<1x32x16xbf16> to vector<32x16xbf16>
    %85 = vector.extract_strided_slice %78 {offsets = [0, 16], sizes = [16, 16], strides = [1, 1]} : vector<16x144xbf16> to vector<16x16xbf16>
    %cst_51 = arith.constant dense<0.000000e+00> : vector<32x16xf32>
    %86 = tpu.matmul %84, %85, %cst_51 {dimension_numbers = #tpu.dot_dimension_numbers<[1], [0], [0], [1], [0, 0, 1, 1], [], []>} : vector<32x16xbf16>, vector<16x16xbf16>, vector<32x16xf32> -> vector<32x16xf32>
    %87 = arith.addf %82, %86 : vector<32x16xf32>
    %c2_52 = arith.constant 2 : index
    %c0_53 = arith.constant 0 : index
    %c0_54 = arith.constant 0 : index
    %88 = vector.load %arg7[%c2_52, %c0_53, %c0_54] : memref<9x32x16xbf16, #tpu.memory_space<vmem>>, vector<1x32x16xbf16>
    %89 = vector.shape_cast %88 : vector<1x32x16xbf16> to vector<32x16xbf16>
    %90 = vector.extract_strided_slice %78 {offsets = [0, 32], sizes = [16, 16], strides = [1, 1]} : vector<16x144xbf16> to vector<16x16xbf16>
    %cst_55 = arith.constant dense<0.000000e+00> : vector<32x16xf32>
    %91 = tpu.matmul %89, %90, %cst_55 {dimension_numbers = #tpu.dot_dimension_numbers<[1], [0], [0], [1], [0, 0, 1, 1], [], []>} : vector<32x16xbf16>, vector<16x16xbf16>, vector<32x16xf32> -> vector<32x16xf32>
    %92 = arith.addf %87, %91 : vector<32x16xf32>
    %c3_56 = arith.constant 3 : index
    %c0_57 = arith.constant 0 : index
    %c0_58 = arith.constant 0 : index
    %93 = vector.load %arg7[%c3_56, %c0_57, %c0_58] : memref<9x32x16xbf16, #tpu.memory_space<vmem>>, vector<1x32x16xbf16>
    %94 = vector.shape_cast %93 : vector<1x32x16xbf16> to vector<32x16xbf16>
    %95 = vector.extract_strided_slice %78 {offsets = [0, 48], sizes = [16, 16], strides = [1, 1]} : vector<16x144xbf16> to vector<16x16xbf16>
    %cst_59 = arith.constant dense<0.000000e+00> : vector<32x16xf32>
    %96 = tpu.matmul %94, %95, %cst_59 {dimension_numbers = #tpu.dot_dimension_numbers<[1], [0], [0], [1], [0, 0, 1, 1], [], []>} : vector<32x16xbf16>, vector<16x16xbf16>, vector<32x16xf32> -> vector<32x16xf32>
    %97 = arith.addf %92, %96 : vector<32x16xf32>
    %c4_60 = arith.constant 4 : index
    %c0_61 = arith.constant 0 : index
    %c0_62 = arith.constant 0 : index
    %98 = vector.load %arg7[%c4_60, %c0_61, %c0_62] : memref<9x32x16xbf16, #tpu.memory_space<vmem>>, vector<1x32x16xbf16>
    %99 = vector.shape_cast %98 : vector<1x32x16xbf16> to vector<32x16xbf16>
    %100 = vector.extract_strided_slice %78 {offsets = [0, 64], sizes = [16, 16], strides = [1, 1]} : vector<16x144xbf16> to vector<16x16xbf16>
    %cst_63 = arith.constant dense<0.000000e+00> : vector<32x16xf32>
    %101 = tpu.matmul %99, %100, %cst_63 {dimension_numbers = #tpu.dot_dimension_numbers<[1], [0], [0], [1], [0, 0, 1, 1], [], []>} : vector<32x16xbf16>, vector<16x16xbf16>, vector<32x16xf32> -> vector<32x16xf32>
    %102 = arith.addf %97, %101 : vector<32x16xf32>
    %c5_64 = arith.constant 5 : index
    %c0_65 = arith.constant 0 : index
    %c0_66 = arith.constant 0 : index
    %103 = vector.load %arg7[%c5_64, %c0_65, %c0_66] : memref<9x32x16xbf16, #tpu.memory_space<vmem>>, vector<1x32x16xbf16>
    %104 = vector.shape_cast %103 : vector<1x32x16xbf16> to vector<32x16xbf16>
    %105 = vector.extract_strided_slice %78 {offsets = [0, 80], sizes = [16, 16], strides = [1, 1]} : vector<16x144xbf16> to vector<16x16xbf16>
    %cst_67 = arith.constant dense<0.000000e+00> : vector<32x16xf32>
    %106 = tpu.matmul %104, %105, %cst_67 {dimension_numbers = #tpu.dot_dimension_numbers<[1], [0], [0], [1], [0, 0, 1, 1], [], []>} : vector<32x16xbf16>, vector<16x16xbf16>, vector<32x16xf32> -> vector<32x16xf32>
    %107 = arith.addf %102, %106 : vector<32x16xf32>
    %c6_68 = arith.constant 6 : index
    %c0_69 = arith.constant 0 : index
    %c0_70 = arith.constant 0 : index
    %108 = vector.load %arg7[%c6_68, %c0_69, %c0_70] : memref<9x32x16xbf16, #tpu.memory_space<vmem>>, vector<1x32x16xbf16>
    %109 = vector.shape_cast %108 : vector<1x32x16xbf16> to vector<32x16xbf16>
    %110 = vector.extract_strided_slice %78 {offsets = [0, 96], sizes = [16, 16], strides = [1, 1]} : vector<16x144xbf16> to vector<16x16xbf16>
    %cst_71 = arith.constant dense<0.000000e+00> : vector<32x16xf32>
    %111 = tpu.matmul %109, %110, %cst_71 {dimension_numbers = #tpu.dot_dimension_numbers<[1], [0], [0], [1], [0, 0, 1, 1], [], []>} : vector<32x16xbf16>, vector<16x16xbf16>, vector<32x16xf32> -> vector<32x16xf32>
    %112 = arith.addf %107, %111 : vector<32x16xf32>
    %c7_72 = arith.constant 7 : index
    %c0_73 = arith.constant 0 : index
    %c0_74 = arith.constant 0 : index
    %113 = vector.load %arg7[%c7_72, %c0_73, %c0_74] : memref<9x32x16xbf16, #tpu.memory_space<vmem>>, vector<1x32x16xbf16>
    %114 = vector.shape_cast %113 : vector<1x32x16xbf16> to vector<32x16xbf16>
    %115 = vector.extract_strided_slice %78 {offsets = [0, 112], sizes = [16, 16], strides = [1, 1]} : vector<16x144xbf16> to vector<16x16xbf16>
    %cst_75 = arith.constant dense<0.000000e+00> : vector<32x16xf32>
    %116 = tpu.matmul %114, %115, %cst_75 {dimension_numbers = #tpu.dot_dimension_numbers<[1], [0], [0], [1], [0, 0, 1, 1], [], []>} : vector<32x16xbf16>, vector<16x16xbf16>, vector<32x16xf32> -> vector<32x16xf32>
    %117 = arith.addf %112, %116 : vector<32x16xf32>
    %c8_76 = arith.constant 8 : index
    %c0_77 = arith.constant 0 : index
    %c0_78 = arith.constant 0 : index
    %118 = vector.load %arg7[%c8_76, %c0_77, %c0_78] : memref<9x32x16xbf16, #tpu.memory_space<vmem>>, vector<1x32x16xbf16>
    %119 = vector.shape_cast %118 : vector<1x32x16xbf16> to vector<32x16xbf16>
    %120 = vector.extract_strided_slice %78 {offsets = [0, 128], sizes = [16, 16], strides = [1, 1]} : vector<16x144xbf16> to vector<16x16xbf16>
    %cst_79 = arith.constant dense<0.000000e+00> : vector<32x16xf32>
    %121 = tpu.matmul %119, %120, %cst_79 {dimension_numbers = #tpu.dot_dimension_numbers<[1], [0], [0], [1], [0, 0, 1, 1], [], []>} : vector<32x16xbf16>, vector<16x16xbf16>, vector<32x16xf32> -> vector<32x16xf32>
    %122 = arith.addf %117, %121 : vector<32x16xf32>
    %c0_80 = arith.constant 0 : index
    %c0_81 = arith.constant 0 : index
    %123 = vector.load %arg8[%c0_80, %c0_81] : memref<32x1xf32, #tpu.memory_space<vmem>>, vector<32x1xf32>
    %124 = vector.broadcast %123 : vector<32x1xf32> to vector<32x16xf32>
    %125 = arith.addf %122, %124 : vector<32x16xf32>
    %c1_82 = arith.constant 1 : index
    %126 = memref.load %arg1[%c1_82] : memref<5xf32, #tpu.memory_space<smem>>
    %cst_83 = arith.constant dense<0.000000e+00> : vector<32xf32>
    %127 = vector.multi_reduction <add>, %125, %cst_83 [1] : vector<32x16xf32> to vector<32xf32>
    %128 = vector.shape_cast %127 : vector<32xf32> to vector<32x1xf32>
    %cst_84 = arith.constant 6.250000e-02 : f32
    %129 = vector.broadcast %cst_84 : f32 to vector<32x1xf32>
    %130 = arith.mulf %128, %129 : vector<32x1xf32>
    %131 = vector.broadcast %130 : vector<32x1xf32> to vector<32x16xf32>
    %132 = arith.subf %125, %131 : vector<32x16xf32>
    %133 = arith.mulf %132, %132 : vector<32x16xf32>
    %cst_85 = arith.constant dense<0.000000e+00> : vector<32xf32>
    %134 = vector.multi_reduction <add>, %133, %cst_85 [1] : vector<32x16xf32> to vector<32xf32>
    %135 = vector.shape_cast %134 : vector<32xf32> to vector<32x1xf32>
    %cst_86 = arith.constant 6.250000e-02 : f32
    %136 = vector.broadcast %cst_86 : f32 to vector<32x1xf32>
    %137 = arith.mulf %135, %136 : vector<32x1xf32>
    %cst_87 = arith.constant 9.99999974E-6 : f32
    %138 = vector.broadcast %cst_87 : f32 to vector<32x1xf32>
    %139 = arith.addf %137, %138 : vector<32x1xf32>
    %140 = math.rsqrt %139 : vector<32x1xf32>
    %141 = vector.broadcast %140 : vector<32x1xf32> to vector<32x16xf32>
    %142 = arith.mulf %132, %141 : vector<32x16xf32>
    %cst_88 = arith.constant 0.000000e+00 : f32
    %143 = vector.broadcast %cst_88 : f32 to vector<32x16xf32>
    %144 = arith.cmpf oge, %142, %143 : vector<32x16xf32>
    %145 = vector.broadcast %126 : f32 to vector<32x16xf32>
    %146 = arith.mulf %145, %142 : vector<32x16xf32>
    %147 = arith.select %144, %142, %146 : vector<32x16xi1>, vector<32x16xf32>
    %148 = arith.truncf %147 : vector<32x16xf32> to vector<32x16xbf16>
    %c0_89 = arith.constant 0 : index
    %c0_90 = arith.constant 0 : index
    %149 = vector.load %arg9[%c0_89, %c0_90] : memref<16x144xbf16, #tpu.memory_space<vmem>>, vector<16x144xbf16>
    %cst_91 = arith.constant dense<0.000000e+00> : vector<32x144xf32>
    %150 = tpu.matmul %148, %149, %cst_91 {dimension_numbers = #tpu.dot_dimension_numbers<[1], [0], [0], [1], [0, 0, 1, 1], [], []>} : vector<32x16xbf16>, vector<16x144xbf16>, vector<32x144xf32> -> vector<32x144xf32>
    %151 = arith.truncf %150 : vector<32x144xf32> to vector<32x144xbf16>
    %c0_92 = arith.constant 0 : index
    %c0_93 = arith.constant 0 : index
    %c0_94 = arith.constant 0 : index
    %152 = vector.load %arg10[%c0_92, %c0_93, %c0_94] : memref<9x64x32xbf16, #tpu.memory_space<vmem>>, vector<1x64x32xbf16>
    %153 = vector.shape_cast %152 : vector<1x64x32xbf16> to vector<64x32xbf16>
    %154 = vector.extract_strided_slice %151 {offsets = [0, 0], sizes = [32, 16], strides = [1, 1]} : vector<32x144xbf16> to vector<32x16xbf16>
    %cst_95 = arith.constant dense<0.000000e+00> : vector<64x16xf32>
    %155 = tpu.matmul %153, %154, %cst_95 {dimension_numbers = #tpu.dot_dimension_numbers<[1], [0], [0], [1], [0, 0, 1, 1], [], []>} : vector<64x32xbf16>, vector<32x16xbf16>, vector<64x16xf32> -> vector<64x16xf32>
    %c1_96 = arith.constant 1 : index
    %c0_97 = arith.constant 0 : index
    %c0_98 = arith.constant 0 : index
    %156 = vector.load %arg10[%c1_96, %c0_97, %c0_98] : memref<9x64x32xbf16, #tpu.memory_space<vmem>>, vector<1x64x32xbf16>
    %157 = vector.shape_cast %156 : vector<1x64x32xbf16> to vector<64x32xbf16>
    %158 = vector.extract_strided_slice %151 {offsets = [0, 16], sizes = [32, 16], strides = [1, 1]} : vector<32x144xbf16> to vector<32x16xbf16>
    %cst_99 = arith.constant dense<0.000000e+00> : vector<64x16xf32>
    %159 = tpu.matmul %157, %158, %cst_99 {dimension_numbers = #tpu.dot_dimension_numbers<[1], [0], [0], [1], [0, 0, 1, 1], [], []>} : vector<64x32xbf16>, vector<32x16xbf16>, vector<64x16xf32> -> vector<64x16xf32>
    %160 = arith.addf %155, %159 : vector<64x16xf32>
    %c2_100 = arith.constant 2 : index
    %c0_101 = arith.constant 0 : index
    %c0_102 = arith.constant 0 : index
    %161 = vector.load %arg10[%c2_100, %c0_101, %c0_102] : memref<9x64x32xbf16, #tpu.memory_space<vmem>>, vector<1x64x32xbf16>
    %162 = vector.shape_cast %161 : vector<1x64x32xbf16> to vector<64x32xbf16>
    %163 = vector.extract_strided_slice %151 {offsets = [0, 32], sizes = [32, 16], strides = [1, 1]} : vector<32x144xbf16> to vector<32x16xbf16>
    %cst_103 = arith.constant dense<0.000000e+00> : vector<64x16xf32>
    %164 = tpu.matmul %162, %163, %cst_103 {dimension_numbers = #tpu.dot_dimension_numbers<[1], [0], [0], [1], [0, 0, 1, 1], [], []>} : vector<64x32xbf16>, vector<32x16xbf16>, vector<64x16xf32> -> vector<64x16xf32>
    %165 = arith.addf %160, %164 : vector<64x16xf32>
    %c3_104 = arith.constant 3 : index
    %c0_105 = arith.constant 0 : index
    %c0_106 = arith.constant 0 : index
    %166 = vector.load %arg10[%c3_104, %c0_105, %c0_106] : memref<9x64x32xbf16, #tpu.memory_space<vmem>>, vector<1x64x32xbf16>
    %167 = vector.shape_cast %166 : vector<1x64x32xbf16> to vector<64x32xbf16>
    %168 = vector.extract_strided_slice %151 {offsets = [0, 48], sizes = [32, 16], strides = [1, 1]} : vector<32x144xbf16> to vector<32x16xbf16>
    %cst_107 = arith.constant dense<0.000000e+00> : vector<64x16xf32>
    %169 = tpu.matmul %167, %168, %cst_107 {dimension_numbers = #tpu.dot_dimension_numbers<[1], [0], [0], [1], [0, 0, 1, 1], [], []>} : vector<64x32xbf16>, vector<32x16xbf16>, vector<64x16xf32> -> vector<64x16xf32>
    %170 = arith.addf %165, %169 : vector<64x16xf32>
    %c4_108 = arith.constant 4 : index
    %c0_109 = arith.constant 0 : index
    %c0_110 = arith.constant 0 : index
    %171 = vector.load %arg10[%c4_108, %c0_109, %c0_110] : memref<9x64x32xbf16, #tpu.memory_space<vmem>>, vector<1x64x32xbf16>
    %172 = vector.shape_cast %171 : vector<1x64x32xbf16> to vector<64x32xbf16>
    %173 = vector.extract_strided_slice %151 {offsets = [0, 64], sizes = [32, 16], strides = [1, 1]} : vector<32x144xbf16> to vector<32x16xbf16>
    %cst_111 = arith.constant dense<0.000000e+00> : vector<64x16xf32>
    %174 = tpu.matmul %172, %173, %cst_111 {dimension_numbers = #tpu.dot_dimension_numbers<[1], [0], [0], [1], [0, 0, 1, 1], [], []>} : vector<64x32xbf16>, vector<32x16xbf16>, vector<64x16xf32> -> vector<64x16xf32>
    %175 = arith.addf %170, %174 : vector<64x16xf32>
    %c5_112 = arith.constant 5 : index
    %c0_113 = arith.constant 0 : index
    %c0_114 = arith.constant 0 : index
    %176 = vector.load %arg10[%c5_112, %c0_113, %c0_114] : memref<9x64x32xbf16, #tpu.memory_space<vmem>>, vector<1x64x32xbf16>
    %177 = vector.shape_cast %176 : vector<1x64x32xbf16> to vector<64x32xbf16>
    %178 = vector.extract_strided_slice %151 {offsets = [0, 80], sizes = [32, 16], strides = [1, 1]} : vector<32x144xbf16> to vector<32x16xbf16>
    %cst_115 = arith.constant dense<0.000000e+00> : vector<64x16xf32>
    %179 = tpu.matmul %177, %178, %cst_115 {dimension_numbers = #tpu.dot_dimension_numbers<[1], [0], [0], [1], [0, 0, 1, 1], [], []>} : vector<64x32xbf16>, vector<32x16xbf16>, vector<64x16xf32> -> vector<64x16xf32>
    %180 = arith.addf %175, %179 : vector<64x16xf32>
    %c6_116 = arith.constant 6 : index
    %c0_117 = arith.constant 0 : index
    %c0_118 = arith.constant 0 : index
    %181 = vector.load %arg10[%c6_116, %c0_117, %c0_118] : memref<9x64x32xbf16, #tpu.memory_space<vmem>>, vector<1x64x32xbf16>
    %182 = vector.shape_cast %181 : vector<1x64x32xbf16> to vector<64x32xbf16>
    %183 = vector.extract_strided_slice %151 {offsets = [0, 96], sizes = [32, 16], strides = [1, 1]} : vector<32x144xbf16> to vector<32x16xbf16>
    %cst_119 = arith.constant dense<0.000000e+00> : vector<64x16xf32>
    %184 = tpu.matmul %182, %183, %cst_119 {dimension_numbers = #tpu.dot_dimension_numbers<[1], [0], [0], [1], [0, 0, 1, 1], [], []>} : vector<64x32xbf16>, vector<32x16xbf16>, vector<64x16xf32> -> vector<64x16xf32>
    %185 = arith.addf %180, %184 : vector<64x16xf32>
    %c7_120 = arith.constant 7 : index
    %c0_121 = arith.constant 0 : index
    %c0_122 = arith.constant 0 : index
    %186 = vector.load %arg10[%c7_120, %c0_121, %c0_122] : memref<9x64x32xbf16, #tpu.memory_space<vmem>>, vector<1x64x32xbf16>
    %187 = vector.shape_cast %186 : vector<1x64x32xbf16> to vector<64x32xbf16>
    %188 = vector.extract_strided_slice %151 {offsets = [0, 112], sizes = [32, 16], strides = [1, 1]} : vector<32x144xbf16> to vector<32x16xbf16>
    %cst_123 = arith.constant dense<0.000000e+00> : vector<64x16xf32>
    %189 = tpu.matmul %187, %188, %cst_123 {dimension_numbers = #tpu.dot_dimension_numbers<[1], [0], [0], [1], [0, 0, 1, 1], [], []>} : vector<64x32xbf16>, vector<32x16xbf16>, vector<64x16xf32> -> vector<64x16xf32>
    %190 = arith.addf %185, %189 : vector<64x16xf32>
    %c8_124 = arith.constant 8 : index
    %c0_125 = arith.constant 0 : index
    %c0_126 = arith.constant 0 : index
    %191 = vector.load %arg10[%c8_124, %c0_125, %c0_126] : memref<9x64x32xbf16, #tpu.memory_space<vmem>>, vector<1x64x32xbf16>
    %192 = vector.shape_cast %191 : vector<1x64x32xbf16> to vector<64x32xbf16>
    %193 = vector.extract_strided_slice %151 {offsets = [0, 128], sizes = [32, 16], strides = [1, 1]} : vector<32x144xbf16> to vector<32x16xbf16>
    %cst_127 = arith.constant dense<0.000000e+00> : vector<64x16xf32>
    %194 = tpu.matmul %192, %193, %cst_127 {dimension_numbers = #tpu.dot_dimension_numbers<[1], [0], [0], [1], [0, 0, 1, 1], [], []>} : vector<64x32xbf16>, vector<32x16xbf16>, vector<64x16xf32> -> vector<64x16xf32>
    %195 = arith.addf %190, %194 : vector<64x16xf32>
    %c0_128 = arith.constant 0 : index
    %c0_129 = arith.constant 0 : index
    %196 = vector.load %arg11[%c0_128, %c0_129] : memref<64x1xf32, #tpu.memory_space<vmem>>, vector<64x1xf32>
    %197 = vector.broadcast %196 : vector<64x1xf32> to vector<64x16xf32>
    %198 = arith.addf %195, %197 : vector<64x16xf32>
    %c2_130 = arith.constant 2 : index
    %199 = memref.load %arg1[%c2_130] : memref<5xf32, #tpu.memory_space<smem>>
    %cst_131 = arith.constant dense<0.000000e+00> : vector<64xf32>
    %200 = vector.multi_reduction <add>, %198, %cst_131 [1] : vector<64x16xf32> to vector<64xf32>
    %201 = vector.shape_cast %200 : vector<64xf32> to vector<64x1xf32>
    %cst_132 = arith.constant 6.250000e-02 : f32
    %202 = vector.broadcast %cst_132 : f32 to vector<64x1xf32>
    %203 = arith.mulf %201, %202 : vector<64x1xf32>
    %204 = vector.broadcast %203 : vector<64x1xf32> to vector<64x16xf32>
    %205 = arith.subf %198, %204 : vector<64x16xf32>
    %206 = arith.mulf %205, %205 : vector<64x16xf32>
    %cst_133 = arith.constant dense<0.000000e+00> : vector<64xf32>
    %207 = vector.multi_reduction <add>, %206, %cst_133 [1] : vector<64x16xf32> to vector<64xf32>
    %208 = vector.shape_cast %207 : vector<64xf32> to vector<64x1xf32>
    %cst_134 = arith.constant 6.250000e-02 : f32
    %209 = vector.broadcast %cst_134 : f32 to vector<64x1xf32>
    %210 = arith.mulf %208, %209 : vector<64x1xf32>
    %cst_135 = arith.constant 9.99999974E-6 : f32
    %211 = vector.broadcast %cst_135 : f32 to vector<64x1xf32>
    %212 = arith.addf %210, %211 : vector<64x1xf32>
    %213 = math.rsqrt %212 : vector<64x1xf32>
    %214 = vector.broadcast %213 : vector<64x1xf32> to vector<64x16xf32>
    %215 = arith.mulf %205, %214 : vector<64x16xf32>
    %cst_136 = arith.constant 0.000000e+00 : f32
    %216 = vector.broadcast %cst_136 : f32 to vector<64x16xf32>
    %217 = arith.cmpf oge, %215, %216 : vector<64x16xf32>
    %218 = vector.broadcast %199 : f32 to vector<64x16xf32>
    %219 = arith.mulf %218, %215 : vector<64x16xf32>
    %220 = arith.select %217, %215, %219 : vector<64x16xi1>, vector<64x16xf32>
    %221 = arith.truncf %220 : vector<64x16xf32> to vector<64x16xbf16>
    %c0_137 = arith.constant 0 : index
    %c0_138 = arith.constant 0 : index
    %222 = vector.load %arg13[%c0_137, %c0_138] : memref<144x32xbf16, #tpu.memory_space<vmem>>, vector<144x32xbf16>
    %cst_139 = arith.constant dense<0.000000e+00> : vector<144x16xf32>
    %223 = tpu.matmul %222, %148, %cst_139 {dimension_numbers = #tpu.dot_dimension_numbers<[1], [0], [0], [1], [0, 0, 1, 1], [], []>} : vector<144x32xbf16>, vector<32x16xbf16>, vector<144x16xf32> -> vector<144x16xf32>
    %c0_140 = arith.constant 0 : index
    %c0_141 = arith.constant 0 : index
    %224 = vector.load %arg14[%c0_140, %c0_141] : memref<144x64xbf16, #tpu.memory_space<vmem>>, vector<144x64xbf16>
    %cst_142 = arith.constant dense<0.000000e+00> : vector<144x16xf32>
    %225 = tpu.matmul %224, %221, %cst_142 {dimension_numbers = #tpu.dot_dimension_numbers<[1], [0], [0], [1], [0, 0, 1, 1], [], []>} : vector<144x64xbf16>, vector<64x16xbf16>, vector<144x16xf32> -> vector<144x16xf32>
    %226 = arith.addf %223, %225 : vector<144x16xf32>
    %227 = arith.truncf %226 : vector<144x16xf32> to vector<144x16xbf16>
    %228 = vector.extract_strided_slice %227 {offsets = [0, 0], sizes = [16, 16], strides = [1, 1]} : vector<144x16xbf16> to vector<16x16xbf16>
    %c0_143 = arith.constant 0 : index
    %c0_144 = arith.constant 0 : index
    %c0_145 = arith.constant 0 : index
    %229 = vector.load %arg12[%c0_143, %c0_144, %c0_145] : memref<9x16x64xbf16, #tpu.memory_space<vmem>>, vector<1x16x64xbf16>
    %230 = vector.shape_cast %229 : vector<1x16x64xbf16> to vector<16x64xbf16>
    %cst_146 = arith.constant dense<0.000000e+00> : vector<16x64xf32>
    %231 = tpu.matmul %228, %230, %cst_146 {dimension_numbers = #tpu.dot_dimension_numbers<[1], [0], [0], [1], [0, 0, 1, 1], [], []>} : vector<16x16xbf16>, vector<16x64xbf16>, vector<16x64xf32> -> vector<16x64xf32>
    %232 = vector.extract_strided_slice %227 {offsets = [16, 0], sizes = [16, 16], strides = [1, 1]} : vector<144x16xbf16> to vector<16x16xbf16>
    %c1_147 = arith.constant 1 : index
    %c0_148 = arith.constant 0 : index
    %c0_149 = arith.constant 0 : index
    %233 = vector.load %arg12[%c1_147, %c0_148, %c0_149] : memref<9x16x64xbf16, #tpu.memory_space<vmem>>, vector<1x16x64xbf16>
    %234 = vector.shape_cast %233 : vector<1x16x64xbf16> to vector<16x64xbf16>
    %cst_150 = arith.constant dense<0.000000e+00> : vector<16x64xf32>
    %235 = tpu.matmul %232, %234, %cst_150 {dimension_numbers = #tpu.dot_dimension_numbers<[1], [0], [0], [1], [0, 0, 1, 1], [], []>} : vector<16x16xbf16>, vector<16x64xbf16>, vector<16x64xf32> -> vector<16x64xf32>
    %236 = arith.addf %231, %235 : vector<16x64xf32>
    %237 = vector.extract_strided_slice %227 {offsets = [32, 0], sizes = [16, 16], strides = [1, 1]} : vector<144x16xbf16> to vector<16x16xbf16>
    %c2_151 = arith.constant 2 : index
    %c0_152 = arith.constant 0 : index
    %c0_153 = arith.constant 0 : index
    %238 = vector.load %arg12[%c2_151, %c0_152, %c0_153] : memref<9x16x64xbf16, #tpu.memory_space<vmem>>, vector<1x16x64xbf16>
    %239 = vector.shape_cast %238 : vector<1x16x64xbf16> to vector<16x64xbf16>
    %cst_154 = arith.constant dense<0.000000e+00> : vector<16x64xf32>
    %240 = tpu.matmul %237, %239, %cst_154 {dimension_numbers = #tpu.dot_dimension_numbers<[1], [0], [0], [1], [0, 0, 1, 1], [], []>} : vector<16x16xbf16>, vector<16x64xbf16>, vector<16x64xf32> -> vector<16x64xf32>
    %241 = arith.addf %236, %240 : vector<16x64xf32>
    %242 = vector.extract_strided_slice %227 {offsets = [48, 0], sizes = [16, 16], strides = [1, 1]} : vector<144x16xbf16> to vector<16x16xbf16>
    %c3_155 = arith.constant 3 : index
    %c0_156 = arith.constant 0 : index
    %c0_157 = arith.constant 0 : index
    %243 = vector.load %arg12[%c3_155, %c0_156, %c0_157] : memref<9x16x64xbf16, #tpu.memory_space<vmem>>, vector<1x16x64xbf16>
    %244 = vector.shape_cast %243 : vector<1x16x64xbf16> to vector<16x64xbf16>
    %cst_158 = arith.constant dense<0.000000e+00> : vector<16x64xf32>
    %245 = tpu.matmul %242, %244, %cst_158 {dimension_numbers = #tpu.dot_dimension_numbers<[1], [0], [0], [1], [0, 0, 1, 1], [], []>} : vector<16x16xbf16>, vector<16x64xbf16>, vector<16x64xf32> -> vector<16x64xf32>
    %246 = arith.addf %241, %245 : vector<16x64xf32>
    %247 = vector.extract_strided_slice %227 {offsets = [64, 0], sizes = [16, 16], strides = [1, 1]} : vector<144x16xbf16> to vector<16x16xbf16>
    %c4_159 = arith.constant 4 : index
    %c0_160 = arith.constant 0 : index
    %c0_161 = arith.constant 0 : index
    %248 = vector.load %arg12[%c4_159, %c0_160, %c0_161] : memref<9x16x64xbf16, #tpu.memory_space<vmem>>, vector<1x16x64xbf16>
    %249 = vector.shape_cast %248 : vector<1x16x64xbf16> to vector<16x64xbf16>
    %cst_162 = arith.constant dense<0.000000e+00> : vector<16x64xf32>
    %250 = tpu.matmul %247, %249, %cst_162 {dimension_numbers = #tpu.dot_dimension_numbers<[1], [0], [0], [1], [0, 0, 1, 1], [], []>} : vector<16x16xbf16>, vector<16x64xbf16>, vector<16x64xf32> -> vector<16x64xf32>
    %251 = arith.addf %246, %250 : vector<16x64xf32>
    %252 = vector.extract_strided_slice %227 {offsets = [80, 0], sizes = [16, 16], strides = [1, 1]} : vector<144x16xbf16> to vector<16x16xbf16>
    %c5_163 = arith.constant 5 : index
    %c0_164 = arith.constant 0 : index
    %c0_165 = arith.constant 0 : index
    %253 = vector.load %arg12[%c5_163, %c0_164, %c0_165] : memref<9x16x64xbf16, #tpu.memory_space<vmem>>, vector<1x16x64xbf16>
    %254 = vector.shape_cast %253 : vector<1x16x64xbf16> to vector<16x64xbf16>
    %cst_166 = arith.constant dense<0.000000e+00> : vector<16x64xf32>
    %255 = tpu.matmul %252, %254, %cst_166 {dimension_numbers = #tpu.dot_dimension_numbers<[1], [0], [0], [1], [0, 0, 1, 1], [], []>} : vector<16x16xbf16>, vector<16x64xbf16>, vector<16x64xf32> -> vector<16x64xf32>
    %256 = arith.addf %251, %255 : vector<16x64xf32>
    %257 = vector.extract_strided_slice %227 {offsets = [96, 0], sizes = [16, 16], strides = [1, 1]} : vector<144x16xbf16> to vector<16x16xbf16>
    %c6_167 = arith.constant 6 : index
    %c0_168 = arith.constant 0 : index
    %c0_169 = arith.constant 0 : index
    %258 = vector.load %arg12[%c6_167, %c0_168, %c0_169] : memref<9x16x64xbf16, #tpu.memory_space<vmem>>, vector<1x16x64xbf16>
    %259 = vector.shape_cast %258 : vector<1x16x64xbf16> to vector<16x64xbf16>
    %cst_170 = arith.constant dense<0.000000e+00> : vector<16x64xf32>
    %260 = tpu.matmul %257, %259, %cst_170 {dimension_numbers = #tpu.dot_dimension_numbers<[1], [0], [0], [1], [0, 0, 1, 1], [], []>} : vector<16x16xbf16>, vector<16x64xbf16>, vector<16x64xf32> -> vector<16x64xf32>
    %261 = arith.addf %256, %260 : vector<16x64xf32>
    %262 = vector.extract_strided_slice %227 {offsets = [112, 0], sizes = [16, 16], strides = [1, 1]} : vector<144x16xbf16> to vector<16x16xbf16>
    %c7_171 = arith.constant 7 : index
    %c0_172 = arith.constant 0 : index
    %c0_173 = arith.constant 0 : index
    %263 = vector.load %arg12[%c7_171, %c0_172, %c0_173] : memref<9x16x64xbf16, #tpu.memory_space<vmem>>, vector<1x16x64xbf16>
    %264 = vector.shape_cast %263 : vector<1x16x64xbf16> to vector<16x64xbf16>
    %cst_174 = arith.constant dense<0.000000e+00> : vector<16x64xf32>
    %265 = tpu.matmul %262, %264, %cst_174 {dimension_numbers = #tpu.dot_dimension_numbers<[1], [0], [0], [1], [0, 0, 1, 1], [], []>} : vector<16x16xbf16>, vector<16x64xbf16>, vector<16x64xf32> -> vector<16x64xf32>
    %266 = arith.addf %261, %265 : vector<16x64xf32>
    %267 = vector.extract_strided_slice %227 {offsets = [128, 0], sizes = [16, 16], strides = [1, 1]} : vector<144x16xbf16> to vector<16x16xbf16>
    %c8_175 = arith.constant 8 : index
    %c0_176 = arith.constant 0 : index
    %c0_177 = arith.constant 0 : index
    %268 = vector.load %arg12[%c8_175, %c0_176, %c0_177] : memref<9x16x64xbf16, #tpu.memory_space<vmem>>, vector<1x16x64xbf16>
    %269 = vector.shape_cast %268 : vector<1x16x64xbf16> to vector<16x64xbf16>
    %cst_178 = arith.constant dense<0.000000e+00> : vector<16x64xf32>
    %270 = tpu.matmul %267, %269, %cst_178 {dimension_numbers = #tpu.dot_dimension_numbers<[1], [0], [0], [1], [0, 0, 1, 1], [], []>} : vector<16x16xbf16>, vector<16x64xbf16>, vector<16x64xf32> -> vector<16x64xf32>
    %271 = arith.addf %266, %270 : vector<16x64xf32>
    %c0_179 = arith.constant 0 : index
    %c0_180 = arith.constant 0 : index
    %272 = vector.load %arg15[%c0_179, %c0_180] : memref<16x1xf32, #tpu.memory_space<vmem>>, vector<16x1xf32>
    %273 = vector.broadcast %272 : vector<16x1xf32> to vector<16x64xf32>
    %274 = arith.addf %271, %273 : vector<16x64xf32>
    %c3_181 = arith.constant 3 : index
    %275 = memref.load %arg1[%c3_181] : memref<5xf32, #tpu.memory_space<smem>>
    %cst_182 = arith.constant dense<0.000000e+00> : vector<16xf32>
    %276 = vector.multi_reduction <add>, %274, %cst_182 [1] : vector<16x64xf32> to vector<16xf32>
    %277 = vector.shape_cast %276 : vector<16xf32> to vector<16x1xf32>
    %cst_183 = arith.constant 1.562500e-02 : f32
    %278 = vector.broadcast %cst_183 : f32 to vector<16x1xf32>
    %279 = arith.mulf %277, %278 : vector<16x1xf32>
    %280 = vector.broadcast %279 : vector<16x1xf32> to vector<16x64xf32>
    %281 = arith.subf %274, %280 : vector<16x64xf32>
    %282 = arith.mulf %281, %281 : vector<16x64xf32>
    %cst_184 = arith.constant dense<0.000000e+00> : vector<16xf32>
    %283 = vector.multi_reduction <add>, %282, %cst_184 [1] : vector<16x64xf32> to vector<16xf32>
    %284 = vector.shape_cast %283 : vector<16xf32> to vector<16x1xf32>
    %cst_185 = arith.constant 1.562500e-02 : f32
    %285 = vector.broadcast %cst_185 : f32 to vector<16x1xf32>
    %286 = arith.mulf %284, %285 : vector<16x1xf32>
    %cst_186 = arith.constant 9.99999974E-6 : f32
    %287 = vector.broadcast %cst_186 : f32 to vector<16x1xf32>
    %288 = arith.addf %286, %287 : vector<16x1xf32>
    %289 = math.rsqrt %288 : vector<16x1xf32>
    %290 = vector.broadcast %289 : vector<16x1xf32> to vector<16x64xf32>
    %291 = arith.mulf %281, %290 : vector<16x64xf32>
    %cst_187 = arith.constant 0.000000e+00 : f32
    %292 = vector.broadcast %cst_187 : f32 to vector<16x64xf32>
    %293 = arith.cmpf oge, %291, %292 : vector<16x64xf32>
    %294 = vector.broadcast %275 : f32 to vector<16x64xf32>
    %295 = arith.mulf %294, %291 : vector<16x64xf32>
    %296 = arith.select %293, %291, %295 : vector<16x64xi1>, vector<16x64xf32>
    %297 = arith.truncf %296 : vector<16x64xf32> to vector<16x64xbf16>
    %c0_188 = arith.constant 0 : index
    %c0_189 = arith.constant 0 : index
    %298 = vector.load %arg17[%c0_188, %c0_189] : memref<72x16xbf16, #tpu.memory_space<vmem>>, vector<72x16xbf16>
    %cst_190 = arith.constant dense<0.000000e+00> : vector<72x64xf32>
    %299 = tpu.matmul %298, %75, %cst_190 {dimension_numbers = #tpu.dot_dimension_numbers<[1], [0], [0], [1], [0, 0, 1, 1], [], []>} : vector<72x16xbf16>, vector<16x64xbf16>, vector<72x64xf32> -> vector<72x64xf32>
    %c0_191 = arith.constant 0 : index
    %c0_192 = arith.constant 0 : index
    %300 = vector.load %arg18[%c0_191, %c0_192] : memref<72x16xbf16, #tpu.memory_space<vmem>>, vector<72x16xbf16>
    %cst_193 = arith.constant dense<0.000000e+00> : vector<72x64xf32>
    %301 = tpu.matmul %300, %297, %cst_193 {dimension_numbers = #tpu.dot_dimension_numbers<[1], [0], [0], [1], [0, 0, 1, 1], [], []>} : vector<72x16xbf16>, vector<16x64xbf16>, vector<72x64xf32> -> vector<72x64xf32>
    %302 = arith.addf %299, %301 : vector<72x64xf32>
    %303 = arith.truncf %302 : vector<72x64xf32> to vector<72x64xbf16>
    %304 = vector.extract_strided_slice %303 {offsets = [0, 0], sizes = [4, 64], strides = [1, 1]} : vector<72x64xbf16> to vector<4x64xbf16>
    %c0_194 = arith.constant 0 : index
    %c0_195 = arith.constant 0 : index
    %c0_196 = arith.constant 0 : index
    %305 = vector.load %arg16[%c0_194, %c0_195, %c0_196] : memref<9x64x256xbf16, #tpu.memory_space<vmem>>, vector<1x64x256xbf16>
    %306 = vector.shape_cast %305 : vector<1x64x256xbf16> to vector<64x256xbf16>
    %cst_197 = arith.constant dense<0.000000e+00> : vector<4x256xf32>
    %307 = tpu.matmul %304, %306, %cst_197 {dimension_numbers = #tpu.dot_dimension_numbers<[1], [0], [0], [1], [0, 0, 1, 1], [], []>} : vector<4x64xbf16>, vector<64x256xbf16>, vector<4x256xf32> -> vector<4x256xf32>
    %308 = vector.extract_strided_slice %303 {offsets = [8, 0], sizes = [4, 64], strides = [1, 1]} : vector<72x64xbf16> to vector<4x64xbf16>
    %c1_198 = arith.constant 1 : index
    %c0_199 = arith.constant 0 : index
    %c0_200 = arith.constant 0 : index
    %309 = vector.load %arg16[%c1_198, %c0_199, %c0_200] : memref<9x64x256xbf16, #tpu.memory_space<vmem>>, vector<1x64x256xbf16>
    %310 = vector.shape_cast %309 : vector<1x64x256xbf16> to vector<64x256xbf16>
    %cst_201 = arith.constant dense<0.000000e+00> : vector<4x256xf32>
    %311 = tpu.matmul %308, %310, %cst_201 {dimension_numbers = #tpu.dot_dimension_numbers<[1], [0], [0], [1], [0, 0, 1, 1], [], []>} : vector<4x64xbf16>, vector<64x256xbf16>, vector<4x256xf32> -> vector<4x256xf32>
    %312 = arith.addf %307, %311 : vector<4x256xf32>
    %313 = vector.extract_strided_slice %303 {offsets = [16, 0], sizes = [4, 64], strides = [1, 1]} : vector<72x64xbf16> to vector<4x64xbf16>
    %c2_202 = arith.constant 2 : index
    %c0_203 = arith.constant 0 : index
    %c0_204 = arith.constant 0 : index
    %314 = vector.load %arg16[%c2_202, %c0_203, %c0_204] : memref<9x64x256xbf16, #tpu.memory_space<vmem>>, vector<1x64x256xbf16>
    %315 = vector.shape_cast %314 : vector<1x64x256xbf16> to vector<64x256xbf16>
    %cst_205 = arith.constant dense<0.000000e+00> : vector<4x256xf32>
    %316 = tpu.matmul %313, %315, %cst_205 {dimension_numbers = #tpu.dot_dimension_numbers<[1], [0], [0], [1], [0, 0, 1, 1], [], []>} : vector<4x64xbf16>, vector<64x256xbf16>, vector<4x256xf32> -> vector<4x256xf32>
    %317 = arith.addf %312, %316 : vector<4x256xf32>
    %318 = vector.extract_strided_slice %303 {offsets = [24, 0], sizes = [4, 64], strides = [1, 1]} : vector<72x64xbf16> to vector<4x64xbf16>
    %c3_206 = arith.constant 3 : index
    %c0_207 = arith.constant 0 : index
    %c0_208 = arith.constant 0 : index
    %319 = vector.load %arg16[%c3_206, %c0_207, %c0_208] : memref<9x64x256xbf16, #tpu.memory_space<vmem>>, vector<1x64x256xbf16>
    %320 = vector.shape_cast %319 : vector<1x64x256xbf16> to vector<64x256xbf16>
    %cst_209 = arith.constant dense<0.000000e+00> : vector<4x256xf32>
    %321 = tpu.matmul %318, %320, %cst_209 {dimension_numbers = #tpu.dot_dimension_numbers<[1], [0], [0], [1], [0, 0, 1, 1], [], []>} : vector<4x64xbf16>, vector<64x256xbf16>, vector<4x256xf32> -> vector<4x256xf32>
    %322 = arith.addf %317, %321 : vector<4x256xf32>
    %323 = vector.extract_strided_slice %303 {offsets = [32, 0], sizes = [4, 64], strides = [1, 1]} : vector<72x64xbf16> to vector<4x64xbf16>
    %c4_210 = arith.constant 4 : index
    %c0_211 = arith.constant 0 : index
    %c0_212 = arith.constant 0 : index
    %324 = vector.load %arg16[%c4_210, %c0_211, %c0_212] : memref<9x64x256xbf16, #tpu.memory_space<vmem>>, vector<1x64x256xbf16>
    %325 = vector.shape_cast %324 : vector<1x64x256xbf16> to vector<64x256xbf16>
    %cst_213 = arith.constant dense<0.000000e+00> : vector<4x256xf32>
    %326 = tpu.matmul %323, %325, %cst_213 {dimension_numbers = #tpu.dot_dimension_numbers<[1], [0], [0], [1], [0, 0, 1, 1], [], []>} : vector<4x64xbf16>, vector<64x256xbf16>, vector<4x256xf32> -> vector<4x256xf32>
    %327 = arith.addf %322, %326 : vector<4x256xf32>
    %328 = vector.extract_strided_slice %303 {offsets = [40, 0], sizes = [4, 64], strides = [1, 1]} : vector<72x64xbf16> to vector<4x64xbf16>
    %c5_214 = arith.constant 5 : index
    %c0_215 = arith.constant 0 : index
    %c0_216 = arith.constant 0 : index
    %329 = vector.load %arg16[%c5_214, %c0_215, %c0_216] : memref<9x64x256xbf16, #tpu.memory_space<vmem>>, vector<1x64x256xbf16>
    %330 = vector.shape_cast %329 : vector<1x64x256xbf16> to vector<64x256xbf16>
    %cst_217 = arith.constant dense<0.000000e+00> : vector<4x256xf32>
    %331 = tpu.matmul %328, %330, %cst_217 {dimension_numbers = #tpu.dot_dimension_numbers<[1], [0], [0], [1], [0, 0, 1, 1], [], []>} : vector<4x64xbf16>, vector<64x256xbf16>, vector<4x256xf32> -> vector<4x256xf32>
    %332 = arith.addf %327, %331 : vector<4x256xf32>
    %333 = vector.extract_strided_slice %303 {offsets = [48, 0], sizes = [4, 64], strides = [1, 1]} : vector<72x64xbf16> to vector<4x64xbf16>
    %c6_218 = arith.constant 6 : index
    %c0_219 = arith.constant 0 : index
    %c0_220 = arith.constant 0 : index
    %334 = vector.load %arg16[%c6_218, %c0_219, %c0_220] : memref<9x64x256xbf16, #tpu.memory_space<vmem>>, vector<1x64x256xbf16>
    %335 = vector.shape_cast %334 : vector<1x64x256xbf16> to vector<64x256xbf16>
    %cst_221 = arith.constant dense<0.000000e+00> : vector<4x256xf32>
    %336 = tpu.matmul %333, %335, %cst_221 {dimension_numbers = #tpu.dot_dimension_numbers<[1], [0], [0], [1], [0, 0, 1, 1], [], []>} : vector<4x64xbf16>, vector<64x256xbf16>, vector<4x256xf32> -> vector<4x256xf32>
    %337 = arith.addf %332, %336 : vector<4x256xf32>
    %338 = vector.extract_strided_slice %303 {offsets = [56, 0], sizes = [4, 64], strides = [1, 1]} : vector<72x64xbf16> to vector<4x64xbf16>
    %c7_222 = arith.constant 7 : index
    %c0_223 = arith.constant 0 : index
    %c0_224 = arith.constant 0 : index
    %339 = vector.load %arg16[%c7_222, %c0_223, %c0_224] : memref<9x64x256xbf16, #tpu.memory_space<vmem>>, vector<1x64x256xbf16>
    %340 = vector.shape_cast %339 : vector<1x64x256xbf16> to vector<64x256xbf16>
    %cst_225 = arith.constant dense<0.000000e+00> : vector<4x256xf32>
    %341 = tpu.matmul %338, %340, %cst_225 {dimension_numbers = #tpu.dot_dimension_numbers<[1], [0], [0], [1], [0, 0, 1, 1], [], []>} : vector<4x64xbf16>, vector<64x256xbf16>, vector<4x256xf32> -> vector<4x256xf32>
    %342 = arith.addf %337, %341 : vector<4x256xf32>
    %343 = vector.extract_strided_slice %303 {offsets = [64, 0], sizes = [4, 64], strides = [1, 1]} : vector<72x64xbf16> to vector<4x64xbf16>
    %c8_226 = arith.constant 8 : index
    %c0_227 = arith.constant 0 : index
    %c0_228 = arith.constant 0 : index
    %344 = vector.load %arg16[%c8_226, %c0_227, %c0_228] : memref<9x64x256xbf16, #tpu.memory_space<vmem>>, vector<1x64x256xbf16>
    %345 = vector.shape_cast %344 : vector<1x64x256xbf16> to vector<64x256xbf16>
    %cst_229 = arith.constant dense<0.000000e+00> : vector<4x256xf32>
    %346 = tpu.matmul %343, %345, %cst_229 {dimension_numbers = #tpu.dot_dimension_numbers<[1], [0], [0], [1], [0, 0, 1, 1], [], []>} : vector<4x64xbf16>, vector<64x256xbf16>, vector<4x256xf32> -> vector<4x256xf32>
    %347 = arith.addf %342, %346 : vector<4x256xf32>
    %c0_230 = arith.constant 0 : index
    %c0_231 = arith.constant 0 : index
    %348 = vector.load %arg19[%c0_230, %c0_231] : memref<4x1xf32, #tpu.memory_space<vmem>>, vector<4x1xf32>
    %349 = vector.broadcast %348 : vector<4x1xf32> to vector<4x256xf32>
    %350 = arith.addf %347, %349 : vector<4x256xf32>
    %c0_232 = arith.constant 0 : index
    %c0_233 = arith.constant 0 : index
    %c0_234 = arith.constant 0 : index
    %351 = vector.load %arg20[%c0_232, %c0_233, %c0_234] : memref<1x4x256xf32, #tpu.memory_space<vmem>>, vector<1x4x256xf32>
    %352 = vector.shape_cast %351 : vector<1x4x256xf32> to vector<4x256xf32>
    %353 = vector.shape_cast %350 : vector<4x256xf32> to vector<1x4x256xf32>
    tpu.vector_store %arg20[%c0_232, %c0_233, %c0_234], %353 {strides = array<i32>} : memref<1x4x256xf32, #tpu.memory_space<vmem>>, vector<1x4x256xf32>,
    return
  }
  func.func @transform_0(%arg0: i32) -> i32 {
    %c0_i32 = arith.constant 0 : i32
    %c0_i32_0 = arith.constant 0 : i32
    return %c0_i32 : i32
  }
  func.func @transform_1(%arg0: i32) -> (i32, i32, i32) {
    %c0_i32 = arith.constant 0 : i32
    %c0_i32_0 = arith.constant 0 : i32
    %c0_i32_1 = arith.constant 0 : i32
    return %arg0, %c0_i32, %c0_i32_0 : i32, i32, i32
  }
  func.func @transform_2(%arg0: i32) -> (i32, i32) {
    %c0_i32 = arith.constant 0 : i32
    %c0_i32_0 = arith.constant 0 : i32
    %c0_i32_1 = arith.constant 0 : i32
    return %c0_i32, %c0_i32_0 : i32, i32
  }
  func.func @transform_3(%arg0: i32) -> (i32, i32, i32) {
    %c0_i32 = arith.constant 0 : i32
    %c0_i32_0 = arith.constant 0 : i32
    %c0_i32_1 = arith.constant 0 : i32
    %c0_i32_2 = arith.constant 0 : i32
    return %c0_i32, %c0_i32_0, %c0_i32_1 : i32, i32, i32
  }
  func.func @transform_4(%arg0: i32) -> (i32, i32) {
    %c0_i32 = arith.constant 0 : i32
    %c0_i32_0 = arith.constant 0 : i32
    %c0_i32_1 = arith.constant 0 : i32
    return %c0_i32, %c0_i32_0 : i32, i32
  }
  func.func @transform_5(%arg0: i32) -> (i32, i32) {
    %c0_i32 = arith.constant 0 : i32
    %c0_i32_0 = arith.constant 0 : i32
    %c0_i32_1 = arith.constant 0 : i32
    return %c0_i32, %c0_i32_0 : i32, i32
  }
  func.func @transform_6(%arg0: i32) -> (i32, i32, i32) {
    %c0_i32 = arith.constant 0 : i32
    %c0_i32_0 = arith.constant 0 : i32
    %c0_i32_1 = arith.constant 0 : i32
    %c0_i32_2 = arith.constant 0 : i32
    return %c0_i32, %c0_i32_0, %c0_i32_1 : i32, i32, i32
  }
  func.func @transform_7(%arg0: i32) -> (i32, i32) {
    %c0_i32 = arith.constant 0 : i32
    %c0_i32_0 = arith.constant 0 : i32
    %c0_i32_1 = arith.constant 0 : i32
    return %c0_i32, %c0_i32_0 : i32, i32
  }
  func.func @transform_8(%arg0: i32) -> (i32, i32) {
    %c0_i32 = arith.constant 0 : i32
    %c0_i32_0 = arith.constant 0 : i32
    %c0_i32_1 = arith.constant 0 : i32
    return %c0_i32, %c0_i32_0 : i32, i32
  }
  func.func @transform_9(%arg0: i32) -> (i32, i32, i32) {
    %c0_i32 = arith.constant 0 : i32
    %c0_i32_0 = arith.constant 0 : i32
    %c0_i32_1 = arith.constant 0 : i32
    %c0_i32_2 = arith.constant 0 : i32
    return %c0_i32, %c0_i32_0, %c0_i32_1 : i32, i32, i32
  }
  func.func @transform_10(%arg0: i32) -> (i32, i32) {
    %c0_i32 = arith.constant 0 : i32
    %c0_i32_0 = arith.constant 0 : i32
    %c0_i32_1 = arith.constant 0 : i32
    return %c0_i32, %c0_i32_0 : i32, i32
  }
  func.func @transform_11(%arg0: i32) -> (i32, i32, i32) {
    %c0_i32 = arith.constant 0 : i32
    %c0_i32_0 = arith.constant 0 : i32
    %c0_i32_1 = arith.constant 0 : i32
    %c0_i32_2 = arith.constant 0 : i32
    return %c0_i32, %c0_i32_0, %c0_i32_1 : i32, i32, i32
  }
  func.func @transform_12(%arg0: i32) -> (i32, i32) {
    %c0_i32 = arith.constant 0 : i32
    %c0_i32_0 = arith.constant 0 : i32
    %c0_i32_1 = arith.constant 0 : i32
    return %c0_i32, %c0_i32_0 : i32, i32
  }
  func.func @transform_13(%arg0: i32) -> (i32, i32) {
    %c0_i32 = arith.constant 0 : i32
    %c0_i32_0 = arith.constant 0 : i32
    %c0_i32_1 = arith.constant 0 : i32
    return %c0_i32, %c0_i32_0 : i32, i32
  }
  func.func @transform_14(%arg0: i32) -> (i32, i32) {
    %c0_i32 = arith.constant 0 : i32
    %c0_i32_0 = arith.constant 0 : i32
    %c0_i32_1 = arith.constant 0 : i32
    return %c0_i32, %c0_i32_0 : i32, i32
  }
  func.func @transform_15(%arg0: i32) -> (i32, i32, i32) {
    %c0_i32 = arith.constant 0 : i32
    %c0_i32_0 = arith.constant 0 : i32
    %c0_i32_1 = arith.constant 0 : i32
    %c0_i32_2 = arith.constant 0 : i32
    return %c0_i32, %c0_i32_0, %c0_i32_1 : i32, i32, i32
  }
  func.func @transform_16(%arg0: i32) -> (i32, i32) {
    %c0_i32 = arith.constant 0 : i32
    %c0_i32_0 = arith.constant 0 : i32
    %c0_i32_1 = arith.constant 0 : i32
    return %c0_i32, %c0_i32_0 : i32, i32
  }
  func.func @transform_17(%arg0: i32) -> (i32, i32) {
    %c0_i32 = arith.constant 0 : i32
    %c0_i32_0 = arith.constant 0 : i32
    %c0_i32_1 = arith.constant 0 : i32
    return %c0_i32, %c0_i32_0 : i32, i32
  }
  func.func @transform_18(%arg0: i32) -> (i32, i32) {
    %c0_i32 = arith.constant 0 : i32
    %c0_i32_0 = arith.constant 0 : i32
    %c0_i32_1 = arith.constant 0 : i32
    return %c0_i32, %c0_i32_0 : i32, i32
  }
  func.func @transform_19(%arg0: i32) -> (i32, i32, i32) {
    %c0_i32 = arith.constant 0 : i32
    %c0_i32_0 = arith.constant 0 : i32
    %c0_i32_1 = arith.constant 0 : i32
    return %arg0, %c0_i32, %c0_i32_0 : i32, i32, i32
  }
}

</mosaic_0001>

<llo_original>
// kernel: tile.38
$region0: #{tile.38}
  #allocation2 [shape = 's32[1]{0}', space=sflag, size = 0x4, scoped, tag = 'scoped memory for tile.38']
  %s0 = inlined_call_operand.hbm [shape: f32[32], index: 0, kind: input, shape index: {}]
  %s1 = inlined_call_operand.vmem [shape: f32[2,32], index: 1, kind: output, shape index: {}]
  $region1: #{tile.38} parent=0
    #allocation0 [shape = 'u8[512]{0}', space=vmem, size = 0x400, scoped, tag = 'operand span for operand 0']
    #allocation1 [shape = 's32[1]{0}', space=sflag, size = 0x4, scoped, tag = 'scoped memory for tile.38']
    %2 = vsyncpa [#allocation1], 0
    // Predicated region
    $region2: #{tile.38} parent=1 // pred_check
      _
    $region3: #{tile.38} parent=1 // pred_check_branch
      %4 = sbr.rel (0) target = $region5
    $region4: #{tile.38} parent=1 // pred_region
      %s6 = ssub.s32 16, 16
      %7 = vsyncadd [#allocation1], %s6
      %s9 = sshll.u32 [#allocation0], 4
      %s10 = int_to_ptr.vmem [resolvable:$true] %s9
      %12 = dma.hbm_to_vmem [thread:$0]  %s0, 16, %s10, [#allocation1]
    $region5: #{tile.38} parent=1 // pred_fallthru
      _
    // Predicated region
    $region6: #{tile.38} parent=1 // pred_check
      _
    $region7: #{tile.38} parent=1 // pred_check_branch
      %14 = sbr.rel (0) target = $region9
    $region8: #{tile.38} parent=1 // pred_region
      %15 = dma.done [#allocation1], 16
    $region9: #{tile.38} parent=1 // pred_fallthru
      _
    %v16 = vld [vmem:[#allocation0] ss:$0 sm:$0xff]
    %17 = vst [vmem:[%s1] sm:$0x3] %v16
    %18 = vsyncpa [#allocation1], 1

// kernel: tile.4
$region0: #{tile.4}
  %s0 = inlined_call_operand.vmem [shape: f32[2,2], index: 0, kind: input, shape index: {}]
  %s1 = inlined_call_operand.vmem [shape: f32[4,1], index: 1, kind: output, shape index: {}]
  $region1: #{tile.4} parent=0
    #allocation0 [shape = 'u8[4096]{0}', space=vmem, size = 0x1000, scoped, tag = 'scoped mem for output reshape']
    #allocation1 [shape = 'u8[4096]{0}', space=vmem, size = 0x1000, scoped, tag = 'scoped mem for input reshape']
    %s3 = sshllo.u32 0, 2
    %v4 = vld [vmem:[%s0] sm:%s3]
    %5 = vst [vmem:[#allocation1] sm:%s3] %v4
    %v6 = vld [vmem:[#allocation1] sm:$0x3]
    %vm7 = vcmask 7168
    %8 = vst.msk [vmem:[#allocation0] ss:$2 sm:$0x3] %vm7, %v6
    %v9 = vld [vmem:[#allocation1] sm:$0x3]
    %10 = vrot.lane.b32.xlu0 %v9, 127
    %v11 = vpop.permute.xlu0 %10
    %vm12 = vcmask 7168
    %s13 = scalar_lea.vmem [#allocation0], 1
    %14 = vst.msk [vmem:[%s13] ss:$2 sm:$0x3] %vm12, %v11
    %s16 = sshllo.u32 0, 4
    %v18 = vld [vmem:[#allocation0] sm:%s16]
    %s19 = sshllo.u32 0, 4
    %20 = vst [vmem:[%s1] sm:%s19] %v18

// kernel: tile.28
$region0: #{tile.28}
  #allocation2 [shape = 's32[1]{0}', space=sflag, size = 0x4, scoped, tag = 'scoped memory for tile.28']
  %s0 = inlined_call_operand.hbm [shape: f32[8], index: 0, kind: input, shape index: {}]
  %s1 = inlined_call_operand.vmem [shape: f32[2,8], index: 1, kind: output, shape index: {}]
  $region1: #{tile.28} parent=0
    #allocation0 [shape = 'u8[512]{0}', space=vmem, size = 0x400, scoped, tag = 'operand span for operand 0']
    #allocation1 [shape = 's32[1]{0}', space=sflag, size = 0x4, scoped, tag = 'scoped memory for tile.28']
    %2 = vsyncpa [#allocation1], 0
    // Predicated region
    $region2: #{tile.28} parent=1 // pred_check
      _
    $region3: #{tile.28} parent=1 // pred_check_branch
      %4 = sbr.rel (0) target = $region5
    $region4: #{tile.28} parent=1 // pred_region
      %s6 = ssub.s32 16, 16
      %7 = vsyncadd [#allocation1], %s6
      %s9 = sshll.u32 [#allocation0], 4
      %s10 = int_to_ptr.vmem [resolvable:$true] %s9
      %12 = dma.hbm_to_vmem [thread:$0]  %s0, 16, %s10, [#allocation1]
    $region5: #{tile.28} parent=1 // pred_fallthru
      _
    // Predicated region
    $region6: #{tile.28} parent=1 // pred_check
      _
    $region7: #{tile.28} parent=1 // pred_check_branch
      %14 = sbr.rel (0) target = $region9
    $region8: #{tile.28} parent=1 // pred_region
      %15 = dma.done [#allocation1], 16
    $region9: #{tile.28} parent=1 // pred_fallthru
      _
    %v16 = vld [vmem:[#allocation0] ss:$0 sm:$0xff]
    %17 = vst [vmem:[%s1] sm:$0x3] %v16
    %18 = vsyncpa [#allocation1], 1

// kernel: tile.48
$region0: #{tile.48}
  #allocation2 [shape = 's32[1]{0}', space=sflag, size = 0x4, scoped, tag = 'scoped memory for tile.48']
  %s0 = inlined_call_operand.hbm [shape: f32[2], index: 0, kind: input, shape index: {}]
  %s1 = inlined_call_operand.vmem [shape: f32[2,2], index: 1, kind: output, shape index: {}]
  $region1: #{tile.48} parent=0
    #allocation0 [shape = 'u8[512]{0}', space=vmem, size = 0x400, scoped, tag = 'operand span for operand 0']
    #allocation1 [shape = 's32[1]{0}', space=sflag, size = 0x4, scoped, tag = 'scoped memory for tile.48']
    %2 = vsyncpa [#allocation1], 0
    // Predicated region
    $region2: #{tile.48} parent=1 // pred_check
      _
    $region3: #{tile.48} parent=1 // pred_check_branch
      %4 = sbr.rel (0) target = $region5
    $region4: #{tile.48} parent=1 // pred_region
      %s6 = ssub.s32 16, 16
      %7 = vsyncadd [#allocation1], %s6
      %s9 = sshll.u32 [#allocation0], 4
      %s10 = int_to_ptr.vmem [resolvable:$true] %s9
      %12 = dma.hbm_to_vmem [thread:$0]  %s0, 16, %s10, [#allocation1]
    $region5: #{tile.48} parent=1 // pred_fallthru
      _
    // Predicated region
    $region6: #{tile.48} parent=1 // pred_check
      _
    $region7: #{tile.48} parent=1 // pred_check_branch
      %14 = sbr.rel (0) target = $region9
    $region8: #{tile.48} parent=1 // pred_region
      %15 = dma.done [#allocation1], 16
    $region9: #{tile.48} parent=1 // pred_fallthru
      _
    %v16 = vld [vmem:[#allocation0] ss:$0 sm:$0xff]
    %17 = vst [vmem:[%s1] sm:$0x3] %v16
    %18 = vsyncpa [#allocation1], 1

// kernel: tile.33
$region0: #{tile.33}
  #allocation2 [shape = 's32[1]{0}', space=sflag, size = 0x4, scoped, tag = 'scoped memory for tile.33']
  %s0 = inlined_call_operand.hbm [shape: f32[16], index: 0, kind: input, shape index: {}]
  %s1 = inlined_call_operand.vmem [shape: f32[2,16], index: 1, kind: output, shape index: {}]
  $region1: #{tile.33} parent=0
    #allocation0 [shape = 'u8[512]{0}', space=vmem, size = 0x400, scoped, tag = 'operand span for operand 0']
    #allocation1 [shape = 's32[1]{0}', space=sflag, size = 0x4, scoped, tag = 'scoped memory for tile.33']
    %2 = vsyncpa [#allocation1], 0
    // Predicated region
    $region2: #{tile.33} parent=1 // pred_check
      _
    $region3: #{tile.33} parent=1 // pred_check_branch
      %4 = sbr.rel (0) target = $region5
    $region4: #{tile.33} parent=1 // pred_region
      %s6 = ssub.s32 16, 16
      %7 = vsyncadd [#allocation1], %s6
      %s9 = sshll.u32 [#allocation0], 4
      %s10 = int_to_ptr.vmem [resolvable:$true] %s9
      %12 = dma.hbm_to_vmem [thread:$0]  %s0, 16, %s10, [#allocation1]
    $region5: #{tile.33} parent=1 // pred_fallthru
      _
    // Predicated region
    $region6: #{tile.33} parent=1 // pred_check
      _
    $region7: #{tile.33} parent=1 // pred_check_branch
      %14 = sbr.rel (0) target = $region9
    $region8: #{tile.33} parent=1 // pred_region
      %15 = dma.done [#allocation1], 16
    $region9: #{tile.33} parent=1 // pred_fallthru
      _
    %v16 = vld [vmem:[#allocation0] ss:$0 sm:$0xff]
    %17 = vst [vmem:[%s1] sm:$0x3] %v16
    %18 = vsyncpa [#allocation1], 1

// kernel: tile.43
$region0: #{tile.43}
  #allocation0 [shape = 's32[1]{0}', space=sflag, size = 0x4, scoped, tag = 'scoped memory for tile.43']
  %s0 = inlined_call_operand.vmem [shape: f32[8], index: 0, kind: input, shape index: {}]
  %s1 = inlined_call_operand.vmem [shape: f32[2,8], index: 1, kind: output, shape index: {}]
  // Predicated region
  $region2: #{tile.43} parent=0 // pred_check
    _
  $region3: #{tile.43} parent=0 // pred_check_branch
    %3 = sbr.rel (0) target = $region5
  $region4: #{tile.43} parent=0 // pred_region
    _
  $region5: #{tile.43} parent=0 // pred_fallthru
    _
  %v4 = vld [vmem:[%s0] ss:$0 sm:$0xff]
  %5 = vst [vmem:[%s1] sm:$0x3] %v4

// kernel: tile.3
$region0: #{tile.3}
  %s0 = inlined_call_operand.vmem [shape: f32[2,8], index: 0, kind: input, shape index: {}]
  %s1 = inlined_call_operand.vmem [shape: f32[16,1], index: 1, kind: output, shape index: {}]
  $region1: #{tile.3} parent=0
    #allocation0 [shape = 'u8[4096]{0}', space=vmem, size = 0x1000, scoped, tag = 'scoped mem for input reshape']
    %s3 = sshllo.u32 0, 2
    %v4 = vld [vmem:[%s0] sm:%s3]
    %5 = vst [vmem:[#allocation0] sm:%s3] %v4
    %v6 = vld [vmem:[#allocation0] sm:$0x3]
    %vm7 = vcmask 7168
    %8 = vst.msk [vmem:[%s1] ss:$8 sm:$0x3] %vm7, %v6
    %v9 = vld [vmem:[#allocation0] sm:$0x3]
    %10 = vrot.lane.b32.xlu0 %v9, 127
    %v11 = vpop.permute.xlu0 %10
    %vm12 = vcmask 7168
    %s13 = scalar_lea.vmem %s1, 1
    %14 = vst.msk [vmem:[%s13] ss:$8 sm:$0x3] %vm12, %v11
    %v15 = vld [vmem:[#allocation0] sm:$0x3]
    %16 = vrot.lane.b32.xlu0 %v15, 126
    %v17 = vpop.permute.xlu0 %16
    %vm18 = vcmask 7168
    %s19 = scalar_lea.vmem %s1, 2
    %20 = vst.msk [vmem:[%s19] ss:$8 sm:$0x3] %vm18, %v17
    %v21 = vld [vmem:[#allocation0] sm:$0x3]
    %22 = vrot.lane.b32.xlu0 %v21, 125
    %v23 = vpop.permute.xlu0 %22
    %vm24 = vcmask 7168
    %s25 = scalar_lea.vmem %s1, 3
    %26 = vst.msk [vmem:[%s25] ss:$8 sm:$0x3] %vm24, %v23
    %v27 = vld [vmem:[#allocation0] sm:$0x3]
    %28 = vrot.lane.b32.xlu0 %v27, 124
    %v29 = vpop.permute.xlu0 %28
    %vm30 = vcmask 7168
    %s31 = scalar_lea.vmem %s1, 4
    %32 = vst.msk [vmem:[%s31] ss:$8 sm:$0x3] %vm30, %v29
    %v33 = vld [vmem:[#allocation0] sm:$0x3]
    %34 = vrot.lane.b32.xlu0 %v33, 123
    %v35 = vpop.permute.xlu0 %34
    %vm36 = vcmask 7168
    %s37 = scalar_lea.vmem %s1, 5
    %38 = vst.msk [vmem:[%s37] ss:$8 sm:$0x3] %vm36, %v35
    %v39 = vld [vmem:[#allocation0] sm:$0x3]
    %40 = vrot.lane.b32.xlu0 %v39, 122
    %v41 = vpop.permute.xlu0 %40
    %vm42 = vcmask 7168
    %s43 = scalar_lea.vmem %s1, 6
    %44 = vst.msk [vmem:[%s43] ss:$8 sm:$0x3] %vm42, %v41
    %v45 = vld [vmem:[#allocation0] sm:$0x3]
    %46 = vrot.lane.b32.xlu0 %v45, 121
    %v47 = vpop.permute.xlu0 %46
    %vm48 = vcmask 7168
    %s49 = scalar_lea.vmem %s1, 7
    %50 = vst.msk [vmem:[%s49] ss:$8 sm:$0x3] %vm48, %v47

// kernel: tile.1
$region0: #{tile.1}
  %s0 = inlined_call_operand.vmem [shape: f32[2,16], index: 0, kind: input, shape index: {}]
  %s1 = inlined_call_operand.vmem [shape: f32[32,1], index: 1, kind: output, shape index: {}]
  $region1: #{tile.1} parent=0
    #allocation0 [shape = 'u8[4096]{0}', space=vmem, size = 0x1000, scoped, tag = 'scoped mem for input reshape']
    %s3 = sshllo.u32 0, 2
    %v4 = vld [vmem:[%s0] sm:%s3]
    %5 = vst [vmem:[#allocation0] sm:%s3] %v4
    %v6 = vld [vmem:[#allocation0] sm:$0x3]
    %vm7 = vcmask 7168
    %8 = vst.msk [vmem:[%s1] ss:$16 sm:$0x3] %vm7, %v6
    %v9 = vld [vmem:[#allocation0] sm:$0x3]
    %10 = vrot.lane.b32.xlu0 %v9, 127
    %v11 = vpop.permute.xlu0 %10
    %vm12 = vcmask 7168
    %s13 = scalar_lea.vmem %s1, 1
    %14 = vst.msk [vmem:[%s13] ss:$16 sm:$0x3] %vm12, %v11
    %v15 = vld [vmem:[#allocation0] sm:$0x3]
    %16 = vrot.lane.b32.xlu0 %v15, 126
    %v17 = vpop.permute.xlu0 %16
    %vm18 = vcmask 7168
    %s19 = scalar_lea.vmem %s1, 2
    %20 = vst.msk [vmem:[%s19] ss:$16 sm:$0x3] %vm18, %v17
    %v21 = vld [vmem:[#allocation0] sm:$0x3]
    %22 = vrot.lane.b32.xlu0 %v21, 125
    %v23 = vpop.permute.xlu0 %22
    %vm24 = vcmask 7168
    %s25 = scalar_lea.vmem %s1, 3
    %26 = vst.msk [vmem:[%s25] ss:$16 sm:$0x3] %vm24, %v23
    %v27 = vld [vmem:[#allocation0] sm:$0x3]
    %28 = vrot.lane.b32.xlu0 %v27, 124
    %v29 = vpop.permute.xlu0 %28
    %vm30 = vcmask 7168
    %s31 = scalar_lea.vmem %s1, 4
    %32 = vst.msk [vmem:[%s31] ss:$16 sm:$0x3] %vm30, %v29
    %v33 = vld [vmem:[#allocation0] sm:$0x3]
    %34 = vrot.lane.b32.xlu0 %v33, 123
    %v35 = vpop.permute.xlu0 %34
    %vm36 = vcmask 7168
    %s37 = scalar_lea.vmem %s1, 5
    %38 = vst.msk [vmem:[%s37] ss:$16 sm:$0x3] %vm36, %v35
    %v39 = vld [vmem:[#allocation0] sm:$0x3]
    %40 = vrot.lane.b32.xlu0 %v39, 122
    %v41 = vpop.permute.xlu0 %40
    %vm42 = vcmask 7168
    %s43 = scalar_lea.vmem %s1, 6
    %44 = vst.msk [vmem:[%s43] ss:$16 sm:$0x3] %vm42, %v41
    %v45 = vld [vmem:[#allocation0] sm:$0x3]
    %46 = vrot.lane.b32.xlu0 %v45, 121
    %v47 = vpop.permute.xlu0 %46
    %vm48 = vcmask 7168
    %s49 = scalar_lea.vmem %s1, 7
    %50 = vst.msk [vmem:[%s49] ss:$16 sm:$0x3] %vm48, %v47
    %v51 = vld [vmem:[#allocation0] sm:$0x3]
    %52 = vrot.lane.b32.xlu0 %v51, 120
    %v53 = vpop.permute.xlu0 %52
    %vm54 = vcmask 7168
    %s55 = scalar_lea.vmem %s1, 8
    %56 = vst.msk [vmem:[%s55] ss:$16 sm:$0x3] %vm54, %v53
    %v57 = vld [vmem:[#allocation0] sm:$0x3]
    %58 = vrot.lane.b32.xlu0 %v57, 119
    %v59 = vpop.permute.xlu0 %58
    %vm60 = vcmask 7168
    %s61 = scalar_lea.vmem %s1, 9
    %62 = vst.msk [vmem:[%s61] ss:$16 sm:$0x3] %vm60, %v59
    %v63 = vld [vmem:[#allocation0] sm:$0x3]
    %64 = vrot.lane.b32.xlu0 %v63, 118
    %v65 = vpop.permute.xlu0 %64
    %vm66 = vcmask 7168
    %s67 = scalar_lea.vmem %s1, 10
    %68 = vst.msk [vmem:[%s67] ss:$16 sm:$0x3] %vm66, %v65
    %v69 = vld [vmem:[#allocation0] sm:$0x3]
    %70 = vrot.lane.b32.xlu0 %v69, 117
    %v71 = vpop.permute.xlu0 %70
    %vm72 = vcmask 7168
    %s73 = scalar_lea.vmem %s1, 11
    %74 = vst.msk [vmem:[%s73] ss:$16 sm:$0x3] %vm72, %v71
    %v75 = vld [vmem:[#allocation0] sm:$0x3]
    %76 = vrot.lane.b32.xlu0 %v75, 116
    %v77 = vpop.permute.xlu0 %76
    %vm78 = vcmask 7168
    %s79 = scalar_lea.vmem %s1, 12
    %80 = vst.msk [vmem:[%s79] ss:$16 sm:$0x3] %vm78, %v77
    %v81 = vld [vmem:[#allocation0] sm:$0x3]
    %82 = vrot.lane.b32.xlu0 %v81, 115
    %v83 = vpop.permute.xlu0 %82
    %vm84 = vcmask 7168
    %s85 = scalar_lea.vmem %s1, 13
    %86 = vst.msk [vmem:[%s85] ss:$16 sm:$0x3] %vm84, %v83
    %v87 = vld [vmem:[#allocation0] sm:$0x3]
    %88 = vrot.lane.b32.xlu0 %v87, 114
    %v89 = vpop.permute.xlu0 %88
    %vm90 = vcmask 7168
    %s91 = scalar_lea.vmem %s1, 14
    %92 = vst.msk [vmem:[%s91] ss:$16 sm:$0x3] %vm90, %v89
    %v93 = vld [vmem:[#allocation0] sm:$0x3]
    %94 = vrot.lane.b32.xlu0 %v93, 113
    %v95 = vpop.permute.xlu0 %94
    %vm96 = vcmask 7168
    %s97 = scalar_lea.vmem %s1, 15
    %98 = vst.msk [vmem:[%s97] ss:$16 sm:$0x3] %vm96, %v95

// kernel: tile.2
$region0: #{tile.2}
  %s0 = inlined_call_operand.vmem [shape: f32[2,32], index: 0, kind: input, shape index: {}]
  %s1 = inlined_call_operand.vmem [shape: f32[64,1], index: 1, kind: output, shape index: {}]
  $region1: #{tile.2} parent=0
    #allocation0 [shape = 'u8[4096]{0}', space=vmem, size = 0x1000, scoped, tag = 'scoped mem for input reshape']
    %s3 = sshllo.u32 0, 2
    %v4 = vld [vmem:[%s0] sm:%s3]
    %5 = vst [vmem:[#allocation0] sm:%s3] %v4
    %v6 = vld [vmem:[#allocation0] sm:$0x3]
    %vm7 = vcmask 7168
    %8 = vst.msk [vmem:[%s1] sm:$0x1] %vm7, %v6
    %s9 = scalar_lea.vmem %s1, 31
    %10 = vst.msk [vmem:[%s9] sm:$0x2] %vm7, %v6
    %v11 = vld [vmem:[#allocation0] sm:$0x3]
    %12 = vrot.lane.b32.xlu0 %v11, 127
    %v13 = vpop.permute.xlu0 %12
    %vm14 = vcmask 7168
    %s15 = scalar_lea.vmem %s1, 1
    %16 = vst.msk [vmem:[%s15] sm:$0x1] %vm14, %v13
    %s17 = scalar_lea.vmem %s1, 32
    %18 = vst.msk [vmem:[%s17] sm:$0x2] %vm14, %v13
    %v19 = vld [vmem:[#allocation0] sm:$0x3]
    %20 = vrot.lane.b32.xlu0 %v19, 126
    %v21 = vpop.permute.xlu0 %20
    %vm22 = vcmask 7168
    %s23 = scalar_lea.vmem %s1, 2
    %24 = vst.msk [vmem:[%s23] sm:$0x1] %vm22, %v21
    %s25 = scalar_lea.vmem %s1, 33
    %26 = vst.msk [vmem:[%s25] sm:$0x2] %vm22, %v21
    %v27 = vld [vmem:[#allocation0] sm:$0x3]
    %28 = vrot.lane.b32.xlu0 %v27, 125
    %v29 = vpop.permute.xlu0 %28
    %vm30 = vcmask 7168
    %s31 = scalar_lea.vmem %s1, 3
    %32 = vst.msk [vmem:[%s31] sm:$0x1] %vm30, %v29
    %s33 = scalar_lea.vmem %s1, 34
    %34 = vst.msk [vmem:[%s33] sm:$0x2] %vm30, %v29
    %v35 = vld [vmem:[#allocation0] sm:$0x3]
    %36 = vrot.lane.b32.xlu0 %v35, 124
    %v37 = vpop.permute.xlu0 %36
    %vm38 = vcmask 7168
    %s39 = scalar_lea.vmem %s1, 4
    %40 = vst.msk [vmem:[%s39] sm:$0x1] %vm38, %v37
    %s41 = scalar_lea.vmem %s1, 35
    %42 = vst.msk [vmem:[%s41] sm:$0x2] %vm38, %v37
    %v43 = vld [vmem:[#allocation0] sm:$0x3]
    %44 = vrot.lane.b32.xlu0 %v43, 123
    %v45 = vpop.permute.xlu0 %44
    %vm46 = vcmask 7168
    %s47 = scalar_lea.vmem %s1, 5
    %48 = vst.msk [vmem:[%s47] sm:$0x1] %vm46, %v45
    %s49 = scalar_lea.vmem %s1, 36
    %50 = vst.msk [vmem:[%s49] sm:$0x2] %vm46, %v45
    %v51 = vld [vmem:[#allocation0] sm:$0x3]
    %52 = vrot.lane.b32.xlu0 %v51, 122
    %v53 = vpop.permute.xlu0 %52
    %vm54 = vcmask 7168
    %s55 = scalar_lea.vmem %s1, 6
    %56 = vst.msk [vmem:[%s55] sm:$0x1] %vm54, %v53
    %s57 = scalar_lea.vmem %s1, 37
    %58 = vst.msk [vmem:[%s57] sm:$0x2] %vm54, %v53
    %v59 = vld [vmem:[#allocation0] sm:$0x3]
    %60 = vrot.lane.b32.xlu0 %v59, 121
    %v61 = vpop.permute.xlu0 %60
    %vm62 = vcmask 7168
    %s63 = scalar_lea.vmem %s1, 7
    %64 = vst.msk [vmem:[%s63] sm:$0x1] %vm62, %v61
    %s65 = scalar_lea.vmem %s1, 38
    %66 = vst.msk [vmem:[%s65] sm:$0x2] %vm62, %v61
    %v67 = vld [vmem:[#allocation0] sm:$0x3]
    %68 = vrot.lane.b32.xlu0 %v67, 120
    %v69 = vpop.permute.xlu0 %68
    %vm70 = vcmask 7168
    %s71 = scalar_lea.vmem %s1, 8
    %72 = vst.msk [vmem:[%s71] sm:$0x1] %vm70, %v69
    %s73 = scalar_lea.vmem %s1, 39
    %74 = vst.msk [vmem:[%s73] sm:$0x2] %vm70, %v69
    %v75 = vld [vmem:[#allocation0] sm:$0x3]
    %76 = vrot.lane.b32.xlu0 %v75, 119
    %v77 = vpop.permute.xlu0 %76
    %vm78 = vcmask 7168
    %s79 = scalar_lea.vmem %s1, 9
    %80 = vst.msk [vmem:[%s79] sm:$0x1] %vm78, %v77
    %s81 = scalar_lea.vmem %s1, 40
    %82 = vst.msk [vmem:[%s81] sm:$0x2] %vm78, %v77
    %v83 = vld [vmem:[#allocation0] sm:$0x3]
    %84 = vrot.lane.b32.xlu0 %v83, 118
    %v85 = vpop.permute.xlu0 %84
    %vm86 = vcmask 7168
    %s87 = scalar_lea.vmem %s1, 10
    %88 = vst.msk [vmem:[%s87] sm:$0x1] %vm86, %v85
    %s89 = scalar_lea.vmem %s1, 41
    %90 = vst.msk [vmem:[%s89] sm:$0x2] %vm86, %v85
    %v91 = vld [vmem:[#allocation0] sm:$0x3]
    %92 = vrot.lane.b32.xlu0 %v91, 117
    %v93 = vpop.permute.xlu0 %92
    %vm94 = vcmask 7168
    %s95 = scalar_lea.vmem %s1, 11
    %96 = vst.msk [vmem:[%s95] sm:$0x1] %vm94, %v93
    %s97 = scalar_lea.vmem %s1, 42
    %98 = vst.msk [vmem:[%s97] sm:$0x2] %vm94, %v93
    %v99 = vld [vmem:[#allocation0] sm:$0x3]
    %100 = vrot.lane.b32.xlu0 %v99, 116
    %v101 = vpop.permute.xlu0 %100
    %vm102 = vcmask 7168
    %s103 = scalar_lea.vmem %s1, 12
    %104 = vst.msk [vmem:[%s103] sm:$0x1] %vm102, %v101
    %s105 = scalar_lea.vmem %s1, 43
    %106 = vst.msk [vmem:[%s105] sm:$0x2] %vm102, %v101
    %v107 = vld [vmem:[#allocation0] sm:$0x3]
    %108 = vrot.lane.b32.xlu0 %v107, 115
    %v109 = vpop.permute.xlu0 %108
    %vm110 = vcmask 7168
    %s111 = scalar_lea.vmem %s1, 13
    %112 = vst.msk [vmem:[%s111] sm:$0x1] %vm110, %v109
    %s113 = scalar_lea.vmem %s1, 44
    %114 = vst.msk [vmem:[%s113] sm:$0x2] %vm110, %v109
    %v115 = vld [vmem:[#allocation0] sm:$0x3]
    %116 = vrot.lane.b32.xlu0 %v115, 114
    %v117 = vpop.permute.xlu0 %116
    %vm118 = vcmask 7168
    %s119 = scalar_lea.vmem %s1, 14
    %120 = vst.msk [vmem:[%s119] sm:$0x1] %vm118, %v117
    %s121 = scalar_lea.vmem %s1, 45
    %122 = vst.msk [vmem:[%s121] sm:$0x2] %vm118, %v117
    %v123 = vld [vmem:[#allocation0] sm:$0x3]
    %124 = vrot.lane.b32.xlu0 %v123, 113
    %v125 = vpop.permute.xlu0 %124
    %vm126 = vcmask 7168
    %s127 = scalar_lea.vmem %s1, 15
    %128 = vst.msk [vmem:[%s127] sm:$0x1] %vm126, %v125
    %s129 = scalar_lea.vmem %s1, 46
    %130 = vst.msk [vmem:[%s129] sm:$0x2] %vm126, %v125
    %v131 = vld [vmem:[#allocation0] sm:$0x3]
    %132 = vrot.lane.b32.xlu0 %v131, 112
    %v133 = vpop.permute.xlu0 %132
    %vm134 = vcmask 7168
    %s135 = scalar_lea.vmem %s1, 16
    %136 = vst.msk [vmem:[%s135] sm:$0x1] %vm134, %v133
    %s137 = scalar_lea.vmem %s1, 47
    %138 = vst.msk [vmem:[%s137] sm:$0x2] %vm134, %v133
    %v139 = vld [vmem:[#allocation0] sm:$0x3]
    %140 = vrot.lane.b32.xlu0 %v139, 111
    %v141 = vpop.permute.xlu0 %140
    %vm142 = vcmask 7168
    %s143 = scalar_lea.vmem %s1, 17
    %144 = vst.msk [vmem:[%s143] sm:$0x1] %vm142, %v141
    %s145 = scalar_lea.vmem %s1, 48
    %146 = vst.msk [vmem:[%s145] sm:$0x2] %vm142, %v141
    %v147 = vld [vmem:[#allocation0] sm:$0x3]
    %148 = vrot.lane.b32.xlu0 %v147, 110
    %v149 = vpop.permute.xlu0 %148
    %vm150 = vcmask 7168
    %s151 = scalar_lea.vmem %s1, 18
    %152 = vst.msk [vmem:[%s151] sm:$0x1] %vm150, %v149
    %s153 = scalar_lea.vmem %s1, 49
    %154 = vst.msk [vmem:[%s153] sm:$0x2] %vm150, %v149
    %v155 = vld [vmem:[#allocation0] sm:$0x3]
    %156 = vrot.lane.b32.xlu0 %v155, 109
    %v157 = vpop.permute.xlu0 %156
    %vm158 = vcmask 7168
    %s159 = scalar_lea.vmem %s1, 19
    %160 = vst.msk [vmem:[%s159] sm:$0x1] %vm158, %v157
    %s161 = scalar_lea.vmem %s1, 50
    %162 = vst.msk [vmem:[%s161] sm:$0x2] %vm158, %v157
    %v163 = vld [vmem:[#allocation0] sm:$0x3]
    %164 = vrot.lane.b32.xlu0 %v163, 108
    %v165 = vpop.permute.xlu0 %164
    %vm166 = vcmask 7168
    %s167 = scalar_lea.vmem %s1, 20
    %168 = vst.msk [vmem:[%s167] sm:$0x1] %vm166, %v165
    %s169 = scalar_lea.vmem %s1, 51
    %170 = vst.msk [vmem:[%s169] sm:$0x2] %vm166, %v165
    %v171 = vld [vmem:[#allocation0] sm:$0x3]
    %172 = vrot.lane.b32.xlu0 %v171, 107
    %v173 = vpop.permute.xlu0 %172
    %vm174 = vcmask 7168
    %s175 = scalar_lea.vmem %s1, 21
    %176 = vst.msk [vmem:[%s175] sm:$0x1] %vm174, %v173
    %s177 = scalar_lea.vmem %s1, 52
    %178 = vst.msk [vmem:[%s177] sm:$0x2] %vm174, %v173
    %v179 = vld [vmem:[#allocation0] sm:$0x3]
    %180 = vrot.lane.b32.xlu0 %v179, 106
    %v181 = vpop.permute.xlu0 %180
    %vm182 = vcmask 7168
    %s183 = scalar_lea.vmem %s1, 22
    %184 = vst.msk [vmem:[%s183] sm:$0x1] %vm182, %v181
    %s185 = scalar_lea.vmem %s1, 53
    %186 = vst.msk [vmem:[%s185] sm:$0x2] %vm182, %v181
    %v187 = vld [vmem:[#allocation0] sm:$0x3]
    %188 = vrot.lane.b32.xlu0 %v187, 105
    %v189 = vpop.permute.xlu0 %188
    %vm190 = vcmask 7168
    %s191 = scalar_lea.vmem %s1, 23
    %192 = vst.msk [vmem:[%s191] sm:$0x1] %vm190, %v189
    %s193 = scalar_lea.vmem %s1, 54
    %194 = vst.msk [vmem:[%s193] sm:$0x2] %vm190, %v189
    %v195 = vld [vmem:[#allocation0] sm:$0x3]
    %196 = vrot.lane.b32.xlu0 %v195, 104
    %v197 = vpop.permute.xlu0 %196
    %vm198 = vcmask 7168
    %s199 = scalar_lea.vmem %s1, 24
    %200 = vst.msk [vmem:[%s199] sm:$0x1] %vm198, %v197
    %s201 = scalar_lea.vmem %s1, 55
    %202 = vst.msk [vmem:[%s201] sm:$0x2] %vm198, %v197
    %v203 = vld [vmem:[#allocation0] sm:$0x3]
    %204 = vrot.lane.b32.xlu0 %v203, 103
    %v205 = vpop.permute.xlu0 %204
    %vm206 = vcmask 7168
    %s207 = scalar_lea.vmem %s1, 25
    %208 = vst.msk [vmem:[%s207] sm:$0x1] %vm206, %v205
    %s209 = scalar_lea.vmem %s1, 56
    %210 = vst.msk [vmem:[%s209] sm:$0x2] %vm206, %v205
    %v211 = vld [vmem:[#allocation0] sm:$0x3]
    %212 = vrot.lane.b32.xlu0 %v211, 102
    %v213 = vpop.permute.xlu0 %212
    %vm214 = vcmask 7168
    %s215 = scalar_lea.vmem %s1, 26
    %216 = vst.msk [vmem:[%s215] sm:$0x1] %vm214, %v213
    %s217 = scalar_lea.vmem %s1, 57
    %218 = vst.msk [vmem:[%s217] sm:$0x2] %vm214, %v213
    %v219 = vld [vmem:[#allocation0] sm:$0x3]
    %220 = vrot.lane.b32.xlu0 %v219, 101
    %v221 = vpop.permute.xlu0 %220
    %vm222 = vcmask 7168
    %s223 = scalar_lea.vmem %s1, 27
    %224 = vst.msk [vmem:[%s223] sm:$0x1] %vm222, %v221
    %s225 = scalar_lea.vmem %s1, 58
    %226 = vst.msk [vmem:[%s225] sm:$0x2] %vm222, %v221
    %v227 = vld [vmem:[#allocation0] sm:$0x3]
    %228 = vrot.lane.b32.xlu0 %v227, 100
    %v229 = vpop.permute.xlu0 %228
    %vm230 = vcmask 7168
    %s231 = scalar_lea.vmem %s1, 28
    %232 = vst.msk [vmem:[%s231] sm:$0x1] %vm230, %v229
    %s233 = scalar_lea.vmem %s1, 59
    %234 = vst.msk [vmem:[%s233] sm:$0x2] %vm230, %v229
    %v235 = vld [vmem:[#allocation0] sm:$0x3]
    %236 = vrot.lane.b32.xlu0 %v235, 99
    %v237 = vpop.permute.xlu0 %236
    %vm238 = vcmask 7168
    %s239 = scalar_lea.vmem %s1, 29
    %240 = vst.msk [vmem:[%s239] sm:$0x1] %vm238, %v237
    %s241 = scalar_lea.vmem %s1, 60
    %242 = vst.msk [vmem:[%s241] sm:$0x2] %vm238, %v237
    %v243 = vld [vmem:[#allocation0] sm:$0x3]
    %244 = vrot.lane.b32.xlu0 %v243, 98
    %v245 = vpop.permute.xlu0 %244
    %vm246 = vcmask 7168
    %s247 = scalar_lea.vmem %s1, 30
    %248 = vst.msk [vmem:[%s247] sm:$0x1] %vm246, %v245
    %s249 = scalar_lea.vmem %s1, 61
    %250 = vst.msk [vmem:[%s249] sm:$0x2] %vm246, %v245
    %v251 = vld [vmem:[#allocation0] sm:$0x3]
    %252 = vrot.lane.b32.xlu0 %v251, 97
    %v253 = vpop.permute.xlu0 %252
    %vm254 = vcmask 7168
    %s255 = scalar_lea.vmem %s1, 31
    %256 = vst.msk [vmem:[%s255] sm:$0x1] %vm254, %v253
    %s257 = scalar_lea.vmem %s1, 62
    %258 = vst.msk [vmem:[%s257] sm:$0x2] %vm254, %v253

// kernel: unet_forward.1
$region0: #{unet_forward.1}
  #allocation0 [shape = 'u32[]', space=smem, size = 0x4, offset = 0x4, fixed_abs, tag = 'smem constant byte address 0x4 - core index']
  #allocation1 [shape = 'u32[144,128]{1,0:T(1,128)}', space=vmem, size = 0x12000, scoped, tag = 'internal scratch']
  %s0 = inlined_call_operand.vmem [shape: f32[5], index: 0, kind: input, shape index: {}]
  %s1 = inlined_call_operand.vmem [shape: f32[1,8,256], index: 1, kind: input, shape index: {}]
  %s2 = inlined_call_operand.vmem [shape: bf16[256,576], index: 2, kind: input, shape index: {}]
  %s3 = inlined_call_operand.vmem [shape: bf16[9,16,8], index: 3, kind: input, shape index: {}]
  %s4 = inlined_call_operand.vmem [shape: f32[16,1], index: 4, kind: input, shape index: {}]
  %s5 = inlined_call_operand.vmem [shape: bf16[64,144], index: 5, kind: input, shape index: {}]
  %s6 = inlined_call_operand.vmem [shape: bf16[9,32,16], index: 6, kind: input, shape index: {}]
  %s7 = inlined_call_operand.vmem [shape: f32[32,1], index: 7, kind: input, shape index: {}]
  %s8 = inlined_call_operand.vmem [shape: bf16[16,144], index: 8, kind: input, shape index: {}]
  %s9 = inlined_call_operand.vmem [shape: bf16[9,64,32], index: 9, kind: input, shape index: {}]
  %s10 = inlined_call_operand.vmem [shape: f32[64,1], index: 10, kind: input, shape index: {}]
  %s11 = inlined_call_operand.vmem [shape: bf16[9,16,64], index: 11, kind: input, shape index: {}]
  %s12 = inlined_call_operand.vmem [shape: bf16[144,32], index: 12, kind: input, shape index: {}]
  %s13 = inlined_call_operand.vmem [shape: bf16[144,64], index: 13, kind: input, shape index: {}]
  %s14 = inlined_call_operand.vmem [shape: f32[16,1], index: 14, kind: input, shape index: {}]
  %s15 = inlined_call_operand.vmem [shape: bf16[9,64,256], index: 15, kind: input, shape index: {}]
  %s16 = inlined_call_operand.vmem [shape: bf16[72,16], index: 16, kind: input, shape index: {}]
  %s17 = inlined_call_operand.vmem [shape: bf16[72,16], index: 17, kind: input, shape index: {}]
  %s18 = inlined_call_operand.vmem [shape: f32[4,1], index: 18, kind: input, shape index: {}]
  %s19 = inlined_call_operand.vmem [shape: f32[1,4,256], index: 19, kind: output, shape index: {}]
  %s20 = sld [smem:[#allocation0]]
  $region90: #{unet_forward.1} parent=0
    _
  %s22 = ssub.s32 1, %s20
  %s23 = scalar_select 0, %s22, %s20
  $region1: #{unet_forward.1} parent=0
    #allocation2 [shape = 'u8[512]{0}', space=smem, size = 0x200, scoped, tag = 'input window, operand 0, single buffered']
    #allocation3 [shape = 's32[1]{0}', space=sflag, size = 0x4, scoped, tag = 'scoped memory for unet_forward.1']
    %24 = vsyncpa [#allocation3], 0
    // Predicated region
    $region2: #{unet_forward.1} parent=1 // pred_check
      _
    $region3: #{unet_forward.1} parent=1 // pred_check_branch
      %26 = sbr.rel (0) target = $region5
    $region4: #{unet_forward.1} parent=1 // pred_region
      %s28 = ssub.s32 16, 16
      %29 = vsyncadd [#allocation3], %s28
      %s31 = sshll.u32 %s0, 4
      %s32 = int_to_ptr.vmem [resolvable:$true] %s31
      %34 = dma.vmem_to_smem %s32, 16, [#allocation2], [#allocation3]
    $region5: #{unet_forward.1} parent=1 // pred_fallthru
      _
    // Predicated region
    $region6: #{unet_forward.1} parent=1 // pred_check
      _
    $region7: #{unet_forward.1} parent=1 // pred_check_branch
      %36 = sbr.rel (0) target = $region9
    $region8: #{unet_forward.1} parent=1 // pred_region
      _
    $region9: #{unet_forward.1} parent=1 // pred_fallthru
      _
    // Predicated region
    $region10: #{unet_forward.1} parent=1 // pred_check
      _
    $region11: #{unet_forward.1} parent=1 // pred_check_branch
      %38 = sbr.rel (0) target = $region13
    $region12: #{unet_forward.1} parent=1 // pred_region
      _
    $region13: #{unet_forward.1} parent=1 // pred_fallthru
      _
    // Predicated region
    $region14: #{unet_forward.1} parent=1 // pred_check
      _
    $region15: #{unet_forward.1} parent=1 // pred_check_branch
      %40 = sbr.rel (0) target = $region17
    $region16: #{unet_forward.1} parent=1 // pred_region
      _
    $region17: #{unet_forward.1} parent=1 // pred_fallthru
      _
    // Predicated region
    $region18: #{unet_forward.1} parent=1 // pred_check
      _
    $region19: #{unet_forward.1} parent=1 // pred_check_branch
      %42 = sbr.rel (0) target = $region21
    $region20: #{unet_forward.1} parent=1 // pred_region
      _
    $region21: #{unet_forward.1} parent=1 // pred_fallthru
      _
    // Predicated region
    $region22: #{unet_forward.1} parent=1 // pred_check
      _
    $region23: #{unet_forward.1} parent=1 // pred_check_branch
      %44 = sbr.rel (0) target = $region25
    $region24: #{unet_forward.1} parent=1 // pred_region
      _
    $region25: #{unet_forward.1} parent=1 // pred_fallthru
      _
    // Predicated region
    $region26: #{unet_forward.1} parent=1 // pred_check
      _
    $region27: #{unet_forward.1} parent=1 // pred_check_branch
      %46 = sbr.rel (0) target = $region29
    $region28: #{unet_forward.1} parent=1 // pred_region
      _
    $region29: #{unet_forward.1} parent=1 // pred_fallthru
      _
    // Predicated region
    $region30: #{unet_forward.1} parent=1 // pred_check
      _
    $region31: #{unet_forward.1} parent=1 // pred_check_branch
      %48 = sbr.rel (0) target = $region33
    $region32: #{unet_forward.1} parent=1 // pred_region
      _
    $region33: #{unet_forward.1} parent=1 // pred_fallthru
      _
    // Predicated region
    $region34: #{unet_forward.1} parent=1 // pred_check
      _
    $region35: #{unet_forward.1} parent=1 // pred_check_branch
      %50 = sbr.rel (0) target = $region37
    $region36: #{unet_forward.1} parent=1 // pred_region
      _
    $region37: #{unet_forward.1} parent=1 // pred_fallthru
      _
    // Predicated region
    $region38: #{unet_forward.1} parent=1 // pred_check
      _
    $region39: #{unet_forward.1} parent=1 // pred_check_branch
      %52 = sbr.rel (0) target = $region41
    $region40: #{unet_forward.1} parent=1 // pred_region
      _
    $region41: #{unet_forward.1} parent=1 // pred_fallthru
      _
    // Predicated region
    $region42: #{unet_forward.1} parent=1 // pred_check
      _
    $region43: #{unet_forward.1} parent=1 // pred_check_branch
      %54 = sbr.rel (0) target = $region45
    $region44: #{unet_forward.1} parent=1 // pred_region
      _
    $region45: #{unet_forward.1} parent=1 // pred_fallthru
      _
    // Predicated region
    $region46: #{unet_forward.1} parent=1 // pred_check
      _
    $region47: #{unet_forward.1} parent=1 // pred_check_branch
      %56 = sbr.rel (0) target = $region49
    $region48: #{unet_forward.1} parent=1 // pred_region
      _
    $region49: #{unet_forward.1} parent=1 // pred_fallthru
      _
    // Predicated region
    $region50: #{unet_forward.1} parent=1 // pred_check
      _
    $region51: #{unet_forward.1} parent=1 // pred_check_branch
      %58 = sbr.rel (0) target = $region53
    $region52: #{unet_forward.1} parent=1 // pred_region
      _
    $region53: #{unet_forward.1} parent=1 // pred_fallthru
      _
    // Predicated region
    $region54: #{unet_forward.1} parent=1 // pred_check
      _
    $region55: #{unet_forward.1} parent=1 // pred_check_branch
      %60 = sbr.rel (0) target = $region57
    $region56: #{unet_forward.1} parent=1 // pred_region
      _
    $region57: #{unet_forward.1} parent=1 // pred_fallthru
      _
    // Predicated region
    $region58: #{unet_forward.1} parent=1 // pred_check
      _
    $region59: #{unet_forward.1} parent=1 // pred_check_branch
      %62 = sbr.rel (0) target = $region61
    $region60: #{unet_forward.1} parent=1 // pred_region
      _
    $region61: #{unet_forward.1} parent=1 // pred_fallthru
      _
    // Predicated region
    $region62: #{unet_forward.1} parent=1 // pred_check
      _
    $region63: #{unet_forward.1} parent=1 // pred_check_branch
      %64 = sbr.rel (0) target = $region65
    $region64: #{unet_forward.1} parent=1 // pred_region
      _
    $region65: #{unet_forward.1} parent=1 // pred_fallthru
      _
    // Predicated region
    $region66: #{unet_forward.1} parent=1 // pred_check
      _
    $region67: #{unet_forward.1} parent=1 // pred_check_branch
      %66 = sbr.rel (0) target = $region69
    $region68: #{unet_forward.1} parent=1 // pred_region
      _
    $region69: #{unet_forward.1} parent=1 // pred_fallthru
      _
    // Predicated region
    $region70: #{unet_forward.1} parent=1 // pred_check
      _
    $region71: #{unet_forward.1} parent=1 // pred_check_branch
      %68 = sbr.rel (0) target = $region73
    $region72: #{unet_forward.1} parent=1 // pred_region
      _
    $region73: #{unet_forward.1} parent=1 // pred_fallthru
      _
    // Predicated region
    $region74: #{unet_forward.1} parent=1 // pred_check
      _
    $region75: #{unet_forward.1} parent=1 // pred_check_branch
      %70 = sbr.rel (0) target = $region77
    $region76: #{unet_forward.1} parent=1 // pred_region
      _
    $region77: #{unet_forward.1} parent=1 // pred_fallthru
      _
    // Predicated region
    $region78: #{unet_forward.1} parent=1 // pred_check
      _
    $region79: #{unet_forward.1} parent=1 // pred_check_branch
      %72 = sbr.rel (0) target = $region81
    $region80: #{unet_forward.1} parent=1 // pred_region
      %73 = dma.done [#allocation3], 16
    $region81: #{unet_forward.1} parent=1 // pred_fallthru
      _
    %74 = sfence
    %v76 = vld [vmem:[%s1] sm:$0xff]
    %v77 = vld [vmem:[%s1 + $0x8] sm:$0xff]
    %v78 = vpack.c.bf16 %v76, %v76
    %v79 = vpack.c.bf16 %v77, %v77
    %v80 = vld [vmem:[%s2] sm:$0xff]
    %v81 = vld [vmem:[%s2 + $0x8] sm:$0xff]
    %v82 = vld [vmem:[%s2 + $0x10] sm:$0xf]
    %v83 = vld [vmem:[%s2 + $0x14] sm:$0xff]
    %v84 = vld [vmem:[%s2 + $0x1c] sm:$0xff]
    %v85 = vld [vmem:[%s2 + $0x24] sm:$0xf]
    %v86 = vld [vmem:[%s2 + $0x28] sm:$0xff]
    %v87 = vld [vmem:[%s2 + $0x30] sm:$0xff]
    %v88 = vld [vmem:[%s2 + $0x38] sm:$0xf]
    %v89 = vld [vmem:[%s2 + $0x3c] sm:$0xff]
    %v90 = vld [vmem:[%s2 + $0x44] sm:$0xff]
    %v91 = vld [vmem:[%s2 + $0x4c] sm:$0xf]
    %v92 = vld [vmem:[%s2 + $0x50] sm:$0xff]
    %v93 = vld [vmem:[%s2 + $0x58] sm:$0xff]
    %v94 = vld [vmem:[%s2 + $0x60] sm:$0xf]
    %v95 = vld [vmem:[%s2 + $0x64] sm:$0xff]
    %v96 = vld [vmem:[%s2 + $0x6c] sm:$0xff]
    %v97 = vld [vmem:[%s2 + $0x74] sm:$0xf]
    %v98 = vld [vmem:[%s2 + $0x78] sm:$0xff]
    %v99 = vld [vmem:[%s2 + $0x80] sm:$0xff]
    %v100 = vld [vmem:[%s2 + $0x88] sm:$0xf]
    %v101 = vld [vmem:[%s2 + $0x8c] sm:$0xff]
    %v102 = vld [vmem:[%s2 + $0x94] sm:$0xff]
    %v103 = vld [vmem:[%s2 + $0x9c] sm:$0xf]
    %v104 = vld [vmem:[%s2 + $0xa0] sm:$0xff]
    %v105 = vld [vmem:[%s2 + $0xa8] sm:$0xff]
    %v106 = vld [vmem:[%s2 + $0xb0] sm:$0xf]
    %v107 = vld [vmem:[%s2 + $0xb4] sm:$0xff]
    %v108 = vld [vmem:[%s2 + $0xbc] sm:$0xff]
    %v109 = vld [vmem:[%s2 + $0xc4] sm:$0xf]
    %v110 = vld [vmem:[%s2 + $0xc8] sm:$0xff]
    %v111 = vld [vmem:[%s2 + $0xd0] sm:$0xff]
    %v112 = vld [vmem:[%s2 + $0xd8] sm:$0xf]
    %v113 = vld [vmem:[%s2 + $0xdc] sm:$0xff]
    %v114 = vld [vmem:[%s2 + $0xe4] sm:$0xff]
    %v115 = vld [vmem:[%s2 + $0xec] sm:$0xf]
    %v116 = vld [vmem:[%s2 + $0xf0] sm:$0xff]
    %v117 = vld [vmem:[%s2 + $0xf8] sm:$0xff]
    %v118 = vld [vmem:[%s2 + $0x100] sm:$0xf]
    %v119 = vld [vmem:[%s2 + $0x104] sm:$0xff]
    %v120 = vld [vmem:[%s2 + $0x10c] sm:$0xff]
    %v121 = vld [vmem:[%s2 + $0x114] sm:$0xf]
    %v122 = vld [vmem:[%s2 + $0x118] sm:$0xff]
    %v123 = vld [vmem:[%s2 + $0x120] sm:$0xff]
    %v124 = vld [vmem:[%s2 + $0x128] sm:$0xf]
    %v125 = vld [vmem:[%s2 + $0x12c] sm:$0xff]
    %v126 = vld [vmem:[%s2 + $0x134] sm:$0xff]
    %v127 = vld [vmem:[%s2 + $0x13c] sm:$0xf]
    %v128 = vld [vmem:[%s2 + $0x140] sm:$0xff]
    %v129 = vld [vmem:[%s2 + $0x148] sm:$0xff]
    %v130 = vld [vmem:[%s2 + $0x150] sm:$0xf]
    %v131 = vld [vmem:[%s2 + $0x154] sm:$0xff]
    %v132 = vld [vmem:[%s2 + $0x15c] sm:$0xff]
    %v133 = vld [vmem:[%s2 + $0x164] sm:$0xf]
    %v134 = vld [vmem:[%s2 + $0x168] sm:$0xff]
    %v135 = vld [vmem:[%s2 + $0x170] sm:$0xff]
    %v136 = vld [vmem:[%s2 + $0x178] sm:$0xf]
    %v137 = vld [vmem:[%s2 + $0x17c] sm:$0xff]
    %v138 = vld [vmem:[%s2 + $0x184] sm:$0xff]
    %v139 = vld [vmem:[%s2 + $0x18c] sm:$0xf]
    %v140 = vld [vmem:[%s2 + $0x190] sm:$0xff]
    %v141 = vld [vmem:[%s2 + $0x198] sm:$0xff]
    %v142 = vld [vmem:[%s2 + $0x1a0] sm:$0xf]
    %v143 = vld [vmem:[%s2 + $0x1a4] sm:$0xff]
    %v144 = vld [vmem:[%s2 + $0x1ac] sm:$0xff]
    %v145 = vld [vmem:[%s2 + $0x1b4] sm:$0xf]
    %v146 = vld [vmem:[%s2 + $0x1b8] sm:$0xff]
    %v147 = vld [vmem:[%s2 + $0x1c0] sm:$0xff]
    %v148 = vld [vmem:[%s2 + $0x1c8] sm:$0xf]
    %v149 = vld [vmem:[%s2 + $0x1cc] sm:$0xff]
    %v150 = vld [vmem:[%s2 + $0x1d4] sm:$0xff]
    %v151 = vld [vmem:[%s2 + $0x1dc] sm:$0xf]
    %v152 = vld [vmem:[%s2 + $0x1e0] sm:$0xff]
    %v153 = vld [vmem:[%s2 + $0x1e8] sm:$0xff]
    %v154 = vld [vmem:[%s2 + $0x1f0] sm:$0xf]
    %v155 = vld [vmem:[%s2 + $0x1f4] sm:$0xff]
    %v156 = vld [vmem:[%s2 + $0x1fc] sm:$0xff]
    %v157 = vld [vmem:[%s2 + $0x204] sm:$0xf]
    %v158 = vld [vmem:[%s2 + $0x208] sm:$0xff]
    %v159 = vld [vmem:[%s2 + $0x210] sm:$0xff]
    %v160 = vld [vmem:[%s2 + $0x218] sm:$0xf]
    %v161 = vld [vmem:[%s2 + $0x21c] sm:$0xff]
    %v162 = vld [vmem:[%s2 + $0x224] sm:$0xff]
    %v163 = vld [vmem:[%s2 + $0x22c] sm:$0xf]
    %v164 = vld [vmem:[%s2 + $0x230] sm:$0xff]
    %v165 = vld [vmem:[%s2 + $0x238] sm:$0xff]
    %v166 = vld [vmem:[%s2 + $0x240] sm:$0xf]
    %v167 = vld [vmem:[%s2 + $0x244] sm:$0xff]
    %v168 = vld [vmem:[%s2 + $0x24c] sm:$0xff]
    %v169 = vld [vmem:[%s2 + $0x254] sm:$0xf]
    %v170 = vld [vmem:[%s2 + $0x258] sm:$0xff]
    %v171 = vld [vmem:[%s2 + $0x260] sm:$0xff]
    %v172 = vld [vmem:[%s2 + $0x268] sm:$0xf]
    %v173 = vld [vmem:[%s2 + $0x26c] sm:$0xff]
    %v174 = vld [vmem:[%s2 + $0x274] sm:$0xff]
    %v175 = vld [vmem:[%s2 + $0x27c] sm:$0xf]
    %v272 = vunpack.c.l.b16 %v80
    %v273 = vunpack.c.h.b16 %v80
    %v274 = vunpack.c.l.b16 %v81
    %v275 = vunpack.c.h.b16 %v81
    %v276 = vunpack.c.l.b16 %v82
    %v277 = vunpack.c.l.b16 %v83
    %v278 = vunpack.c.h.b16 %v83
    %v279 = vunpack.c.l.b16 %v84
    %v280 = vunpack.c.h.b16 %v84
    %v281 = vunpack.c.l.b16 %v85
    %v282 = vunpack.c.l.b16 %v86
    %v283 = vunpack.c.h.b16 %v86
    %v284 = vunpack.c.l.b16 %v87
    %v285 = vunpack.c.h.b16 %v87
    %v286 = vunpack.c.l.b16 %v88
    %v287 = vunpack.c.l.b16 %v89
    %v288 = vunpack.c.h.b16 %v89
    %v289 = vunpack.c.l.b16 %v90
    %v290 = vunpack.c.h.b16 %v90
    %v291 = vunpack.c.l.b16 %v91
    %v292 = vunpack.c.l.b16 %v92
    %v293 = vunpack.c.h.b16 %v92
    %v294 = vunpack.c.l.b16 %v93
    %v295 = vunpack.c.h.b16 %v93
    %v296 = vunpack.c.l.b16 %v94
    %v297 = vunpack.c.l.b16 %v95
    %v298 = vunpack.c.h.b16 %v95
    %v299 = vunpack.c.l.b16 %v96
    %v300 = vunpack.c.h.b16 %v96
    %v301 = vunpack.c.l.b16 %v97
    %v302 = vunpack.c.l.b16 %v98
    %v303 = vunpack.c.h.b16 %v98
    %v304 = vunpack.c.l.b16 %v99
    %v305 = vunpack.c.h.b16 %v99
    %v306 = vunpack.c.l.b16 %v100
    %v307 = vunpack.c.l.b16 %v101
    %v308 = vunpack.c.h.b16 %v101
    %v309 = vunpack.c.l.b16 %v102
    %v310 = vunpack.c.h.b16 %v102
    %v311 = vunpack.c.l.b16 %v103
    %v312 = vunpack.c.l.b16 %v104
    %v313 = vunpack.c.h.b16 %v104
    %v314 = vunpack.c.l.b16 %v105
    %v315 = vunpack.c.h.b16 %v105
    %v316 = vunpack.c.l.b16 %v106
    %v317 = vunpack.c.l.b16 %v107
    %v318 = vunpack.c.h.b16 %v107
    %v319 = vunpack.c.l.b16 %v108
    %v320 = vunpack.c.h.b16 %v108
    %v321 = vunpack.c.l.b16 %v109
    %v322 = vunpack.c.l.b16 %v110
    %v323 = vunpack.c.h.b16 %v110
    %v324 = vunpack.c.l.b16 %v111
    %v325 = vunpack.c.h.b16 %v111
    %v326 = vunpack.c.l.b16 %v112
    %v327 = vunpack.c.l.b16 %v113
    %v328 = vunpack.c.h.b16 %v113
    %v329 = vunpack.c.l.b16 %v114
    %v330 = vunpack.c.h.b16 %v114
    %v331 = vunpack.c.l.b16 %v115
    %v332 = vunpack.c.l.b16 %v116
    %v333 = vunpack.c.h.b16 %v116
    %v334 = vunpack.c.l.b16 %v117
    %v335 = vunpack.c.h.b16 %v117
    %v336 = vunpack.c.l.b16 %v118
    %v337 = vunpack.c.l.b16 %v119
    %v338 = vunpack.c.h.b16 %v119
    %v339 = vunpack.c.l.b16 %v120
    %v340 = vunpack.c.h.b16 %v120
    %v341 = vunpack.c.l.b16 %v121
    %v342 = vunpack.c.l.b16 %v122
    %v343 = vunpack.c.h.b16 %v122
    %v344 = vunpack.c.l.b16 %v123
    %v345 = vunpack.c.h.b16 %v123
    %v346 = vunpack.c.l.b16 %v124
    %v347 = vunpack.c.l.b16 %v125
    %v348 = vunpack.c.h.b16 %v125
    %v349 = vunpack.c.l.b16 %v126
    %v350 = vunpack.c.h.b16 %v126
    %v351 = vunpack.c.l.b16 %v127
    %v352 = vunpack.c.l.b16 %v128
    %v353 = vunpack.c.h.b16 %v128
    %v354 = vunpack.c.l.b16 %v129
    %v355 = vunpack.c.h.b16 %v129
    %v356 = vunpack.c.l.b16 %v130
    %v357 = vunpack.c.l.b16 %v131
    %v358 = vunpack.c.h.b16 %v131
    %v359 = vunpack.c.l.b16 %v132
    %v360 = vunpack.c.h.b16 %v132
    %v361 = vunpack.c.l.b16 %v133
    %v362 = vunpack.c.l.b16 %v134
    %v363 = vunpack.c.h.b16 %v134
    %v364 = vunpack.c.l.b16 %v135
    %v365 = vunpack.c.h.b16 %v135
    %v366 = vunpack.c.l.b16 %v136
    %v367 = vunpack.c.l.b16 %v137
    %v368 = vunpack.c.h.b16 %v137
    %v369 = vunpack.c.l.b16 %v138
    %v370 = vunpack.c.h.b16 %v138
    %v371 = vunpack.c.l.b16 %v139
    %v372 = vunpack.c.l.b16 %v140
    %v373 = vunpack.c.h.b16 %v140
    %v374 = vunpack.c.l.b16 %v141
    %v375 = vunpack.c.h.b16 %v141
    %v376 = vunpack.c.l.b16 %v142
    %v377 = vunpack.c.l.b16 %v143
    %v378 = vunpack.c.h.b16 %v143
    %v379 = vunpack.c.l.b16 %v144
    %v380 = vunpack.c.h.b16 %v144
    %v381 = vunpack.c.l.b16 %v145
    %v382 = vunpack.c.l.b16 %v146
    %v383 = vunpack.c.h.b16 %v146
    %v384 = vunpack.c.l.b16 %v147
    %v385 = vunpack.c.h.b16 %v147
    %v386 = vunpack.c.l.b16 %v148
    %v387 = vunpack.c.l.b16 %v149
    %v388 = vunpack.c.h.b16 %v149
    %v389 = vunpack.c.l.b16 %v150
    %v390 = vunpack.c.h.b16 %v150
    %v391 = vunpack.c.l.b16 %v151
    %v392 = vunpack.c.l.b16 %v152
    %v393 = vunpack.c.h.b16 %v152
    %v394 = vunpack.c.l.b16 %v153
    %v395 = vunpack.c.h.b16 %v153
    %v396 = vunpack.c.l.b16 %v154
    %v397 = vunpack.c.l.b16 %v155
    %v398 = vunpack.c.h.b16 %v155
    %v399 = vunpack.c.l.b16 %v156
    %v400 = vunpack.c.h.b16 %v156
    %v401 = vunpack.c.l.b16 %v157
    %v402 = vunpack.c.l.b16 %v158
    %v403 = vunpack.c.h.b16 %v158
    %v404 = vunpack.c.l.b16 %v159
    %v405 = vunpack.c.h.b16 %v159
    %v406 = vunpack.c.l.b16 %v160
    %v407 = vunpack.c.l.b16 %v161
    %v408 = vunpack.c.h.b16 %v161
    %v409 = vunpack.c.l.b16 %v162
    %v410 = vunpack.c.h.b16 %v162
    %v411 = vunpack.c.l.b16 %v163
    %v412 = vunpack.c.l.b16 %v164
    %v413 = vunpack.c.h.b16 %v164
    %v414 = vunpack.c.l.b16 %v165
    %v415 = vunpack.c.h.b16 %v165
    %v416 = vunpack.c.l.b16 %v166
    %v417 = vunpack.c.l.b16 %v167
    %v418 = vunpack.c.h.b16 %v167
    %v419 = vunpack.c.l.b16 %v168
    %v420 = vunpack.c.h.b16 %v168
    %v421 = vunpack.c.l.b16 %v169
    %v422 = vunpack.c.l.b16 %v170
    %v423 = vunpack.c.h.b16 %v170
    %v424 = vunpack.c.l.b16 %v171
    %v425 = vunpack.c.h.b16 %v171
    %v426 = vunpack.c.l.b16 %v172
    %v427 = vunpack.c.l.b16 %v173
    %v428 = vunpack.c.h.b16 %v173
    %v429 = vunpack.c.l.b16 %v174
    %v430 = vunpack.c.h.b16 %v174
    %v431 = vunpack.c.l.b16 %v175
    %v432 = vpack.c.b16 %v277, %v272
    %v433 = vpack.c.b16 %v278, %v273
    %v434 = vpack.c.b16 %v279, %v274
    %v435 = vpack.c.b16 %v280, %v275
    %v436 = vpack.c.b16 %v281, %v276
    %v437 = vpack.c.b16 %v287, %v282
    %v438 = vpack.c.b16 %v288, %v283
    %v439 = vpack.c.b16 %v289, %v284
    %v440 = vpack.c.b16 %v290, %v285
    %v441 = vpack.c.b16 %v291, %v286
    %v442 = vpack.c.b16 %v297, %v292
    %v443 = vpack.c.b16 %v298, %v293
    %v444 = vpack.c.b16 %v299, %v294
    %v445 = vpack.c.b16 %v300, %v295
    %v446 = vpack.c.b16 %v301, %v296
    %v447 = vpack.c.b16 %v307, %v302
    %v448 = vpack.c.b16 %v308, %v303
    %v449 = vpack.c.b16 %v309, %v304
    %v450 = vpack.c.b16 %v310, %v305
    %v451 = vpack.c.b16 %v311, %v306
    %v452 = vpack.c.b16 %v317, %v312
    %v453 = vpack.c.b16 %v318, %v313
    %v454 = vpack.c.b16 %v319, %v314
    %v455 = vpack.c.b16 %v320, %v315
    %v456 = vpack.c.b16 %v321, %v316
    %v457 = vpack.c.b16 %v327, %v322
    %v458 = vpack.c.b16 %v328, %v323
    %v459 = vpack.c.b16 %v329, %v324
    %v460 = vpack.c.b16 %v330, %v325
    %v461 = vpack.c.b16 %v331, %v326
    %v462 = vpack.c.b16 %v337, %v332
    %v463 = vpack.c.b16 %v338, %v333
    %v464 = vpack.c.b16 %v339, %v334
    %v465 = vpack.c.b16 %v340, %v335
    %v466 = vpack.c.b16 %v341, %v336
    %v467 = vpack.c.b16 %v347, %v342
    %v468 = vpack.c.b16 %v348, %v343
    %v469 = vpack.c.b16 %v349, %v344
    %v470 = vpack.c.b16 %v350, %v345
    %v471 = vpack.c.b16 %v351, %v346
    %v472 = vpack.c.b16 %v357, %v352
    %v473 = vpack.c.b16 %v358, %v353
    %v474 = vpack.c.b16 %v359, %v354
    %v475 = vpack.c.b16 %v360, %v355
    %v476 = vpack.c.b16 %v361, %v356
    %v477 = vpack.c.b16 %v367, %v362
    %v478 = vpack.c.b16 %v368, %v363
    %v479 = vpack.c.b16 %v369, %v364
    %v480 = vpack.c.b16 %v370, %v365
    %v481 = vpack.c.b16 %v371, %v366
    %v482 = vpack.c.b16 %v377, %v372
    %v483 = vpack.c.b16 %v378, %v373
    %v484 = vpack.c.b16 %v379, %v374
    %v485 = vpack.c.b16 %v380, %v375
    %v486 = vpack.c.b16 %v381, %v376
    %v487 = vpack.c.b16 %v387, %v382
    %v488 = vpack.c.b16 %v388, %v383
    %v489 = vpack.c.b16 %v389, %v384
    %v490 = vpack.c.b16 %v390, %v385
    %v491 = vpack.c.b16 %v391, %v386
    %v492 = vpack.c.b16 %v397, %v392
    %v493 = vpack.c.b16 %v398, %v393
    %v494 = vpack.c.b16 %v399, %v394
    %v495 = vpack.c.b16 %v400, %v395
    %v496 = vpack.c.b16 %v401, %v396
    %v497 = vpack.c.b16 %v407, %v402
    %v498 = vpack.c.b16 %v408, %v403
    %v499 = vpack.c.b16 %v409, %v404
    %v500 = vpack.c.b16 %v410, %v405
    %v501 = vpack.c.b16 %v411, %v406
    %v502 = vpack.c.b16 %v417, %v412
    %v503 = vpack.c.b16 %v418, %v413
    %v504 = vpack.c.b16 %v419, %v414
    %v505 = vpack.c.b16 %v420, %v415
    %v506 = vpack.c.b16 %v421, %v416
    %v507 = vpack.c.b16 %v427, %v422
    %v508 = vpack.c.b16 %v428, %v423
    %v509 = vpack.c.b16 %v429, %v424
    %v510 = vpack.c.b16 %v430, %v425
    %v511 = vpack.c.b16 %v431, %v426
    %592 = vmatprep.subr.bf16.mxu0 %v433
    %593 = vmatpush1.bf16.msra.mxu0 %v432
    %594 = vmatprep.subr.bf16.mxu0 %v438
    %595 = vmatpush1.bf16.msra.mxu0 %v437
    %596 = vmatprep.subr.bf16.mxu0 %v443
    %597 = vmatpush1.bf16.msra.mxu0 %v442
    %598 = vmatprep.subr.bf16.mxu0 %v448
    %599 = vmatpush1.bf16.msra.mxu0 %v447
    %600 = vmatprep.subr.bf16.mxu0 %v453
    %601 = vmatpush1.bf16.msra.mxu0 %v452
    %602 = vmatprep.subr.bf16.mxu0 %v458
    %603 = vmatpush1.bf16.msra.mxu0 %v457
    %604 = vmatprep.subr.bf16.mxu0 %v463
    %605 = vmatpush1.bf16.msra.mxu0 %v462
    %606 = vmatprep.subr.bf16.mxu0 %v468
    %607 = vmatpush1.bf16.msra.mxu0 %v467
    %608 = vmatprep.subr.bf16.mxu0 %v473
    %609 = vmatpush1.bf16.msra.mxu0 %v472
    %610 = vmatprep.subr.bf16.mxu0 %v478
    %611 = vmatpush1.bf16.msra.mxu0 %v477
    %612 = vmatprep.subr.bf16.mxu0 %v483
    %613 = vmatpush1.bf16.msra.mxu0 %v482
    %614 = vmatprep.subr.bf16.mxu0 %v488
    %615 = vmatpush1.bf16.msra.mxu0 %v487
    %616 = vmatprep.subr.bf16.mxu0 %v493
    %617 = vmatpush1.bf16.msra.mxu0 %v492
    %618 = vmatprep.subr.bf16.mxu0 %v498
    %619 = vmatpush1.bf16.msra.mxu0 %v497
    %620 = vmatprep.subr.bf16.mxu0 %v503
    %621 = vmatpush1.bf16.msra.mxu0 %v502
    %622 = vmatprep.subr.bf16.mxu0 %v508
    %623 = vmatpush1.bf16.msra.mxu0 %v507
    %624 = vmatprep.mubr.bf16.mxu0 %v79
    %625 = vmatmul.mubr.bf16.gmra.mrb[0].mxu0 %v78
    %v626 = vpop.f32.mrb[0].mxu0
    %v627 = vadd.f32 0.0, %v626
    %v628 = vpop.f32.mrb[0].mxu0
    %v629 = vadd.f32 0.0, %v628
    %v630 = vpop.f32.mrb[0].mxu0
    %v631 = vpop.f32.mrb[0].mxu0
    %632 = vdwg.mxu0
    %633 = vmatprep.subr.bf16.mxu0 %v435
    %634 = vmatpush1.bf16.msra.mxu0 %v434
    %635 = vmatprep.subr.bf16.mxu0 %v440
    %636 = vmatpush1.bf16.msra.mxu0 %v439
    %637 = vmatprep.subr.bf16.mxu0 %v445
    %638 = vmatpush1.bf16.msra.mxu0 %v444
    %639 = vmatprep.subr.bf16.mxu0 %v450
    %640 = vmatpush1.bf16.msra.mxu0 %v449
    %641 = vmatprep.subr.bf16.mxu0 %v455
    %642 = vmatpush1.bf16.msra.mxu0 %v454
    %643 = vmatprep.subr.bf16.mxu0 %v460
    %644 = vmatpush1.bf16.msra.mxu0 %v459
    %645 = vmatprep.subr.bf16.mxu0 %v465
    %646 = vmatpush1.bf16.msra.mxu0 %v464
    %647 = vmatprep.subr.bf16.mxu0 %v470
    %648 = vmatpush1.bf16.msra.mxu0 %v469
    %649 = vmatprep.subr.bf16.mxu0 %v475
    %650 = vmatpush1.bf16.msra.mxu0 %v474
    %651 = vmatprep.subr.bf16.mxu0 %v480
    %652 = vmatpush1.bf16.msra.mxu0 %v479
    %653 = vmatprep.subr.bf16.mxu0 %v485
    %654 = vmatpush1.bf16.msra.mxu0 %v484
    %655 = vmatprep.subr.bf16.mxu0 %v490
    %656 = vmatpush1.bf16.msra.mxu0 %v489
    %657 = vmatprep.subr.bf16.mxu0 %v495
    %658 = vmatpush1.bf16.msra.mxu0 %v494
    %659 = vmatprep.subr.bf16.mxu0 %v500
    %660 = vmatpush1.bf16.msra.mxu0 %v499
    %661 = vmatprep.subr.bf16.mxu0 %v505
    %662 = vmatpush1.bf16.msra.mxu0 %v504
    %663 = vmatprep.subr.bf16.mxu0 %v510
    %664 = vmatpush1.bf16.msra.mxu0 %v509
    %665 = vmatprep.mubr.bf16.mxu0 %v79
    %666 = vmatmul.mubr.bf16.gmra.mrb[0].mxu0 %v78
    %v667 = vpop.f32.mrb[0].mxu0
    %v668 = vadd.f32 0.0, %v667
    %v669 = vpop.f32.mrb[0].mxu0
    %v670 = vadd.f32 0.0, %v669
    %v671 = vpop.f32.mrb[0].mxu0
    %v672 = vpop.f32.mrb[0].mxu0
    %673 = vdwg.mxu0
    %674 = vmatprep.subr.bf16.mxu0 0
    %675 = vmatpush1.bf16.msra.mxu0 %v436
    %676 = vmatprep.subr.bf16.mxu0 0
    %677 = vmatpush1.bf16.msra.mxu0 %v441
    %678 = vmatprep.subr.bf16.mxu0 0
    %679 = vmatpush1.bf16.msra.mxu0 %v446
    %680 = vmatprep.subr.bf16.mxu0 0
    %681 = vmatpush1.bf16.msra.mxu0 %v451
    %682 = vmatprep.subr.bf16.mxu0 0
    %683 = vmatpush1.bf16.msra.mxu0 %v456
    %684 = vmatprep.subr.bf16.mxu0 0
    %685 = vmatpush1.bf16.msra.mxu0 %v461
    %686 = vmatprep.subr.bf16.mxu0 0
    %687 = vmatpush1.bf16.msra.mxu0 %v466
    %688 = vmatprep.subr.bf16.mxu0 0
    %689 = vmatpush1.bf16.msra.mxu0 %v471
    %690 = vmatprep.subr.bf16.mxu0 0
    %691 = vmatpush1.bf16.msra.mxu0 %v476
    %692 = vmatprep.subr.bf16.mxu0 0
    %693 = vmatpush1.bf16.msra.mxu0 %v481
    %694 = vmatprep.subr.bf16.mxu0 0
    %695 = vmatpush1.bf16.msra.mxu0 %v486
    %696 = vmatprep.subr.bf16.mxu0 0
    %697 = vmatpush1.bf16.msra.mxu0 %v491
    %698 = vmatprep.subr.bf16.mxu0 0
    %699 = vmatpush1.bf16.msra.mxu0 %v496
    %700 = vmatprep.subr.bf16.mxu0 0
    %701 = vmatpush1.bf16.msra.mxu0 %v501
    %702 = vmatprep.subr.bf16.mxu0 0
    %703 = vmatpush1.bf16.msra.mxu0 %v506
    %704 = vmatprep.subr.bf16.mxu0 0
    %705 = vmatpush1.bf16.msra.mxu0 %v511
    %706 = vmatprep.mubr.bf16.mxu0 %v79
    %707 = vmatmul.mubr.bf16.gmra.mrb[0].mxu0 %v78
    %v708 = vpop.f32.mrb[0].mxu0
    %v709 = vadd.f32 0.0, %v708
    %v710 = vpop.f32.mrb[0].mxu0
    %v711 = vpop.f32.mrb[0].mxu0
    %v712 = vpop.f32.mrb[0].mxu0
    %713 = vdwg.mxu0
    %v714 = vpack.c.bf16 %v627, %v627
    %v715 = vpack.c.bf16 %v629, %v629
    %v716 = vpack.c.bf16 %v668, %v668
    %v717 = vpack.c.bf16 %v670, %v670
    %v718 = vpack.c.bf16 %v709, %v709
    %v719 = vld [vmem:[%s3] sm:$0xf]
    %v720 = vld [vmem:[%s3 + $0x4] sm:$0xf]
    %s721 = scalar_lea.vmem %s3, 8
    %v722 = vld [vmem:[%s721] sm:$0xf]
    %v723 = vld [vmem:[%s721 + $0x4] sm:$0xf]
    %v726 = vunpack.c.l.b16 %v722
    %v727 = vunpack.c.l.b16 %v723
    %v728 = vpack.c.b16 %v727, %v726
    %730 = vrot.lane.b32.xlu0 %v714, 64
    %v731 = vpop.permute.xlu0 %730
    %vm732 = vcmask 64512
    %v734 = vsel %vm732, %v728, 0
    %vm736 = vcmask 1043456
    %v738 = vsel %vm736, %v731, 0
    %740 = vmatprep.subr.bf16.mxu0 0
    %741 = vmatpush1.bf16.msra.mxu0 %v738
    %742 = vmatprep.subr.bf16.mxu0 0
    %743 = vmatpush1.bf16.msra.mxu0 0
    %744 = vmatprep.subr.bf16.mxu0 0
    %745 = vmatpush1.bf16.msra.mxu0 0
    %746 = vmatprep.subr.bf16.mxu0 0
    %747 = vmatpush1.bf16.msra.mxu0 0
    %748 = vmatprep.subr.bf16.mxu0 0
    %749 = vmatpush1.bf16.msra.mxu0 0
    %750 = vmatprep.subr.bf16.mxu0 0
    %751 = vmatpush1.bf16.msra.mxu0 0
    %752 = vmatprep.subr.bf16.mxu0 0
    %753 = vmatpush1.bf16.msra.mxu0 0
    %754 = vmatprep.subr.bf16.mxu0 0
    %755 = vmatpush1.bf16.msra.mxu0 0
    %756 = vmatprep.subr.bf16.mxu0 0
    %757 = vmatpush1.bf16.msra.mxu0 0
    %758 = vmatprep.subr.bf16.mxu0 0
    %759 = vmatpush1.bf16.msra.mxu0 0
    %760 = vmatprep.subr.bf16.mxu0 0
    %761 = vmatpush1.bf16.msra.mxu0 0
    %762 = vmatprep.subr.bf16.mxu0 0
    %763 = vmatpush1.bf16.msra.mxu0 0
    %764 = vmatprep.subr.bf16.mxu0 0
    %765 = vmatpush1.bf16.msra.mxu0 0
    %766 = vmatprep.subr.bf16.mxu0 0
    %767 = vmatpush1.bf16.msra.mxu0 0
    %768 = vmatprep.subr.bf16.mxu0 0
    %769 = vmatpush1.bf16.msra.mxu0 0
    %770 = vmatprep.subr.bf16.mxu0 0
    %771 = vmatpush1.bf16.msra.mxu0 0
    %772 = vmatprep.mubr.bf16.mxu0 0
    %773 = vmatmul.mubr.bf16.gmra.mrb[0].mxu0 %v734
    %v774 = vpop.f32.mrb[0].mxu0
    %v775 = vadd.f32 0.0, %v774
    %v776 = vpop.f32.mrb[0].mxu0
    %v777 = vpop.f32.mrb[0].mxu0
    %v778 = vadd.f32 0.0, %v777
    %v779 = vpop.f32.mrb[0].mxu0
    %780 = vdwg.mxu0
    %v783 = vunpack.c.l.b16 %v719
    %v784 = vunpack.c.l.b16 %v720
    %v785 = vpack.c.b16 %v784, %v783
    %v787 = vsel %vm732, %v785, 0
    %v790 = vsel %vm736, %v714, 0
    %792 = vmatprep.subr.bf16.mxu0 0
    %793 = vmatpush1.bf16.msra.mxu0 %v790
    %794 = vmatprep.subr.bf16.mxu0 0
    %795 = vmatpush1.bf16.msra.mxu0 0
    %796 = vmatprep.subr.bf16.mxu0 0
    %797 = vmatpush1.bf16.msra.mxu0 0
    %798 = vmatprep.subr.bf16.mxu0 0
    %799 = vmatpush1.bf16.msra.mxu0 0
    %800 = vmatprep.subr.bf16.mxu0 0
    %801 = vmatpush1.bf16.msra.mxu0 0
    %802 = vmatprep.subr.bf16.mxu0 0
    %803 = vmatpush1.bf16.msra.mxu0 0
    %804 = vmatprep.subr.bf16.mxu0 0
    %805 = vmatpush1.bf16.msra.mxu0 0
    %806 = vmatprep.subr.bf16.mxu0 0
    %807 = vmatpush1.bf16.msra.mxu0 0
    %808 = vmatprep.subr.bf16.mxu0 0
    %809 = vmatpush1.bf16.msra.mxu0 0
    %810 = vmatprep.subr.bf16.mxu0 0
    %811 = vmatpush1.bf16.msra.mxu0 0
    %812 = vmatprep.subr.bf16.mxu0 0
    %813 = vmatpush1.bf16.msra.mxu0 0
    %814 = vmatprep.subr.bf16.mxu0 0
    %815 = vmatpush1.bf16.msra.mxu0 0
    %816 = vmatprep.subr.bf16.mxu0 0
    %817 = vmatpush1.bf16.msra.mxu0 0
    %818 = vmatprep.subr.bf16.mxu0 0
    %819 = vmatpush1.bf16.msra.mxu0 0
    %820 = vmatprep.subr.bf16.mxu0 0
    %821 = vmatpush1.bf16.msra.mxu0 0
    %822 = vmatprep.subr.bf16.mxu0 0
    %823 = vmatpush1.bf16.msra.mxu0 0
    %824 = vmatprep.mubr.bf16.mxu0 0
    %825 = vmatmul.mubr.bf16.gmra.mrb[0].mxu0 %v787
    %v826 = vpop.f32.mrb[0].mxu0
    %v827 = vadd.f32 %v775, %v826
    %v828 = vpop.f32.mrb[0].mxu0
    %v829 = vpop.f32.mrb[0].mxu0
    %v830 = vadd.f32 %v778, %v829
    %v831 = vpop.f32.mrb[0].mxu0
    %832 = vdwg.mxu0
    %s833 = scalar_lea.vmem %s3, 16
    %v834 = vld [vmem:[%s833] sm:$0xf]
    %v835 = vld [vmem:[%s833 + $0x4] sm:$0xf]
    %v838 = vunpack.c.l.b16 %v834
    %v839 = vunpack.c.l.b16 %v835
    %v840 = vpack.c.b16 %v839, %v838
    %v842 = vsel %vm732, %v840, 0
    %v845 = vsel %vm736, %v715, 0
    %847 = vmatprep.subr.bf16.mxu0 0
    %848 = vmatpush1.bf16.msra.mxu0 %v845
    %849 = vmatprep.subr.bf16.mxu0 0
    %850 = vmatpush1.bf16.msra.mxu0 0
    %851 = vmatprep.subr.bf16.mxu0 0
    %852 = vmatpush1.bf16.msra.mxu0 0
    %853 = vmatprep.subr.bf16.mxu0 0
    %854 = vmatpush1.bf16.msra.mxu0 0
    %855 = vmatprep.subr.bf16.mxu0 0
    %856 = vmatpush1.bf16.msra.mxu0 0
    %857 = vmatprep.subr.bf16.mxu0 0
    %858 = vmatpush1.bf16.msra.mxu0 0
    %859 = vmatprep.subr.bf16.mxu0 0
    %860 = vmatpush1.bf16.msra.mxu0 0
    %861 = vmatprep.subr.bf16.mxu0 0
    %862 = vmatpush1.bf16.msra.mxu0 0
    %863 = vmatprep.subr.bf16.mxu0 0
    %864 = vmatpush1.bf16.msra.mxu0 0
    %865 = vmatprep.subr.bf16.mxu0 0
    %866 = vmatpush1.bf16.msra.mxu0 0
    %867 = vmatprep.subr.bf16.mxu0 0
    %868 = vmatpush1.bf16.msra.mxu0 0
    %869 = vmatprep.subr.bf16.mxu0 0
    %870 = vmatpush1.bf16.msra.mxu0 0
    %871 = vmatprep.subr.bf16.mxu0 0
    %872 = vmatpush1.bf16.msra.mxu0 0
    %873 = vmatprep.subr.bf16.mxu0 0
    %874 = vmatpush1.bf16.msra.mxu0 0
    %875 = vmatprep.subr.bf16.mxu0 0
    %876 = vmatpush1.bf16.msra.mxu0 0
    %877 = vmatprep.subr.bf16.mxu0 0
    %878 = vmatpush1.bf16.msra.mxu0 0
    %879 = vmatprep.mubr.bf16.mxu0 0
    %880 = vmatmul.mubr.bf16.gmra.mrb[0].mxu0 %v842
    %v881 = vpop.f32.mrb[0].mxu0
    %v882 = vadd.f32 0.0, %v881
    %v883 = vpop.f32.mrb[0].mxu0
    %v884 = vpop.f32.mrb[0].mxu0
    %v885 = vadd.f32 0.0, %v884
    %v886 = vpop.f32.mrb[0].mxu0
    %887 = vdwg.mxu0
    %v888 = vadd.f32 %v827, %v882
    %v889 = vadd.f32 %v830, %v885
    %s890 = scalar_lea.vmem %s3, 24
    %v891 = vld [vmem:[%s890] sm:$0xf]
    %v892 = vld [vmem:[%s890 + $0x4] sm:$0xf]
    %v895 = vunpack.c.l.b16 %v891
    %v896 = vunpack.c.l.b16 %v892
    %v897 = vpack.c.b16 %v896, %v895
    %899 = vrot.lane.b32.xlu0 %v715, 64
    %v900 = vpop.permute.xlu0 %899
    %v902 = vsel %vm732, %v897, 0
    %v905 = vsel %vm736, %v900, 0
    %907 = vmatprep.subr.bf16.mxu0 0
    %908 = vmatpush1.bf16.msra.mxu0 %v905
    %909 = vmatprep.subr.bf16.mxu0 0
    %910 = vmatpush1.bf16.msra.mxu0 0
    %911 = vmatprep.subr.bf16.mxu0 0
    %912 = vmatpush1.bf16.msra.mxu0 0
    %913 = vmatprep.subr.bf16.mxu0 0
    %914 = vmatpush1.bf16.msra.mxu0 0
    %915 = vmatprep.subr.bf16.mxu0 0
    %916 = vmatpush1.bf16.msra.mxu0 0
    %917 = vmatprep.subr.bf16.mxu0 0
    %918 = vmatpush1.bf16.msra.mxu0 0
    %919 = vmatprep.subr.bf16.mxu0 0
    %920 = vmatpush1.bf16.msra.mxu0 0
    %921 = vmatprep.subr.bf16.mxu0 0
    %922 = vmatpush1.bf16.msra.mxu0 0
    %923 = vmatprep.subr.bf16.mxu0 0
    %924 = vmatpush1.bf16.msra.mxu0 0
    %925 = vmatprep.subr.bf16.mxu0 0
    %926 = vmatpush1.bf16.msra.mxu0 0
    %927 = vmatprep.subr.bf16.mxu0 0
    %928 = vmatpush1.bf16.msra.mxu0 0
    %929 = vmatprep.subr.bf16.mxu0 0
    %930 = vmatpush1.bf16.msra.mxu0 0
    %931 = vmatprep.subr.bf16.mxu0 0
    %932 = vmatpush1.bf16.msra.mxu0 0
    %933 = vmatprep.subr.bf16.mxu0 0
    %934 = vmatpush1.bf16.msra.mxu0 0
    %935 = vmatprep.subr.bf16.mxu0 0
    %936 = vmatpush1.bf16.msra.mxu0 0
    %937 = vmatprep.subr.bf16.mxu0 0
    %938 = vmatpush1.bf16.msra.mxu0 0
    %939 = vmatprep.mubr.bf16.mxu0 0
    %940 = vmatmul.mubr.bf16.gmra.mrb[0].mxu0 %v902
    %v941 = vpop.f32.mrb[0].mxu0
    %v942 = vadd.f32 0.0, %v941
    %v943 = vpop.f32.mrb[0].mxu0
    %v944 = vpop.f32.mrb[0].mxu0
    %v945 = vadd.f32 0.0, %v944
    %v946 = vpop.f32.mrb[0].mxu0
    %947 = vdwg.mxu0
    %v948 = vadd.f32 %v888, %v942
    %v949 = vadd.f32 %v889, %v945
    %s950 = scalar_lea.vmem %s3, 32
    %v951 = vld [vmem:[%s950] sm:$0xf]
    %v952 = vld [vmem:[%s950 + $0x4] sm:$0xf]
    %v955 = vunpack.c.l.b16 %v951
    %v956 = vunpack.c.l.b16 %v952
    %v957 = vpack.c.b16 %v956, %v955
    %v959 = vsel %vm732, %v957, 0
    %v962 = vsel %vm736, %v716, 0
    %964 = vmatprep.subr.bf16.mxu0 0
    %965 = vmatpush1.bf16.msra.mxu0 %v962
    %966 = vmatprep.subr.bf16.mxu0 0
    %967 = vmatpush1.bf16.msra.mxu0 0
    %968 = vmatprep.subr.bf16.mxu0 0
    %969 = vmatpush1.bf16.msra.mxu0 0
    %970 = vmatprep.subr.bf16.mxu0 0
    %971 = vmatpush1.bf16.msra.mxu0 0
    %972 = vmatprep.subr.bf16.mxu0 0
    %973 = vmatpush1.bf16.msra.mxu0 0
    %974 = vmatprep.subr.bf16.mxu0 0
    %975 = vmatpush1.bf16.msra.mxu0 0
    %976 = vmatprep.subr.bf16.mxu0 0
    %977 = vmatpush1.bf16.msra.mxu0 0
    %978 = vmatprep.subr.bf16.mxu0 0
    %979 = vmatpush1.bf16.msra.mxu0 0
    %980 = vmatprep.subr.bf16.mxu0 0
    %981 = vmatpush1.bf16.msra.mxu0 0
    %982 = vmatprep.subr.bf16.mxu0 0
    %983 = vmatpush1.bf16.msra.mxu0 0
    %984 = vmatprep.subr.bf16.mxu0 0
    %985 = vmatpush1.bf16.msra.mxu0 0
    %986 = vmatprep.subr.bf16.mxu0 0
    %987 = vmatpush1.bf16.msra.mxu0 0
    %988 = vmatprep.subr.bf16.mxu0 0
    %989 = vmatpush1.bf16.msra.mxu0 0
    %990 = vmatprep.subr.bf16.mxu0 0
    %991 = vmatpush1.bf16.msra.mxu0 0
    %992 = vmatprep.subr.bf16.mxu0 0
    %993 = vmatpush1.bf16.msra.mxu0 0
    %994 = vmatprep.subr.bf16.mxu0 0
    %995 = vmatpush1.bf16.msra.mxu0 0
    %996 = vmatprep.mubr.bf16.mxu0 0
    %997 = vmatmul.mubr.bf16.gmra.mrb[0].mxu0 %v959
    %v998 = vpop.f32.mrb[0].mxu0
    %v999 = vadd.f32 0.0, %v998
    %v1000 = vpop.f32.mrb[0].mxu0
    %v1001 = vpop.f32.mrb[0].mxu0
    %v1002 = vadd.f32 0.0, %v1001
    %v1003 = vpop.f32.mrb[0].mxu0
    %1004 = vdwg.mxu0
    %v1005 = vadd.f32 %v948, %v999
    %v1006 = vadd.f32 %v949, %v1002
    %s1007 = scalar_lea.vmem %s3, 40
    %v1008 = vld [vmem:[%s1007] sm:$0xf]
    %v1009 = vld [vmem:[%s1007 + $0x4] sm:$0xf]
    %v1012 = vunpack.c.l.b16 %v1008
    %v1013 = vunpack.c.l.b16 %v1009
    %v1014 = vpack.c.b16 %v1013, %v1012
    %1016 = vrot.lane.b32.xlu0 %v716, 64
    %v1017 = vpop.permute.xlu0 %1016
    %v1019 = vsel %vm732, %v1014, 0
    %v1022 = vsel %vm736, %v1017, 0
    %1024 = vmatprep.subr.bf16.mxu0 0
    %1025 = vmatpush1.bf16.msra.mxu0 %v1022
    %1026 = vmatprep.subr.bf16.mxu0 0
    %1027 = vmatpush1.bf16.msra.mxu0 0
    %1028 = vmatprep.subr.bf16.mxu0 0
    %1029 = vmatpush1.bf16.msra.mxu0 0
    %1030 = vmatprep.subr.bf16.mxu0 0
    %1031 = vmatpush1.bf16.msra.mxu0 0
    %1032 = vmatprep.subr.bf16.mxu0 0
    %1033 = vmatpush1.bf16.msra.mxu0 0
    %1034 = vmatprep.subr.bf16.mxu0 0
    %1035 = vmatpush1.bf16.msra.mxu0 0
    %1036 = vmatprep.subr.bf16.mxu0 0
    %1037 = vmatpush1.bf16.msra.mxu0 0
    %1038 = vmatprep.subr.bf16.mxu0 0
    %1039 = vmatpush1.bf16.msra.mxu0 0
    %1040 = vmatprep.subr.bf16.mxu0 0
    %1041 = vmatpush1.bf16.msra.mxu0 0
    %1042 = vmatprep.subr.bf16.mxu0 0
    %1043 = vmatpush1.bf16.msra.mxu0 0
    %1044 = vmatprep.subr.bf16.mxu0 0
    %1045 = vmatpush1.bf16.msra.mxu0 0
    %1046 = vmatprep.subr.bf16.mxu0 0
    %1047 = vmatpush1.bf16.msra.mxu0 0
    %1048 = vmatprep.subr.bf16.mxu0 0
    %1049 = vmatpush1.bf16.msra.mxu0 0
    %1050 = vmatprep.subr.bf16.mxu0 0
    %1051 = vmatpush1.bf16.msra.mxu0 0
    %1052 = vmatprep.subr.bf16.mxu0 0
    %1053 = vmatpush1.bf16.msra.mxu0 0
    %1054 = vmatprep.subr.bf16.mxu0 0
    %1055 = vmatpush1.bf16.msra.mxu0 0
    %1056 = vmatprep.mubr.bf16.mxu0 0
    %1057 = vmatmul.mubr.bf16.gmra.mrb[0].mxu0 %v1019
    %v1058 = vpop.f32.mrb[0].mxu0
    %v1059 = vadd.f32 0.0, %v1058
    %v1060 = vpop.f32.mrb[0].mxu0
    %v1061 = vpop.f32.mrb[0].mxu0
    %v1062 = vadd.f32 0.0, %v1061
    %v1063 = vpop.f32.mrb[0].mxu0
    %1064 = vdwg.mxu0
    %v1065 = vadd.f32 %v1005, %v1059
    %v1066 = vadd.f32 %v1006, %v1062
    %s1067 = scalar_lea.vmem %s3, 48
    %v1068 = vld [vmem:[%s1067] sm:$0xf]
    %v1069 = vld [vmem:[%s1067 + $0x4] sm:$0xf]
    %v1072 = vunpack.c.l.b16 %v1068
    %v1073 = vunpack.c.l.b16 %v1069
    %v1074 = vpack.c.b16 %v1073, %v1072
    %v1076 = vsel %vm732, %v1074, 0
    %v1079 = vsel %vm736, %v717, 0
    %1081 = vmatprep.subr.bf16.mxu0 0
    %1082 = vmatpush1.bf16.msra.mxu0 %v1079
    %1083 = vmatprep.subr.bf16.mxu0 0
    %1084 = vmatpush1.bf16.msra.mxu0 0
    %1085 = vmatprep.subr.bf16.mxu0 0
    %1086 = vmatpush1.bf16.msra.mxu0 0
    %1087 = vmatprep.subr.bf16.mxu0 0
    %1088 = vmatpush1.bf16.msra.mxu0 0
    %1089 = vmatprep.subr.bf16.mxu0 0
    %1090 = vmatpush1.bf16.msra.mxu0 0
    %1091 = vmatprep.subr.bf16.mxu0 0
    %1092 = vmatpush1.bf16.msra.mxu0 0
    %1093 = vmatprep.subr.bf16.mxu0 0
    %1094 = vmatpush1.bf16.msra.mxu0 0
    %1095 = vmatprep.subr.bf16.mxu0 0
    %1096 = vmatpush1.bf16.msra.mxu0 0
    %1097 = vmatprep.subr.bf16.mxu0 0
    %1098 = vmatpush1.bf16.msra.mxu0 0
    %1099 = vmatprep.subr.bf16.mxu0 0
    %1100 = vmatpush1.bf16.msra.mxu0 0
    %1101 = vmatprep.subr.bf16.mxu0 0
    %1102 = vmatpush1.bf16.msra.mxu0 0
    %1103 = vmatprep.subr.bf16.mxu0 0
    %1104 = vmatpush1.bf16.msra.mxu0 0
    %1105 = vmatprep.subr.bf16.mxu0 0
    %1106 = vmatpush1.bf16.msra.mxu0 0
    %1107 = vmatprep.subr.bf16.mxu0 0
    %1108 = vmatpush1.bf16.msra.mxu0 0
    %1109 = vmatprep.subr.bf16.mxu0 0
    %1110 = vmatpush1.bf16.msra.mxu0 0
    %1111 = vmatprep.subr.bf16.mxu0 0
    %1112 = vmatpush1.bf16.msra.mxu0 0
    %1113 = vmatprep.mubr.bf16.mxu0 0
    %1114 = vmatmul.mubr.bf16.gmra.mrb[0].mxu0 %v1076
    %v1115 = vpop.f32.mrb[0].mxu0
    %v1116 = vadd.f32 0.0, %v1115
    %v1117 = vpop.f32.mrb[0].mxu0
    %v1118 = vpop.f32.mrb[0].mxu0
    %v1119 = vadd.f32 0.0, %v1118
    %v1120 = vpop.f32.mrb[0].mxu0
    %1121 = vdwg.mxu0
    %v1122 = vadd.f32 %v1065, %v1116
    %v1123 = vadd.f32 %v1066, %v1119
    %s1124 = scalar_lea.vmem %s3, 56
    %v1125 = vld [vmem:[%s1124] sm:$0xf]
    %v1126 = vld [vmem:[%s1124 + $0x4] sm:$0xf]
    %v1129 = vunpack.c.l.b16 %v1125
    %v1130 = vunpack.c.l.b16 %v1126
    %v1131 = vpack.c.b16 %v1130, %v1129
    %1133 = vrot.lane.b32.xlu0 %v717, 64
    %v1134 = vpop.permute.xlu0 %1133
    %v1136 = vsel %vm732, %v1131, 0
    %v1139 = vsel %vm736, %v1134, 0
    %1141 = vmatprep.subr.bf16.mxu0 0
    %1142 = vmatpush1.bf16.msra.mxu0 %v1139
    %1143 = vmatprep.subr.bf16.mxu0 0
    %1144 = vmatpush1.bf16.msra.mxu0 0
    %1145 = vmatprep.subr.bf16.mxu0 0
    %1146 = vmatpush1.bf16.msra.mxu0 0
    %1147 = vmatprep.subr.bf16.mxu0 0
    %1148 = vmatpush1.bf16.msra.mxu0 0
    %1149 = vmatprep.subr.bf16.mxu0 0
    %1150 = vmatpush1.bf16.msra.mxu0 0
    %1151 = vmatprep.subr.bf16.mxu0 0
    %1152 = vmatpush1.bf16.msra.mxu0 0
    %1153 = vmatprep.subr.bf16.mxu0 0
    %1154 = vmatpush1.bf16.msra.mxu0 0
    %1155 = vmatprep.subr.bf16.mxu0 0
    %1156 = vmatpush1.bf16.msra.mxu0 0
    %1157 = vmatprep.subr.bf16.mxu0 0
    %1158 = vmatpush1.bf16.msra.mxu0 0
    %1159 = vmatprep.subr.bf16.mxu0 0
    %1160 = vmatpush1.bf16.msra.mxu0 0
    %1161 = vmatprep.subr.bf16.mxu0 0
    %1162 = vmatpush1.bf16.msra.mxu0 0
    %1163 = vmatprep.subr.bf16.mxu0 0
    %1164 = vmatpush1.bf16.msra.mxu0 0
    %1165 = vmatprep.subr.bf16.mxu0 0
    %1166 = vmatpush1.bf16.msra.mxu0 0
    %1167 = vmatprep.subr.bf16.mxu0 0
    %1168 = vmatpush1.bf16.msra.mxu0 0
    %1169 = vmatprep.subr.bf16.mxu0 0
    %1170 = vmatpush1.bf16.msra.mxu0 0
    %1171 = vmatprep.subr.bf16.mxu0 0
    %1172 = vmatpush1.bf16.msra.mxu0 0
    %1173 = vmatprep.mubr.bf16.mxu0 0
    %1174 = vmatmul.mubr.bf16.gmra.mrb[0].mxu0 %v1136
    %v1175 = vpop.f32.mrb[0].mxu0
    %v1176 = vadd.f32 0.0, %v1175
    %v1177 = vpop.f32.mrb[0].mxu0
    %v1178 = vpop.f32.mrb[0].mxu0
    %v1179 = vadd.f32 0.0, %v1178
    %v1180 = vpop.f32.mrb[0].mxu0
    %1181 = vdwg.mxu0
    %v1182 = vadd.f32 %v1122, %v1176
    %v1183 = vadd.f32 %v1123, %v1179
    %s1184 = scalar_lea.vmem %s3, 64
    %v1185 = vld [vmem:[%s1184] sm:$0xf]
    %v1186 = vld [vmem:[%s1184 + $0x4] sm:$0xf]
    %v1189 = vunpack.c.l.b16 %v1185
    %v1190 = vunpack.c.l.b16 %v1186
    %v1191 = vpack.c.b16 %v1190, %v1189
    %v1193 = vsel %vm732, %v1191, 0
    %v1196 = vsel %vm736, %v718, 0
    %1198 = vmatprep.subr.bf16.mxu0 0
    %1199 = vmatpush1.bf16.msra.mxu0 %v1196
    %1200 = vmatprep.subr.bf16.mxu0 0
    %1201 = vmatpush1.bf16.msra.mxu0 0
    %1202 = vmatprep.subr.bf16.mxu0 0
    %1203 = vmatpush1.bf16.msra.mxu0 0
    %1204 = vmatprep.subr.bf16.mxu0 0
    %1205 = vmatpush1.bf16.msra.mxu0 0
    %1206 = vmatprep.subr.bf16.mxu0 0
    %1207 = vmatpush1.bf16.msra.mxu0 0
    %1208 = vmatprep.subr.bf16.mxu0 0
    %1209 = vmatpush1.bf16.msra.mxu0 0
    %1210 = vmatprep.subr.bf16.mxu0 0
    %1211 = vmatpush1.bf16.msra.mxu0 0
    %1212 = vmatprep.subr.bf16.mxu0 0
    %1213 = vmatpush1.bf16.msra.mxu0 0
    %1214 = vmatprep.subr.bf16.mxu0 0
    %1215 = vmatpush1.bf16.msra.mxu0 0
    %1216 = vmatprep.subr.bf16.mxu0 0
    %1217 = vmatpush1.bf16.msra.mxu0 0
    %1218 = vmatprep.subr.bf16.mxu0 0
    %1219 = vmatpush1.bf16.msra.mxu0 0
    %1220 = vmatprep.subr.bf16.mxu0 0
    %1221 = vmatpush1.bf16.msra.mxu0 0
    %1222 = vmatprep.subr.bf16.mxu0 0
    %1223 = vmatpush1.bf16.msra.mxu0 0
    %1224 = vmatprep.subr.bf16.mxu0 0
    %1225 = vmatpush1.bf16.msra.mxu0 0
    %1226 = vmatprep.subr.bf16.mxu0 0
    %1227 = vmatpush1.bf16.msra.mxu0 0
    %1228 = vmatprep.subr.bf16.mxu0 0
    %1229 = vmatpush1.bf16.msra.mxu0 0
    %1230 = vmatprep.mubr.bf16.mxu0 0
    %1231 = vmatmul.mubr.bf16.gmra.mrb[0].mxu0 %v1193
    %v1232 = vpop.f32.mrb[0].mxu0
    %v1233 = vadd.f32 0.0, %v1232
    %v1234 = vpop.f32.mrb[0].mxu0
    %v1235 = vpop.f32.mrb[0].mxu0
    %v1236 = vadd.f32 0.0, %v1235
    %v1237 = vpop.f32.mrb[0].mxu0
    %1238 = vdwg.mxu0
    %v1239 = vadd.f32 %v1182, %v1233
    %v1240 = vadd.f32 %v1183, %v1236
    %v1241 = vld [vmem:[%s4] sm:$0xff]
    %v1242 = vld [vmem:[%s4 + $0x8] sm:$0xff]
    %1244 = vset.pattern.permute.xlu0 0
    %1245 = vperm.xlu0 %1244, %v1241
    %v1246 = vpop.permute.xlu0 %1245
    %1249 = vset.pattern.permute.xlu0 0
    %1250 = vperm.xlu0 %1249, %v1242
    %v1251 = vpop.permute.xlu0 %1250
    %v1253 = vadd.f32 %v1239, %v1246
    %v1254 = vadd.f32 %v1240, %v1251
    %s1255 = sld [smem:[#allocation2]]
    %vm1256 = vcmask 523264
    %v1257 = vsel %vm1256, %v1253, 0.0
    %1258 = vadd.xlane.f32.xlu0 %v1257
    %v1259 = vpop.xlane.xlu0 %1258
    %v1260 = vsel %vm1256, %v1254, 0.0
    %1261 = vadd.xlane.f32.xlu0 %v1260
    %v1262 = vpop.xlane.xlu0 %1261
    %v1263 = vmul.f32 %v1259, 0.015625
    %v1264 = vmul.f32 %v1262, 0.015625
    %v1265 = vsub.f32 %v1253, %v1263
    %v1266 = vsub.f32 %v1254, %v1264
    %v1267 = vmul.f32 %v1265, %v1265
    %v1268 = vmul.f32 %v1266, %v1266
    %v1269 = vsel %vm1256, %v1267, 0.0
    %1270 = vadd.xlane.f32.xlu0 %v1269
    %v1271 = vpop.xlane.xlu0 %1270
    %v1272 = vsel %vm1256, %v1268, 0.0
    %1273 = vadd.xlane.f32.xlu0 %v1272
    %v1274 = vpop.xlane.xlu0 %1273
    %v1275 = vmul.f32 %v1271, 0.015625
    %v1276 = vmul.f32 %v1274, 0.015625
    %v1277 = vadd.f32 %v1275, 1e-05
    %v1278 = vadd.f32 %v1276, 1e-05
    %v1279 = vrsqrt.pop %v1277
    %v1280 = vrsqrt.pop %v1278
    %v1281 = vmul.f32 %v1265, %v1279
    %v1282 = vmul.f32 %v1266, %v1280
    %vm1283 = vcmp.ge.f32.partialorder %v1281, 0.0
    %vm1284 = vcmp.ge.f32.partialorder %v1282, 0.0
    %v1285 = vstv %s1255
    %v1286 = vmul.f32 %v1285, %v1281
    %v1287 = vmul.f32 %v1285, %v1282
    %v1288 = vsel %vm1283, %v1281, %v1286
    %v1289 = vsel %vm1284, %v1282, %v1287
    %v1290 = vpack.c.bf16 %v1289, %v1288
    %v1291 = vld [vmem:[%s5] sm:$0xff]
    %v1292 = vld [vmem:[%s5 + $0x8] sm:$0xff]
    %v1293 = vld [vmem:[%s5 + $0x10] sm:$0xff]
    %v1294 = vld [vmem:[%s5 + $0x18] sm:$0xff]
    %v1295 = vld [vmem:[%s5 + $0x20] sm:$0xff]
    %v1296 = vld [vmem:[%s5 + $0x28] sm:$0xff]
    %v1297 = vld [vmem:[%s5 + $0x30] sm:$0xff]
    %v1298 = vld [vmem:[%s5 + $0x38] sm:$0xff]
    %v1307 = vunpack.c.l.b16 %v1291
    %v1308 = vunpack.c.h.b16 %v1291
    %v1309 = vunpack.c.l.b16 %v1292
    %v1310 = vunpack.c.h.b16 %v1292
    %v1311 = vunpack.c.l.b16 %v1293
    %v1312 = vunpack.c.h.b16 %v1293
    %v1313 = vunpack.c.l.b16 %v1294
    %v1314 = vunpack.c.h.b16 %v1294
    %v1315 = vunpack.c.l.b16 %v1295
    %v1316 = vunpack.c.h.b16 %v1295
    %v1317 = vunpack.c.l.b16 %v1296
    %v1318 = vunpack.c.h.b16 %v1296
    %v1319 = vunpack.c.l.b16 %v1297
    %v1320 = vunpack.c.h.b16 %v1297
    %v1321 = vunpack.c.l.b16 %v1298
    %v1322 = vunpack.c.h.b16 %v1298
    %v1323 = vpack.c.b16 %v1309, %v1307
    %v1324 = vpack.c.b16 %v1310, %v1308
    %v1325 = vpack.c.b16 %v1313, %v1311
    %v1326 = vpack.c.b16 %v1314, %v1312
    %v1327 = vpack.c.b16 %v1317, %v1315
    %v1328 = vpack.c.b16 %v1318, %v1316
    %v1329 = vpack.c.b16 %v1321, %v1319
    %v1330 = vpack.c.b16 %v1322, %v1320
    %v1340 = vsel %vm1256, %v1290, 0
    %1342 = vmatprep.subr.bf16.mxu0 %v1324
    %1343 = vmatpush1.bf16.msra.mxu0 %v1323
    %1344 = vmatprep.subr.bf16.mxu0 %v1326
    %1345 = vmatpush1.bf16.msra.mxu0 %v1325
    %1346 = vmatprep.subr.bf16.mxu0 %v1328
    %1347 = vmatpush1.bf16.msra.mxu0 %v1327
    %1348 = vmatprep.subr.bf16.mxu0 %v1330
    %1349 = vmatpush1.bf16.msra.mxu0 %v1329
    %1350 = vmatprep.subr.bf16.mxu0 0
    %1351 = vmatpush1.bf16.msra.mxu0 0
    %1352 = vmatprep.subr.bf16.mxu0 0
    %1353 = vmatpush1.bf16.msra.mxu0 0
    %1354 = vmatprep.subr.bf16.mxu0 0
    %1355 = vmatpush1.bf16.msra.mxu0 0
    %1356 = vmatprep.subr.bf16.mxu0 0
    %1357 = vmatpush1.bf16.msra.mxu0 0
    %1358 = vmatprep.subr.bf16.mxu0 0
    %1359 = vmatpush1.bf16.msra.mxu0 0
    %1360 = vmatprep.subr.bf16.mxu0 0
    %1361 = vmatpush1.bf16.msra.mxu0 0
    %1362 = vmatprep.subr.bf16.mxu0 0
    %1363 = vmatpush1.bf16.msra.mxu0 0
    %1364 = vmatprep.subr.bf16.mxu0 0
    %1365 = vmatpush1.bf16.msra.mxu0 0
    %1366 = vmatprep.subr.bf16.mxu0 0
    %1367 = vmatpush1.bf16.msra.mxu0 0
    %1368 = vmatprep.subr.bf16.mxu0 0
    %1369 = vmatpush1.bf16.msra.mxu0 0
    %1370 = vmatprep.subr.bf16.mxu0 0
    %1371 = vmatpush1.bf16.msra.mxu0 0
    %1372 = vmatprep.subr.bf16.mxu0 0
    %1373 = vmatpush1.bf16.msra.mxu0 0
    %1374 = vmatprep.mubr.bf16.mxu0 0
    %1375 = vmatmul.mubr.bf16.gmra.mrb[0].mxu0 %v1340
    %v1376 = vpop.f32.mrb[0].mxu0
    %v1377 = vadd.f32 0.0, %v1376
    %v1378 = vpop.f32.mrb[0].mxu0
    %v1379 = vadd.f32 0.0, %v1378
    %v1380 = vpop.f32.mrb[0].mxu0
    %v1381 = vadd.f32 0.0, %v1380
    %v1382 = vpop.f32.mrb[0].mxu0
    %v1383 = vadd.f32 0.0, %v1382
    %1384 = vdwg.mxu0
    %v1385 = vpack.c.bf16 %v1381, %v1377
    %v1386 = vpack.c.bf16 %v1383, %v1379
    %v1387 = vld [vmem:[%s6] sm:$0xf]
    %v1388 = vld [vmem:[%s6 + $0x4] sm:$0xf]
    %v1389 = vld [vmem:[%s6 + $0x8] sm:$0xf]
    %v1390 = vld [vmem:[%s6 + $0xc] sm:$0xf]
    %s1391 = scalar_lea.vmem %s6, 16
    %v1392 = vld [vmem:[%s1391] sm:$0xf]
    %v1393 = vld [vmem:[%s1391 + $0x4] sm:$0xf]
    %v1394 = vld [vmem:[%s1391 + $0x8] sm:$0xf]
    %v1395 = vld [vmem:[%s1391 + $0xc] sm:$0xf]
    %v1400 = vunpack.c.l.b16 %v1392
    %v1401 = vunpack.c.l.b16 %v1393
    %v1402 = vunpack.c.l.b16 %v1394
    %v1403 = vunpack.c.l.b16 %v1395
    %v1404 = vpack.c.b16 %v1401, %v1400
    %v1405 = vpack.c.b16 %v1403, %v1402
    %1407 = vrot.lane.b32.xlu0 %v1385, 112
    %v1408 = vpop.permute.xlu0 %1407
    %vm1410 = vcmask 130048
    %v1412 = vsel %vm1410, %v1404, 0
    %v1415 = vsel %vm1410, %v1405, 0
    %1417 = vmatprep.subr.bf16.mxu0 0
    %1418 = vmatpush1.bf16.msra.mxu0 %v1408
    %1419 = vmatprep.subr.bf16.mxu0 0
    %1420 = vmatpush1.bf16.msra.mxu0 0
    %1421 = vmatprep.subr.bf16.mxu0 0
    %1422 = vmatpush1.bf16.msra.mxu0 0
    %1423 = vmatprep.subr.bf16.mxu0 0
    %1424 = vmatpush1.bf16.msra.mxu0 0
    %1425 = vmatprep.subr.bf16.mxu0 0
    %1426 = vmatpush1.bf16.msra.mxu0 0
    %1427 = vmatprep.subr.bf16.mxu0 0
    %1428 = vmatpush1.bf16.msra.mxu0 0
    %1429 = vmatprep.subr.bf16.mxu0 0
    %1430 = vmatpush1.bf16.msra.mxu0 0
    %1431 = vmatprep.subr.bf16.mxu0 0
    %1432 = vmatpush1.bf16.msra.mxu0 0
    %1433 = vmatprep.subr.bf16.mxu0 0
    %1434 = vmatpush1.bf16.msra.mxu0 0
    %1435 = vmatprep.subr.bf16.mxu0 0
    %1436 = vmatpush1.bf16.msra.mxu0 0
    %1437 = vmatprep.subr.bf16.mxu0 0
    %1438 = vmatpush1.bf16.msra.mxu0 0
    %1439 = vmatprep.subr.bf16.mxu0 0
    %1440 = vmatpush1.bf16.msra.mxu0 0
    %1441 = vmatprep.subr.bf16.mxu0 0
    %1442 = vmatpush1.bf16.msra.mxu0 0
    %1443 = vmatprep.subr.bf16.mxu0 0
    %1444 = vmatpush1.bf16.msra.mxu0 0
    %1445 = vmatprep.subr.bf16.mxu0 0
    %1446 = vmatpush1.bf16.msra.mxu0 0
    %1447 = vmatprep.subr.bf16.mxu0 0
    %1448 = vmatpush1.bf16.msra.mxu0 0
    %1449 = vmatprep.mubr.bf16.mxu0 0
    %1450 = vmatmul.mubr.bf16.gmra.mrb[0].mxu0 %v1412
    %v1451 = vpop.f32.mrb[0].mxu0
    %v1452 = vadd.f32 0.0, %v1451
    %v1453 = vpop.f32.mrb[0].mxu0
    %v1454 = vpop.f32.mrb[0].mxu0
    %v1455 = vadd.f32 0.0, %v1454
    %v1456 = vpop.f32.mrb[0].mxu0
    %1457 = vmatprep.mubr.bf16.mxu0 0
    %1458 = vmatmul.mubr.bf16.gmra.mrb[0].mxu0 %v1415
    %v1459 = vpop.f32.mrb[0].mxu0
    %v1460 = vadd.f32 0.0, %v1459
    %v1461 = vpop.f32.mrb[0].mxu0
    %v1462 = vpop.f32.mrb[0].mxu0
    %v1463 = vadd.f32 0.0, %v1462
    %v1464 = vpop.f32.mrb[0].mxu0
    %1465 = vdwg.mxu0
    %v1470 = vunpack.c.l.b16 %v1387
    %v1471 = vunpack.c.l.b16 %v1388
    %v1472 = vunpack.c.l.b16 %v1389
    %v1473 = vunpack.c.l.b16 %v1390
    %v1474 = vpack.c.b16 %v1471, %v1470
    %v1475 = vpack.c.b16 %v1473, %v1472
    %v1477 = vsel %vm1410, %v1474, 0
    %v1480 = vsel %vm1410, %v1475, 0
    %1482 = vmatprep.subr.bf16.mxu0 0
    %1483 = vmatpush1.bf16.msra.mxu0 %v1385
    %1484 = vmatprep.subr.bf16.mxu0 0
    %1485 = vmatpush1.bf16.msra.mxu0 0
    %1486 = vmatprep.subr.bf16.mxu0 0
    %1487 = vmatpush1.bf16.msra.mxu0 0
    %1488 = vmatprep.subr.bf16.mxu0 0
    %1489 = vmatpush1.bf16.msra.mxu0 0
    %1490 = vmatprep.subr.bf16.mxu0 0
    %1491 = vmatpush1.bf16.msra.mxu0 0
    %1492 = vmatprep.subr.bf16.mxu0 0
    %1493 = vmatpush1.bf16.msra.mxu0 0
    %1494 = vmatprep.subr.bf16.mxu0 0
    %1495 = vmatpush1.bf16.msra.mxu0 0
    %1496 = vmatprep.subr.bf16.mxu0 0
    %1497 = vmatpush1.bf16.msra.mxu0 0
    %1498 = vmatprep.subr.bf16.mxu0 0
    %1499 = vmatpush1.bf16.msra.mxu0 0
    %1500 = vmatprep.subr.bf16.mxu0 0
    %1501 = vmatpush1.bf16.msra.mxu0 0
    %1502 = vmatprep.subr.bf16.mxu0 0
    %1503 = vmatpush1.bf16.msra.mxu0 0
    %1504 = vmatprep.subr.bf16.mxu0 0
    %1505 = vmatpush1.bf16.msra.mxu0 0
    %1506 = vmatprep.subr.bf16.mxu0 0
    %1507 = vmatpush1.bf16.msra.mxu0 0
    %1508 = vmatprep.subr.bf16.mxu0 0
    %1509 = vmatpush1.bf16.msra.mxu0 0
    %1510 = vmatprep.subr.bf16.mxu0 0
    %1511 = vmatpush1.bf16.msra.mxu0 0
    %1512 = vmatprep.subr.bf16.mxu0 0
    %1513 = vmatpush1.bf16.msra.mxu0 0
    %1514 = vmatprep.mubr.bf16.mxu0 0
    %1515 = vmatmul.mubr.bf16.gmra.mrb[0].mxu0 %v1477
    %v1516 = vpop.f32.mrb[0].mxu0
    %v1517 = vadd.f32 %v1452, %v1516
    %v1518 = vpop.f32.mrb[0].mxu0
    %v1519 = vpop.f32.mrb[0].mxu0
    %v1520 = vadd.f32 %v1455, %v1519
    %v1521 = vpop.f32.mrb[0].mxu0
    %1522 = vmatprep.mubr.bf16.mxu0 0
    %1523 = vmatmul.mubr.bf16.gmra.mrb[0].mxu0 %v1480
    %v1524 = vpop.f32.mrb[0].mxu0
    %v1525 = vadd.f32 %v1460, %v1524
    %v1526 = vpop.f32.mrb[0].mxu0
    %v1527 = vpop.f32.mrb[0].mxu0
    %v1528 = vadd.f32 %v1463, %v1527
    %v1529 = vpop.f32.mrb[0].mxu0
    %1530 = vdwg.mxu0
    %s1531 = scalar_lea.vmem %s6, 32
    %v1532 = vld [vmem:[%s1531] sm:$0xf]
    %v1533 = vld [vmem:[%s1531 + $0x4] sm:$0xf]
    %v1534 = vld [vmem:[%s1531 + $0x8] sm:$0xf]
    %v1535 = vld [vmem:[%s1531 + $0xc] sm:$0xf]
    %v1540 = vunpack.c.l.b16 %v1532
    %v1541 = vunpack.c.l.b16 %v1533
    %v1542 = vunpack.c.l.b16 %v1534
    %v1543 = vunpack.c.l.b16 %v1535
    %v1544 = vpack.c.b16 %v1541, %v1540
    %v1545 = vpack.c.b16 %v1543, %v1542
    %1546 = vrot.lane.b32.xlu0 %v1385, 96
    %v1547 = vpop.permute.xlu0 %1546
    %v1550 = vsel %vm1410, %v1544, 0
    %v1553 = vsel %vm1410, %v1545, 0
    %1555 = vmatprep.subr.bf16.mxu0 0
    %1556 = vmatpush1.bf16.msra.mxu0 %v1547
    %1557 = vmatprep.subr.bf16.mxu0 0
    %1558 = vmatpush1.bf16.msra.mxu0 0
    %1559 = vmatprep.subr.bf16.mxu0 0
    %1560 = vmatpush1.bf16.msra.mxu0 0
    %1561 = vmatprep.subr.bf16.mxu0 0
    %1562 = vmatpush1.bf16.msra.mxu0 0
    %1563 = vmatprep.subr.bf16.mxu0 0
    %1564 = vmatpush1.bf16.msra.mxu0 0
    %1565 = vmatprep.subr.bf16.mxu0 0
    %1566 = vmatpush1.bf16.msra.mxu0 0
    %1567 = vmatprep.subr.bf16.mxu0 0
    %1568 = vmatpush1.bf16.msra.mxu0 0
    %1569 = vmatprep.subr.bf16.mxu0 0
    %1570 = vmatpush1.bf16.msra.mxu0 0
    %1571 = vmatprep.subr.bf16.mxu0 0
    %1572 = vmatpush1.bf16.msra.mxu0 0
    %1573 = vmatprep.subr.bf16.mxu0 0
    %1574 = vmatpush1.bf16.msra.mxu0 0
    %1575 = vmatprep.subr.bf16.mxu0 0
    %1576 = vmatpush1.bf16.msra.mxu0 0
    %1577 = vmatprep.subr.bf16.mxu0 0
    %1578 = vmatpush1.bf16.msra.mxu0 0
    %1579 = vmatprep.subr.bf16.mxu0 0
    %1580 = vmatpush1.bf16.msra.mxu0 0
    %1581 = vmatprep.subr.bf16.mxu0 0
    %1582 = vmatpush1.bf16.msra.mxu0 0
    %1583 = vmatprep.subr.bf16.mxu0 0
    %1584 = vmatpush1.bf16.msra.mxu0 0
    %1585 = vmatprep.subr.bf16.mxu0 0
    %1586 = vmatpush1.bf16.msra.mxu0 0
    %1587 = vmatprep.mubr.bf16.mxu0 0
    %1588 = vmatmul.mubr.bf16.gmra.mrb[0].mxu0 %v1550
    %v1589 = vpop.f32.mrb[0].mxu0
    %v1590 = vadd.f32 0.0, %v1589
    %v1591 = vpop.f32.mrb[0].mxu0
    %v1592 = vpop.f32.mrb[0].mxu0
    %v1593 = vadd.f32 0.0, %v1592
    %v1594 = vpop.f32.mrb[0].mxu0
    %1595 = vmatprep.mubr.bf16.mxu0 0
    %1596 = vmatmul.mubr.bf16.gmra.mrb[0].mxu0 %v1553
    %v1597 = vpop.f32.mrb[0].mxu0
    %v1598 = vadd.f32 0.0, %v1597
    %v1599 = vpop.f32.mrb[0].mxu0
    %v1600 = vpop.f32.mrb[0].mxu0
    %v1601 = vadd.f32 0.0, %v1600
    %v1602 = vpop.f32.mrb[0].mxu0
    %1603 = vdwg.mxu0
    %v1604 = vadd.f32 %v1517, %v1590
    %v1605 = vadd.f32 %v1520, %v1593
    %v1606 = vadd.f32 %v1525, %v1598
    %v1607 = vadd.f32 %v1528, %v1601
    %s1608 = scalar_lea.vmem %s6, 48
    %v1609 = vld [vmem:[%s1608] sm:$0xf]
    %v1610 = vld [vmem:[%s1608 + $0x4] sm:$0xf]
    %v1611 = vld [vmem:[%s1608 + $0x8] sm:$0xf]
    %v1612 = vld [vmem:[%s1608 + $0xc] sm:$0xf]
    %v1617 = vunpack.c.l.b16 %v1609
    %v1618 = vunpack.c.l.b16 %v1610
    %v1619 = vunpack.c.l.b16 %v1611
    %v1620 = vunpack.c.l.b16 %v1612
    %v1621 = vpack.c.b16 %v1618, %v1617
    %v1622 = vpack.c.b16 %v1620, %v1619
    %1623 = vrot.lane.b32.xlu0 %v1385, 80
    %v1624 = vpop.permute.xlu0 %1623
    %v1627 = vsel %vm1410, %v1621, 0
    %v1630 = vsel %vm1410, %v1622, 0
    %1632 = vmatprep.subr.bf16.mxu0 0
    %1633 = vmatpush1.bf16.msra.mxu0 %v1624
    %1634 = vmatprep.subr.bf16.mxu0 0
    %1635 = vmatpush1.bf16.msra.mxu0 0
    %1636 = vmatprep.subr.bf16.mxu0 0
    %1637 = vmatpush1.bf16.msra.mxu0 0
    %1638 = vmatprep.subr.bf16.mxu0 0
    %1639 = vmatpush1.bf16.msra.mxu0 0
    %1640 = vmatprep.subr.bf16.mxu0 0
    %1641 = vmatpush1.bf16.msra.mxu0 0
    %1642 = vmatprep.subr.bf16.mxu0 0
    %1643 = vmatpush1.bf16.msra.mxu0 0
    %1644 = vmatprep.subr.bf16.mxu0 0
    %1645 = vmatpush1.bf16.msra.mxu0 0
    %1646 = vmatprep.subr.bf16.mxu0 0
    %1647 = vmatpush1.bf16.msra.mxu0 0
    %1648 = vmatprep.subr.bf16.mxu0 0
    %1649 = vmatpush1.bf16.msra.mxu0 0
    %1650 = vmatprep.subr.bf16.mxu0 0
    %1651 = vmatpush1.bf16.msra.mxu0 0
    %1652 = vmatprep.subr.bf16.mxu0 0
    %1653 = vmatpush1.bf16.msra.mxu0 0
    %1654 = vmatprep.subr.bf16.mxu0 0
    %1655 = vmatpush1.bf16.msra.mxu0 0
    %1656 = vmatprep.subr.bf16.mxu0 0
    %1657 = vmatpush1.bf16.msra.mxu0 0
    %1658 = vmatprep.subr.bf16.mxu0 0
    %1659 = vmatpush1.bf16.msra.mxu0 0
    %1660 = vmatprep.subr.bf16.mxu0 0
    %1661 = vmatpush1.bf16.msra.mxu0 0
    %1662 = vmatprep.subr.bf16.mxu0 0
    %1663 = vmatpush1.bf16.msra.mxu0 0
    %1664 = vmatprep.mubr.bf16.mxu0 0
    %1665 = vmatmul.mubr.bf16.gmra.mrb[0].mxu0 %v1627
    %v1666 = vpop.f32.mrb[0].mxu0
    %v1667 = vadd.f32 0.0, %v1666
    %v1668 = vpop.f32.mrb[0].mxu0
    %v1669 = vpop.f32.mrb[0].mxu0
    %v1670 = vadd.f32 0.0, %v1669
    %v1671 = vpop.f32.mrb[0].mxu0
    %1672 = vmatprep.mubr.bf16.mxu0 0
    %1673 = vmatmul.mubr.bf16.gmra.mrb[0].mxu0 %v1630
    %v1674 = vpop.f32.mrb[0].mxu0
    %v1675 = vadd.f32 0.0, %v1674
    %v1676 = vpop.f32.mrb[0].mxu0
    %v1677 = vpop.f32.mrb[0].mxu0
    %v1678 = vadd.f32 0.0, %v1677
    %v1679 = vpop.f32.mrb[0].mxu0
    %1680 = vdwg.mxu0
    %v1681 = vadd.f32 %v1604, %v1667
    %v1682 = vadd.f32 %v1605, %v1670
    %v1683 = vadd.f32 %v1606, %v1675
    %v1684 = vadd.f32 %v1607, %v1678
    %s1685 = scalar_lea.vmem %s6, 64
    %v1686 = vld [vmem:[%s1685] sm:$0xf]
    %v1687 = vld [vmem:[%s1685 + $0x4] sm:$0xf]
    %v1688 = vld [vmem:[%s1685 + $0x8] sm:$0xf]
    %v1689 = vld [vmem:[%s1685 + $0xc] sm:$0xf]
    %v1694 = vunpack.c.l.b16 %v1686
    %v1695 = vunpack.c.l.b16 %v1687
    %v1696 = vunpack.c.l.b16 %v1688
    %v1697 = vunpack.c.l.b16 %v1689
    %v1698 = vpack.c.b16 %v1695, %v1694
    %v1699 = vpack.c.b16 %v1697, %v1696
    %1700 = vrot.lane.b32.xlu0 %v1385, 64
    %v1701 = vpop.permute.xlu0 %1700
    %v1704 = vsel %vm1410, %v1698, 0
    %v1707 = vsel %vm1410, %v1699, 0
    %1709 = vmatprep.subr.bf16.mxu0 0
    %1710 = vmatpush1.bf16.msra.mxu0 %v1701
    %1711 = vmatprep.subr.bf16.mxu0 0
    %1712 = vmatpush1.bf16.msra.mxu0 0
    %1713 = vmatprep.subr.bf16.mxu0 0
    %1714 = vmatpush1.bf16.msra.mxu0 0
    %1715 = vmatprep.subr.bf16.mxu0 0
    %1716 = vmatpush1.bf16.msra.mxu0 0
    %1717 = vmatprep.subr.bf16.mxu0 0
    %1718 = vmatpush1.bf16.msra.mxu0 0
    %1719 = vmatprep.subr.bf16.mxu0 0
    %1720 = vmatpush1.bf16.msra.mxu0 0
    %1721 = vmatprep.subr.bf16.mxu0 0
    %1722 = vmatpush1.bf16.msra.mxu0 0
    %1723 = vmatprep.subr.bf16.mxu0 0
    %1724 = vmatpush1.bf16.msra.mxu0 0
    %1725 = vmatprep.subr.bf16.mxu0 0
    %1726 = vmatpush1.bf16.msra.mxu0 0
    %1727 = vmatprep.subr.bf16.mxu0 0
    %1728 = vmatpush1.bf16.msra.mxu0 0
    %1729 = vmatprep.subr.bf16.mxu0 0
    %1730 = vmatpush1.bf16.msra.mxu0 0
    %1731 = vmatprep.subr.bf16.mxu0 0
    %1732 = vmatpush1.bf16.msra.mxu0 0
    %1733 = vmatprep.subr.bf16.mxu0 0
    %1734 = vmatpush1.bf16.msra.mxu0 0
    %1735 = vmatprep.subr.bf16.mxu0 0
    %1736 = vmatpush1.bf16.msra.mxu0 0
    %1737 = vmatprep.subr.bf16.mxu0 0
    %1738 = vmatpush1.bf16.msra.mxu0 0
    %1739 = vmatprep.subr.bf16.mxu0 0
    %1740 = vmatpush1.bf16.msra.mxu0 0
    %1741 = vmatprep.mubr.bf16.mxu0 0
    %1742 = vmatmul.mubr.bf16.gmra.mrb[0].mxu0 %v1704
    %v1743 = vpop.f32.mrb[0].mxu0
    %v1744 = vadd.f32 0.0, %v1743
    %v1745 = vpop.f32.mrb[0].mxu0
    %v1746 = vpop.f32.mrb[0].mxu0
    %v1747 = vadd.f32 0.0, %v1746
    %v1748 = vpop.f32.mrb[0].mxu0
    %1749 = vmatprep.mubr.bf16.mxu0 0
    %1750 = vmatmul.mubr.bf16.gmra.mrb[0].mxu0 %v1707
    %v1751 = vpop.f32.mrb[0].mxu0
    %v1752 = vadd.f32 0.0, %v1751
    %v1753 = vpop.f32.mrb[0].mxu0
    %v1754 = vpop.f32.mrb[0].mxu0
    %v1755 = vadd.f32 0.0, %v1754
    %v1756 = vpop.f32.mrb[0].mxu0
    %1757 = vdwg.mxu0
    %v1758 = vadd.f32 %v1681, %v1744
    %v1759 = vadd.f32 %v1682, %v1747
    %v1760 = vadd.f32 %v1683, %v1752
    %v1761 = vadd.f32 %v1684, %v1755
    %s1762 = scalar_lea.vmem %s6, 80
    %v1763 = vld [vmem:[%s1762] sm:$0xf]
    %v1764 = vld [vmem:[%s1762 + $0x4] sm:$0xf]
    %v1765 = vld [vmem:[%s1762 + $0x8] sm:$0xf]
    %v1766 = vld [vmem:[%s1762 + $0xc] sm:$0xf]
    %v1771 = vunpack.c.l.b16 %v1763
    %v1772 = vunpack.c.l.b16 %v1764
    %v1773 = vunpack.c.l.b16 %v1765
    %v1774 = vunpack.c.l.b16 %v1766
    %v1775 = vpack.c.b16 %v1772, %v1771
    %v1776 = vpack.c.b16 %v1774, %v1773
    %1777 = vrot.lane.b32.xlu0 %v1385, 48
    %v1778 = vpop.permute.xlu0 %1777
    %v1781 = vsel %vm1410, %v1775, 0
    %v1784 = vsel %vm1410, %v1776, 0
    %1786 = vmatprep.subr.bf16.mxu0 0
    %1787 = vmatpush1.bf16.msra.mxu0 %v1778
    %1788 = vmatprep.subr.bf16.mxu0 0
    %1789 = vmatpush1.bf16.msra.mxu0 0
    %1790 = vmatprep.subr.bf16.mxu0 0
    %1791 = vmatpush1.bf16.msra.mxu0 0
    %1792 = vmatprep.subr.bf16.mxu0 0
    %1793 = vmatpush1.bf16.msra.mxu0 0
    %1794 = vmatprep.subr.bf16.mxu0 0
    %1795 = vmatpush1.bf16.msra.mxu0 0
    %1796 = vmatprep.subr.bf16.mxu0 0
    %1797 = vmatpush1.bf16.msra.mxu0 0
    %1798 = vmatprep.subr.bf16.mxu0 0
    %1799 = vmatpush1.bf16.msra.mxu0 0
    %1800 = vmatprep.subr.bf16.mxu0 0
    %1801 = vmatpush1.bf16.msra.mxu0 0
    %1802 = vmatprep.subr.bf16.mxu0 0
    %1803 = vmatpush1.bf16.msra.mxu0 0
    %1804 = vmatprep.subr.bf16.mxu0 0
    %1805 = vmatpush1.bf16.msra.mxu0 0
    %1806 = vmatprep.subr.bf16.mxu0 0
    %1807 = vmatpush1.bf16.msra.mxu0 0
    %1808 = vmatprep.subr.bf16.mxu0 0
    %1809 = vmatpush1.bf16.msra.mxu0 0
    %1810 = vmatprep.subr.bf16.mxu0 0
    %1811 = vmatpush1.bf16.msra.mxu0 0
    %1812 = vmatprep.subr.bf16.mxu0 0
    %1813 = vmatpush1.bf16.msra.mxu0 0
    %1814 = vmatprep.subr.bf16.mxu0 0
    %1815 = vmatpush1.bf16.msra.mxu0 0
    %1816 = vmatprep.subr.bf16.mxu0 0
    %1817 = vmatpush1.bf16.msra.mxu0 0
    %1818 = vmatprep.mubr.bf16.mxu0 0
    %1819 = vmatmul.mubr.bf16.gmra.mrb[0].mxu0 %v1781
    %v1820 = vpop.f32.mrb[0].mxu0
    %v1821 = vadd.f32 0.0, %v1820
    %v1822 = vpop.f32.mrb[0].mxu0
    %v1823 = vpop.f32.mrb[0].mxu0
    %v1824 = vadd.f32 0.0, %v1823
    %v1825 = vpop.f32.mrb[0].mxu0
    %1826 = vmatprep.mubr.bf16.mxu0 0
    %1827 = vmatmul.mubr.bf16.gmra.mrb[0].mxu0 %v1784
    %v1828 = vpop.f32.mrb[0].mxu0
    %v1829 = vadd.f32 0.0, %v1828
    %v1830 = vpop.f32.mrb[0].mxu0
    %v1831 = vpop.f32.mrb[0].mxu0
    %v1832 = vadd.f32 0.0, %v1831
    %v1833 = vpop.f32.mrb[0].mxu0
    %1834 = vdwg.mxu0
    %v1835 = vadd.f32 %v1758, %v1821
    %v1836 = vadd.f32 %v1759, %v1824
    %v1837 = vadd.f32 %v1760, %v1829
    %v1838 = vadd.f32 %v1761, %v1832
    %s1839 = scalar_lea.vmem %s6, 96
    %v1840 = vld [vmem:[%s1839] sm:$0xf]
    %v1841 = vld [vmem:[%s1839 + $0x4] sm:$0xf]
    %v1842 = vld [vmem:[%s1839 + $0x8] sm:$0xf]
    %v1843 = vld [vmem:[%s1839 + $0xc] sm:$0xf]
    %v1848 = vunpack.c.l.b16 %v1840
    %v1849 = vunpack.c.l.b16 %v1841
    %v1850 = vunpack.c.l.b16 %v1842
    %v1851 = vunpack.c.l.b16 %v1843
    %v1852 = vpack.c.b16 %v1849, %v1848
    %v1853 = vpack.c.b16 %v1851, %v1850
    %1854 = vrot.lane.b32.xlu0 %v1385, 32
    %v1855 = vpop.permute.xlu0 %1854
    %v1858 = vsel %vm1410, %v1852, 0
    %v1861 = vsel %vm1410, %v1853, 0
    %1863 = vmatprep.subr.bf16.mxu0 0
    %1864 = vmatpush1.bf16.msra.mxu0 %v1855
    %1865 = vmatprep.subr.bf16.mxu0 0
    %1866 = vmatpush1.bf16.msra.mxu0 0
    %1867 = vmatprep.subr.bf16.mxu0 0
    %1868 = vmatpush1.bf16.msra.mxu0 0
    %1869 = vmatprep.subr.bf16.mxu0 0
    %1870 = vmatpush1.bf16.msra.mxu0 0
    %1871 = vmatprep.subr.bf16.mxu0 0
    %1872 = vmatpush1.bf16.msra.mxu0 0
    %1873 = vmatprep.subr.bf16.mxu0 0
    %1874 = vmatpush1.bf16.msra.mxu0 0
    %1875 = vmatprep.subr.bf16.mxu0 0
    %1876 = vmatpush1.bf16.msra.mxu0 0
    %1877 = vmatprep.subr.bf16.mxu0 0
    %1878 = vmatpush1.bf16.msra.mxu0 0
    %1879 = vmatprep.subr.bf16.mxu0 0
    %1880 = vmatpush1.bf16.msra.mxu0 0
    %1881 = vmatprep.subr.bf16.mxu0 0
    %1882 = vmatpush1.bf16.msra.mxu0 0
    %1883 = vmatprep.subr.bf16.mxu0 0
    %1884 = vmatpush1.bf16.msra.mxu0 0
    %1885 = vmatprep.subr.bf16.mxu0 0
    %1886 = vmatpush1.bf16.msra.mxu0 0
    %1887 = vmatprep.subr.bf16.mxu0 0
    %1888 = vmatpush1.bf16.msra.mxu0 0
    %1889 = vmatprep.subr.bf16.mxu0 0
    %1890 = vmatpush1.bf16.msra.mxu0 0
    %1891 = vmatprep.subr.bf16.mxu0 0
    %1892 = vmatpush1.bf16.msra.mxu0 0
    %1893 = vmatprep.subr.bf16.mxu0 0
    %1894 = vmatpush1.bf16.msra.mxu0 0
    %1895 = vmatprep.mubr.bf16.mxu0 0
    %1896 = vmatmul.mubr.bf16.gmra.mrb[0].mxu0 %v1858
    %v1897 = vpop.f32.mrb[0].mxu0
    %v1898 = vadd.f32 0.0, %v1897
    %v1899 = vpop.f32.mrb[0].mxu0
    %v1900 = vpop.f32.mrb[0].mxu0
    %v1901 = vadd.f32 0.0, %v1900
    %v1902 = vpop.f32.mrb[0].mxu0
    %1903 = vmatprep.mubr.bf16.mxu0 0
    %1904 = vmatmul.mubr.bf16.gmra.mrb[0].mxu0 %v1861
    %v1905 = vpop.f32.mrb[0].mxu0
    %v1906 = vadd.f32 0.0, %v1905
    %v1907 = vpop.f32.mrb[0].mxu0
    %v1908 = vpop.f32.mrb[0].mxu0
    %v1909 = vadd.f32 0.0, %v1908
    %v1910 = vpop.f32.mrb[0].mxu0
    %1911 = vdwg.mxu0
    %v1912 = vadd.f32 %v1835, %v1898
    %v1913 = vadd.f32 %v1836, %v1901
    %v1914 = vadd.f32 %v1837, %v1906
    %v1915 = vadd.f32 %v1838, %v1909
    %s1916 = scalar_lea.vmem %s6, 112
    %v1917 = vld [vmem:[%s1916] sm:$0xf]
    %v1918 = vld [vmem:[%s1916 + $0x4] sm:$0xf]
    %v1919 = vld [vmem:[%s1916 + $0x8] sm:$0xf]
    %v1920 = vld [vmem:[%s1916 + $0xc] sm:$0xf]
    %v1925 = vunpack.c.l.b16 %v1917
    %v1926 = vunpack.c.l.b16 %v1918
    %v1927 = vunpack.c.l.b16 %v1919
    %v1928 = vunpack.c.l.b16 %v1920
    %v1929 = vpack.c.b16 %v1926, %v1925
    %v1930 = vpack.c.b16 %v1928, %v1927
    %1931 = vrot.lane.b32.xlu0 %v1385, 16
    %v1932 = vpop.permute.xlu0 %1931
    %v1935 = vsel %vm1410, %v1929, 0
    %v1938 = vsel %vm1410, %v1930, 0
    %1940 = vmatprep.subr.bf16.mxu0 0
    %1941 = vmatpush1.bf16.msra.mxu0 %v1932
    %1942 = vmatprep.subr.bf16.mxu0 0
    %1943 = vmatpush1.bf16.msra.mxu0 0
    %1944 = vmatprep.subr.bf16.mxu0 0
    %1945 = vmatpush1.bf16.msra.mxu0 0
    %1946 = vmatprep.subr.bf16.mxu0 0
    %1947 = vmatpush1.bf16.msra.mxu0 0
    %1948 = vmatprep.subr.bf16.mxu0 0
    %1949 = vmatpush1.bf16.msra.mxu0 0
    %1950 = vmatprep.subr.bf16.mxu0 0
    %1951 = vmatpush1.bf16.msra.mxu0 0
    %1952 = vmatprep.subr.bf16.mxu0 0
    %1953 = vmatpush1.bf16.msra.mxu0 0
    %1954 = vmatprep.subr.bf16.mxu0 0
    %1955 = vmatpush1.bf16.msra.mxu0 0
    %1956 = vmatprep.subr.bf16.mxu0 0
    %1957 = vmatpush1.bf16.msra.mxu0 0
    %1958 = vmatprep.subr.bf16.mxu0 0
    %1959 = vmatpush1.bf16.msra.mxu0 0
    %1960 = vmatprep.subr.bf16.mxu0 0
    %1961 = vmatpush1.bf16.msra.mxu0 0
    %1962 = vmatprep.subr.bf16.mxu0 0
    %1963 = vmatpush1.bf16.msra.mxu0 0
    %1964 = vmatprep.subr.bf16.mxu0 0
    %1965 = vmatpush1.bf16.msra.mxu0 0
    %1966 = vmatprep.subr.bf16.mxu0 0
    %1967 = vmatpush1.bf16.msra.mxu0 0
    %1968 = vmatprep.subr.bf16.mxu0 0
    %1969 = vmatpush1.bf16.msra.mxu0 0
    %1970 = vmatprep.subr.bf16.mxu0 0
    %1971 = vmatpush1.bf16.msra.mxu0 0
    %1972 = vmatprep.mubr.bf16.mxu0 0
    %1973 = vmatmul.mubr.bf16.gmra.mrb[0].mxu0 %v1935
    %v1974 = vpop.f32.mrb[0].mxu0
    %v1975 = vadd.f32 0.0, %v1974
    %v1976 = vpop.f32.mrb[0].mxu0
    %v1977 = vpop.f32.mrb[0].mxu0
    %v1978 = vadd.f32 0.0, %v1977
    %v1979 = vpop.f32.mrb[0].mxu0
    %1980 = vmatprep.mubr.bf16.mxu0 0
    %1981 = vmatmul.mubr.bf16.gmra.mrb[0].mxu0 %v1938
    %v1982 = vpop.f32.mrb[0].mxu0
    %v1983 = vadd.f32 0.0, %v1982
    %v1984 = vpop.f32.mrb[0].mxu0
    %v1985 = vpop.f32.mrb[0].mxu0
    %v1986 = vadd.f32 0.0, %v1985
    %v1987 = vpop.f32.mrb[0].mxu0
    %1988 = vdwg.mxu0
    %v1989 = vadd.f32 %v1912, %v1975
    %v1990 = vadd.f32 %v1913, %v1978
    %v1991 = vadd.f32 %v1914, %v1983
    %v1992 = vadd.f32 %v1915, %v1986
    %s1993 = scalar_lea.vmem %s6, 128
    %v1994 = vld [vmem:[%s1993] sm:$0xf]
    %v1995 = vld [vmem:[%s1993 + $0x4] sm:$0xf]
    %v1996 = vld [vmem:[%s1993 + $0x8] sm:$0xf]
    %v1997 = vld [vmem:[%s1993 + $0xc] sm:$0xf]
    %v2002 = vunpack.c.l.b16 %v1994
    %v2003 = vunpack.c.l.b16 %v1995
    %v2004 = vunpack.c.l.b16 %v1996
    %v2005 = vunpack.c.l.b16 %v1997
    %v2006 = vpack.c.b16 %v2003, %v2002
    %v2007 = vpack.c.b16 %v2005, %v2004
    %v2009 = vsel %vm1410, %v2006, 0
    %v2012 = vsel %vm1410, %v2007, 0
    %2014 = vmatprep.subr.bf16.mxu0 0
    %2015 = vmatpush1.bf16.msra.mxu0 %v1386
    %2016 = vmatprep.subr.bf16.mxu0 0
    %2017 = vmatpush1.bf16.msra.mxu0 0
    %2018 = vmatprep.subr.bf16.mxu0 0
    %2019 = vmatpush1.bf16.msra.mxu0 0
    %2020 = vmatprep.subr.bf16.mxu0 0
    %2021 = vmatpush1.bf16.msra.mxu0 0
    %2022 = vmatprep.subr.bf16.mxu0 0
    %2023 = vmatpush1.bf16.msra.mxu0 0
    %2024 = vmatprep.subr.bf16.mxu0 0
    %2025 = vmatpush1.bf16.msra.mxu0 0
    %2026 = vmatprep.subr.bf16.mxu0 0
    %2027 = vmatpush1.bf16.msra.mxu0 0
    %2028 = vmatprep.subr.bf16.mxu0 0
    %2029 = vmatpush1.bf16.msra.mxu0 0
    %2030 = vmatprep.subr.bf16.mxu0 0
    %2031 = vmatpush1.bf16.msra.mxu0 0
    %2032 = vmatprep.subr.bf16.mxu0 0
    %2033 = vmatpush1.bf16.msra.mxu0 0
    %2034 = vmatprep.subr.bf16.mxu0 0
    %2035 = vmatpush1.bf16.msra.mxu0 0
    %2036 = vmatprep.subr.bf16.mxu0 0
    %2037 = vmatpush1.bf16.msra.mxu0 0
    %2038 = vmatprep.subr.bf16.mxu0 0
    %2039 = vmatpush1.bf16.msra.mxu0 0
    %2040 = vmatprep.subr.bf16.mxu0 0
    %2041 = vmatpush1.bf16.msra.mxu0 0
    %2042 = vmatprep.subr.bf16.mxu0 0
    %2043 = vmatpush1.bf16.msra.mxu0 0
    %2044 = vmatprep.subr.bf16.mxu0 0
    %2045 = vmatpush1.bf16.msra.mxu0 0
    %2046 = vmatprep.mubr.bf16.mxu0 0
    %2047 = vmatmul.mubr.bf16.gmra.mrb[0].mxu0 %v2009
    %v2048 = vpop.f32.mrb[0].mxu0
    %v2049 = vadd.f32 0.0, %v2048
    %v2050 = vpop.f32.mrb[0].mxu0
    %v2051 = vpop.f32.mrb[0].mxu0
    %v2052 = vadd.f32 0.0, %v2051
    %v2053 = vpop.f32.mrb[0].mxu0
    %2054 = vmatprep.mubr.bf16.mxu0 0
    %2055 = vmatmul.mubr.bf16.gmra.mrb[0].mxu0 %v2012
    %v2056 = vpop.f32.mrb[0].mxu0
    %v2057 = vadd.f32 0.0, %v2056
    %v2058 = vpop.f32.mrb[0].mxu0
    %v2059 = vpop.f32.mrb[0].mxu0
    %v2060 = vadd.f32 0.0, %v2059
    %v2061 = vpop.f32.mrb[0].mxu0
    %2062 = vdwg.mxu0
    %v2063 = vadd.f32 %v1989, %v2049
    %v2064 = vadd.f32 %v1990, %v2052
    %v2065 = vadd.f32 %v1991, %v2057
    %v2066 = vadd.f32 %v1992, %v2060
    %v2067 = vld [vmem:[%s7] sm:$0xff]
    %v2068 = vld [vmem:[%s7 + $0x8] sm:$0xff]
    %v2069 = vld [vmem:[%s7 + $0x10] sm:$0xff]
    %v2070 = vld [vmem:[%s7 + $0x18] sm:$0xff]
    %2072 = vset.pattern.permute.xlu0 0
    %2073 = vperm.xlu0 %2072, %v2067
    %v2074 = vpop.permute.xlu0 %2073
    %2077 = vset.pattern.permute.xlu0 0
    %2078 = vperm.xlu0 %2077, %v2068
    %v2079 = vpop.permute.xlu0 %2078
    %2082 = vset.pattern.permute.xlu0 0
    %2083 = vperm.xlu0 %2082, %v2069
    %v2084 = vpop.permute.xlu0 %2083
    %2087 = vset.pattern.permute.xlu0 0
    %2088 = vperm.xlu0 %2087, %v2070
    %v2089 = vpop.permute.xlu0 %2088
    %v2091 = vadd.f32 %v2063, %v2074
    %v2092 = vadd.f32 %v2064, %v2079
    %v2093 = vadd.f32 %v2065, %v2084
    %v2094 = vadd.f32 %v2066, %v2089
    %s2095 = sld [smem:[#allocation2 + $0x1]]
    %v2096 = vsel %vm1410, %v2091, 0.0
    %2097 = vadd.xlane.f32.xlu0 %v2096
    %v2098 = vpop.xlane.xlu0 %2097
    %v2099 = vsel %vm1410, %v2092, 0.0
    %2100 = vadd.xlane.f32.xlu0 %v2099
    %v2101 = vpop.xlane.xlu0 %2100
    %v2102 = vsel %vm1410, %v2093, 0.0
    %2103 = vadd.xlane.f32.xlu0 %v2102
    %v2104 = vpop.xlane.xlu0 %2103
    %v2105 = vsel %vm1410, %v2094, 0.0
    %2106 = vadd.xlane.f32.xlu0 %v2105
    %v2107 = vpop.xlane.xlu0 %2106
    %v2108 = vmul.f32 %v2098, 0.0625
    %v2109 = vmul.f32 %v2101, 0.0625
    %v2110 = vmul.f32 %v2104, 0.0625
    %v2111 = vmul.f32 %v2107, 0.0625
    %v2112 = vsub.f32 %v2091, %v2108
    %v2113 = vsub.f32 %v2092, %v2109
    %v2114 = vsub.f32 %v2093, %v2110
    %v2115 = vsub.f32 %v2094, %v2111
    %v2116 = vmul.f32 %v2112, %v2112
    %v2117 = vmul.f32 %v2113, %v2113
    %v2118 = vmul.f32 %v2114, %v2114
    %v2119 = vmul.f32 %v2115, %v2115
    %v2120 = vsel %vm1410, %v2116, 0.0
    %2121 = vadd.xlane.f32.xlu0 %v2120
    %v2122 = vpop.xlane.xlu0 %2121
    %v2123 = vsel %vm1410, %v2117, 0.0
    %2124 = vadd.xlane.f32.xlu0 %v2123
    %v2125 = vpop.xlane.xlu0 %2124
    %v2126 = vsel %vm1410, %v2118, 0.0
    %2127 = vadd.xlane.f32.xlu0 %v2126
    %v2128 = vpop.xlane.xlu0 %2127
    %v2129 = vsel %vm1410, %v2119, 0.0
    %2130 = vadd.xlane.f32.xlu0 %v2129
    %v2131 = vpop.xlane.xlu0 %2130
    %v2132 = vmul.f32 %v2122, 0.0625
    %v2133 = vmul.f32 %v2125, 0.0625
    %v2134 = vmul.f32 %v2128, 0.0625
    %v2135 = vmul.f32 %v2131, 0.0625
    %v2136 = vadd.f32 %v2132, 1e-05
    %v2137 = vadd.f32 %v2133, 1e-05
    %v2138 = vadd.f32 %v2134, 1e-05
    %v2139 = vadd.f32 %v2135, 1e-05
    %v2140 = vrsqrt.pop %v2136
    %v2141 = vrsqrt.pop %v2137
    %v2142 = vrsqrt.pop %v2138
    %v2143 = vrsqrt.pop %v2139
    %v2144 = vmul.f32 %v2112, %v2140
    %v2145 = vmul.f32 %v2113, %v2141
    %v2146 = vmul.f32 %v2114, %v2142
    %v2147 = vmul.f32 %v2115, %v2143
    %vm2148 = vcmp.ge.f32.partialorder %v2144, 0.0
    %vm2149 = vcmp.ge.f32.partialorder %v2145, 0.0
    %vm2150 = vcmp.ge.f32.partialorder %v2146, 0.0
    %vm2151 = vcmp.ge.f32.partialorder %v2147, 0.0
    %v2152 = vstv %s2095
    %v2153 = vmul.f32 %v2152, %v2144
    %v2154 = vmul.f32 %v2152, %v2145
    %v2155 = vmul.f32 %v2152, %v2146
    %v2156 = vmul.f32 %v2152, %v2147
    %v2157 = vsel %vm2148, %v2144, %v2153
    %v2158 = vsel %vm2149, %v2145, %v2154
    %v2159 = vsel %vm2150, %v2146, %v2155
    %v2160 = vsel %vm2151, %v2147, %v2156
    %v2161 = vpack.c.bf16 %v2158, %v2157
    %v2162 = vpack.c.bf16 %v2160, %v2159
    %v2163 = vld [vmem:[%s8] sm:$0xff]
    %v2164 = vld [vmem:[%s8 + $0x8] sm:$0xff]
    %v2167 = vunpack.c.l.b16 %v2163
    %v2168 = vunpack.c.h.b16 %v2163
    %v2169 = vunpack.c.l.b16 %v2164
    %v2170 = vunpack.c.h.b16 %v2164
    %v2171 = vpack.c.b16 %v2169, %v2167
    %v2172 = vpack.c.b16 %v2170, %v2168
    %v2176 = vsel %vm1410, %v2161, 0
    %v2179 = vsel %vm1410, %v2162, 0
    %2181 = vmatprep.subr.bf16.mxu0 %v2172
    %2182 = vmatpush1.bf16.msra.mxu0 %v2171
    %2183 = vmatprep.subr.bf16.mxu0 0
    %2184 = vmatpush1.bf16.msra.mxu0 0
    %2185 = vmatprep.subr.bf16.mxu0 0
    %2186 = vmatpush1.bf16.msra.mxu0 0
    %2187 = vmatprep.subr.bf16.mxu0 0
    %2188 = vmatpush1.bf16.msra.mxu0 0
    %2189 = vmatprep.subr.bf16.mxu0 0
    %2190 = vmatpush1.bf16.msra.mxu0 0
    %2191 = vmatprep.subr.bf16.mxu0 0
    %2192 = vmatpush1.bf16.msra.mxu0 0
    %2193 = vmatprep.subr.bf16.mxu0 0
    %2194 = vmatpush1.bf16.msra.mxu0 0
    %2195 = vmatprep.subr.bf16.mxu0 0
    %2196 = vmatpush1.bf16.msra.mxu0 0
    %2197 = vmatprep.subr.bf16.mxu0 0
    %2198 = vmatpush1.bf16.msra.mxu0 0
    %2199 = vmatprep.subr.bf16.mxu0 0
    %2200 = vmatpush1.bf16.msra.mxu0 0
    %2201 = vmatprep.subr.bf16.mxu0 0
    %2202 = vmatpush1.bf16.msra.mxu0 0
    %2203 = vmatprep.subr.bf16.mxu0 0
    %2204 = vmatpush1.bf16.msra.mxu0 0
    %2205 = vmatprep.subr.bf16.mxu0 0
    %2206 = vmatpush1.bf16.msra.mxu0 0
    %2207 = vmatprep.subr.bf16.mxu0 0
    %2208 = vmatpush1.bf16.msra.mxu0 0
    %2209 = vmatprep.subr.bf16.mxu0 0
    %2210 = vmatpush1.bf16.msra.mxu0 0
    %2211 = vmatprep.subr.bf16.mxu0 0
    %2212 = vmatpush1.bf16.msra.mxu0 0
    %2213 = vmatprep.mubr.bf16.mxu0 0
    %2214 = vmatmul.mubr.bf16.gmra.mrb[0].mxu0 %v2176
    %v2215 = vpop.f32.mrb[0].mxu0
    %v2216 = vadd.f32 0.0, %v2215
    %v2217 = vpop.f32.mrb[0].mxu0
    %v2218 = vadd.f32 0.0, %v2217
    %v2219 = vpop.f32.mrb[0].mxu0
    %v2220 = vadd.f32 0.0, %v2219
    %v2221 = vpop.f32.mrb[0].mxu0
    %v2222 = vadd.f32 0.0, %v2221
    %2223 = vmatprep.mubr.bf16.mxu0 0
    %2224 = vmatmul.mubr.bf16.gmra.mrb[0].mxu0 %v2179
    %v2225 = vpop.f32.mrb[0].mxu0
    %v2226 = vadd.f32 0.0, %v2225
    %v2227 = vpop.f32.mrb[0].mxu0
    %v2228 = vadd.f32 0.0, %v2227
    %v2229 = vpop.f32.mrb[0].mxu0
    %v2230 = vadd.f32 0.0, %v2229
    %v2231 = vpop.f32.mrb[0].mxu0
    %v2232 = vadd.f32 0.0, %v2231
    %2233 = vdwg.mxu0
    %v2234 = vpack.c.bf16 %v2220, %v2216
    %v2235 = vpack.c.bf16 %v2222, %v2218
    %v2236 = vpack.c.bf16 %v2230, %v2226
    %v2237 = vpack.c.bf16 %v2232, %v2228
    %v2238 = vld [vmem:[%s9] sm:$0xf]
    %v2239 = vld [vmem:[%s9 + $0x4] sm:$0xf]
    %v2240 = vld [vmem:[%s9 + $0x8] sm:$0xf]
    %v2241 = vld [vmem:[%s9 + $0xc] sm:$0xf]
    %v2242 = vld [vmem:[%s9 + $0x10] sm:$0xf]
    %v2243 = vld [vmem:[%s9 + $0x14] sm:$0xf]
    %v2244 = vld [vmem:[%s9 + $0x18] sm:$0xf]
    %v2245 = vld [vmem:[%s9 + $0x1c] sm:$0xf]
    %s2246 = scalar_lea.vmem %s9, 32
    %v2247 = vld [vmem:[%s2246] sm:$0xf]
    %v2248 = vld [vmem:[%s2246 + $0x4] sm:$0xf]
    %v2249 = vld [vmem:[%s2246 + $0x8] sm:$0xf]
    %v2250 = vld [vmem:[%s2246 + $0xc] sm:$0xf]
    %v2251 = vld [vmem:[%s2246 + $0x10] sm:$0xf]
    %v2252 = vld [vmem:[%s2246 + $0x14] sm:$0xf]
    %v2253 = vld [vmem:[%s2246 + $0x18] sm:$0xf]
    %v2254 = vld [vmem:[%s2246 + $0x1c] sm:$0xf]
    %v2263 = vunpack.c.l.b16 %v2247
    %v2264 = vunpack.c.l.b16 %v2248
    %v2265 = vunpack.c.l.b16 %v2249
    %v2266 = vunpack.c.l.b16 %v2250
    %v2267 = vunpack.c.l.b16 %v2251
    %v2268 = vunpack.c.l.b16 %v2252
    %v2269 = vunpack.c.l.b16 %v2253
    %v2270 = vunpack.c.l.b16 %v2254
    %v2271 = vpack.c.b16 %v2264, %v2263
    %v2272 = vpack.c.b16 %v2266, %v2265
    %v2273 = vpack.c.b16 %v2268, %v2267
    %v2274 = vpack.c.b16 %v2270, %v2269
    %2277 = vrot.lane.b32.xlu0 %v2234, 112
    %v2278 = vpop.permute.xlu0 %2277
    %2279 = vrot.lane.b32.xlu0 %v2236, 112
    %v2280 = vpop.permute.xlu0 %2279
    %vm2283 = vcmask 261120
    %v2285 = vsel %vm2283, %v2271, 0
    %v2288 = vsel %vm2283, %v2272, 0
    %v2291 = vsel %vm2283, %v2273, 0
    %v2294 = vsel %vm2283, %v2274, 0
    %2296 = vmatprep.subr.bf16.mxu0 0
    %2297 = vmatpush1.bf16.msra.mxu0 %v2278
    %2298 = vmatprep.subr.bf16.mxu0 0
    %2299 = vmatpush1.bf16.msra.mxu0 %v2280
    %2300 = vmatprep.subr.bf16.mxu0 0
    %2301 = vmatpush1.bf16.msra.mxu0 0
    %2302 = vmatprep.subr.bf16.mxu0 0
    %2303 = vmatpush1.bf16.msra.mxu0 0
    %2304 = vmatprep.subr.bf16.mxu0 0
    %2305 = vmatpush1.bf16.msra.mxu0 0
    %2306 = vmatprep.subr.bf16.mxu0 0
    %2307 = vmatpush1.bf16.msra.mxu0 0
    %2308 = vmatprep.subr.bf16.mxu0 0
    %2309 = vmatpush1.bf16.msra.mxu0 0
    %2310 = vmatprep.subr.bf16.mxu0 0
    %2311 = vmatpush1.bf16.msra.mxu0 0
    %2312 = vmatprep.subr.bf16.mxu0 0
    %2313 = vmatpush1.bf16.msra.mxu0 0
    %2314 = vmatprep.subr.bf16.mxu0 0
    %2315 = vmatpush1.bf16.msra.mxu0 0
    %2316 = vmatprep.subr.bf16.mxu0 0
    %2317 = vmatpush1.bf16.msra.mxu0 0
    %2318 = vmatprep.subr.bf16.mxu0 0
    %2319 = vmatpush1.bf16.msra.mxu0 0
    %2320 = vmatprep.subr.bf16.mxu0 0
    %2321 = vmatpush1.bf16.msra.mxu0 0
    %2322 = vmatprep.subr.bf16.mxu0 0
    %2323 = vmatpush1.bf16.msra.mxu0 0
    %2324 = vmatprep.subr.bf16.mxu0 0
    %2325 = vmatpush1.bf16.msra.mxu0 0
    %2326 = vmatprep.subr.bf16.mxu0 0
    %2327 = vmatpush1.bf16.msra.mxu0 0
    %2328 = vmatprep.mubr.bf16.mxu0 0
    %2329 = vmatmul.mubr.bf16.gmra.mrb[0].mxu0 %v2285
    %v2330 = vpop.f32.mrb[0].mxu0
    %v2331 = vadd.f32 0.0, %v2330
    %v2332 = vpop.f32.mrb[0].mxu0
    %v2333 = vpop.f32.mrb[0].mxu0
    %v2334 = vadd.f32 0.0, %v2333
    %v2335 = vpop.f32.mrb[0].mxu0
    %2336 = vmatprep.mubr.bf16.mxu0 0
    %2337 = vmatmul.mubr.bf16.gmra.mrb[0].mxu0 %v2288
    %v2338 = vpop.f32.mrb[0].mxu0
    %v2339 = vadd.f32 0.0, %v2338
    %v2340 = vpop.f32.mrb[0].mxu0
    %v2341 = vpop.f32.mrb[0].mxu0
    %v2342 = vadd.f32 0.0, %v2341
    %v2343 = vpop.f32.mrb[0].mxu0
    %2344 = vmatprep.mubr.bf16.mxu0 0
    %2345 = vmatmul.mubr.bf16.gmra.mrb[0].mxu0 %v2291
    %v2346 = vpop.f32.mrb[0].mxu0
    %v2347 = vadd.f32 0.0, %v2346
    %v2348 = vpop.f32.mrb[0].mxu0
    %v2349 = vpop.f32.mrb[0].mxu0
    %v2350 = vadd.f32 0.0, %v2349
    %v2351 = vpop.f32.mrb[0].mxu0
    %2352 = vmatprep.mubr.bf16.mxu0 0
    %2353 = vmatmul.mubr.bf16.gmra.mrb[0].mxu0 %v2294
    %v2354 = vpop.f32.mrb[0].mxu0
    %v2355 = vadd.f32 0.0, %v2354
    %v2356 = vpop.f32.mrb[0].mxu0
    %v2357 = vpop.f32.mrb[0].mxu0
    %v2358 = vadd.f32 0.0, %v2357
    %v2359 = vpop.f32.mrb[0].mxu0
    %2360 = vdwg.mxu0
    %v2369 = vunpack.c.l.b16 %v2238
    %v2370 = vunpack.c.l.b16 %v2239
    %v2371 = vunpack.c.l.b16 %v2240
    %v2372 = vunpack.c.l.b16 %v2241
    %v2373 = vunpack.c.l.b16 %v2242
    %v2374 = vunpack.c.l.b16 %v2243
    %v2375 = vunpack.c.l.b16 %v2244
    %v2376 = vunpack.c.l.b16 %v2245
    %v2377 = vpack.c.b16 %v2370, %v2369
    %v2378 = vpack.c.b16 %v2372, %v2371
    %v2379 = vpack.c.b16 %v2374, %v2373
    %v2380 = vpack.c.b16 %v2376, %v2375
    %v2382 = vsel %vm2283, %v2377, 0
    %v2385 = vsel %vm2283, %v2378, 0
    %v2388 = vsel %vm2283, %v2379, 0
    %v2391 = vsel %vm2283, %v2380, 0
    %2393 = vmatprep.subr.bf16.mxu0 0
    %2394 = vmatpush1.bf16.msra.mxu0 %v2234
    %2395 = vmatprep.subr.bf16.mxu0 0
    %2396 = vmatpush1.bf16.msra.mxu0 %v2236
    %2397 = vmatprep.subr.bf16.mxu0 0
    %2398 = vmatpush1.bf16.msra.mxu0 0
    %2399 = vmatprep.subr.bf16.mxu0 0
    %2400 = vmatpush1.bf16.msra.mxu0 0
    %2401 = vmatprep.subr.bf16.mxu0 0
    %2402 = vmatpush1.bf16.msra.mxu0 0
    %2403 = vmatprep.subr.bf16.mxu0 0
    %2404 = vmatpush1.bf16.msra.mxu0 0
    %2405 = vmatprep.subr.bf16.mxu0 0
    %2406 = vmatpush1.bf16.msra.mxu0 0
    %2407 = vmatprep.subr.bf16.mxu0 0
    %2408 = vmatpush1.bf16.msra.mxu0 0
    %2409 = vmatprep.subr.bf16.mxu0 0
    %2410 = vmatpush1.bf16.msra.mxu0 0
    %2411 = vmatprep.subr.bf16.mxu0 0
    %2412 = vmatpush1.bf16.msra.mxu0 0
    %2413 = vmatprep.subr.bf16.mxu0 0
    %2414 = vmatpush1.bf16.msra.mxu0 0
    %2415 = vmatprep.subr.bf16.mxu0 0
    %2416 = vmatpush1.bf16.msra.mxu0 0
    %2417 = vmatprep.subr.bf16.mxu0 0
    %2418 = vmatpush1.bf16.msra.mxu0 0
    %2419 = vmatprep.subr.bf16.mxu0 0
    %2420 = vmatpush1.bf16.msra.mxu0 0
    %2421 = vmatprep.subr.bf16.mxu0 0
    %2422 = vmatpush1.bf16.msra.mxu0 0
    %2423 = vmatprep.subr.bf16.mxu0 0
    %2424 = vmatpush1.bf16.msra.mxu0 0
    %2425 = vmatprep.mubr.bf16.mxu0 0
    %2426 = vmatmul.mubr.bf16.gmra.mrb[0].mxu0 %v2382
    %v2427 = vpop.f32.mrb[0].mxu0
    %v2428 = vadd.f32 %v2331, %v2427
    %v2429 = vpop.f32.mrb[0].mxu0
    %v2430 = vpop.f32.mrb[0].mxu0
    %v2431 = vadd.f32 %v2334, %v2430
    %v2432 = vpop.f32.mrb[0].mxu0
    %2433 = vmatprep.mubr.bf16.mxu0 0
    %2434 = vmatmul.mubr.bf16.gmra.mrb[0].mxu0 %v2385
    %v2435 = vpop.f32.mrb[0].mxu0
    %v2436 = vadd.f32 %v2339, %v2435
    %v2437 = vpop.f32.mrb[0].mxu0
    %v2438 = vpop.f32.mrb[0].mxu0
    %v2439 = vadd.f32 %v2342, %v2438
    %v2440 = vpop.f32.mrb[0].mxu0
    %2441 = vmatprep.mubr.bf16.mxu0 0
    %2442 = vmatmul.mubr.bf16.gmra.mrb[0].mxu0 %v2388
    %v2443 = vpop.f32.mrb[0].mxu0
    %v2444 = vadd.f32 %v2347, %v2443
    %v2445 = vpop.f32.mrb[0].mxu0
    %v2446 = vpop.f32.mrb[0].mxu0
    %v2447 = vadd.f32 %v2350, %v2446
    %v2448 = vpop.f32.mrb[0].mxu0
    %2449 = vmatprep.mubr.bf16.mxu0 0
    %2450 = vmatmul.mubr.bf16.gmra.mrb[0].mxu0 %v2391
    %v2451 = vpop.f32.mrb[0].mxu0
    %v2452 = vadd.f32 %v2355, %v2451
    %v2453 = vpop.f32.mrb[0].mxu0
    %v2454 = vpop.f32.mrb[0].mxu0
    %v2455 = vadd.f32 %v2358, %v2454
    %v2456 = vpop.f32.mrb[0].mxu0
    %2457 = vdwg.mxu0
    %s2458 = scalar_lea.vmem %s9, 64
    %v2459 = vld [vmem:[%s2458] sm:$0xf]
    %v2460 = vld [vmem:[%s2458 + $0x4] sm:$0xf]
    %v2461 = vld [vmem:[%s2458 + $0x8] sm:$0xf]
    %v2462 = vld [vmem:[%s2458 + $0xc] sm:$0xf]
    %v2463 = vld [vmem:[%s2458 + $0x10] sm:$0xf]
    %v2464 = vld [vmem:[%s2458 + $0x14] sm:$0xf]
    %v2465 = vld [vmem:[%s2458 + $0x18] sm:$0xf]
    %v2466 = vld [vmem:[%s2458 + $0x1c] sm:$0xf]
    %v2475 = vunpack.c.l.b16 %v2459
    %v2476 = vunpack.c.l.b16 %v2460
    %v2477 = vunpack.c.l.b16 %v2461
    %v2478 = vunpack.c.l.b16 %v2462
    %v2479 = vunpack.c.l.b16 %v2463
    %v2480 = vunpack.c.l.b16 %v2464
    %v2481 = vunpack.c.l.b16 %v2465
    %v2482 = vunpack.c.l.b16 %v2466
    %v2483 = vpack.c.b16 %v2476, %v2475
    %v2484 = vpack.c.b16 %v2478, %v2477
    %v2485 = vpack.c.b16 %v2480, %v2479
    %v2486 = vpack.c.b16 %v2482, %v2481
    %2487 = vrot.lane.b32.xlu0 %v2234, 96
    %v2488 = vpop.permute.xlu0 %2487
    %2489 = vrot.lane.b32.xlu0 %v2236, 96
    %v2490 = vpop.permute.xlu0 %2489
    %v2494 = vsel %vm2283, %v2483, 0
    %v2497 = vsel %vm2283, %v2484, 0
    %v2500 = vsel %vm2283, %v2485, 0
    %v2503 = vsel %vm2283, %v2486, 0
    %2505 = vmatprep.subr.bf16.mxu0 0
    %2506 = vmatpush1.bf16.msra.mxu0 %v2488
    %2507 = vmatprep.subr.bf16.mxu0 0
    %2508 = vmatpush1.bf16.msra.mxu0 %v2490
    %2509 = vmatprep.subr.bf16.mxu0 0
    %2510 = vmatpush1.bf16.msra.mxu0 0
    %2511 = vmatprep.subr.bf16.mxu0 0
    %2512 = vmatpush1.bf16.msra.mxu0 0
    %2513 = vmatprep.subr.bf16.mxu0 0
    %2514 = vmatpush1.bf16.msra.mxu0 0
    %2515 = vmatprep.subr.bf16.mxu0 0
    %2516 = vmatpush1.bf16.msra.mxu0 0
    %2517 = vmatprep.subr.bf16.mxu0 0
    %2518 = vmatpush1.bf16.msra.mxu0 0
    %2519 = vmatprep.subr.bf16.mxu0 0
    %2520 = vmatpush1.bf16.msra.mxu0 0
    %2521 = vmatprep.subr.bf16.mxu0 0
    %2522 = vmatpush1.bf16.msra.mxu0 0
    %2523 = vmatprep.subr.bf16.mxu0 0
    %2524 = vmatpush1.bf16.msra.mxu0 0
    %2525 = vmatprep.subr.bf16.mxu0 0
    %2526 = vmatpush1.bf16.msra.mxu0 0
    %2527 = vmatprep.subr.bf16.mxu0 0
    %2528 = vmatpush1.bf16.msra.mxu0 0
    %2529 = vmatprep.subr.bf16.mxu0 0
    %2530 = vmatpush1.bf16.msra.mxu0 0
    %2531 = vmatprep.subr.bf16.mxu0 0
    %2532 = vmatpush1.bf16.msra.mxu0 0
    %2533 = vmatprep.subr.bf16.mxu0 0
    %2534 = vmatpush1.bf16.msra.mxu0 0
    %2535 = vmatprep.subr.bf16.mxu0 0
    %2536 = vmatpush1.bf16.msra.mxu0 0
    %2537 = vmatprep.mubr.bf16.mxu0 0
    %2538 = vmatmul.mubr.bf16.gmra.mrb[0].mxu0 %v2494
    %v2539 = vpop.f32.mrb[0].mxu0
    %v2540 = vadd.f32 0.0, %v2539
    %v2541 = vpop.f32.mrb[0].mxu0
    %v2542 = vpop.f32.mrb[0].mxu0
    %v2543 = vadd.f32 0.0, %v2542
    %v2544 = vpop.f32.mrb[0].mxu0
    %2545 = vmatprep.mubr.bf16.mxu0 0
    %2546 = vmatmul.mubr.bf16.gmra.mrb[0].mxu0 %v2497
    %v2547 = vpop.f32.mrb[0].mxu0
    %v2548 = vadd.f32 0.0, %v2547
    %v2549 = vpop.f32.mrb[0].mxu0
    %v2550 = vpop.f32.mrb[0].mxu0
    %v2551 = vadd.f32 0.0, %v2550
    %v2552 = vpop.f32.mrb[0].mxu0
    %2553 = vmatprep.mubr.bf16.mxu0 0
    %2554 = vmatmul.mubr.bf16.gmra.mrb[0].mxu0 %v2500
    %v2555 = vpop.f32.mrb[0].mxu0
    %v2556 = vadd.f32 0.0, %v2555
    %v2557 = vpop.f32.mrb[0].mxu0
    %v2558 = vpop.f32.mrb[0].mxu0
    %v2559 = vadd.f32 0.0, %v2558
    %v2560 = vpop.f32.mrb[0].mxu0
    %2561 = vmatprep.mubr.bf16.mxu0 0
    %2562 = vmatmul.mubr.bf16.gmra.mrb[0].mxu0 %v2503
    %v2563 = vpop.f32.mrb[0].mxu0
    %v2564 = vadd.f32 0.0, %v2563
    %v2565 = vpop.f32.mrb[0].mxu0
    %v2566 = vpop.f32.mrb[0].mxu0
    %v2567 = vadd.f32 0.0, %v2566
    %v2568 = vpop.f32.mrb[0].mxu0
    %2569 = vdwg.mxu0
    %v2570 = vadd.f32 %v2428, %v2540
    %v2571 = vadd.f32 %v2431, %v2543
    %v2572 = vadd.f32 %v2436, %v2548
    %v2573 = vadd.f32 %v2439, %v2551
    %v2574 = vadd.f32 %v2444, %v2556
    %v2575 = vadd.f32 %v2447, %v2559
    %v2576 = vadd.f32 %v2452, %v2564
    %v2577 = vadd.f32 %v2455, %v2567
    %s2578 = scalar_lea.vmem %s9, 96
    %v2579 = vld [vmem:[%s2578] sm:$0xf]
    %v2580 = vld [vmem:[%s2578 + $0x4] sm:$0xf]
    %v2581 = vld [vmem:[%s2578 + $0x8] sm:$0xf]
    %v2582 = vld [vmem:[%s2578 + $0xc] sm:$0xf]
    %v2583 = vld [vmem:[%s2578 + $0x10] sm:$0xf]
    %v2584 = vld [vmem:[%s2578 + $0x14] sm:$0xf]
    %v2585 = vld [vmem:[%s2578 + $0x18] sm:$0xf]
    %v2586 = vld [vmem:[%s2578 + $0x1c] sm:$0xf]
    %v2595 = vunpack.c.l.b16 %v2579
    %v2596 = vunpack.c.l.b16 %v2580
    %v2597 = vunpack.c.l.b16 %v2581
    %v2598 = vunpack.c.l.b16 %v2582
    %v2599 = vunpack.c.l.b16 %v2583
    %v2600 = vunpack.c.l.b16 %v2584
    %v2601 = vunpack.c.l.b16 %v2585
    %v2602 = vunpack.c.l.b16 %v2586
    %v2603 = vpack.c.b16 %v2596, %v2595
    %v2604 = vpack.c.b16 %v2598, %v2597
    %v2605 = vpack.c.b16 %v2600, %v2599
    %v2606 = vpack.c.b16 %v2602, %v2601
    %2607 = vrot.lane.b32.xlu0 %v2234, 80
    %v2608 = vpop.permute.xlu0 %2607
    %2609 = vrot.lane.b32.xlu0 %v2236, 80
    %v2610 = vpop.permute.xlu0 %2609
    %v2614 = vsel %vm2283, %v2603, 0
    %v2617 = vsel %vm2283, %v2604, 0
    %v2620 = vsel %vm2283, %v2605, 0
    %v2623 = vsel %vm2283, %v2606, 0
    %2625 = vmatprep.subr.bf16.mxu0 0
    %2626 = vmatpush1.bf16.msra.mxu0 %v2608
    %2627 = vmatprep.subr.bf16.mxu0 0
    %2628 = vmatpush1.bf16.msra.mxu0 %v2610
    %2629 = vmatprep.subr.bf16.mxu0 0
    %2630 = vmatpush1.bf16.msra.mxu0 0
    %2631 = vmatprep.subr.bf16.mxu0 0
    %2632 = vmatpush1.bf16.msra.mxu0 0
    %2633 = vmatprep.subr.bf16.mxu0 0
    %2634 = vmatpush1.bf16.msra.mxu0 0
    %2635 = vmatprep.subr.bf16.mxu0 0
    %2636 = vmatpush1.bf16.msra.mxu0 0
    %2637 = vmatprep.subr.bf16.mxu0 0
    %2638 = vmatpush1.bf16.msra.mxu0 0
    %2639 = vmatprep.subr.bf16.mxu0 0
    %2640 = vmatpush1.bf16.msra.mxu0 0
    %2641 = vmatprep.subr.bf16.mxu0 0
    %2642 = vmatpush1.bf16.msra.mxu0 0
    %2643 = vmatprep.subr.bf16.mxu0 0
    %2644 = vmatpush1.bf16.msra.mxu0 0
    %2645 = vmatprep.subr.bf16.mxu0 0
    %2646 = vmatpush1.bf16.msra.mxu0 0
    %2647 = vmatprep.subr.bf16.mxu0 0
    %2648 = vmatpush1.bf16.msra.mxu0 0
    %2649 = vmatprep.subr.bf16.mxu0 0
    %2650 = vmatpush1.bf16.msra.mxu0 0
    %2651 = vmatprep.subr.bf16.mxu0 0
    %2652 = vmatpush1.bf16.msra.mxu0 0
    %2653 = vmatprep.subr.bf16.mxu0 0
    %2654 = vmatpush1.bf16.msra.mxu0 0
    %2655 = vmatprep.subr.bf16.mxu0 0
    %2656 = vmatpush1.bf16.msra.mxu0 0
    %2657 = vmatprep.mubr.bf16.mxu0 0
    %2658 = vmatmul.mubr.bf16.gmra.mrb[0].mxu0 %v2614
    %v2659 = vpop.f32.mrb[0].mxu0
    %v2660 = vadd.f32 0.0, %v2659
    %v2661 = vpop.f32.mrb[0].mxu0
    %v2662 = vpop.f32.mrb[0].mxu0
    %v2663 = vadd.f32 0.0, %v2662
    %v2664 = vpop.f32.mrb[0].mxu0
    %2665 = vmatprep.mubr.bf16.mxu0 0
    %2666 = vmatmul.mubr.bf16.gmra.mrb[0].mxu0 %v2617
    %v2667 = vpop.f32.mrb[0].mxu0
    %v2668 = vadd.f32 0.0, %v2667
    %v2669 = vpop.f32.mrb[0].mxu0
    %v2670 = vpop.f32.mrb[0].mxu0
    %v2671 = vadd.f32 0.0, %v2670
    %v2672 = vpop.f32.mrb[0].mxu0
    %2673 = vmatprep.mubr.bf16.mxu0 0
    %2674 = vmatmul.mubr.bf16.gmra.mrb[0].mxu0 %v2620
    %v2675 = vpop.f32.mrb[0].mxu0
    %v2676 = vadd.f32 0.0, %v2675
    %v2677 = vpop.f32.mrb[0].mxu0
    %v2678 = vpop.f32.mrb[0].mxu0
    %v2679 = vadd.f32 0.0, %v2678
    %v2680 = vpop.f32.mrb[0].mxu0
    %2681 = vmatprep.mubr.bf16.mxu0 0
    %2682 = vmatmul.mubr.bf16.gmra.mrb[0].mxu0 %v2623
    %v2683 = vpop.f32.mrb[0].mxu0
    %v2684 = vadd.f32 0.0, %v2683
    %v2685 = vpop.f32.mrb[0].mxu0
    %v2686 = vpop.f32.mrb[0].mxu0
    %v2687 = vadd.f32 0.0, %v2686
    %v2688 = vpop.f32.mrb[0].mxu0
    %2689 = vdwg.mxu0
    %v2690 = vadd.f32 %v2570, %v2660
    %v2691 = vadd.f32 %v2571, %v2663
    %v2692 = vadd.f32 %v2572, %v2668
    %v2693 = vadd.f32 %v2573, %v2671
    %v2694 = vadd.f32 %v2574, %v2676
    %v2695 = vadd.f32 %v2575, %v2679
    %v2696 = vadd.f32 %v2576, %v2684
    %v2697 = vadd.f32 %v2577, %v2687
    %s2698 = scalar_lea.vmem %s9, 128
    %v2699 = vld [vmem:[%s2698] sm:$0xf]
    %v2700 = vld [vmem:[%s2698 + $0x4] sm:$0xf]
    %v2701 = vld [vmem:[%s2698 + $0x8] sm:$0xf]
    %v2702 = vld [vmem:[%s2698 + $0xc] sm:$0xf]
    %v2703 = vld [vmem:[%s2698 + $0x10] sm:$0xf]
    %v2704 = vld [vmem:[%s2698 + $0x14] sm:$0xf]
    %v2705 = vld [vmem:[%s2698 + $0x18] sm:$0xf]
    %v2706 = vld [vmem:[%s2698 + $0x1c] sm:$0xf]
    %v2715 = vunpack.c.l.b16 %v2699
    %v2716 = vunpack.c.l.b16 %v2700
    %v2717 = vunpack.c.l.b16 %v2701
    %v2718 = vunpack.c.l.b16 %v2702
    %v2719 = vunpack.c.l.b16 %v2703
    %v2720 = vunpack.c.l.b16 %v2704
    %v2721 = vunpack.c.l.b16 %v2705
    %v2722 = vunpack.c.l.b16 %v2706
    %v2723 = vpack.c.b16 %v2716, %v2715
    %v2724 = vpack.c.b16 %v2718, %v2717
    %v2725 = vpack.c.b16 %v2720, %v2719
    %v2726 = vpack.c.b16 %v2722, %v2721
    %2727 = vrot.lane.b32.xlu0 %v2234, 64
    %v2728 = vpop.permute.xlu0 %2727
    %2729 = vrot.lane.b32.xlu0 %v2236, 64
    %v2730 = vpop.permute.xlu0 %2729
    %v2734 = vsel %vm2283, %v2723, 0
    %v2737 = vsel %vm2283, %v2724, 0
    %v2740 = vsel %vm2283, %v2725, 0
    %v2743 = vsel %vm2283, %v2726, 0
    %2745 = vmatprep.subr.bf16.mxu0 0
    %2746 = vmatpush1.bf16.msra.mxu0 %v2728
    %2747 = vmatprep.subr.bf16.mxu0 0
    %2748 = vmatpush1.bf16.msra.mxu0 %v2730
    %2749 = vmatprep.subr.bf16.mxu0 0
    %2750 = vmatpush1.bf16.msra.mxu0 0
    %2751 = vmatprep.subr.bf16.mxu0 0
    %2752 = vmatpush1.bf16.msra.mxu0 0
    %2753 = vmatprep.subr.bf16.mxu0 0
    %2754 = vmatpush1.bf16.msra.mxu0 0
    %2755 = vmatprep.subr.bf16.mxu0 0
    %2756 = vmatpush1.bf16.msra.mxu0 0
    %2757 = vmatprep.subr.bf16.mxu0 0
    %2758 = vmatpush1.bf16.msra.mxu0 0
    %2759 = vmatprep.subr.bf16.mxu0 0
    %2760 = vmatpush1.bf16.msra.mxu0 0
    %2761 = vmatprep.subr.bf16.mxu0 0
    %2762 = vmatpush1.bf16.msra.mxu0 0
    %2763 = vmatprep.subr.bf16.mxu0 0
    %2764 = vmatpush1.bf16.msra.mxu0 0
    %2765 = vmatprep.subr.bf16.mxu0 0
    %2766 = vmatpush1.bf16.msra.mxu0 0
    %2767 = vmatprep.subr.bf16.mxu0 0
    %2768 = vmatpush1.bf16.msra.mxu0 0
    %2769 = vmatprep.subr.bf16.mxu0 0
    %2770 = vmatpush1.bf16.msra.mxu0 0
    %2771 = vmatprep.subr.bf16.mxu0 0
    %2772 = vmatpush1.bf16.msra.mxu0 0
    %2773 = vmatprep.subr.bf16.mxu0 0
    %2774 = vmatpush1.bf16.msra.mxu0 0
    %2775 = vmatprep.subr.bf16.mxu0 0
    %2776 = vmatpush1.bf16.msra.mxu0 0
    %2777 = vmatprep.mubr.bf16.mxu0 0
    %2778 = vmatmul.mubr.bf16.gmra.mrb[0].mxu0 %v2734
    %v2779 = vpop.f32.mrb[0].mxu0
    %v2780 = vadd.f32 0.0, %v2779
    %v2781 = vpop.f32.mrb[0].mxu0
    %v2782 = vpop.f32.mrb[0].mxu0
    %v2783 = vadd.f32 0.0, %v2782
    %v2784 = vpop.f32.mrb[0].mxu0
    %2785 = vmatprep.mubr.bf16.mxu0 0
    %2786 = vmatmul.mubr.bf16.gmra.mrb[0].mxu0 %v2737
    %v2787 = vpop.f32.mrb[0].mxu0
    %v2788 = vadd.f32 0.0, %v2787
    %v2789 = vpop.f32.mrb[0].mxu0
    %v2790 = vpop.f32.mrb[0].mxu0
    %v2791 = vadd.f32 0.0, %v2790
    %v2792 = vpop.f32.mrb[0].mxu0
    %2793 = vmatprep.mubr.bf16.mxu0 0
    %2794 = vmatmul.mubr.bf16.gmra.mrb[0].mxu0 %v2740
    %v2795 = vpop.f32.mrb[0].mxu0
    %v2796 = vadd.f32 0.0, %v2795
    %v2797 = vpop.f32.mrb[0].mxu0
    %v2798 = vpop.f32.mrb[0].mxu0
    %v2799 = vadd.f32 0.0, %v2798
    %v2800 = vpop.f32.mrb[0].mxu0
    %2801 = vmatprep.mubr.bf16.mxu0 0
    %2802 = vmatmul.mubr.bf16.gmra.mrb[0].mxu0 %v2743
    %v2803 = vpop.f32.mrb[0].mxu0
    %v2804 = vadd.f32 0.0, %v2803
    %v2805 = vpop.f32.mrb[0].mxu0
    %v2806 = vpop.f32.mrb[0].mxu0
    %v2807 = vadd.f32 0.0, %v2806
    %v2808 = vpop.f32.mrb[0].mxu0
    %2809 = vdwg.mxu0
    %v2810 = vadd.f32 %v2690, %v2780
    %v2811 = vadd.f32 %v2691, %v2783
    %v2812 = vadd.f32 %v2692, %v2788
    %v2813 = vadd.f32 %v2693, %v2791
    %v2814 = vadd.f32 %v2694, %v2796
    %v2815 = vadd.f32 %v2695, %v2799
    %v2816 = vadd.f32 %v2696, %v2804
    %v2817 = vadd.f32 %v2697, %v2807
    %s2818 = scalar_lea.vmem %s9, 160
    %v2819 = vld [vmem:[%s2818] sm:$0xf]
    %v2820 = vld [vmem:[%s2818 + $0x4] sm:$0xf]
    %v2821 = vld [vmem:[%s2818 + $0x8] sm:$0xf]
    %v2822 = vld [vmem:[%s2818 + $0xc] sm:$0xf]
    %v2823 = vld [vmem:[%s2818 + $0x10] sm:$0xf]
    %v2824 = vld [vmem:[%s2818 + $0x14] sm:$0xf]
    %v2825 = vld [vmem:[%s2818 + $0x18] sm:$0xf]
    %v2826 = vld [vmem:[%s2818 + $0x1c] sm:$0xf]
    %v2835 = vunpack.c.l.b16 %v2819
    %v2836 = vunpack.c.l.b16 %v2820
    %v2837 = vunpack.c.l.b16 %v2821
    %v2838 = vunpack.c.l.b16 %v2822
    %v2839 = vunpack.c.l.b16 %v2823
    %v2840 = vunpack.c.l.b16 %v2824
    %v2841 = vunpack.c.l.b16 %v2825
    %v2842 = vunpack.c.l.b16 %v2826
    %v2843 = vpack.c.b16 %v2836, %v2835
    %v2844 = vpack.c.b16 %v2838, %v2837
    %v2845 = vpack.c.b16 %v2840, %v2839
    %v2846 = vpack.c.b16 %v2842, %v2841
    %2847 = vrot.lane.b32.xlu0 %v2234, 48
    %v2848 = vpop.permute.xlu0 %2847
    %2849 = vrot.lane.b32.xlu0 %v2236, 48
    %v2850 = vpop.permute.xlu0 %2849
    %v2854 = vsel %vm2283, %v2843, 0
    %v2857 = vsel %vm2283, %v2844, 0
    %v2860 = vsel %vm2283, %v2845, 0
    %v2863 = vsel %vm2283, %v2846, 0
    %2865 = vmatprep.subr.bf16.mxu0 0
    %2866 = vmatpush1.bf16.msra.mxu0 %v2848
    %2867 = vmatprep.subr.bf16.mxu0 0
    %2868 = vmatpush1.bf16.msra.mxu0 %v2850
    %2869 = vmatprep.subr.bf16.mxu0 0
    %2870 = vmatpush1.bf16.msra.mxu0 0
    %2871 = vmatprep.subr.bf16.mxu0 0
    %2872 = vmatpush1.bf16.msra.mxu0 0
    %2873 = vmatprep.subr.bf16.mxu0 0
    %2874 = vmatpush1.bf16.msra.mxu0 0
    %2875 = vmatprep.subr.bf16.mxu0 0
    %2876 = vmatpush1.bf16.msra.mxu0 0
    %2877 = vmatprep.subr.bf16.mxu0 0
    %2878 = vmatpush1.bf16.msra.mxu0 0
    %2879 = vmatprep.subr.bf16.mxu0 0
    %2880 = vmatpush1.bf16.msra.mxu0 0
    %2881 = vmatprep.subr.bf16.mxu0 0
    %2882 = vmatpush1.bf16.msra.mxu0 0
    %2883 = vmatprep.subr.bf16.mxu0 0
    %2884 = vmatpush1.bf16.msra.mxu0 0
    %2885 = vmatprep.subr.bf16.mxu0 0
    %2886 = vmatpush1.bf16.msra.mxu0 0
    %2887 = vmatprep.subr.bf16.mxu0 0
    %2888 = vmatpush1.bf16.msra.mxu0 0
    %2889 = vmatprep.subr.bf16.mxu0 0
    %2890 = vmatpush1.bf16.msra.mxu0 0
    %2891 = vmatprep.subr.bf16.mxu0 0
    %2892 = vmatpush1.bf16.msra.mxu0 0
    %2893 = vmatprep.subr.bf16.mxu0 0
    %2894 = vmatpush1.bf16.msra.mxu0 0
    %2895 = vmatprep.subr.bf16.mxu0 0
    %2896 = vmatpush1.bf16.msra.mxu0 0
    %2897 = vmatprep.mubr.bf16.mxu0 0
    %2898 = vmatmul.mubr.bf16.gmra.mrb[0].mxu0 %v2854
    %v2899 = vpop.f32.mrb[0].mxu0
    %v2900 = vadd.f32 0.0, %v2899
    %v2901 = vpop.f32.mrb[0].mxu0
    %v2902 = vpop.f32.mrb[0].mxu0
    %v2903 = vadd.f32 0.0, %v2902
    %v2904 = vpop.f32.mrb[0].mxu0
    %2905 = vmatprep.mubr.bf16.mxu0 0
    %2906 = vmatmul.mubr.bf16.gmra.mrb[0].mxu0 %v2857
    %v2907 = vpop.f32.mrb[0].mxu0
    %v2908 = vadd.f32 0.0, %v2907
    %v2909 = vpop.f32.mrb[0].mxu0
    %v2910 = vpop.f32.mrb[0].mxu0
    %v2911 = vadd.f32 0.0, %v2910
    %v2912 = vpop.f32.mrb[0].mxu0
    %2913 = vmatprep.mubr.bf16.mxu0 0
    %2914 = vmatmul.mubr.bf16.gmra.mrb[0].mxu0 %v2860
    %v2915 = vpop.f32.mrb[0].mxu0
    %v2916 = vadd.f32 0.0, %v2915
    %v2917 = vpop.f32.mrb[0].mxu0
    %v2918 = vpop.f32.mrb[0].mxu0
    %v2919 = vadd.f32 0.0, %v2918
    %v2920 = vpop.f32.mrb[0].mxu0
    %2921 = vmatprep.mubr.bf16.mxu0 0
    %2922 = vmatmul.mubr.bf16.gmra.mrb[0].mxu0 %v2863
    %v2923 = vpop.f32.mrb[0].mxu0
    %v2924 = vadd.f32 0.0, %v2923
    %v2925 = vpop.f32.mrb[0].mxu0
    %v2926 = vpop.f32.mrb[0].mxu0
    %v2927 = vadd.f32 0.0, %v2926
    %v2928 = vpop.f32.mrb[0].mxu0
    %2929 = vdwg.mxu0
    %v2930 = vadd.f32 %v2810, %v2900
    %v2931 = vadd.f32 %v2811, %v2903
    %v2932 = vadd.f32 %v2812, %v2908
    %v2933 = vadd.f32 %v2813, %v2911
    %v2934 = vadd.f32 %v2814, %v2916
    %v2935 = vadd.f32 %v2815, %v2919
    %v2936 = vadd.f32 %v2816, %v2924
    %v2937 = vadd.f32 %v2817, %v2927
    %s2938 = scalar_lea.vmem %s9, 192
    %v2939 = vld [vmem:[%s2938] sm:$0xf]
    %v2940 = vld [vmem:[%s2938 + $0x4] sm:$0xf]
    %v2941 = vld [vmem:[%s2938 + $0x8] sm:$0xf]
    %v2942 = vld [vmem:[%s2938 + $0xc] sm:$0xf]
    %v2943 = vld [vmem:[%s2938 + $0x10] sm:$0xf]
    %v2944 = vld [vmem:[%s2938 + $0x14] sm:$0xf]
    %v2945 = vld [vmem:[%s2938 + $0x18] sm:$0xf]
    %v2946 = vld [vmem:[%s2938 + $0x1c] sm:$0xf]
    %v2955 = vunpack.c.l.b16 %v2939
    %v2956 = vunpack.c.l.b16 %v2940
    %v2957 = vunpack.c.l.b16 %v2941
    %v2958 = vunpack.c.l.b16 %v2942
    %v2959 = vunpack.c.l.b16 %v2943
    %v2960 = vunpack.c.l.b16 %v2944
    %v2961 = vunpack.c.l.b16 %v2945
    %v2962 = vunpack.c.l.b16 %v2946
    %v2963 = vpack.c.b16 %v2956, %v2955
    %v2964 = vpack.c.b16 %v2958, %v2957
    %v2965 = vpack.c.b16 %v2960, %v2959
    %v2966 = vpack.c.b16 %v2962, %v2961
    %2967 = vrot.lane.b32.xlu0 %v2234, 32
    %v2968 = vpop.permute.xlu0 %2967
    %2969 = vrot.lane.b32.xlu0 %v2236, 32
    %v2970 = vpop.permute.xlu0 %2969
    %v2974 = vsel %vm2283, %v2963, 0
    %v2977 = vsel %vm2283, %v2964, 0
    %v2980 = vsel %vm2283, %v2965, 0
    %v2983 = vsel %vm2283, %v2966, 0
    %2985 = vmatprep.subr.bf16.mxu0 0
    %2986 = vmatpush1.bf16.msra.mxu0 %v2968
    %2987 = vmatprep.subr.bf16.mxu0 0
    %2988 = vmatpush1.bf16.msra.mxu0 %v2970
    %2989 = vmatprep.subr.bf16.mxu0 0
    %2990 = vmatpush1.bf16.msra.mxu0 0
    %2991 = vmatprep.subr.bf16.mxu0 0
    %2992 = vmatpush1.bf16.msra.mxu0 0
    %2993 = vmatprep.subr.bf16.mxu0 0
    %2994 = vmatpush1.bf16.msra.mxu0 0
    %2995 = vmatprep.subr.bf16.mxu0 0
    %2996 = vmatpush1.bf16.msra.mxu0 0
    %2997 = vmatprep.subr.bf16.mxu0 0
    %2998 = vmatpush1.bf16.msra.mxu0 0
    %2999 = vmatprep.subr.bf16.mxu0 0
    %3000 = vmatpush1.bf16.msra.mxu0 0
    %3001 = vmatprep.subr.bf16.mxu0 0
    %3002 = vmatpush1.bf16.msra.mxu0 0
    %3003 = vmatprep.subr.bf16.mxu0 0
    %3004 = vmatpush1.bf16.msra.mxu0 0
    %3005 = vmatprep.subr.bf16.mxu0 0
    %3006 = vmatpush1.bf16.msra.mxu0 0
    %3007 = vmatprep.subr.bf16.mxu0 0
    %3008 = vmatpush1.bf16.msra.mxu0 0
    %3009 = vmatprep.subr.bf16.mxu0 0
    %3010 = vmatpush1.bf16.msra.mxu0 0
    %3011 = vmatprep.subr.bf16.mxu0 0
    %3012 = vmatpush1.bf16.msra.mxu0 0
    %3013 = vmatprep.subr.bf16.mxu0 0
    %3014 = vmatpush1.bf16.msra.mxu0 0
    %3015 = vmatprep.subr.bf16.mxu0 0
    %3016 = vmatpush1.bf16.msra.mxu0 0
    %3017 = vmatprep.mubr.bf16.mxu0 0
    %3018 = vmatmul.mubr.bf16.gmra.mrb[0].mxu0 %v2974
    %v3019 = vpop.f32.mrb[0].mxu0
    %v3020 = vadd.f32 0.0, %v3019
    %v3021 = vpop.f32.mrb[0].mxu0
    %v3022 = vpop.f32.mrb[0].mxu0
    %v3023 = vadd.f32 0.0, %v3022
    %v3024 = vpop.f32.mrb[0].mxu0
    %3025 = vmatprep.mubr.bf16.mxu0 0
    %3026 = vmatmul.mubr.bf16.gmra.mrb[0].mxu0 %v2977
    %v3027 = vpop.f32.mrb[0].mxu0
    %v3028 = vadd.f32 0.0, %v3027
    %v3029 = vpop.f32.mrb[0].mxu0
    %v3030 = vpop.f32.mrb[0].mxu0
    %v3031 = vadd.f32 0.0, %v3030
    %v3032 = vpop.f32.mrb[0].mxu0
    %3033 = vmatprep.mubr.bf16.mxu0 0
    %3034 = vmatmul.mubr.bf16.gmra.mrb[0].mxu0 %v2980
    %v3035 = vpop.f32.mrb[0].mxu0
    %v3036 = vadd.f32 0.0, %v3035
    %v3037 = vpop.f32.mrb[0].mxu0
    %v3038 = vpop.f32.mrb[0].mxu0
    %v3039 = vadd.f32 0.0, %v3038
    %v3040 = vpop.f32.mrb[0].mxu0
    %3041 = vmatprep.mubr.bf16.mxu0 0
    %3042 = vmatmul.mubr.bf16.gmra.mrb[0].mxu0 %v2983
    %v3043 = vpop.f32.mrb[0].mxu0
    %v3044 = vadd.f32 0.0, %v3043
    %v3045 = vpop.f32.mrb[0].mxu0
    %v3046 = vpop.f32.mrb[0].mxu0
    %v3047 = vadd.f32 0.0, %v3046
    %v3048 = vpop.f32.mrb[0].mxu0
    %3049 = vdwg.mxu0
    %v3050 = vadd.f32 %v2930, %v3020
    %v3051 = vadd.f32 %v2931, %v3023
    %v3052 = vadd.f32 %v2932, %v3028
    %v3053 = vadd.f32 %v2933, %v3031
    %v3054 = vadd.f32 %v2934, %v3036
    %v3055 = vadd.f32 %v2935, %v3039
    %v3056 = vadd.f32 %v2936, %v3044
    %v3057 = vadd.f32 %v2937, %v3047
    %s3058 = scalar_lea.vmem %s9, 224
    %v3059 = vld [vmem:[%s3058] sm:$0xf]
    %v3060 = vld [vmem:[%s3058 + $0x4] sm:$0xf]
    %v3061 = vld [vmem:[%s3058 + $0x8] sm:$0xf]
    %v3062 = vld [vmem:[%s3058 + $0xc] sm:$0xf]
    %v3063 = vld [vmem:[%s3058 + $0x10] sm:$0xf]
    %v3064 = vld [vmem:[%s3058 + $0x14] sm:$0xf]
    %v3065 = vld [vmem:[%s3058 + $0x18] sm:$0xf]
    %v3066 = vld [vmem:[%s3058 + $0x1c] sm:$0xf]
    %v3075 = vunpack.c.l.b16 %v3059
    %v3076 = vunpack.c.l.b16 %v3060
    %v3077 = vunpack.c.l.b16 %v3061
    %v3078 = vunpack.c.l.b16 %v3062
    %v3079 = vunpack.c.l.b16 %v3063
    %v3080 = vunpack.c.l.b16 %v3064
    %v3081 = vunpack.c.l.b16 %v3065
    %v3082 = vunpack.c.l.b16 %v3066
    %v3083 = vpack.c.b16 %v3076, %v3075
    %v3084 = vpack.c.b16 %v3078, %v3077
    %v3085 = vpack.c.b16 %v3080, %v3079
    %v3086 = vpack.c.b16 %v3082, %v3081
    %3087 = vrot.lane.b32.xlu0 %v2234, 16
    %v3088 = vpop.permute.xlu0 %3087
    %3089 = vrot.lane.b32.xlu0 %v2236, 16
    %v3090 = vpop.permute.xlu0 %3089
    %v3094 = vsel %vm2283, %v3083, 0
    %v3097 = vsel %vm2283, %v3084, 0
    %v3100 = vsel %vm2283, %v3085, 0
    %v3103 = vsel %vm2283, %v3086, 0
    %3105 = vmatprep.subr.bf16.mxu0 0
    %3106 = vmatpush1.bf16.msra.mxu0 %v3088
    %3107 = vmatprep.subr.bf16.mxu0 0
    %3108 = vmatpush1.bf16.msra.mxu0 %v3090
    %3109 = vmatprep.subr.bf16.mxu0 0
    %3110 = vmatpush1.bf16.msra.mxu0 0
    %3111 = vmatprep.subr.bf16.mxu0 0
    %3112 = vmatpush1.bf16.msra.mxu0 0
    %3113 = vmatprep.subr.bf16.mxu0 0
    %3114 = vmatpush1.bf16.msra.mxu0 0
    %3115 = vmatprep.subr.bf16.mxu0 0
    %3116 = vmatpush1.bf16.msra.mxu0 0
    %3117 = vmatprep.subr.bf16.mxu0 0
    %3118 = vmatpush1.bf16.msra.mxu0 0
    %3119 = vmatprep.subr.bf16.mxu0 0
    %3120 = vmatpush1.bf16.msra.mxu0 0
    %3121 = vmatprep.subr.bf16.mxu0 0
    %3122 = vmatpush1.bf16.msra.mxu0 0
    %3123 = vmatprep.subr.bf16.mxu0 0
    %3124 = vmatpush1.bf16.msra.mxu0 0
    %3125 = vmatprep.subr.bf16.mxu0 0
    %3126 = vmatpush1.bf16.msra.mxu0 0
    %3127 = vmatprep.subr.bf16.mxu0 0
    %3128 = vmatpush1.bf16.msra.mxu0 0
    %3129 = vmatprep.subr.bf16.mxu0 0
    %3130 = vmatpush1.bf16.msra.mxu0 0
    %3131 = vmatprep.subr.bf16.mxu0 0
    %3132 = vmatpush1.bf16.msra.mxu0 0
    %3133 = vmatprep.subr.bf16.mxu0 0
    %3134 = vmatpush1.bf16.msra.mxu0 0
    %3135 = vmatprep.subr.bf16.mxu0 0
    %3136 = vmatpush1.bf16.msra.mxu0 0
    %3137 = vmatprep.mubr.bf16.mxu0 0
    %3138 = vmatmul.mubr.bf16.gmra.mrb[0].mxu0 %v3094
    %v3139 = vpop.f32.mrb[0].mxu0
    %v3140 = vadd.f32 0.0, %v3139
    %v3141 = vpop.f32.mrb[0].mxu0
    %v3142 = vpop.f32.mrb[0].mxu0
    %v3143 = vadd.f32 0.0, %v3142
    %v3144 = vpop.f32.mrb[0].mxu0
    %3145 = vmatprep.mubr.bf16.mxu0 0
    %3146 = vmatmul.mubr.bf16.gmra.mrb[0].mxu0 %v3097
    %v3147 = vpop.f32.mrb[0].mxu0
    %v3148 = vadd.f32 0.0, %v3147
    %v3149 = vpop.f32.mrb[0].mxu0
    %v3150 = vpop.f32.mrb[0].mxu0
    %v3151 = vadd.f32 0.0, %v3150
    %v3152 = vpop.f32.mrb[0].mxu0
    %3153 = vmatprep.mubr.bf16.mxu0 0
    %3154 = vmatmul.mubr.bf16.gmra.mrb[0].mxu0 %v3100
    %v3155 = vpop.f32.mrb[0].mxu0
    %v3156 = vadd.f32 0.0, %v3155
    %v3157 = vpop.f32.mrb[0].mxu0
    %v3158 = vpop.f32.mrb[0].mxu0
    %v3159 = vadd.f32 0.0, %v3158
    %v3160 = vpop.f32.mrb[0].mxu0
    %3161 = vmatprep.mubr.bf16.mxu0 0
    %3162 = vmatmul.mubr.bf16.gmra.mrb[0].mxu0 %v3103
    %v3163 = vpop.f32.mrb[0].mxu0
    %v3164 = vadd.f32 0.0, %v3163
    %v3165 = vpop.f32.mrb[0].mxu0
    %v3166 = vpop.f32.mrb[0].mxu0
    %v3167 = vadd.f32 0.0, %v3166
    %v3168 = vpop.f32.mrb[0].mxu0
    %3169 = vdwg.mxu0
    %v3170 = vadd.f32 %v3050, %v3140
    %v3171 = vadd.f32 %v3051, %v3143
    %v3172 = vadd.f32 %v3052, %v3148
    %v3173 = vadd.f32 %v3053, %v3151
    %v3174 = vadd.f32 %v3054, %v3156
    %v3175 = vadd.f32 %v3055, %v3159
    %v3176 = vadd.f32 %v3056, %v3164
    %v3177 = vadd.f32 %v3057, %v3167
    %s3178 = scalar_lea.vmem %s9, 256
    %v3179 = vld [vmem:[%s3178] sm:$0xf]
    %v3180 = vld [vmem:[%s3178 + $0x4] sm:$0xf]
    %v3181 = vld [vmem:[%s3178 + $0x8] sm:$0xf]
    %v3182 = vld [vmem:[%s3178 + $0xc] sm:$0xf]
    %v3183 = vld [vmem:[%s3178 + $0x10] sm:$0xf]
    %v3184 = vld [vmem:[%s3178 + $0x14] sm:$0xf]
    %v3185 = vld [vmem:[%s3178 + $0x18] sm:$0xf]
    %v3186 = vld [vmem:[%s3178 + $0x1c] sm:$0xf]
    %v3195 = vunpack.c.l.b16 %v3179
    %v3196 = vunpack.c.l.b16 %v3180
    %v3197 = vunpack.c.l.b16 %v3181
    %v3198 = vunpack.c.l.b16 %v3182
    %v3199 = vunpack.c.l.b16 %v3183
    %v3200 = vunpack.c.l.b16 %v3184
    %v3201 = vunpack.c.l.b16 %v3185
    %v3202 = vunpack.c.l.b16 %v3186
    %v3203 = vpack.c.b16 %v3196, %v3195
    %v3204 = vpack.c.b16 %v3198, %v3197
    %v3205 = vpack.c.b16 %v3200, %v3199
    %v3206 = vpack.c.b16 %v3202, %v3201
    %v3208 = vsel %vm2283, %v3203, 0
    %v3211 = vsel %vm2283, %v3204, 0
    %v3214 = vsel %vm2283, %v3205, 0
    %v3217 = vsel %vm2283, %v3206, 0
    %3219 = vmatprep.subr.bf16.mxu0 0
    %3220 = vmatpush1.bf16.msra.mxu0 %v2235
    %3221 = vmatprep.subr.bf16.mxu0 0
    %3222 = vmatpush1.bf16.msra.mxu0 %v2237
    %3223 = vmatprep.subr.bf16.mxu0 0
    %3224 = vmatpush1.bf16.msra.mxu0 0
    %3225 = vmatprep.subr.bf16.mxu0 0
    %3226 = vmatpush1.bf16.msra.mxu0 0
    %3227 = vmatprep.subr.bf16.mxu0 0
    %3228 = vmatpush1.bf16.msra.mxu0 0
    %3229 = vmatprep.subr.bf16.mxu0 0
    %3230 = vmatpush1.bf16.msra.mxu0 0
    %3231 = vmatprep.subr.bf16.mxu0 0
    %3232 = vmatpush1.bf16.msra.mxu0 0
    %3233 = vmatprep.subr.bf16.mxu0 0
    %3234 = vmatpush1.bf16.msra.mxu0 0
    %3235 = vmatprep.subr.bf16.mxu0 0
    %3236 = vmatpush1.bf16.msra.mxu0 0
    %3237 = vmatprep.subr.bf16.mxu0 0
    %3238 = vmatpush1.bf16.msra.mxu0 0
    %3239 = vmatprep.subr.bf16.mxu0 0
    %3240 = vmatpush1.bf16.msra.mxu0 0
    %3241 = vmatprep.subr.bf16.mxu0 0
    %3242 = vmatpush1.bf16.msra.mxu0 0
    %3243 = vmatprep.subr.bf16.mxu0 0
    %3244 = vmatpush1.bf16.msra.mxu0 0
    %3245 = vmatprep.subr.bf16.mxu0 0
    %3246 = vmatpush1.bf16.msra.mxu0 0
    %3247 = vmatprep.subr.bf16.mxu0 0
    %3248 = vmatpush1.bf16.msra.mxu0 0
    %3249 = vmatprep.subr.bf16.mxu0 0
    %3250 = vmatpush1.bf16.msra.mxu0 0
    %3251 = vmatprep.mubr.bf16.mxu0 0
    %3252 = vmatmul.mubr.bf16.gmra.mrb[0].mxu0 %v3208
    %v3253 = vpop.f32.mrb[0].mxu0
    %v3254 = vadd.f32 0.0, %v3253
    %v3255 = vpop.f32.mrb[0].mxu0
    %v3256 = vpop.f32.mrb[0].mxu0
    %v3257 = vadd.f32 0.0, %v3256
    %v3258 = vpop.f32.mrb[0].mxu0
    %3259 = vmatprep.mubr.bf16.mxu0 0
    %3260 = vmatmul.mubr.bf16.gmra.mrb[0].mxu0 %v3211
    %v3261 = vpop.f32.mrb[0].mxu0
    %v3262 = vadd.f32 0.0, %v3261
    %v3263 = vpop.f32.mrb[0].mxu0
    %v3264 = vpop.f32.mrb[0].mxu0
    %v3265 = vadd.f32 0.0, %v3264
    %v3266 = vpop.f32.mrb[0].mxu0
    %3267 = vmatprep.mubr.bf16.mxu0 0
    %3268 = vmatmul.mubr.bf16.gmra.mrb[0].mxu0 %v3214
    %v3269 = vpop.f32.mrb[0].mxu0
    %v3270 = vadd.f32 0.0, %v3269
    %v3271 = vpop.f32.mrb[0].mxu0
    %v3272 = vpop.f32.mrb[0].mxu0
    %v3273 = vadd.f32 0.0, %v3272
    %v3274 = vpop.f32.mrb[0].mxu0
    %3275 = vmatprep.mubr.bf16.mxu0 0
    %3276 = vmatmul.mubr.bf16.gmra.mrb[0].mxu0 %v3217
    %v3277 = vpop.f32.mrb[0].mxu0
    %v3278 = vadd.f32 0.0, %v3277
    %v3279 = vpop.f32.mrb[0].mxu0
    %v3280 = vpop.f32.mrb[0].mxu0
    %v3281 = vadd.f32 0.0, %v3280
    %v3282 = vpop.f32.mrb[0].mxu0
    %3283 = vdwg.mxu0
    %v3284 = vadd.f32 %v3170, %v3254
    %v3285 = vadd.f32 %v3171, %v3257
    %v3286 = vadd.f32 %v3172, %v3262
    %v3287 = vadd.f32 %v3173, %v3265
    %v3288 = vadd.f32 %v3174, %v3270
    %v3289 = vadd.f32 %v3175, %v3273
    %v3290 = vadd.f32 %v3176, %v3278
    %v3291 = vadd.f32 %v3177, %v3281
    %v3292 = vld [vmem:[%s10] sm:$0xff]
    %v3293 = vld [vmem:[%s10 + $0x8] sm:$0xff]
    %v3294 = vld [vmem:[%s10 + $0x10] sm:$0xff]
    %v3295 = vld [vmem:[%s10 + $0x18] sm:$0xff]
    %v3296 = vld [vmem:[%s10 + $0x20] sm:$0xff]
    %v3297 = vld [vmem:[%s10 + $0x28] sm:$0xff]
    %v3298 = vld [vmem:[%s10 + $0x30] sm:$0xff]
    %v3299 = vld [vmem:[%s10 + $0x38] sm:$0xff]
    %3301 = vset.pattern.permute.xlu0 0
    %3302 = vperm.xlu0 %3301, %v3292
    %v3303 = vpop.permute.xlu0 %3302
    %3306 = vset.pattern.permute.xlu0 0
    %3307 = vperm.xlu0 %3306, %v3293
    %v3308 = vpop.permute.xlu0 %3307
    %3311 = vset.pattern.permute.xlu0 0
    %3312 = vperm.xlu0 %3311, %v3294
    %v3313 = vpop.permute.xlu0 %3312
    %3316 = vset.pattern.permute.xlu0 0
    %3317 = vperm.xlu0 %3316, %v3295
    %v3318 = vpop.permute.xlu0 %3317
    %3321 = vset.pattern.permute.xlu0 0
    %3322 = vperm.xlu0 %3321, %v3296
    %v3323 = vpop.permute.xlu0 %3322
    %3326 = vset.pattern.permute.xlu0 0
    %3327 = vperm.xlu0 %3326, %v3297
    %v3328 = vpop.permute.xlu0 %3327
    %3331 = vset.pattern.permute.xlu0 0
    %3332 = vperm.xlu0 %3331, %v3298
    %v3333 = vpop.permute.xlu0 %3332
    %3336 = vset.pattern.permute.xlu0 0
    %3337 = vperm.xlu0 %3336, %v3299
    %v3338 = vpop.permute.xlu0 %3337
    %v3340 = vadd.f32 %v3284, %v3303
    %v3341 = vadd.f32 %v3285, %v3308
    %v3342 = vadd.f32 %v3286, %v3313
    %v3343 = vadd.f32 %v3287, %v3318
    %v3344 = vadd.f32 %v3288, %v3323
    %v3345 = vadd.f32 %v3289, %v3328
    %v3346 = vadd.f32 %v3290, %v3333
    %v3347 = vadd.f32 %v3291, %v3338
    %s3348 = sld [smem:[#allocation2 + $0x2]]
    %v3349 = vsel %vm1410, %v3340, 0.0
    %3350 = vadd.xlane.f32.xlu0 %v3349
    %v3351 = vpop.xlane.xlu0 %3350
    %v3352 = vsel %vm1410, %v3341, 0.0
    %3353 = vadd.xlane.f32.xlu0 %v3352
    %v3354 = vpop.xlane.xlu0 %3353
    %v3355 = vsel %vm1410, %v3342, 0.0
    %3356 = vadd.xlane.f32.xlu0 %v3355
    %v3357 = vpop.xlane.xlu0 %3356
    %v3358 = vsel %vm1410, %v3343, 0.0
    %3359 = vadd.xlane.f32.xlu0 %v3358
    %v3360 = vpop.xlane.xlu0 %3359
    %v3361 = vsel %vm1410, %v3344, 0.0
    %3362 = vadd.xlane.f32.xlu0 %v3361
    %v3363 = vpop.xlane.xlu0 %3362
    %v3364 = vsel %vm1410, %v3345, 0.0
    %3365 = vadd.xlane.f32.xlu0 %v3364
    %v3366 = vpop.xlane.xlu0 %3365
    %v3367 = vsel %vm1410, %v3346, 0.0
    %3368 = vadd.xlane.f32.xlu0 %v3367
    %v3369 = vpop.xlane.xlu0 %3368
    %v3370 = vsel %vm1410, %v3347, 0.0
    %3371 = vadd.xlane.f32.xlu0 %v3370
    %v3372 = vpop.xlane.xlu0 %3371
    %v3373 = vmul.f32 %v3351, 0.0625
    %v3374 = vmul.f32 %v3354, 0.0625
    %v3375 = vmul.f32 %v3357, 0.0625
    %v3376 = vmul.f32 %v3360, 0.0625
    %v3377 = vmul.f32 %v3363, 0.0625
    %v3378 = vmul.f32 %v3366, 0.0625
    %v3379 = vmul.f32 %v3369, 0.0625
    %v3380 = vmul.f32 %v3372, 0.0625
    %v3381 = vsub.f32 %v3340, %v3373
    %v3382 = vsub.f32 %v3341, %v3374
    %v3383 = vsub.f32 %v3342, %v3375
    %v3384 = vsub.f32 %v3343, %v3376
    %v3385 = vsub.f32 %v3344, %v3377
    %v3386 = vsub.f32 %v3345, %v3378
    %v3387 = vsub.f32 %v3346, %v3379
    %v3388 = vsub.f32 %v3347, %v3380
    %v3389 = vmul.f32 %v3381, %v3381
    %v3390 = vmul.f32 %v3382, %v3382
    %v3391 = vmul.f32 %v3383, %v3383
    %v3392 = vmul.f32 %v3384, %v3384
    %v3393 = vmul.f32 %v3385, %v3385
    %v3394 = vmul.f32 %v3386, %v3386
    %v3395 = vmul.f32 %v3387, %v3387
    %v3396 = vmul.f32 %v3388, %v3388
    %v3397 = vsel %vm1410, %v3389, 0.0
    %3398 = vadd.xlane.f32.xlu0 %v3397
    %v3399 = vpop.xlane.xlu0 %3398
    %v3400 = vsel %vm1410, %v3390, 0.0
    %3401 = vadd.xlane.f32.xlu0 %v3400
    %v3402 = vpop.xlane.xlu0 %3401
    %v3403 = vsel %vm1410, %v3391, 0.0
    %3404 = vadd.xlane.f32.xlu0 %v3403
    %v3405 = vpop.xlane.xlu0 %3404
    %v3406 = vsel %vm1410, %v3392, 0.0
    %3407 = vadd.xlane.f32.xlu0 %v3406
    %v3408 = vpop.xlane.xlu0 %3407
    %v3409 = vsel %vm1410, %v3393, 0.0
    %3410 = vadd.xlane.f32.xlu0 %v3409
    %v3411 = vpop.xlane.xlu0 %3410
    %v3412 = vsel %vm1410, %v3394, 0.0
    %3413 = vadd.xlane.f32.xlu0 %v3412
    %v3414 = vpop.xlane.xlu0 %3413
    %v3415 = vsel %vm1410, %v3395, 0.0
    %3416 = vadd.xlane.f32.xlu0 %v3415
    %v3417 = vpop.xlane.xlu0 %3416
    %v3418 = vsel %vm1410, %v3396, 0.0
    %3419 = vadd.xlane.f32.xlu0 %v3418
    %v3420 = vpop.xlane.xlu0 %3419
    %v3421 = vmul.f32 %v3399, 0.0625
    %v3422 = vmul.f32 %v3402, 0.0625
    %v3423 = vmul.f32 %v3405, 0.0625
    %v3424 = vmul.f32 %v3408, 0.0625
    %v3425 = vmul.f32 %v3411, 0.0625
    %v3426 = vmul.f32 %v3414, 0.0625
    %v3427 = vmul.f32 %v3417, 0.0625
    %v3428 = vmul.f32 %v3420, 0.0625
    %v3429 = vadd.f32 %v3421, 1e-05
    %v3430 = vadd.f32 %v3422, 1e-05
    %v3431 = vadd.f32 %v3423, 1e-05
    %v3432 = vadd.f32 %v3424, 1e-05
    %v3433 = vadd.f32 %v3425, 1e-05
    %v3434 = vadd.f32 %v3426, 1e-05
    %v3435 = vadd.f32 %v3427, 1e-05
    %v3436 = vadd.f32 %v3428, 1e-05
    %v3437 = vrsqrt.pop %v3429
    %v3438 = vrsqrt.pop %v3430
    %v3439 = vrsqrt.pop %v3431
    %v3440 = vrsqrt.pop %v3432
    %v3441 = vrsqrt.pop %v3433
    %v3442 = vrsqrt.pop %v3434
    %v3443 = vrsqrt.pop %v3435
    %v3444 = vrsqrt.pop %v3436
    %v3445 = vmul.f32 %v3381, %v3437
    %v3446 = vmul.f32 %v3382, %v3438
    %v3447 = vmul.f32 %v3383, %v3439
    %v3448 = vmul.f32 %v3384, %v3440
    %v3449 = vmul.f32 %v3385, %v3441
    %v3450 = vmul.f32 %v3386, %v3442
    %v3451 = vmul.f32 %v3387, %v3443
    %v3452 = vmul.f32 %v3388, %v3444
    %vm3453 = vcmp.ge.f32.partialorder %v3445, 0.0
    %vm3454 = vcmp.ge.f32.partialorder %v3446, 0.0
    %vm3455 = vcmp.ge.f32.partialorder %v3447, 0.0
    %vm3456 = vcmp.ge.f32.partialorder %v3448, 0.0
    %vm3457 = vcmp.ge.f32.partialorder %v3449, 0.0
    %vm3458 = vcmp.ge.f32.partialorder %v3450, 0.0
    %vm3459 = vcmp.ge.f32.partialorder %v3451, 0.0
    %vm3460 = vcmp.ge.f32.partialorder %v3452, 0.0
    %v3461 = vstv %s3348
    %v3462 = vmul.f32 %v3461, %v3445
    %v3463 = vmul.f32 %v3461, %v3446
    %v3464 = vmul.f32 %v3461, %v3447
    %v3465 = vmul.f32 %v3461, %v3448
    %v3466 = vmul.f32 %v3461, %v3449
    %v3467 = vmul.f32 %v3461, %v3450
    %v3468 = vmul.f32 %v3461, %v3451
    %v3469 = vmul.f32 %v3461, %v3452
    %v3470 = vsel %vm3453, %v3445, %v3462
    %v3471 = vsel %vm3454, %v3446, %v3463
    %v3472 = vsel %vm3455, %v3447, %v3464
    %v3473 = vsel %vm3456, %v3448, %v3465
    %v3474 = vsel %vm3457, %v3449, %v3466
    %v3475 = vsel %vm3458, %v3450, %v3467
    %v3476 = vsel %vm3459, %v3451, %v3468
    %v3477 = vsel %vm3460, %v3452, %v3469
    %v3478 = vpack.c.bf16 %v3471, %v3470
    %v3479 = vpack.c.bf16 %v3473, %v3472
    %v3480 = vpack.c.bf16 %v3475, %v3474
    %v3481 = vpack.c.bf16 %v3477, %v3476
    %v3482 = vld [vmem:[%s12] sm:$0xf]
    %v3483 = vld [vmem:[%s12 + $0x4] sm:$0xf]
    %v3484 = vld [vmem:[%s12 + $0x8] sm:$0xf]
    %v3485 = vld [vmem:[%s12 + $0xc] sm:$0xf]
    %v3486 = vld [vmem:[%s12 + $0x10] sm:$0xf]
    %v3487 = vld [vmem:[%s12 + $0x14] sm:$0xf]
    %v3488 = vld [vmem:[%s12 + $0x18] sm:$0xf]
    %v3489 = vld [vmem:[%s12 + $0x1c] sm:$0xf]
    %v3490 = vld [vmem:[%s12 + $0x20] sm:$0xf]
    %v3491 = vld [vmem:[%s12 + $0x24] sm:$0xf]
    %v3492 = vld [vmem:[%s12 + $0x28] sm:$0xf]
    %v3493 = vld [vmem:[%s12 + $0x2c] sm:$0xf]
    %v3494 = vld [vmem:[%s12 + $0x30] sm:$0xf]
    %v3495 = vld [vmem:[%s12 + $0x34] sm:$0xf]
    %v3496 = vld [vmem:[%s12 + $0x38] sm:$0xf]
    %v3497 = vld [vmem:[%s12 + $0x3c] sm:$0xf]
    %v3498 = vld [vmem:[%s12 + $0x40] sm:$0xf]
    %v3499 = vld [vmem:[%s12 + $0x44] sm:$0xf]
    %v3500 = vld [vmem:[%s13] sm:$0xf]
    %v3501 = vld [vmem:[%s13 + $0x4] sm:$0xf]
    %v3502 = vld [vmem:[%s13 + $0x8] sm:$0xf]
    %v3503 = vld [vmem:[%s13 + $0xc] sm:$0xf]
    %v3504 = vld [vmem:[%s13 + $0x10] sm:$0xf]
    %v3505 = vld [vmem:[%s13 + $0x14] sm:$0xf]
    %v3506 = vld [vmem:[%s13 + $0x18] sm:$0xf]
    %v3507 = vld [vmem:[%s13 + $0x1c] sm:$0xf]
    %v3508 = vld [vmem:[%s13 + $0x20] sm:$0xf]
    %v3509 = vld [vmem:[%s13 + $0x24] sm:$0xf]
    %v3510 = vld [vmem:[%s13 + $0x28] sm:$0xf]
    %v3511 = vld [vmem:[%s13 + $0x2c] sm:$0xf]
    %v3512 = vld [vmem:[%s13 + $0x30] sm:$0xf]
    %v3513 = vld [vmem:[%s13 + $0x34] sm:$0xf]
    %v3514 = vld [vmem:[%s13 + $0x38] sm:$0xf]
    %v3515 = vld [vmem:[%s13 + $0x3c] sm:$0xf]
    %v3516 = vld [vmem:[%s13 + $0x40] sm:$0xf]
    %v3517 = vld [vmem:[%s13 + $0x44] sm:$0xf]
    %v3536 = vunpack.c.l.b16 %v3500
    %v3537 = vunpack.c.l.b16 %v3501
    %v3538 = vunpack.c.l.b16 %v3502
    %v3539 = vunpack.c.l.b16 %v3503
    %v3540 = vunpack.c.l.b16 %v3504
    %v3541 = vunpack.c.l.b16 %v3505
    %v3542 = vunpack.c.l.b16 %v3506
    %v3543 = vunpack.c.l.b16 %v3507
    %v3544 = vunpack.c.l.b16 %v3508
    %v3545 = vunpack.c.l.b16 %v3509
    %v3546 = vunpack.c.l.b16 %v3510
    %v3547 = vunpack.c.l.b16 %v3511
    %v3548 = vunpack.c.l.b16 %v3512
    %v3549 = vunpack.c.l.b16 %v3513
    %v3550 = vunpack.c.l.b16 %v3514
    %v3551 = vunpack.c.l.b16 %v3515
    %v3552 = vunpack.c.l.b16 %v3516
    %v3553 = vunpack.c.l.b16 %v3517
    %v3554 = vpack.c.b16 %v3537, %v3536
    %v3555 = vpack.c.b16 %v3539, %v3538
    %v3556 = vpack.c.b16 %v3541, %v3540
    %v3557 = vpack.c.b16 %v3543, %v3542
    %v3558 = vpack.c.b16 %v3545, %v3544
    %v3559 = vpack.c.b16 %v3547, %v3546
    %v3560 = vpack.c.b16 %v3549, %v3548
    %v3561 = vpack.c.b16 %v3551, %v3550
    %v3562 = vpack.c.b16 %v3553, %v3552
    %v3564 = vsel %vm1256, %v3554, 0
    %v3567 = vsel %vm1256, %v3555, 0
    %v3570 = vsel %vm1256, %v3556, 0
    %v3573 = vsel %vm1256, %v3557, 0
    %v3576 = vsel %vm1256, %v3558, 0
    %v3579 = vsel %vm1256, %v3559, 0
    %v3582 = vsel %vm1256, %v3560, 0
    %v3585 = vsel %vm1256, %v3561, 0
    %v3588 = vsel %vm1256, %v3562, 0
    %3590 = vmatprep.subr.bf16.mxu0 0
    %3591 = vmatpush1.bf16.msra.mxu0 %v3478
    %3592 = vmatprep.subr.bf16.mxu0 0
    %3593 = vmatpush1.bf16.msra.mxu0 %v3479
    %3594 = vmatprep.subr.bf16.mxu0 0
    %3595 = vmatpush1.bf16.msra.mxu0 %v3480
    %3596 = vmatprep.subr.bf16.mxu0 0
    %3597 = vmatpush1.bf16.msra.mxu0 %v3481
    %3598 = vmatprep.subr.bf16.mxu0 0
    %3599 = vmatpush1.bf16.msra.mxu0 0
    %3600 = vmatprep.subr.bf16.mxu0 0
    %3601 = vmatpush1.bf16.msra.mxu0 0
    %3602 = vmatprep.subr.bf16.mxu0 0
    %3603 = vmatpush1.bf16.msra.mxu0 0
    %3604 = vmatprep.subr.bf16.mxu0 0
    %3605 = vmatpush1.bf16.msra.mxu0 0
    %3606 = vmatprep.subr.bf16.mxu0 0
    %3607 = vmatpush1.bf16.msra.mxu0 0
    %3608 = vmatprep.subr.bf16.mxu0 0
    %3609 = vmatpush1.bf16.msra.mxu0 0
    %3610 = vmatprep.subr.bf16.mxu0 0
    %3611 = vmatpush1.bf16.msra.mxu0 0
    %3612 = vmatprep.subr.bf16.mxu0 0
    %3613 = vmatpush1.bf16.msra.mxu0 0
    %3614 = vmatprep.subr.bf16.mxu0 0
    %3615 = vmatpush1.bf16.msra.mxu0 0
    %3616 = vmatprep.subr.bf16.mxu0 0
    %3617 = vmatpush1.bf16.msra.mxu0 0
    %3618 = vmatprep.subr.bf16.mxu0 0
    %3619 = vmatpush1.bf16.msra.mxu0 0
    %3620 = vmatprep.subr.bf16.mxu0 0
    %3621 = vmatpush1.bf16.msra.mxu0 0
    %3622 = vmatprep.mubr.bf16.mxu0 0
    %3623 = vmatmul.mubr.bf16.gmra.mrb[0].mxu0 %v3564
    %v3624 = vpop.f32.mrb[0].mxu0
    %v3625 = vadd.f32 0.0, %v3624
    %v3626 = vpop.f32.mrb[0].mxu0
    %v3627 = vpop.f32.mrb[0].mxu0
    %v3628 = vadd.f32 0.0, %v3627
    %v3629 = vpop.f32.mrb[0].mxu0
    %3630 = vmatprep.mubr.bf16.mxu0 0
    %3631 = vmatmul.mubr.bf16.gmra.mrb[0].mxu0 %v3567
    %v3632 = vpop.f32.mrb[0].mxu0
    %v3633 = vadd.f32 0.0, %v3632
    %v3634 = vpop.f32.mrb[0].mxu0
    %v3635 = vpop.f32.mrb[0].mxu0
    %v3636 = vadd.f32 0.0, %v3635
    %v3637 = vpop.f32.mrb[0].mxu0
    %3638 = vmatprep.mubr.bf16.mxu0 0
    %3639 = vmatmul.mubr.bf16.gmra.mrb[0].mxu0 %v3570
    %v3640 = vpop.f32.mrb[0].mxu0
    %v3641 = vadd.f32 0.0, %v3640
    %v3642 = vpop.f32.mrb[0].mxu0
    %v3643 = vpop.f32.mrb[0].mxu0
    %v3644 = vadd.f32 0.0, %v3643
    %v3645 = vpop.f32.mrb[0].mxu0
    %3646 = vmatprep.mubr.bf16.mxu0 0
    %3647 = vmatmul.mubr.bf16.gmra.mrb[0].mxu0 %v3573
    %v3648 = vpop.f32.mrb[0].mxu0
    %v3649 = vadd.f32 0.0, %v3648
    %v3650 = vpop.f32.mrb[0].mxu0
    %v3651 = vpop.f32.mrb[0].mxu0
    %v3652 = vadd.f32 0.0, %v3651
    %v3653 = vpop.f32.mrb[0].mxu0
    %3654 = vmatprep.mubr.bf16.mxu0 0
    %3655 = vmatmul.mubr.bf16.gmra.mrb[0].mxu0 %v3576
    %v3656 = vpop.f32.mrb[0].mxu0
    %v3657 = vadd.f32 0.0, %v3656
    %v3658 = vpop.f32.mrb[0].mxu0
    %v3659 = vpop.f32.mrb[0].mxu0
    %v3660 = vadd.f32 0.0, %v3659
    %v3661 = vpop.f32.mrb[0].mxu0
    %3662 = vmatprep.mubr.bf16.mxu0 0
    %3663 = vmatmul.mubr.bf16.gmra.mrb[0].mxu0 %v3579
    %v3664 = vpop.f32.mrb[0].mxu0
    %v3665 = vadd.f32 0.0, %v3664
    %v3666 = vpop.f32.mrb[0].mxu0
    %v3667 = vpop.f32.mrb[0].mxu0
    %v3668 = vadd.f32 0.0, %v3667
    %v3669 = vpop.f32.mrb[0].mxu0
    %3670 = vmatprep.mubr.bf16.mxu0 0
    %3671 = vmatmul.mubr.bf16.gmra.mrb[0].mxu0 %v3582
    %v3672 = vpop.f32.mrb[0].mxu0
    %v3673 = vadd.f32 0.0, %v3672
    %v3674 = vpop.f32.mrb[0].mxu0
    %v3675 = vpop.f32.mrb[0].mxu0
    %v3676 = vadd.f32 0.0, %v3675
    %v3677 = vpop.f32.mrb[0].mxu0
    %3678 = vmatprep.mubr.bf16.mxu0 0
    %3679 = vmatmul.mubr.bf16.gmra.mrb[0].mxu0 %v3585
    %v3680 = vpop.f32.mrb[0].mxu0
    %v3681 = vadd.f32 0.0, %v3680
    %v3682 = vpop.f32.mrb[0].mxu0
    %v3683 = vpop.f32.mrb[0].mxu0
    %v3684 = vadd.f32 0.0, %v3683
    %v3685 = vpop.f32.mrb[0].mxu0
    %3686 = vmatprep.mubr.bf16.mxu0 0
    %3687 = vmatmul.mubr.bf16.gmra.mrb[0].mxu0 %v3588
    %v3688 = vpop.f32.mrb[0].mxu0
    %v3689 = vadd.f32 0.0, %v3688
    %v3690 = vpop.f32.mrb[0].mxu0
    %v3691 = vpop.f32.mrb[0].mxu0
    %v3692 = vadd.f32 0.0, %v3691
    %v3693 = vpop.f32.mrb[0].mxu0
    %3694 = vdwg.mxu0
    %v3713 = vunpack.c.l.b16 %v3482
    %v3714 = vunpack.c.l.b16 %v3483
    %v3715 = vunpack.c.l.b16 %v3484
    %v3716 = vunpack.c.l.b16 %v3485
    %v3717 = vunpack.c.l.b16 %v3486
    %v3718 = vunpack.c.l.b16 %v3487
    %v3719 = vunpack.c.l.b16 %v3488
    %v3720 = vunpack.c.l.b16 %v3489
    %v3721 = vunpack.c.l.b16 %v3490
    %v3722 = vunpack.c.l.b16 %v3491
    %v3723 = vunpack.c.l.b16 %v3492
    %v3724 = vunpack.c.l.b16 %v3493
    %v3725 = vunpack.c.l.b16 %v3494
    %v3726 = vunpack.c.l.b16 %v3495
    %v3727 = vunpack.c.l.b16 %v3496
    %v3728 = vunpack.c.l.b16 %v3497
    %v3729 = vunpack.c.l.b16 %v3498
    %v3730 = vunpack.c.l.b16 %v3499
    %v3731 = vpack.c.b16 %v3714, %v3713
    %v3732 = vpack.c.b16 %v3716, %v3715
    %v3733 = vpack.c.b16 %v3718, %v3717
    %v3734 = vpack.c.b16 %v3720, %v3719
    %v3735 = vpack.c.b16 %v3722, %v3721
    %v3736 = vpack.c.b16 %v3724, %v3723
    %v3737 = vpack.c.b16 %v3726, %v3725
    %v3738 = vpack.c.b16 %v3728, %v3727
    %v3739 = vpack.c.b16 %v3730, %v3729
    %v3741 = vsel %vm2283, %v3731, 0
    %v3744 = vsel %vm2283, %v3732, 0
    %v3747 = vsel %vm2283, %v3733, 0
    %v3750 = vsel %vm2283, %v3734, 0
    %v3753 = vsel %vm2283, %v3735, 0
    %v3756 = vsel %vm2283, %v3736, 0
    %v3759 = vsel %vm2283, %v3737, 0
    %v3762 = vsel %vm2283, %v3738, 0
    %v3765 = vsel %vm2283, %v3739, 0
    %3767 = vmatprep.subr.bf16.mxu0 0
    %3768 = vmatpush1.bf16.msra.mxu0 %v2161
    %3769 = vmatprep.subr.bf16.mxu0 0
    %3770 = vmatpush1.bf16.msra.mxu0 %v2162
    %3771 = vmatprep.subr.bf16.mxu0 0
    %3772 = vmatpush1.bf16.msra.mxu0 0
    %3773 = vmatprep.subr.bf16.mxu0 0
    %3774 = vmatpush1.bf16.msra.mxu0 0
    %3775 = vmatprep.subr.bf16.mxu0 0
    %3776 = vmatpush1.bf16.msra.mxu0 0
    %3777 = vmatprep.subr.bf16.mxu0 0
    %3778 = vmatpush1.bf16.msra.mxu0 0
    %3779 = vmatprep.subr.bf16.mxu0 0
    %3780 = vmatpush1.bf16.msra.mxu0 0
    %3781 = vmatprep.subr.bf16.mxu0 0
    %3782 = vmatpush1.bf16.msra.mxu0 0
    %3783 = vmatprep.subr.bf16.mxu0 0
    %3784 = vmatpush1.bf16.msra.mxu0 0
    %3785 = vmatprep.subr.bf16.mxu0 0
    %3786 = vmatpush1.bf16.msra.mxu0 0
    %3787 = vmatprep.subr.bf16.mxu0 0
    %3788 = vmatpush1.bf16.msra.mxu0 0
    %3789 = vmatprep.subr.bf16.mxu0 0
    %3790 = vmatpush1.bf16.msra.mxu0 0
    %3791 = vmatprep.subr.bf16.mxu0 0
    %3792 = vmatpush1.bf16.msra.mxu0 0
    %3793 = vmatprep.subr.bf16.mxu0 0
    %3794 = vmatpush1.bf16.msra.mxu0 0
    %3795 = vmatprep.subr.bf16.mxu0 0
    %3796 = vmatpush1.bf16.msra.mxu0 0
    %3797 = vmatprep.subr.bf16.mxu0 0
    %3798 = vmatpush1.bf16.msra.mxu0 0
    %3799 = vmatprep.mubr.bf16.mxu0 0
    %3800 = vmatmul.mubr.bf16.gmra.mrb[0].mxu0 %v3741
    %v3801 = vpop.f32.mrb[0].mxu0
    %v3802 = vadd.f32 %v3625, %v3801
    %v3803 = vpop.f32.mrb[0].mxu0
    %v3804 = vpop.f32.mrb[0].mxu0
    %v3805 = vadd.f32 %v3628, %v3804
    %v3806 = vpop.f32.mrb[0].mxu0
    %3807 = vmatprep.mubr.bf16.mxu0 0
    %3808 = vmatmul.mubr.bf16.gmra.mrb[0].mxu0 %v3744
    %v3809 = vpop.f32.mrb[0].mxu0
    %v3810 = vadd.f32 %v3633, %v3809
    %v3811 = vpop.f32.mrb[0].mxu0
    %v3812 = vpop.f32.mrb[0].mxu0
    %v3813 = vadd.f32 %v3636, %v3812
    %v3814 = vpop.f32.mrb[0].mxu0
    %3815 = vmatprep.mubr.bf16.mxu0 0
    %3816 = vmatmul.mubr.bf16.gmra.mrb[0].mxu0 %v3747
    %v3817 = vpop.f32.mrb[0].mxu0
    %v3818 = vadd.f32 %v3641, %v3817
    %v3819 = vpop.f32.mrb[0].mxu0
    %v3820 = vpop.f32.mrb[0].mxu0
    %v3821 = vadd.f32 %v3644, %v3820
    %v3822 = vpop.f32.mrb[0].mxu0
    %3823 = vmatprep.mubr.bf16.mxu0 0
    %3824 = vmatmul.mubr.bf16.gmra.mrb[0].mxu0 %v3750
    %v3825 = vpop.f32.mrb[0].mxu0
    %v3826 = vadd.f32 %v3649, %v3825
    %v3827 = vpop.f32.mrb[0].mxu0
    %v3828 = vpop.f32.mrb[0].mxu0
    %v3829 = vadd.f32 %v3652, %v3828
    %v3830 = vpop.f32.mrb[0].mxu0
    %3831 = vmatprep.mubr.bf16.mxu0 0
    %3832 = vmatmul.mubr.bf16.gmra.mrb[0].mxu0 %v3753
    %v3833 = vpop.f32.mrb[0].mxu0
    %v3834 = vadd.f32 %v3657, %v3833
    %v3835 = vpop.f32.mrb[0].mxu0
    %v3836 = vpop.f32.mrb[0].mxu0
    %v3837 = vadd.f32 %v3660, %v3836
    %v3838 = vpop.f32.mrb[0].mxu0
    %3839 = vmatprep.mubr.bf16.mxu0 0
    %3840 = vmatmul.mubr.bf16.gmra.mrb[0].mxu0 %v3756
    %v3841 = vpop.f32.mrb[0].mxu0
    %v3842 = vadd.f32 %v3665, %v3841
    %v3843 = vpop.f32.mrb[0].mxu0
    %v3844 = vpop.f32.mrb[0].mxu0
    %v3845 = vadd.f32 %v3668, %v3844
    %v3846 = vpop.f32.mrb[0].mxu0
    %3847 = vmatprep.mubr.bf16.mxu0 0
    %3848 = vmatmul.mubr.bf16.gmra.mrb[0].mxu0 %v3759
    %v3849 = vpop.f32.mrb[0].mxu0
    %v3850 = vadd.f32 %v3673, %v3849
    %v3851 = vpop.f32.mrb[0].mxu0
    %v3852 = vpop.f32.mrb[0].mxu0
    %v3853 = vadd.f32 %v3676, %v3852
    %v3854 = vpop.f32.mrb[0].mxu0
    %3855 = vmatprep.mubr.bf16.mxu0 0
    %3856 = vmatmul.mubr.bf16.gmra.mrb[0].mxu0 %v3762
    %v3857 = vpop.f32.mrb[0].mxu0
    %v3858 = vadd.f32 %v3681, %v3857
    %v3859 = vpop.f32.mrb[0].mxu0
    %v3860 = vpop.f32.mrb[0].mxu0
    %v3861 = vadd.f32 %v3684, %v3860
    %v3862 = vpop.f32.mrb[0].mxu0
    %3863 = vmatprep.mubr.bf16.mxu0 0
    %3864 = vmatmul.mubr.bf16.gmra.mrb[0].mxu0 %v3765
    %v3865 = vpop.f32.mrb[0].mxu0
    %v3866 = vadd.f32 %v3689, %v3865
    %v3867 = vpop.f32.mrb[0].mxu0
    %v3868 = vpop.f32.mrb[0].mxu0
    %v3869 = vadd.f32 %v3692, %v3868
    %v3870 = vpop.f32.mrb[0].mxu0
    %3871 = vdwg.mxu0
    %v3872 = vpack.c.bf16 %v3805, %v3802
    %v3873 = vpack.c.bf16 %v3813, %v3810
    %v3874 = vpack.c.bf16 %v3821, %v3818
    %v3875 = vpack.c.bf16 %v3829, %v3826
    %v3876 = vpack.c.bf16 %v3837, %v3834
    %v3877 = vpack.c.bf16 %v3845, %v3842
    %v3878 = vpack.c.bf16 %v3853, %v3850
    %v3879 = vpack.c.bf16 %v3861, %v3858
    %v3880 = vpack.c.bf16 %v3869, %v3866
    %v3881 = vld [vmem:[%s11] sm:$0xf]
    %v3882 = vld [vmem:[%s11 + $0x4] sm:$0xf]
    %s3883 = scalar_lea.vmem %s11, 8
    %v3884 = vld [vmem:[%s3883] sm:$0xf]
    %v3885 = vld [vmem:[%s3883 + $0x4] sm:$0xf]
    %v3888 = vunpack.c.l.b16 %v3884
    %v3889 = vunpack.c.l.b16 %v3885
    %v3890 = vpack.c.b16 %v3889, %v3888
    %v3893 = vsel %vm1410, %v3873, 0
    %3895 = vmatprep.subr.bf16.mxu0 0
    %3896 = vmatpush1.bf16.msra.mxu0 %v3890
    %3897 = vmatprep.subr.bf16.mxu0 0
    %3898 = vmatpush1.bf16.msra.mxu0 0
    %3899 = vmatprep.subr.bf16.mxu0 0
    %3900 = vmatpush1.bf16.msra.mxu0 0
    %3901 = vmatprep.subr.bf16.mxu0 0
    %3902 = vmatpush1.bf16.msra.mxu0 0
    %3903 = vmatprep.subr.bf16.mxu0 0
    %3904 = vmatpush1.bf16.msra.mxu0 0
    %3905 = vmatprep.subr.bf16.mxu0 0
    %3906 = vmatpush1.bf16.msra.mxu0 0
    %3907 = vmatprep.subr.bf16.mxu0 0
    %3908 = vmatpush1.bf16.msra.mxu0 0
    %3909 = vmatprep.subr.bf16.mxu0 0
    %3910 = vmatpush1.bf16.msra.mxu0 0
    %3911 = vmatprep.subr.bf16.mxu0 0
    %3912 = vmatpush1.bf16.msra.mxu0 0
    %3913 = vmatprep.subr.bf16.mxu0 0
    %3914 = vmatpush1.bf16.msra.mxu0 0
    %3915 = vmatprep.subr.bf16.mxu0 0
    %3916 = vmatpush1.bf16.msra.mxu0 0
    %3917 = vmatprep.subr.bf16.mxu0 0
    %3918 = vmatpush1.bf16.msra.mxu0 0
    %3919 = vmatprep.subr.bf16.mxu0 0
    %3920 = vmatpush1.bf16.msra.mxu0 0
    %3921 = vmatprep.subr.bf16.mxu0 0
    %3922 = vmatpush1.bf16.msra.mxu0 0
    %3923 = vmatprep.subr.bf16.mxu0 0
    %3924 = vmatpush1.bf16.msra.mxu0 0
    %3925 = vmatprep.subr.bf16.mxu0 0
    %3926 = vmatpush1.bf16.msra.mxu0 0
    %3927 = vmatprep.mubr.bf16.mxu0 0
    %3928 = vmatmul.mubr.bf16.gmra.mrb[0].mxu0 %v3893
    %v3929 = vpop.f32.mrb[0].mxu0
    %v3930 = vadd.f32 0.0, %v3929
    %v3931 = vpop.f32.mrb[0].mxu0
    %v3932 = vpop.f32.mrb[0].mxu0
    %v3933 = vadd.f32 0.0, %v3932
    %v3934 = vpop.f32.mrb[0].mxu0
    %3935 = vdwg.mxu0
    %v3938 = vunpack.c.l.b16 %v3881
    %v3939 = vunpack.c.l.b16 %v3882
    %v3940 = vpack.c.b16 %v3939, %v3938
    %v3943 = vsel %vm1410, %v3872, 0
    %3945 = vmatprep.subr.bf16.mxu0 0
    %3946 = vmatpush1.bf16.msra.mxu0 %v3940
    %3947 = vmatprep.subr.bf16.mxu0 0
    %3948 = vmatpush1.bf16.msra.mxu0 0
    %3949 = vmatprep.subr.bf16.mxu0 0
    %3950 = vmatpush1.bf16.msra.mxu0 0
    %3951 = vmatprep.subr.bf16.mxu0 0
    %3952 = vmatpush1.bf16.msra.mxu0 0
    %3953 = vmatprep.subr.bf16.mxu0 0
    %3954 = vmatpush1.bf16.msra.mxu0 0
    %3955 = vmatprep.subr.bf16.mxu0 0
    %3956 = vmatpush1.bf16.msra.mxu0 0
    %3957 = vmatprep.subr.bf16.mxu0 0
    %3958 = vmatpush1.bf16.msra.mxu0 0
    %3959 = vmatprep.subr.bf16.mxu0 0
    %3960 = vmatpush1.bf16.msra.mxu0 0
    %3961 = vmatprep.subr.bf16.mxu0 0
    %3962 = vmatpush1.bf16.msra.mxu0 0
    %3963 = vmatprep.subr.bf16.mxu0 0
    %3964 = vmatpush1.bf16.msra.mxu0 0
    %3965 = vmatprep.subr.bf16.mxu0 0
    %3966 = vmatpush1.bf16.msra.mxu0 0
    %3967 = vmatprep.subr.bf16.mxu0 0
    %3968 = vmatpush1.bf16.msra.mxu0 0
    %3969 = vmatprep.subr.bf16.mxu0 0
    %3970 = vmatpush1.bf16.msra.mxu0 0
    %3971 = vmatprep.subr.bf16.mxu0 0
    %3972 = vmatpush1.bf16.msra.mxu0 0
    %3973 = vmatprep.subr.bf16.mxu0 0
    %3974 = vmatpush1.bf16.msra.mxu0 0
    %3975 = vmatprep.subr.bf16.mxu0 0
    %3976 = vmatpush1.bf16.msra.mxu0 0
    %3977 = vmatprep.mubr.bf16.mxu0 0
    %3978 = vmatmul.mubr.bf16.gmra.mrb[0].mxu0 %v3943
    %v3979 = vpop.f32.mrb[0].mxu0
    %v3980 = vadd.f32 %v3930, %v3979
    %v3981 = vpop.f32.mrb[0].mxu0
    %v3982 = vpop.f32.mrb[0].mxu0
    %v3983 = vadd.f32 %v3933, %v3982
    %v3984 = vpop.f32.mrb[0].mxu0
    %3985 = vdwg.mxu0
    %s3986 = scalar_lea.vmem %s11, 16
    %v3987 = vld [vmem:[%s3986] sm:$0xf]
    %v3988 = vld [vmem:[%s3986 + $0x4] sm:$0xf]
    %v3991 = vunpack.c.l.b16 %v3987
    %v3992 = vunpack.c.l.b16 %v3988
    %v3993 = vpack.c.b16 %v3992, %v3991
    %v3996 = vsel %vm1410, %v3874, 0
    %3998 = vmatprep.subr.bf16.mxu0 0
    %3999 = vmatpush1.bf16.msra.mxu0 %v3993
    %4000 = vmatprep.subr.bf16.mxu0 0
    %4001 = vmatpush1.bf16.msra.mxu0 0
    %4002 = vmatprep.subr.bf16.mxu0 0
    %4003 = vmatpush1.bf16.msra.mxu0 0
    %4004 = vmatprep.subr.bf16.mxu0 0
    %4005 = vmatpush1.bf16.msra.mxu0 0
    %4006 = vmatprep.subr.bf16.mxu0 0
    %4007 = vmatpush1.bf16.msra.mxu0 0
    %4008 = vmatprep.subr.bf16.mxu0 0
    %4009 = vmatpush1.bf16.msra.mxu0 0
    %4010 = vmatprep.subr.bf16.mxu0 0
    %4011 = vmatpush1.bf16.msra.mxu0 0
    %4012 = vmatprep.subr.bf16.mxu0 0
    %4013 = vmatpush1.bf16.msra.mxu0 0
    %4014 = vmatprep.subr.bf16.mxu0 0
    %4015 = vmatpush1.bf16.msra.mxu0 0
    %4016 = vmatprep.subr.bf16.mxu0 0
    %4017 = vmatpush1.bf16.msra.mxu0 0
    %4018 = vmatprep.subr.bf16.mxu0 0
    %4019 = vmatpush1.bf16.msra.mxu0 0
    %4020 = vmatprep.subr.bf16.mxu0 0
    %4021 = vmatpush1.bf16.msra.mxu0 0
    %4022 = vmatprep.subr.bf16.mxu0 0
    %4023 = vmatpush1.bf16.msra.mxu0 0
    %4024 = vmatprep.subr.bf16.mxu0 0
    %4025 = vmatpush1.bf16.msra.mxu0 0
    %4026 = vmatprep.subr.bf16.mxu0 0
    %4027 = vmatpush1.bf16.msra.mxu0 0
    %4028 = vmatprep.subr.bf16.mxu0 0
    %4029 = vmatpush1.bf16.msra.mxu0 0
    %4030 = vmatprep.mubr.bf16.mxu0 0
    %4031 = vmatmul.mubr.bf16.gmra.mrb[0].mxu0 %v3996
    %v4032 = vpop.f32.mrb[0].mxu0
    %v4033 = vadd.f32 0.0, %v4032
    %v4034 = vpop.f32.mrb[0].mxu0
    %v4035 = vpop.f32.mrb[0].mxu0
    %v4036 = vadd.f32 0.0, %v4035
    %v4037 = vpop.f32.mrb[0].mxu0
    %4038 = vdwg.mxu0
    %v4039 = vadd.f32 %v3980, %v4033
    %v4040 = vadd.f32 %v3983, %v4036
    %s4041 = scalar_lea.vmem %s11, 24
    %v4042 = vld [vmem:[%s4041] sm:$0xf]
    %v4043 = vld [vmem:[%s4041 + $0x4] sm:$0xf]
    %v4046 = vunpack.c.l.b16 %v4042
    %v4047 = vunpack.c.l.b16 %v4043
    %v4048 = vpack.c.b16 %v4047, %v4046
    %v4051 = vsel %vm1410, %v3875, 0
    %4053 = vmatprep.subr.bf16.mxu0 0
    %4054 = vmatpush1.bf16.msra.mxu0 %v4048
    %4055 = vmatprep.subr.bf16.mxu0 0
    %4056 = vmatpush1.bf16.msra.mxu0 0
    %4057 = vmatprep.subr.bf16.mxu0 0
    %4058 = vmatpush1.bf16.msra.mxu0 0
    %4059 = vmatprep.subr.bf16.mxu0 0
    %4060 = vmatpush1.bf16.msra.mxu0 0
    %4061 = vmatprep.subr.bf16.mxu0 0
    %4062 = vmatpush1.bf16.msra.mxu0 0
    %4063 = vmatprep.subr.bf16.mxu0 0
    %4064 = vmatpush1.bf16.msra.mxu0 0
    %4065 = vmatprep.subr.bf16.mxu0 0
    %4066 = vmatpush1.bf16.msra.mxu0 0
    %4067 = vmatprep.subr.bf16.mxu0 0
    %4068 = vmatpush1.bf16.msra.mxu0 0
    %4069 = vmatprep.subr.bf16.mxu0 0
    %4070 = vmatpush1.bf16.msra.mxu0 0
    %4071 = vmatprep.subr.bf16.mxu0 0
    %4072 = vmatpush1.bf16.msra.mxu0 0
    %4073 = vmatprep.subr.bf16.mxu0 0
    %4074 = vmatpush1.bf16.msra.mxu0 0
    %4075 = vmatprep.subr.bf16.mxu0 0
    %4076 = vmatpush1.bf16.msra.mxu0 0
    %4077 = vmatprep.subr.bf16.mxu0 0
    %4078 = vmatpush1.bf16.msra.mxu0 0
    %4079 = vmatprep.subr.bf16.mxu0 0
    %4080 = vmatpush1.bf16.msra.mxu0 0
    %4081 = vmatprep.subr.bf16.mxu0 0
    %4082 = vmatpush1.bf16.msra.mxu0 0
    %4083 = vmatprep.subr.bf16.mxu0 0
    %4084 = vmatpush1.bf16.msra.mxu0 0
    %4085 = vmatprep.mubr.bf16.mxu0 0
    %4086 = vmatmul.mubr.bf16.gmra.mrb[0].mxu0 %v4051
    %v4087 = vpop.f32.mrb[0].mxu0
    %v4088 = vadd.f32 0.0, %v4087
    %v4089 = vpop.f32.mrb[0].mxu0
    %v4090 = vpop.f32.mrb[0].mxu0
    %v4091 = vadd.f32 0.0, %v4090
    %v4092 = vpop.f32.mrb[0].mxu0
    %4093 = vdwg.mxu0
    %v4094 = vadd.f32 %v4039, %v4088
    %v4095 = vadd.f32 %v4040, %v4091
    %s4096 = scalar_lea.vmem %s11, 32
    %v4097 = vld [vmem:[%s4096] sm:$0xf]
    %v4098 = vld [vmem:[%s4096 + $0x4] sm:$0xf]
    %v4101 = vunpack.c.l.b16 %v4097
    %v4102 = vunpack.c.l.b16 %v4098
    %v4103 = vpack.c.b16 %v4102, %v4101
    %v4106 = vsel %vm1410, %v3876, 0
    %4108 = vmatprep.subr.bf16.mxu0 0
    %4109 = vmatpush1.bf16.msra.mxu0 %v4103
    %4110 = vmatprep.subr.bf16.mxu0 0
    %4111 = vmatpush1.bf16.msra.mxu0 0
    %4112 = vmatprep.subr.bf16.mxu0 0
    %4113 = vmatpush1.bf16.msra.mxu0 0
    %4114 = vmatprep.subr.bf16.mxu0 0
    %4115 = vmatpush1.bf16.msra.mxu0 0
    %4116 = vmatprep.subr.bf16.mxu0 0
    %4117 = vmatpush1.bf16.msra.mxu0 0
    %4118 = vmatprep.subr.bf16.mxu0 0
    %4119 = vmatpush1.bf16.msra.mxu0 0
    %4120 = vmatprep.subr.bf16.mxu0 0
    %4121 = vmatpush1.bf16.msra.mxu0 0
    %4122 = vmatprep.subr.bf16.mxu0 0
    %4123 = vmatpush1.bf16.msra.mxu0 0
    %4124 = vmatprep.subr.bf16.mxu0 0
    %4125 = vmatpush1.bf16.msra.mxu0 0
    %4126 = vmatprep.subr.bf16.mxu0 0
    %4127 = vmatpush1.bf16.msra.mxu0 0
    %4128 = vmatprep.subr.bf16.mxu0 0
    %4129 = vmatpush1.bf16.msra.mxu0 0
    %4130 = vmatprep.subr.bf16.mxu0 0
    %4131 = vmatpush1.bf16.msra.mxu0 0
    %4132 = vmatprep.subr.bf16.mxu0 0
    %4133 = vmatpush1.bf16.msra.mxu0 0
    %4134 = vmatprep.subr.bf16.mxu0 0
    %4135 = vmatpush1.bf16.msra.mxu0 0
    %4136 = vmatprep.subr.bf16.mxu0 0
    %4137 = vmatpush1.bf16.msra.mxu0 0
    %4138 = vmatprep.subr.bf16.mxu0 0
    %4139 = vmatpush1.bf16.msra.mxu0 0
    %4140 = vmatprep.mubr.bf16.mxu0 0
    %4141 = vmatmul.mubr.bf16.gmra.mrb[0].mxu0 %v4106
    %v4142 = vpop.f32.mrb[0].mxu0
    %v4143 = vadd.f32 0.0, %v4142
    %v4144 = vpop.f32.mrb[0].mxu0
    %v4145 = vpop.f32.mrb[0].mxu0
    %v4146 = vadd.f32 0.0, %v4145
    %v4147 = vpop.f32.mrb[0].mxu0
    %4148 = vdwg.mxu0
    %v4149 = vadd.f32 %v4094, %v4143
    %v4150 = vadd.f32 %v4095, %v4146
    %s4151 = scalar_lea.vmem %s11, 40
    %v4152 = vld [vmem:[%s4151] sm:$0xf]
    %v4153 = vld [vmem:[%s4151 + $0x4] sm:$0xf]
    %v4156 = vunpack.c.l.b16 %v4152
    %v4157 = vunpack.c.l.b16 %v4153
    %v4158 = vpack.c.b16 %v4157, %v4156
    %v4161 = vsel %vm1410, %v3877, 0
    %4163 = vmatprep.subr.bf16.mxu0 0
    %4164 = vmatpush1.bf16.msra.mxu0 %v4158
    %4165 = vmatprep.subr.bf16.mxu0 0
    %4166 = vmatpush1.bf16.msra.mxu0 0
    %4167 = vmatprep.subr.bf16.mxu0 0
    %4168 = vmatpush1.bf16.msra.mxu0 0
    %4169 = vmatprep.subr.bf16.mxu0 0
    %4170 = vmatpush1.bf16.msra.mxu0 0
    %4171 = vmatprep.subr.bf16.mxu0 0
    %4172 = vmatpush1.bf16.msra.mxu0 0
    %4173 = vmatprep.subr.bf16.mxu0 0
    %4174 = vmatpush1.bf16.msra.mxu0 0
    %4175 = vmatprep.subr.bf16.mxu0 0
    %4176 = vmatpush1.bf16.msra.mxu0 0
    %4177 = vmatprep.subr.bf16.mxu0 0
    %4178 = vmatpush1.bf16.msra.mxu0 0
    %4179 = vmatprep.subr.bf16.mxu0 0
    %4180 = vmatpush1.bf16.msra.mxu0 0
    %4181 = vmatprep.subr.bf16.mxu0 0
    %4182 = vmatpush1.bf16.msra.mxu0 0
    %4183 = vmatprep.subr.bf16.mxu0 0
    %4184 = vmatpush1.bf16.msra.mxu0 0
    %4185 = vmatprep.subr.bf16.mxu0 0
    %4186 = vmatpush1.bf16.msra.mxu0 0
    %4187 = vmatprep.subr.bf16.mxu0 0
    %4188 = vmatpush1.bf16.msra.mxu0 0
    %4189 = vmatprep.subr.bf16.mxu0 0
    %4190 = vmatpush1.bf16.msra.mxu0 0
    %4191 = vmatprep.subr.bf16.mxu0 0
    %4192 = vmatpush1.bf16.msra.mxu0 0
    %4193 = vmatprep.subr.bf16.mxu0 0
    %4194 = vmatpush1.bf16.msra.mxu0 0
    %4195 = vmatprep.mubr.bf16.mxu0 0
    %4196 = vmatmul.mubr.bf16.gmra.mrb[0].mxu0 %v4161
    %v4197 = vpop.f32.mrb[0].mxu0
    %v4198 = vadd.f32 0.0, %v4197
    %v4199 = vpop.f32.mrb[0].mxu0
    %v4200 = vpop.f32.mrb[0].mxu0
    %v4201 = vadd.f32 0.0, %v4200
    %v4202 = vpop.f32.mrb[0].mxu0
    %4203 = vdwg.mxu0
    %v4204 = vadd.f32 %v4149, %v4198
    %v4205 = vadd.f32 %v4150, %v4201
    %s4206 = scalar_lea.vmem %s11, 48
    %v4207 = vld [vmem:[%s4206] sm:$0xf]
    %v4208 = vld [vmem:[%s4206 + $0x4] sm:$0xf]
    %v4211 = vunpack.c.l.b16 %v4207
    %v4212 = vunpack.c.l.b16 %v4208
    %v4213 = vpack.c.b16 %v4212, %v4211
    %v4216 = vsel %vm1410, %v3878, 0
    %4218 = vmatprep.subr.bf16.mxu0 0
    %4219 = vmatpush1.bf16.msra.mxu0 %v4213
    %4220 = vmatprep.subr.bf16.mxu0 0
    %4221 = vmatpush1.bf16.msra.mxu0 0
    %4222 = vmatprep.subr.bf16.mxu0 0
    %4223 = vmatpush1.bf16.msra.mxu0 0
    %4224 = vmatprep.subr.bf16.mxu0 0
    %4225 = vmatpush1.bf16.msra.mxu0 0
    %4226 = vmatprep.subr.bf16.mxu0 0
    %4227 = vmatpush1.bf16.msra.mxu0 0
    %4228 = vmatprep.subr.bf16.mxu0 0
    %4229 = vmatpush1.bf16.msra.mxu0 0
    %4230 = vmatprep.subr.bf16.mxu0 0
    %4231 = vmatpush1.bf16.msra.mxu0 0
    %4232 = vmatprep.subr.bf16.mxu0 0
    %4233 = vmatpush1.bf16.msra.mxu0 0
    %4234 = vmatprep.subr.bf16.mxu0 0
    %4235 = vmatpush1.bf16.msra.mxu0 0
    %4236 = vmatprep.subr.bf16.mxu0 0
    %4237 = vmatpush1.bf16.msra.mxu0 0
    %4238 = vmatprep.subr.bf16.mxu0 0
    %4239 = vmatpush1.bf16.msra.mxu0 0
    %4240 = vmatprep.subr.bf16.mxu0 0
    %4241 = vmatpush1.bf16.msra.mxu0 0
    %4242 = vmatprep.subr.bf16.mxu0 0
    %4243 = vmatpush1.bf16.msra.mxu0 0
    %4244 = vmatprep.subr.bf16.mxu0 0
    %4245 = vmatpush1.bf16.msra.mxu0 0
    %4246 = vmatprep.subr.bf16.mxu0 0
    %4247 = vmatpush1.bf16.msra.mxu0 0
    %4248 = vmatprep.subr.bf16.mxu0 0
    %4249 = vmatpush1.bf16.msra.mxu0 0
    %4250 = vmatprep.mubr.bf16.mxu0 0
    %4251 = vmatmul.mubr.bf16.gmra.mrb[0].mxu0 %v4216
    %v4252 = vpop.f32.mrb[0].mxu0
    %v4253 = vadd.f32 0.0, %v4252
    %v4254 = vpop.f32.mrb[0].mxu0
    %v4255 = vpop.f32.mrb[0].mxu0
    %v4256 = vadd.f32 0.0, %v4255
    %v4257 = vpop.f32.mrb[0].mxu0
    %4258 = vdwg.mxu0
    %v4259 = vadd.f32 %v4204, %v4253
    %v4260 = vadd.f32 %v4205, %v4256
    %s4261 = scalar_lea.vmem %s11, 56
    %v4262 = vld [vmem:[%s4261] sm:$0xf]
    %v4263 = vld [vmem:[%s4261 + $0x4] sm:$0xf]
    %v4266 = vunpack.c.l.b16 %v4262
    %v4267 = vunpack.c.l.b16 %v4263
    %v4268 = vpack.c.b16 %v4267, %v4266
    %v4271 = vsel %vm1410, %v3879, 0
    %4273 = vmatprep.subr.bf16.mxu0 0
    %4274 = vmatpush1.bf16.msra.mxu0 %v4268
    %4275 = vmatprep.subr.bf16.mxu0 0
    %4276 = vmatpush1.bf16.msra.mxu0 0
    %4277 = vmatprep.subr.bf16.mxu0 0
    %4278 = vmatpush1.bf16.msra.mxu0 0
    %4279 = vmatprep.subr.bf16.mxu0 0
    %4280 = vmatpush1.bf16.msra.mxu0 0
    %4281 = vmatprep.subr.bf16.mxu0 0
    %4282 = vmatpush1.bf16.msra.mxu0 0
    %4283 = vmatprep.subr.bf16.mxu0 0
    %4284 = vmatpush1.bf16.msra.mxu0 0
    %4285 = vmatprep.subr.bf16.mxu0 0
    %4286 = vmatpush1.bf16.msra.mxu0 0
    %4287 = vmatprep.subr.bf16.mxu0 0
    %4288 = vmatpush1.bf16.msra.mxu0 0
    %4289 = vmatprep.subr.bf16.mxu0 0
    %4290 = vmatpush1.bf16.msra.mxu0 0
    %4291 = vmatprep.subr.bf16.mxu0 0
    %4292 = vmatpush1.bf16.msra.mxu0 0
    %4293 = vmatprep.subr.bf16.mxu0 0
    %4294 = vmatpush1.bf16.msra.mxu0 0
    %4295 = vmatprep.subr.bf16.mxu0 0
    %4296 = vmatpush1.bf16.msra.mxu0 0
    %4297 = vmatprep.subr.bf16.mxu0 0
    %4298 = vmatpush1.bf16.msra.mxu0 0
    %4299 = vmatprep.subr.bf16.mxu0 0
    %4300 = vmatpush1.bf16.msra.mxu0 0
    %4301 = vmatprep.subr.bf16.mxu0 0
    %4302 = vmatpush1.bf16.msra.mxu0 0
    %4303 = vmatprep.subr.bf16.mxu0 0
    %4304 = vmatpush1.bf16.msra.mxu0 0
    %4305 = vmatprep.mubr.bf16.mxu0 0
    %4306 = vmatmul.mubr.bf16.gmra.mrb[0].mxu0 %v4271
    %v4307 = vpop.f32.mrb[0].mxu0
    %v4308 = vadd.f32 0.0, %v4307
    %v4309 = vpop.f32.mrb[0].mxu0
    %v4310 = vpop.f32.mrb[0].mxu0
    %v4311 = vadd.f32 0.0, %v4310
    %v4312 = vpop.f32.mrb[0].mxu0
    %4313 = vdwg.mxu0
    %v4314 = vadd.f32 %v4259, %v4308
    %v4315 = vadd.f32 %v4260, %v4311
    %s4316 = scalar_lea.vmem %s11, 64
    %v4317 = vld [vmem:[%s4316] sm:$0xf]
    %v4318 = vld [vmem:[%s4316 + $0x4] sm:$0xf]
    %v4321 = vunpack.c.l.b16 %v4317
    %v4322 = vunpack.c.l.b16 %v4318
    %v4323 = vpack.c.b16 %v4322, %v4321
    %v4326 = vsel %vm1410, %v3880, 0
    %4328 = vmatprep.subr.bf16.mxu0 0
    %4329 = vmatpush1.bf16.msra.mxu0 %v4323
    %4330 = vmatprep.subr.bf16.mxu0 0
    %4331 = vmatpush1.bf16.msra.mxu0 0
    %4332 = vmatprep.subr.bf16.mxu0 0
    %4333 = vmatpush1.bf16.msra.mxu0 0
    %4334 = vmatprep.subr.bf16.mxu0 0
    %4335 = vmatpush1.bf16.msra.mxu0 0
    %4336 = vmatprep.subr.bf16.mxu0 0
    %4337 = vmatpush1.bf16.msra.mxu0 0
    %4338 = vmatprep.subr.bf16.mxu0 0
    %4339 = vmatpush1.bf16.msra.mxu0 0
    %4340 = vmatprep.subr.bf16.mxu0 0
    %4341 = vmatpush1.bf16.msra.mxu0 0
    %4342 = vmatprep.subr.bf16.mxu0 0
    %4343 = vmatpush1.bf16.msra.mxu0 0
    %4344 = vmatprep.subr.bf16.mxu0 0
    %4345 = vmatpush1.bf16.msra.mxu0 0
    %4346 = vmatprep.subr.bf16.mxu0 0
    %4347 = vmatpush1.bf16.msra.mxu0 0
    %4348 = vmatprep.subr.bf16.mxu0 0
    %4349 = vmatpush1.bf16.msra.mxu0 0
    %4350 = vmatprep.subr.bf16.mxu0 0
    %4351 = vmatpush1.bf16.msra.mxu0 0
    %4352 = vmatprep.subr.bf16.mxu0 0
    %4353 = vmatpush1.bf16.msra.mxu0 0
    %4354 = vmatprep.subr.bf16.mxu0 0
    %4355 = vmatpush1.bf16.msra.mxu0 0
    %4356 = vmatprep.subr.bf16.mxu0 0
    %4357 = vmatpush1.bf16.msra.mxu0 0
    %4358 = vmatprep.subr.bf16.mxu0 0
    %4359 = vmatpush1.bf16.msra.mxu0 0
    %4360 = vmatprep.mubr.bf16.mxu0 0
    %4361 = vmatmul.mubr.bf16.gmra.mrb[0].mxu0 %v4326
    %v4362 = vpop.f32.mrb[0].mxu0
    %v4363 = vadd.f32 0.0, %v4362
    %v4364 = vpop.f32.mrb[0].mxu0
    %v4365 = vpop.f32.mrb[0].mxu0
    %v4366 = vadd.f32 0.0, %v4365
    %v4367 = vpop.f32.mrb[0].mxu0
    %4368 = vdwg.mxu0
    %v4369 = vadd.f32 %v4314, %v4363
    %v4370 = vadd.f32 %v4315, %v4366
    %v4371 = vld [vmem:[%s14] sm:$0xff]
    %v4372 = vld [vmem:[%s14 + $0x8] sm:$0xff]
    %4374 = vset.pattern.permute.xlu0 0
    %4375 = vperm.xlu0 %4374, %v4371
    %v4376 = vpop.permute.xlu0 %4375
    %4379 = vset.pattern.permute.xlu0 0
    %4380 = vperm.xlu0 %4379, %v4372
    %v4381 = vpop.permute.xlu0 %4380
    %v4383 = vadd.f32 %v4369, %v4376
    %v4384 = vadd.f32 %v4370, %v4381
    %s4385 = sld [smem:[#allocation2 + $0x3]]
    %v4386 = vsel %vm1256, %v4383, 0.0
    %4387 = vadd.xlane.f32.xlu0 %v4386
    %v4388 = vpop.xlane.xlu0 %4387
    %v4389 = vsel %vm1256, %v4384, 0.0
    %4390 = vadd.xlane.f32.xlu0 %v4389
    %v4391 = vpop.xlane.xlu0 %4390
    %v4392 = vmul.f32 %v4388, 0.015625
    %v4393 = vmul.f32 %v4391, 0.015625
    %v4394 = vsub.f32 %v4383, %v4392
    %v4395 = vsub.f32 %v4384, %v4393
    %v4396 = vmul.f32 %v4394, %v4394
    %v4397 = vmul.f32 %v4395, %v4395
    %v4398 = vsel %vm1256, %v4396, 0.0
    %4399 = vadd.xlane.f32.xlu0 %v4398
    %v4400 = vpop.xlane.xlu0 %4399
    %v4401 = vsel %vm1256, %v4397, 0.0
    %4402 = vadd.xlane.f32.xlu0 %v4401
    %v4403 = vpop.xlane.xlu0 %4402
    %v4404 = vmul.f32 %v4400, 0.015625
    %v4405 = vmul.f32 %v4403, 0.015625
    %v4406 = vadd.f32 %v4404, 1e-05
    %v4407 = vadd.f32 %v4405, 1e-05
    %v4408 = vrsqrt.pop %v4406
    %v4409 = vrsqrt.pop %v4407
    %v4410 = vmul.f32 %v4394, %v4408
    %v4411 = vmul.f32 %v4395, %v4409
    %vm4412 = vcmp.ge.f32.partialorder %v4410, 0.0
    %vm4413 = vcmp.ge.f32.partialorder %v4411, 0.0
    %v4414 = vstv %s4385
    %v4415 = vmul.f32 %v4414, %v4410
    %v4416 = vmul.f32 %v4414, %v4411
    %v4417 = vsel %vm4412, %v4410, %v4415
    %v4418 = vsel %vm4413, %v4411, %v4416
    %v4419 = vpack.c.bf16 %v4418, %v4417
    %v4420 = vld [vmem:[%s16] sm:$0xf]
    %v4421 = vld [vmem:[%s16 + $0x4] sm:$0xf]
    %v4422 = vld [vmem:[%s16 + $0x8] sm:$0xf]
    %v4423 = vld [vmem:[%s16 + $0xc] sm:$0xf]
    %v4424 = vld [vmem:[%s16 + $0x10] sm:$0xf]
    %v4425 = vld [vmem:[%s16 + $0x14] sm:$0xf]
    %v4426 = vld [vmem:[%s16 + $0x18] sm:$0xf]
    %v4427 = vld [vmem:[%s16 + $0x1c] sm:$0xf]
    %v4428 = vld [vmem:[%s16 + $0x20] sm:$0xf]
    %v4429 = vld [vmem:[%s17] sm:$0xf]
    %v4430 = vld [vmem:[%s17 + $0x4] sm:$0xf]
    %v4431 = vld [vmem:[%s17 + $0x8] sm:$0xf]
    %v4432 = vld [vmem:[%s17 + $0xc] sm:$0xf]
    %v4433 = vld [vmem:[%s17 + $0x10] sm:$0xf]
    %v4434 = vld [vmem:[%s17 + $0x14] sm:$0xf]
    %v4435 = vld [vmem:[%s17 + $0x18] sm:$0xf]
    %v4436 = vld [vmem:[%s17 + $0x1c] sm:$0xf]
    %v4437 = vld [vmem:[%s17 + $0x20] sm:$0xf]
    %v4447 = vunpack.c.l.b16 %v4429
    %v4448 = vunpack.c.l.b16 %v4430
    %v4449 = vunpack.c.l.b16 %v4431
    %v4450 = vunpack.c.l.b16 %v4432
    %v4451 = vunpack.c.l.b16 %v4433
    %v4452 = vunpack.c.l.b16 %v4434
    %v4453 = vunpack.c.l.b16 %v4435
    %v4454 = vunpack.c.l.b16 %v4436
    %v4455 = vunpack.c.l.b16 %v4437
    %v4456 = vpack.c.b16 %v4448, %v4447
    %v4457 = vpack.c.b16 %v4450, %v4449
    %v4458 = vpack.c.b16 %v4452, %v4451
    %v4459 = vpack.c.b16 %v4454, %v4453
    %v4460 = vpack.c.b16 %v4455, %v4455
    %v4462 = vsel %vm1410, %v4456, 0
    %v4465 = vsel %vm1410, %v4457, 0
    %v4468 = vsel %vm1410, %v4458, 0
    %v4471 = vsel %vm1410, %v4459, 0
    %v4474 = vsel %vm1410, %v4460, 0
    %4476 = vmatprep.subr.bf16.mxu0 0
    %4477 = vmatpush1.bf16.msra.mxu0 %v4419
    %4478 = vmatprep.subr.bf16.mxu0 0
    %4479 = vmatpush1.bf16.msra.mxu0 0
    %4480 = vmatprep.subr.bf16.mxu0 0
    %4481 = vmatpush1.bf16.msra.mxu0 0
    %4482 = vmatprep.subr.bf16.mxu0 0
    %4483 = vmatpush1.bf16.msra.mxu0 0
    %4484 = vmatprep.subr.bf16.mxu0 0
    %4485 = vmatpush1.bf16.msra.mxu0 0
    %4486 = vmatprep.subr.bf16.mxu0 0
    %4487 = vmatpush1.bf16.msra.mxu0 0
    %4488 = vmatprep.subr.bf16.mxu0 0
    %4489 = vmatpush1.bf16.msra.mxu0 0
    %4490 = vmatprep.subr.bf16.mxu0 0
    %4491 = vmatpush1.bf16.msra.mxu0 0
    %4492 = vmatprep.subr.bf16.mxu0 0
    %4493 = vmatpush1.bf16.msra.mxu0 0
    %4494 = vmatprep.subr.bf16.mxu0 0
    %4495 = vmatpush1.bf16.msra.mxu0 0
    %4496 = vmatprep.subr.bf16.mxu0 0
    %4497 = vmatpush1.bf16.msra.mxu0 0
    %4498 = vmatprep.subr.bf16.mxu0 0
    %4499 = vmatpush1.bf16.msra.mxu0 0
    %4500 = vmatprep.subr.bf16.mxu0 0
    %4501 = vmatpush1.bf16.msra.mxu0 0
    %4502 = vmatprep.subr.bf16.mxu0 0
    %4503 = vmatpush1.bf16.msra.mxu0 0
    %4504 = vmatprep.subr.bf16.mxu0 0
    %4505 = vmatpush1.bf16.msra.mxu0 0
    %4506 = vmatprep.subr.bf16.mxu0 0
    %4507 = vmatpush1.bf16.msra.mxu0 0
    %4508 = vmatprep.mubr.bf16.mxu0 0
    %4509 = vmatmul.mubr.bf16.gmra.mrb[0].mxu0 %v4462
    %v4510 = vpop.f32.mrb[0].mxu0
    %v4511 = vadd.f32 0.0, %v4510
    %v4512 = vpop.f32.mrb[0].mxu0
    %v4513 = vpop.f32.mrb[0].mxu0
    %v4514 = vadd.f32 0.0, %v4513
    %v4515 = vpop.f32.mrb[0].mxu0
    %4516 = vmatprep.mubr.bf16.mxu0 0
    %4517 = vmatmul.mubr.bf16.gmra.mrb[0].mxu0 %v4465
    %v4518 = vpop.f32.mrb[0].mxu0
    %v4519 = vadd.f32 0.0, %v4518
    %v4520 = vpop.f32.mrb[0].mxu0
    %v4521 = vpop.f32.mrb[0].mxu0
    %v4522 = vadd.f32 0.0, %v4521
    %v4523 = vpop.f32.mrb[0].mxu0
    %4524 = vmatprep.mubr.bf16.mxu0 0
    %4525 = vmatmul.mubr.bf16.gmra.mrb[0].mxu0 %v4468
    %v4526 = vpop.f32.mrb[0].mxu0
    %v4527 = vadd.f32 0.0, %v4526
    %v4528 = vpop.f32.mrb[0].mxu0
    %v4529 = vpop.f32.mrb[0].mxu0
    %v4530 = vadd.f32 0.0, %v4529
    %v4531 = vpop.f32.mrb[0].mxu0
    %4532 = vmatprep.mubr.bf16.mxu0 0
    %4533 = vmatmul.mubr.bf16.gmra.mrb[0].mxu0 %v4471
    %v4534 = vpop.f32.mrb[0].mxu0
    %v4535 = vadd.f32 0.0, %v4534
    %v4536 = vpop.f32.mrb[0].mxu0
    %v4537 = vpop.f32.mrb[0].mxu0
    %v4538 = vadd.f32 0.0, %v4537
    %v4539 = vpop.f32.mrb[0].mxu0
    %4540 = vmatprep.mubr.bf16.mxu0 0
    %4541 = vmatmul.mubr.bf16.gmra.mrb[0].mxu0 %v4474
    %v4542 = vpop.f32.mrb[0].mxu0
    %v4543 = vadd.f32 0.0, %v4542
    %v4544 = vpop.f32.mrb[0].mxu0
    %v4545 = vpop.f32.mrb[0].mxu0
    %v4546 = vpop.f32.mrb[0].mxu0
    %4547 = vdwg.mxu0
    %v4557 = vunpack.c.l.b16 %v4420
    %v4558 = vunpack.c.l.b16 %v4421
    %v4559 = vunpack.c.l.b16 %v4422
    %v4560 = vunpack.c.l.b16 %v4423
    %v4561 = vunpack.c.l.b16 %v4424
    %v4562 = vunpack.c.l.b16 %v4425
    %v4563 = vunpack.c.l.b16 %v4426
    %v4564 = vunpack.c.l.b16 %v4427
    %v4565 = vunpack.c.l.b16 %v4428
    %v4566 = vpack.c.b16 %v4558, %v4557
    %v4567 = vpack.c.b16 %v4560, %v4559
    %v4568 = vpack.c.b16 %v4562, %v4561
    %v4569 = vpack.c.b16 %v4564, %v4563
    %v4570 = vpack.c.b16 %v4565, %v4565
    %v4572 = vsel %vm1410, %v4566, 0
    %v4575 = vsel %vm1410, %v4567, 0
    %v4578 = vsel %vm1410, %v4568, 0
    %v4581 = vsel %vm1410, %v4569, 0
    %v4584 = vsel %vm1410, %v4570, 0
    %4586 = vmatprep.subr.bf16.mxu0 0
    %4587 = vmatpush1.bf16.msra.mxu0 %v1290
    %4588 = vmatprep.subr.bf16.mxu0 0
    %4589 = vmatpush1.bf16.msra.mxu0 0
    %4590 = vmatprep.subr.bf16.mxu0 0
    %4591 = vmatpush1.bf16.msra.mxu0 0
    %4592 = vmatprep.subr.bf16.mxu0 0
    %4593 = vmatpush1.bf16.msra.mxu0 0
    %4594 = vmatprep.subr.bf16.mxu0 0
    %4595 = vmatpush1.bf16.msra.mxu0 0
    %4596 = vmatprep.subr.bf16.mxu0 0
    %4597 = vmatpush1.bf16.msra.mxu0 0
    %4598 = vmatprep.subr.bf16.mxu0 0
    %4599 = vmatpush1.bf16.msra.mxu0 0
    %4600 = vmatprep.subr.bf16.mxu0 0
    %4601 = vmatpush1.bf16.msra.mxu0 0
    %4602 = vmatprep.subr.bf16.mxu0 0
    %4603 = vmatpush1.bf16.msra.mxu0 0
    %4604 = vmatprep.subr.bf16.mxu0 0
    %4605 = vmatpush1.bf16.msra.mxu0 0
    %4606 = vmatprep.subr.bf16.mxu0 0
    %4607 = vmatpush1.bf16.msra.mxu0 0
    %4608 = vmatprep.subr.bf16.mxu0 0
    %4609 = vmatpush1.bf16.msra.mxu0 0
    %4610 = vmatprep.subr.bf16.mxu0 0
    %4611 = vmatpush1.bf16.msra.mxu0 0
    %4612 = vmatprep.subr.bf16.mxu0 0
    %4613 = vmatpush1.bf16.msra.mxu0 0
    %4614 = vmatprep.subr.bf16.mxu0 0
    %4615 = vmatpush1.bf16.msra.mxu0 0
    %4616 = vmatprep.subr.bf16.mxu0 0
    %4617 = vmatpush1.bf16.msra.mxu0 0
    %4618 = vmatprep.mubr.bf16.mxu0 0
    %4619 = vmatmul.mubr.bf16.gmra.mrb[0].mxu0 %v4572
    %v4620 = vpop.f32.mrb[0].mxu0
    %v4621 = vadd.f32 %v4511, %v4620
    %v4622 = vpop.f32.mrb[0].mxu0
    %v4623 = vpop.f32.mrb[0].mxu0
    %v4624 = vadd.f32 %v4514, %v4623
    %v4625 = vpop.f32.mrb[0].mxu0
    %4626 = vmatprep.mubr.bf16.mxu0 0
    %4627 = vmatmul.mubr.bf16.gmra.mrb[0].mxu0 %v4575
    %v4628 = vpop.f32.mrb[0].mxu0
    %v4629 = vadd.f32 %v4519, %v4628
    %v4630 = vpop.f32.mrb[0].mxu0
    %v4631 = vpop.f32.mrb[0].mxu0
    %v4632 = vadd.f32 %v4522, %v4631
    %v4633 = vpop.f32.mrb[0].mxu0
    %4634 = vmatprep.mubr.bf16.mxu0 0
    %4635 = vmatmul.mubr.bf16.gmra.mrb[0].mxu0 %v4578
    %v4636 = vpop.f32.mrb[0].mxu0
    %v4637 = vadd.f32 %v4527, %v4636
    %v4638 = vpop.f32.mrb[0].mxu0
    %v4639 = vpop.f32.mrb[0].mxu0
    %v4640 = vadd.f32 %v4530, %v4639
    %v4641 = vpop.f32.mrb[0].mxu0
    %4642 = vmatprep.mubr.bf16.mxu0 0
    %4643 = vmatmul.mubr.bf16.gmra.mrb[0].mxu0 %v4581
    %v4644 = vpop.f32.mrb[0].mxu0
    %v4645 = vadd.f32 %v4535, %v4644
    %v4646 = vpop.f32.mrb[0].mxu0
    %v4647 = vpop.f32.mrb[0].mxu0
    %v4648 = vadd.f32 %v4538, %v4647
    %v4649 = vpop.f32.mrb[0].mxu0
    %4650 = vmatprep.mubr.bf16.mxu0 0
    %4651 = vmatmul.mubr.bf16.gmra.mrb[0].mxu0 %v4584
    %v4652 = vpop.f32.mrb[0].mxu0
    %v4653 = vadd.f32 %v4543, %v4652
    %v4654 = vpop.f32.mrb[0].mxu0
    %v4655 = vpop.f32.mrb[0].mxu0
    %v4656 = vpop.f32.mrb[0].mxu0
    %4657 = vdwg.mxu0
    %v4658 = vpack.c.bf16 %v4624, %v4621
    %v4659 = vpack.c.bf16 %v4632, %v4629
    %v4660 = vpack.c.bf16 %v4640, %v4637
    %v4661 = vpack.c.bf16 %v4648, %v4645
    %v4662 = vpack.c.bf16 %v4653, %v4653
    %v4663 = vld [vmem:[%s15] sm:$0xff]
    %v4664 = vld [vmem:[%s15 + $0x8] sm:$0xff]
    %v4665 = vld [vmem:[%s15 + $0x10] sm:$0xff]
    %v4666 = vld [vmem:[%s15 + $0x18] sm:$0xff]
    %v4667 = vld [vmem:[%s15 + $0x20] sm:$0xff]
    %v4668 = vld [vmem:[%s15 + $0x28] sm:$0xff]
    %v4669 = vld [vmem:[%s15 + $0x30] sm:$0xff]
    %v4670 = vld [vmem:[%s15 + $0x38] sm:$0xff]
    %s4671 = scalar_lea.vmem %s15, 64
    %v4672 = vld [vmem:[%s4671] sm:$0xff]
    %v4673 = vld [vmem:[%s4671 + $0x8] sm:$0xff]
    %v4674 = vld [vmem:[%s4671 + $0x10] sm:$0xff]
    %v4675 = vld [vmem:[%s4671 + $0x18] sm:$0xff]
    %v4676 = vld [vmem:[%s4671 + $0x20] sm:$0xff]
    %v4677 = vld [vmem:[%s4671 + $0x28] sm:$0xff]
    %v4678 = vld [vmem:[%s4671 + $0x30] sm:$0xff]
    %v4679 = vld [vmem:[%s4671 + $0x38] sm:$0xff]
    %v4681 = vrot.slane %v4658, 4
    %v4690 = vunpack.c.l.b16 %v4672
    %v4691 = vunpack.c.h.b16 %v4672
    %v4692 = vunpack.c.l.b16 %v4673
    %v4693 = vunpack.c.h.b16 %v4673
    %v4694 = vunpack.c.l.b16 %v4674
    %v4695 = vunpack.c.h.b16 %v4674
    %v4696 = vunpack.c.l.b16 %v4675
    %v4697 = vunpack.c.h.b16 %v4675
    %v4698 = vunpack.c.l.b16 %v4676
    %v4699 = vunpack.c.h.b16 %v4676
    %v4700 = vunpack.c.l.b16 %v4677
    %v4701 = vunpack.c.h.b16 %v4677
    %v4702 = vunpack.c.l.b16 %v4678
    %v4703 = vunpack.c.h.b16 %v4678
    %v4704 = vunpack.c.l.b16 %v4679
    %v4705 = vunpack.c.h.b16 %v4679
    %v4706 = vpack.c.b16 %v4692, %v4690
    %v4707 = vpack.c.b16 %v4693, %v4691
    %v4708 = vpack.c.b16 %v4696, %v4694
    %v4709 = vpack.c.b16 %v4697, %v4695
    %v4710 = vpack.c.b16 %v4700, %v4698
    %v4711 = vpack.c.b16 %v4701, %v4699
    %v4712 = vpack.c.b16 %v4704, %v4702
    %v4713 = vpack.c.b16 %v4705, %v4703
    %v4723 = vsel %vm1256, %v4681, 0
    %4725 = vmatprep.subr.bf16.mxu0 %v4707
    %4726 = vmatpush1.bf16.msra.mxu0 %v4706
    %4727 = vmatprep.subr.bf16.mxu0 %v4709
    %4728 = vmatpush1.bf16.msra.mxu0 %v4708
    %4729 = vmatprep.subr.bf16.mxu0 %v4711
    %4730 = vmatpush1.bf16.msra.mxu0 %v4710
    %4731 = vmatprep.subr.bf16.mxu0 %v4713
    %4732 = vmatpush1.bf16.msra.mxu0 %v4712
    %4733 = vmatprep.subr.bf16.mxu0 0
    %4734 = vmatpush1.bf16.msra.mxu0 0
    %4735 = vmatprep.subr.bf16.mxu0 0
    %4736 = vmatpush1.bf16.msra.mxu0 0
    %4737 = vmatprep.subr.bf16.mxu0 0
    %4738 = vmatpush1.bf16.msra.mxu0 0
    %4739 = vmatprep.subr.bf16.mxu0 0
    %4740 = vmatpush1.bf16.msra.mxu0 0
    %4741 = vmatprep.subr.bf16.mxu0 0
    %4742 = vmatpush1.bf16.msra.mxu0 0
    %4743 = vmatprep.subr.bf16.mxu0 0
    %4744 = vmatpush1.bf16.msra.mxu0 0
    %4745 = vmatprep.subr.bf16.mxu0 0
    %4746 = vmatpush1.bf16.msra.mxu0 0
    %4747 = vmatprep.subr.bf16.mxu0 0
    %4748 = vmatpush1.bf16.msra.mxu0 0
    %4749 = vmatprep.subr.bf16.mxu0 0
    %4750 = vmatpush1.bf16.msra.mxu0 0
    %4751 = vmatprep.subr.bf16.mxu0 0
    %4752 = vmatpush1.bf16.msra.mxu0 0
    %4753 = vmatprep.subr.bf16.mxu0 0
    %4754 = vmatpush1.bf16.msra.mxu0 0
    %4755 = vmatprep.subr.bf16.mxu0 0
    %4756 = vmatpush1.bf16.msra.mxu0 0
    %4757 = vmatprep.mubr.bf16.mxu0 0
    %4758 = vmatmul.mubr.bf16.gmra.mrb[0].mxu0 %v4723
    %v4759 = vpop.f32.mrb[0].mxu0
    %v4760 = vadd.f32 0.0, %v4759
    %v4761 = vpop.f32.mrb[0].mxu0
    %v4762 = vadd.f32 0.0, %v4761
    %v4763 = vpop.f32.mrb[0].mxu0
    %v4764 = vpop.f32.mrb[0].mxu0
    %4765 = vdwg.mxu0
    %v4774 = vunpack.c.l.b16 %v4663
    %v4775 = vunpack.c.h.b16 %v4663
    %v4776 = vunpack.c.l.b16 %v4664
    %v4777 = vunpack.c.h.b16 %v4664
    %v4778 = vunpack.c.l.b16 %v4665
    %v4779 = vunpack.c.h.b16 %v4665
    %v4780 = vunpack.c.l.b16 %v4666
    %v4781 = vunpack.c.h.b16 %v4666
    %v4782 = vunpack.c.l.b16 %v4667
    %v4783 = vunpack.c.h.b16 %v4667
    %v4784 = vunpack.c.l.b16 %v4668
    %v4785 = vunpack.c.h.b16 %v4668
    %v4786 = vunpack.c.l.b16 %v4669
    %v4787 = vunpack.c.h.b16 %v4669
    %v4788 = vunpack.c.l.b16 %v4670
    %v4789 = vunpack.c.h.b16 %v4670
    %v4790 = vpack.c.b16 %v4776, %v4774
    %v4791 = vpack.c.b16 %v4777, %v4775
    %v4792 = vpack.c.b16 %v4780, %v4778
    %v4793 = vpack.c.b16 %v4781, %v4779
    %v4794 = vpack.c.b16 %v4784, %v4782
    %v4795 = vpack.c.b16 %v4785, %v4783
    %v4796 = vpack.c.b16 %v4788, %v4786
    %v4797 = vpack.c.b16 %v4789, %v4787
    %v4807 = vsel %vm1256, %v4658, 0
    %4809 = vmatprep.subr.bf16.mxu0 %v4791
    %4810 = vmatpush1.bf16.msra.mxu0 %v4790
    %4811 = vmatprep.subr.bf16.mxu0 %v4793
    %4812 = vmatpush1.bf16.msra.mxu0 %v4792
    %4813 = vmatprep.subr.bf16.mxu0 %v4795
    %4814 = vmatpush1.bf16.msra.mxu0 %v4794
    %4815 = vmatprep.subr.bf16.mxu0 %v4797
    %4816 = vmatpush1.bf16.msra.mxu0 %v4796
    %4817 = vmatprep.subr.bf16.mxu0 0
    %4818 = vmatpush1.bf16.msra.mxu0 0
    %4819 = vmatprep.subr.bf16.mxu0 0
    %4820 = vmatpush1.bf16.msra.mxu0 0
    %4821 = vmatprep.subr.bf16.mxu0 0
    %4822 = vmatpush1.bf16.msra.mxu0 0
    %4823 = vmatprep.subr.bf16.mxu0 0
    %4824 = vmatpush1.bf16.msra.mxu0 0
    %4825 = vmatprep.subr.bf16.mxu0 0
    %4826 = vmatpush1.bf16.msra.mxu0 0
    %4827 = vmatprep.subr.bf16.mxu0 0
    %4828 = vmatpush1.bf16.msra.mxu0 0
    %4829 = vmatprep.subr.bf16.mxu0 0
    %4830 = vmatpush1.bf16.msra.mxu0 0
    %4831 = vmatprep.subr.bf16.mxu0 0
    %4832 = vmatpush1.bf16.msra.mxu0 0
    %4833 = vmatprep.subr.bf16.mxu0 0
    %4834 = vmatpush1.bf16.msra.mxu0 0
    %4835 = vmatprep.subr.bf16.mxu0 0
    %4836 = vmatpush1.bf16.msra.mxu0 0
    %4837 = vmatprep.subr.bf16.mxu0 0
    %4838 = vmatpush1.bf16.msra.mxu0 0
    %4839 = vmatprep.subr.bf16.mxu0 0
    %4840 = vmatpush1.bf16.msra.mxu0 0
    %4841 = vmatprep.mubr.bf16.mxu0 0
    %4842 = vmatmul.mubr.bf16.gmra.mrb[0].mxu0 %v4807
    %v4843 = vpop.f32.mrb[0].mxu0
    %v4844 = vadd.f32 %v4760, %v4843
    %v4845 = vpop.f32.mrb[0].mxu0
    %v4846 = vadd.f32 %v4762, %v4845
    %v4847 = vpop.f32.mrb[0].mxu0
    %v4848 = vpop.f32.mrb[0].mxu0
    %4849 = vdwg.mxu0
    %s4850 = scalar_lea.vmem %s15, 128
    %v4851 = vld [vmem:[%s4850] sm:$0xff]
    %v4852 = vld [vmem:[%s4850 + $0x8] sm:$0xff]
    %v4853 = vld [vmem:[%s4850 + $0x10] sm:$0xff]
    %v4854 = vld [vmem:[%s4850 + $0x18] sm:$0xff]
    %v4855 = vld [vmem:[%s4850 + $0x20] sm:$0xff]
    %v4856 = vld [vmem:[%s4850 + $0x28] sm:$0xff]
    %v4857 = vld [vmem:[%s4850 + $0x30] sm:$0xff]
    %v4858 = vld [vmem:[%s4850 + $0x38] sm:$0xff]
    %v4867 = vunpack.c.l.b16 %v4851
    %v4868 = vunpack.c.h.b16 %v4851
    %v4869 = vunpack.c.l.b16 %v4852
    %v4870 = vunpack.c.h.b16 %v4852
    %v4871 = vunpack.c.l.b16 %v4853
    %v4872 = vunpack.c.h.b16 %v4853
    %v4873 = vunpack.c.l.b16 %v4854
    %v4874 = vunpack.c.h.b16 %v4854
    %v4875 = vunpack.c.l.b16 %v4855
    %v4876 = vunpack.c.h.b16 %v4855
    %v4877 = vunpack.c.l.b16 %v4856
    %v4878 = vunpack.c.h.b16 %v4856
    %v4879 = vunpack.c.l.b16 %v4857
    %v4880 = vunpack.c.h.b16 %v4857
    %v4881 = vunpack.c.l.b16 %v4858
    %v4882 = vunpack.c.h.b16 %v4858
    %v4883 = vpack.c.b16 %v4869, %v4867
    %v4884 = vpack.c.b16 %v4870, %v4868
    %v4885 = vpack.c.b16 %v4873, %v4871
    %v4886 = vpack.c.b16 %v4874, %v4872
    %v4887 = vpack.c.b16 %v4877, %v4875
    %v4888 = vpack.c.b16 %v4878, %v4876
    %v4889 = vpack.c.b16 %v4881, %v4879
    %v4890 = vpack.c.b16 %v4882, %v4880
    %v4900 = vsel %vm1256, %v4659, 0
    %4902 = vmatprep.subr.bf16.mxu0 %v4884
    %4903 = vmatpush1.bf16.msra.mxu0 %v4883
    %4904 = vmatprep.subr.bf16.mxu0 %v4886
    %4905 = vmatpush1.bf16.msra.mxu0 %v4885
    %4906 = vmatprep.subr.bf16.mxu0 %v4888
    %4907 = vmatpush1.bf16.msra.mxu0 %v4887
    %4908 = vmatprep.subr.bf16.mxu0 %v4890
    %4909 = vmatpush1.bf16.msra.mxu0 %v4889
    %4910 = vmatprep.subr.bf16.mxu0 0
    %4911 = vmatpush1.bf16.msra.mxu0 0
    %4912 = vmatprep.subr.bf16.mxu0 0
    %4913 = vmatpush1.bf16.msra.mxu0 0
    %4914 = vmatprep.subr.bf16.mxu0 0
    %4915 = vmatpush1.bf16.msra.mxu0 0
    %4916 = vmatprep.subr.bf16.mxu0 0
    %4917 = vmatpush1.bf16.msra.mxu0 0
    %4918 = vmatprep.subr.bf16.mxu0 0
    %4919 = vmatpush1.bf16.msra.mxu0 0
    %4920 = vmatprep.subr.bf16.mxu0 0
    %4921 = vmatpush1.bf16.msra.mxu0 0
    %4922 = vmatprep.subr.bf16.mxu0 0
    %4923 = vmatpush1.bf16.msra.mxu0 0
    %4924 = vmatprep.subr.bf16.mxu0 0
    %4925 = vmatpush1.bf16.msra.mxu0 0
    %4926 = vmatprep.subr.bf16.mxu0 0
    %4927 = vmatpush1.bf16.msra.mxu0 0
    %4928 = vmatprep.subr.bf16.mxu0 0
    %4929 = vmatpush1.bf16.msra.mxu0 0
    %4930 = vmatprep.subr.bf16.mxu0 0
    %4931 = vmatpush1.bf16.msra.mxu0 0
    %4932 = vmatprep.subr.bf16.mxu0 0
    %4933 = vmatpush1.bf16.msra.mxu0 0
    %4934 = vmatprep.mubr.bf16.mxu0 0
    %4935 = vmatmul.mubr.bf16.gmra.mrb[0].mxu0 %v4900
    %v4936 = vpop.f32.mrb[0].mxu0
    %v4937 = vadd.f32 0.0, %v4936
    %v4938 = vpop.f32.mrb[0].mxu0
    %v4939 = vadd.f32 0.0, %v4938
    %v4940 = vpop.f32.mrb[0].mxu0
    %v4941 = vpop.f32.mrb[0].mxu0
    %4942 = vdwg.mxu0
    %v4943 = vadd.f32 %v4844, %v4937
    %v4944 = vadd.f32 %v4846, %v4939
    %s4945 = scalar_lea.vmem %s15, 192
    %v4946 = vld [vmem:[%s4945] sm:$0xff]
    %v4947 = vld [vmem:[%s4945 + $0x8] sm:$0xff]
    %v4948 = vld [vmem:[%s4945 + $0x10] sm:$0xff]
    %v4949 = vld [vmem:[%s4945 + $0x18] sm:$0xff]
    %v4950 = vld [vmem:[%s4945 + $0x20] sm:$0xff]
    %v4951 = vld [vmem:[%s4945 + $0x28] sm:$0xff]
    %v4952 = vld [vmem:[%s4945 + $0x30] sm:$0xff]
    %v4953 = vld [vmem:[%s4945 + $0x38] sm:$0xff]
    %v4955 = vrot.slane %v4659, 4
    %v4964 = vunpack.c.l.b16 %v4946
    %v4965 = vunpack.c.h.b16 %v4946
    %v4966 = vunpack.c.l.b16 %v4947
    %v4967 = vunpack.c.h.b16 %v4947
    %v4968 = vunpack.c.l.b16 %v4948
    %v4969 = vunpack.c.h.b16 %v4948
    %v4970 = vunpack.c.l.b16 %v4949
    %v4971 = vunpack.c.h.b16 %v4949
    %v4972 = vunpack.c.l.b16 %v4950
    %v4973 = vunpack.c.h.b16 %v4950
    %v4974 = vunpack.c.l.b16 %v4951
    %v4975 = vunpack.c.h.b16 %v4951
    %v4976 = vunpack.c.l.b16 %v4952
    %v4977 = vunpack.c.h.b16 %v4952
    %v4978 = vunpack.c.l.b16 %v4953
    %v4979 = vunpack.c.h.b16 %v4953
    %v4980 = vpack.c.b16 %v4966, %v4964
    %v4981 = vpack.c.b16 %v4967, %v4965
    %v4982 = vpack.c.b16 %v4970, %v4968
    %v4983 = vpack.c.b16 %v4971, %v4969
    %v4984 = vpack.c.b16 %v4974, %v4972
    %v4985 = vpack.c.b16 %v4975, %v4973
    %v4986 = vpack.c.b16 %v4978, %v4976
    %v4987 = vpack.c.b16 %v4979, %v4977
    %v4997 = vsel %vm1256, %v4955, 0
    %4999 = vmatprep.subr.bf16.mxu0 %v4981
    %5000 = vmatpush1.bf16.msra.mxu0 %v4980
    %5001 = vmatprep.subr.bf16.mxu0 %v4983
    %5002 = vmatpush1.bf16.msra.mxu0 %v4982
    %5003 = vmatprep.subr.bf16.mxu0 %v4985
    %5004 = vmatpush1.bf16.msra.mxu0 %v4984
    %5005 = vmatprep.subr.bf16.mxu0 %v4987
    %5006 = vmatpush1.bf16.msra.mxu0 %v4986
    %5007 = vmatprep.subr.bf16.mxu0 0
    %5008 = vmatpush1.bf16.msra.mxu0 0
    %5009 = vmatprep.subr.bf16.mxu0 0
    %5010 = vmatpush1.bf16.msra.mxu0 0
    %5011 = vmatprep.subr.bf16.mxu0 0
    %5012 = vmatpush1.bf16.msra.mxu0 0
    %5013 = vmatprep.subr.bf16.mxu0 0
    %5014 = vmatpush1.bf16.msra.mxu0 0
    %5015 = vmatprep.subr.bf16.mxu0 0
    %5016 = vmatpush1.bf16.msra.mxu0 0
    %5017 = vmatprep.subr.bf16.mxu0 0
    %5018 = vmatpush1.bf16.msra.mxu0 0
    %5019 = vmatprep.subr.bf16.mxu0 0
    %5020 = vmatpush1.bf16.msra.mxu0 0
    %5021 = vmatprep.subr.bf16.mxu0 0
    %5022 = vmatpush1.bf16.msra.mxu0 0
    %5023 = vmatprep.subr.bf16.mxu0 0
    %5024 = vmatpush1.bf16.msra.mxu0 0
    %5025 = vmatprep.subr.bf16.mxu0 0
    %5026 = vmatpush1.bf16.msra.mxu0 0
    %5027 = vmatprep.subr.bf16.mxu0 0
    %5028 = vmatpush1.bf16.msra.mxu0 0
    %5029 = vmatprep.subr.bf16.mxu0 0
    %5030 = vmatpush1.bf16.msra.mxu0 0
    %5031 = vmatprep.mubr.bf16.mxu0 0
    %5032 = vmatmul.mubr.bf16.gmra.mrb[0].mxu0 %v4997
    %v5033 = vpop.f32.mrb[0].mxu0
    %v5034 = vadd.f32 0.0, %v5033
    %v5035 = vpop.f32.mrb[0].mxu0
    %v5036 = vadd.f32 0.0, %v5035
    %v5037 = vpop.f32.mrb[0].mxu0
    %v5038 = vpop.f32.mrb[0].mxu0
    %5039 = vdwg.mxu0
    %v5040 = vadd.f32 %v4943, %v5034
    %v5041 = vadd.f32 %v4944, %v5036
    %s5042 = scalar_lea.vmem %s15, 256
    %v5043 = vld [vmem:[%s5042] sm:$0xff]
    %v5044 = vld [vmem:[%s5042 + $0x8] sm:$0xff]
    %v5045 = vld [vmem:[%s5042 + $0x10] sm:$0xff]
    %v5046 = vld [vmem:[%s5042 + $0x18] sm:$0xff]
    %v5047 = vld [vmem:[%s5042 + $0x20] sm:$0xff]
    %v5048 = vld [vmem:[%s5042 + $0x28] sm:$0xff]
    %v5049 = vld [vmem:[%s5042 + $0x30] sm:$0xff]
    %v5050 = vld [vmem:[%s5042 + $0x38] sm:$0xff]
    %v5059 = vunpack.c.l.b16 %v5043
    %v5060 = vunpack.c.h.b16 %v5043
    %v5061 = vunpack.c.l.b16 %v5044
    %v5062 = vunpack.c.h.b16 %v5044
    %v5063 = vunpack.c.l.b16 %v5045
    %v5064 = vunpack.c.h.b16 %v5045
    %v5065 = vunpack.c.l.b16 %v5046
    %v5066 = vunpack.c.h.b16 %v5046
    %v5067 = vunpack.c.l.b16 %v5047
    %v5068 = vunpack.c.h.b16 %v5047
    %v5069 = vunpack.c.l.b16 %v5048
    %v5070 = vunpack.c.h.b16 %v5048
    %v5071 = vunpack.c.l.b16 %v5049
    %v5072 = vunpack.c.h.b16 %v5049
    %v5073 = vunpack.c.l.b16 %v5050
    %v5074 = vunpack.c.h.b16 %v5050
    %v5075 = vpack.c.b16 %v5061, %v5059
    %v5076 = vpack.c.b16 %v5062, %v5060
    %v5077 = vpack.c.b16 %v5065, %v5063
    %v5078 = vpack.c.b16 %v5066, %v5064
    %v5079 = vpack.c.b16 %v5069, %v5067
    %v5080 = vpack.c.b16 %v5070, %v5068
    %v5081 = vpack.c.b16 %v5073, %v5071
    %v5082 = vpack.c.b16 %v5074, %v5072
    %v5092 = vsel %vm1256, %v4660, 0
    %5094 = vmatprep.subr.bf16.mxu0 %v5076
    %5095 = vmatpush1.bf16.msra.mxu0 %v5075
    %5096 = vmatprep.subr.bf16.mxu0 %v5078
    %5097 = vmatpush1.bf16.msra.mxu0 %v5077
    %5098 = vmatprep.subr.bf16.mxu0 %v5080
    %5099 = vmatpush1.bf16.msra.mxu0 %v5079
    %5100 = vmatprep.subr.bf16.mxu0 %v5082
    %5101 = vmatpush1.bf16.msra.mxu0 %v5081
    %5102 = vmatprep.subr.bf16.mxu0 0
    %5103 = vmatpush1.bf16.msra.mxu0 0
    %5104 = vmatprep.subr.bf16.mxu0 0
    %5105 = vmatpush1.bf16.msra.mxu0 0
    %5106 = vmatprep.subr.bf16.mxu0 0
    %5107 = vmatpush1.bf16.msra.mxu0 0
    %5108 = vmatprep.subr.bf16.mxu0 0
    %5109 = vmatpush1.bf16.msra.mxu0 0
    %5110 = vmatprep.subr.bf16.mxu0 0
    %5111 = vmatpush1.bf16.msra.mxu0 0
    %5112 = vmatprep.subr.bf16.mxu0 0
    %5113 = vmatpush1.bf16.msra.mxu0 0
    %5114 = vmatprep.subr.bf16.mxu0 0
    %5115 = vmatpush1.bf16.msra.mxu0 0
    %5116 = vmatprep.subr.bf16.mxu0 0
    %5117 = vmatpush1.bf16.msra.mxu0 0
    %5118 = vmatprep.subr.bf16.mxu0 0
    %5119 = vmatpush1.bf16.msra.mxu0 0
    %5120 = vmatprep.subr.bf16.mxu0 0
    %5121 = vmatpush1.bf16.msra.mxu0 0
    %5122 = vmatprep.subr.bf16.mxu0 0
    %5123 = vmatpush1.bf16.msra.mxu0 0
    %5124 = vmatprep.subr.bf16.mxu0 0
    %5125 = vmatpush1.bf16.msra.mxu0 0
    %5126 = vmatprep.mubr.bf16.mxu0 0
    %5127 = vmatmul.mubr.bf16.gmra.mrb[0].mxu0 %v5092
    %v5128 = vpop.f32.mrb[0].mxu0
    %v5129 = vadd.f32 0.0, %v5128
    %v5130 = vpop.f32.mrb[0].mxu0
    %v5131 = vadd.f32 0.0, %v5130
    %v5132 = vpop.f32.mrb[0].mxu0
    %v5133 = vpop.f32.mrb[0].mxu0
    %5134 = vdwg.mxu0
    %v5135 = vadd.f32 %v5040, %v5129
    %v5136 = vadd.f32 %v5041, %v5131
    %s5137 = scalar_lea.vmem %s15, 320
    %v5138 = vld [vmem:[%s5137] sm:$0xff]
    %v5139 = vld [vmem:[%s5137 + $0x8] sm:$0xff]
    %v5140 = vld [vmem:[%s5137 + $0x10] sm:$0xff]
    %v5141 = vld [vmem:[%s5137 + $0x18] sm:$0xff]
    %v5142 = vld [vmem:[%s5137 + $0x20] sm:$0xff]
    %v5143 = vld [vmem:[%s5137 + $0x28] sm:$0xff]
    %v5144 = vld [vmem:[%s5137 + $0x30] sm:$0xff]
    %v5145 = vld [vmem:[%s5137 + $0x38] sm:$0xff]
    %v5147 = vrot.slane %v4660, 4
    %v5156 = vunpack.c.l.b16 %v5138
    %v5157 = vunpack.c.h.b16 %v5138
    %v5158 = vunpack.c.l.b16 %v5139
    %v5159 = vunpack.c.h.b16 %v5139
    %v5160 = vunpack.c.l.b16 %v5140
    %v5161 = vunpack.c.h.b16 %v5140
    %v5162 = vunpack.c.l.b16 %v5141
    %v5163 = vunpack.c.h.b16 %v5141
    %v5164 = vunpack.c.l.b16 %v5142
    %v5165 = vunpack.c.h.b16 %v5142
    %v5166 = vunpack.c.l.b16 %v5143
    %v5167 = vunpack.c.h.b16 %v5143
    %v5168 = vunpack.c.l.b16 %v5144
    %v5169 = vunpack.c.h.b16 %v5144
    %v5170 = vunpack.c.l.b16 %v5145
    %v5171 = vunpack.c.h.b16 %v5145
    %v5172 = vpack.c.b16 %v5158, %v5156
    %v5173 = vpack.c.b16 %v5159, %v5157
    %v5174 = vpack.c.b16 %v5162, %v5160
    %v5175 = vpack.c.b16 %v5163, %v5161
    %v5176 = vpack.c.b16 %v5166, %v5164
    %v5177 = vpack.c.b16 %v5167, %v5165
    %v5178 = vpack.c.b16 %v5170, %v5168
    %v5179 = vpack.c.b16 %v5171, %v5169
    %v5189 = vsel %vm1256, %v5147, 0
    %5191 = vmatprep.subr.bf16.mxu0 %v5173
    %5192 = vmatpush1.bf16.msra.mxu0 %v5172
    %5193 = vmatprep.subr.bf16.mxu0 %v5175
    %5194 = vmatpush1.bf16.msra.mxu0 %v5174
    %5195 = vmatprep.subr.bf16.mxu0 %v5177
    %5196 = vmatpush1.bf16.msra.mxu0 %v5176
    %5197 = vmatprep.subr.bf16.mxu0 %v5179
    %5198 = vmatpush1.bf16.msra.mxu0 %v5178
    %5199 = vmatprep.subr.bf16.mxu0 0
    %5200 = vmatpush1.bf16.msra.mxu0 0
    %5201 = vmatprep.subr.bf16.mxu0 0
    %5202 = vmatpush1.bf16.msra.mxu0 0
    %5203 = vmatprep.subr.bf16.mxu0 0
    %5204 = vmatpush1.bf16.msra.mxu0 0
    %5205 = vmatprep.subr.bf16.mxu0 0
    %5206 = vmatpush1.bf16.msra.mxu0 0
    %5207 = vmatprep.subr.bf16.mxu0 0
    %5208 = vmatpush1.bf16.msra.mxu0 0
    %5209 = vmatprep.subr.bf16.mxu0 0
    %5210 = vmatpush1.bf16.msra.mxu0 0
    %5211 = vmatprep.subr.bf16.mxu0 0
    %5212 = vmatpush1.bf16.msra.mxu0 0
    %5213 = vmatprep.subr.bf16.mxu0 0
    %5214 = vmatpush1.bf16.msra.mxu0 0
    %5215 = vmatprep.subr.bf16.mxu0 0
    %5216 = vmatpush1.bf16.msra.mxu0 0
    %5217 = vmatprep.subr.bf16.mxu0 0
    %5218 = vmatpush1.bf16.msra.mxu0 0
    %5219 = vmatprep.subr.bf16.mxu0 0
    %5220 = vmatpush1.bf16.msra.mxu0 0
    %5221 = vmatprep.subr.bf16.mxu0 0
    %5222 = vmatpush1.bf16.msra.mxu0 0
    %5223 = vmatprep.mubr.bf16.mxu0 0
    %5224 = vmatmul.mubr.bf16.gmra.mrb[0].mxu0 %v5189
    %v5225 = vpop.f32.mrb[0].mxu0
    %v5226 = vadd.f32 0.0, %v5225
    %v5227 = vpop.f32.mrb[0].mxu0
    %v5228 = vadd.f32 0.0, %v5227
    %v5229 = vpop.f32.mrb[0].mxu0
    %v5230 = vpop.f32.mrb[0].mxu0
    %5231 = vdwg.mxu0
    %v5232 = vadd.f32 %v5135, %v5226
    %v5233 = vadd.f32 %v5136, %v5228
    %s5234 = scalar_lea.vmem %s15, 384
    %v5235 = vld [vmem:[%s5234] sm:$0xff]
    %v5236 = vld [vmem:[%s5234 + $0x8] sm:$0xff]
    %v5237 = vld [vmem:[%s5234 + $0x10] sm:$0xff]
    %v5238 = vld [vmem:[%s5234 + $0x18] sm:$0xff]
    %v5239 = vld [vmem:[%s5234 + $0x20] sm:$0xff]
    %v5240 = vld [vmem:[%s5234 + $0x28] sm:$0xff]
    %v5241 = vld [vmem:[%s5234 + $0x30] sm:$0xff]
    %v5242 = vld [vmem:[%s5234 + $0x38] sm:$0xff]
    %v5251 = vunpack.c.l.b16 %v5235
    %v5252 = vunpack.c.h.b16 %v5235
    %v5253 = vunpack.c.l.b16 %v5236
    %v5254 = vunpack.c.h.b16 %v5236
    %v5255 = vunpack.c.l.b16 %v5237
    %v5256 = vunpack.c.h.b16 %v5237
    %v5257 = vunpack.c.l.b16 %v5238
    %v5258 = vunpack.c.h.b16 %v5238
    %v5259 = vunpack.c.l.b16 %v5239
    %v5260 = vunpack.c.h.b16 %v5239
    %v5261 = vunpack.c.l.b16 %v5240
    %v5262 = vunpack.c.h.b16 %v5240
    %v5263 = vunpack.c.l.b16 %v5241
    %v5264 = vunpack.c.h.b16 %v5241
    %v5265 = vunpack.c.l.b16 %v5242
    %v5266 = vunpack.c.h.b16 %v5242
    %v5267 = vpack.c.b16 %v5253, %v5251
    %v5268 = vpack.c.b16 %v5254, %v5252
    %v5269 = vpack.c.b16 %v5257, %v5255
    %v5270 = vpack.c.b16 %v5258, %v5256
    %v5271 = vpack.c.b16 %v5261, %v5259
    %v5272 = vpack.c.b16 %v5262, %v5260
    %v5273 = vpack.c.b16 %v5265, %v5263
    %v5274 = vpack.c.b16 %v5266, %v5264
    %v5284 = vsel %vm1256, %v4661, 0
    %5286 = vmatprep.subr.bf16.mxu0 %v5268
    %5287 = vmatpush1.bf16.msra.mxu0 %v5267
    %5288 = vmatprep.subr.bf16.mxu0 %v5270
    %5289 = vmatpush1.bf16.msra.mxu0 %v5269
    %5290 = vmatprep.subr.bf16.mxu0 %v5272
    %5291 = vmatpush1.bf16.msra.mxu0 %v5271
    %5292 = vmatprep.subr.bf16.mxu0 %v5274
    %5293 = vmatpush1.bf16.msra.mxu0 %v5273
    %5294 = vmatprep.subr.bf16.mxu0 0
    %5295 = vmatpush1.bf16.msra.mxu0 0
    %5296 = vmatprep.subr.bf16.mxu0 0
    %5297 = vmatpush1.bf16.msra.mxu0 0
    %5298 = vmatprep.subr.bf16.mxu0 0
    %5299 = vmatpush1.bf16.msra.mxu0 0
    %5300 = vmatprep.subr.bf16.mxu0 0
    %5301 = vmatpush1.bf16.msra.mxu0 0
    %5302 = vmatprep.subr.bf16.mxu0 0
    %5303 = vmatpush1.bf16.msra.mxu0 0
    %5304 = vmatprep.subr.bf16.mxu0 0
    %5305 = vmatpush1.bf16.msra.mxu0 0
    %5306 = vmatprep.subr.bf16.mxu0 0
    %5307 = vmatpush1.bf16.msra.mxu0 0
    %5308 = vmatprep.subr.bf16.mxu0 0
    %5309 = vmatpush1.bf16.msra.mxu0 0
    %5310 = vmatprep.subr.bf16.mxu0 0
    %5311 = vmatpush1.bf16.msra.mxu0 0
    %5312 = vmatprep.subr.bf16.mxu0 0
    %5313 = vmatpush1.bf16.msra.mxu0 0
    %5314 = vmatprep.subr.bf16.mxu0 0
    %5315 = vmatpush1.bf16.msra.mxu0 0
    %5316 = vmatprep.subr.bf16.mxu0 0
    %5317 = vmatpush1.bf16.msra.mxu0 0
    %5318 = vmatprep.mubr.bf16.mxu0 0
    %5319 = vmatmul.mubr.bf16.gmra.mrb[0].mxu0 %v5284
    %v5320 = vpop.f32.mrb[0].mxu0
    %v5321 = vadd.f32 0.0, %v5320
    %v5322 = vpop.f32.mrb[0].mxu0
    %v5323 = vadd.f32 0.0, %v5322
    %v5324 = vpop.f32.mrb[0].mxu0
    %v5325 = vpop.f32.mrb[0].mxu0
    %5326 = vdwg.mxu0
    %v5327 = vadd.f32 %v5232, %v5321
    %v5328 = vadd.f32 %v5233, %v5323
    %s5329 = scalar_lea.vmem %s15, 448
    %v5330 = vld [vmem:[%s5329] sm:$0xff]
    %v5331 = vld [vmem:[%s5329 + $0x8] sm:$0xff]
    %v5332 = vld [vmem:[%s5329 + $0x10] sm:$0xff]
    %v5333 = vld [vmem:[%s5329 + $0x18] sm:$0xff]
    %v5334 = vld [vmem:[%s5329 + $0x20] sm:$0xff]
    %v5335 = vld [vmem:[%s5329 + $0x28] sm:$0xff]
    %v5336 = vld [vmem:[%s5329 + $0x30] sm:$0xff]
    %v5337 = vld [vmem:[%s5329 + $0x38] sm:$0xff]
    %v5339 = vrot.slane %v4661, 4
    %v5348 = vunpack.c.l.b16 %v5330
    %v5349 = vunpack.c.h.b16 %v5330
    %v5350 = vunpack.c.l.b16 %v5331
    %v5351 = vunpack.c.h.b16 %v5331
    %v5352 = vunpack.c.l.b16 %v5332
    %v5353 = vunpack.c.h.b16 %v5332
    %v5354 = vunpack.c.l.b16 %v5333
    %v5355 = vunpack.c.h.b16 %v5333
    %v5356 = vunpack.c.l.b16 %v5334
    %v5357 = vunpack.c.h.b16 %v5334
    %v5358 = vunpack.c.l.b16 %v5335
    %v5359 = vunpack.c.h.b16 %v5335
    %v5360 = vunpack.c.l.b16 %v5336
    %v5361 = vunpack.c.h.b16 %v5336
    %v5362 = vunpack.c.l.b16 %v5337
    %v5363 = vunpack.c.h.b16 %v5337
    %v5364 = vpack.c.b16 %v5350, %v5348
    %v5365 = vpack.c.b16 %v5351, %v5349
    %v5366 = vpack.c.b16 %v5354, %v5352
    %v5367 = vpack.c.b16 %v5355, %v5353
    %v5368 = vpack.c.b16 %v5358, %v5356
    %v5369 = vpack.c.b16 %v5359, %v5357
    %v5370 = vpack.c.b16 %v5362, %v5360
    %v5371 = vpack.c.b16 %v5363, %v5361
    %v5381 = vsel %vm1256, %v5339, 0
    %5383 = vmatprep.subr.bf16.mxu0 %v5365
    %5384 = vmatpush1.bf16.msra.mxu0 %v5364
    %5385 = vmatprep.subr.bf16.mxu0 %v5367
    %5386 = vmatpush1.bf16.msra.mxu0 %v5366
    %5387 = vmatprep.subr.bf16.mxu0 %v5369
    %5388 = vmatpush1.bf16.msra.mxu0 %v5368
    %5389 = vmatprep.subr.bf16.mxu0 %v5371
    %5390 = vmatpush1.bf16.msra.mxu0 %v5370
    %5391 = vmatprep.subr.bf16.mxu0 0
    %5392 = vmatpush1.bf16.msra.mxu0 0
    %5393 = vmatprep.subr.bf16.mxu0 0
    %5394 = vmatpush1.bf16.msra.mxu0 0
    %5395 = vmatprep.subr.bf16.mxu0 0
    %5396 = vmatpush1.bf16.msra.mxu0 0
    %5397 = vmatprep.subr.bf16.mxu0 0
    %5398 = vmatpush1.bf16.msra.mxu0 0
    %5399 = vmatprep.subr.bf16.mxu0 0
    %5400 = vmatpush1.bf16.msra.mxu0 0
    %5401 = vmatprep.subr.bf16.mxu0 0
    %5402 = vmatpush1.bf16.msra.mxu0 0
    %5403 = vmatprep.subr.bf16.mxu0 0
    %5404 = vmatpush1.bf16.msra.mxu0 0
    %5405 = vmatprep.subr.bf16.mxu0 0
    %5406 = vmatpush1.bf16.msra.mxu0 0
    %5407 = vmatprep.subr.bf16.mxu0 0
    %5408 = vmatpush1.bf16.msra.mxu0 0
    %5409 = vmatprep.subr.bf16.mxu0 0
    %5410 = vmatpush1.bf16.msra.mxu0 0
    %5411 = vmatprep.subr.bf16.mxu0 0
    %5412 = vmatpush1.bf16.msra.mxu0 0
    %5413 = vmatprep.subr.bf16.mxu0 0
    %5414 = vmatpush1.bf16.msra.mxu0 0
    %5415 = vmatprep.mubr.bf16.mxu0 0
    %5416 = vmatmul.mubr.bf16.gmra.mrb[0].mxu0 %v5381
    %v5417 = vpop.f32.mrb[0].mxu0
    %v5418 = vadd.f32 0.0, %v5417
    %v5419 = vpop.f32.mrb[0].mxu0
    %v5420 = vadd.f32 0.0, %v5419
    %v5421 = vpop.f32.mrb[0].mxu0
    %v5422 = vpop.f32.mrb[0].mxu0
    %5423 = vdwg.mxu0
    %v5424 = vadd.f32 %v5327, %v5418
    %v5425 = vadd.f32 %v5328, %v5420
    %s5426 = scalar_lea.vmem %s15, 512
    %v5427 = vld [vmem:[%s5426] sm:$0xff]
    %v5428 = vld [vmem:[%s5426 + $0x8] sm:$0xff]
    %v5429 = vld [vmem:[%s5426 + $0x10] sm:$0xff]
    %v5430 = vld [vmem:[%s5426 + $0x18] sm:$0xff]
    %v5431 = vld [vmem:[%s5426 + $0x20] sm:$0xff]
    %v5432 = vld [vmem:[%s5426 + $0x28] sm:$0xff]
    %v5433 = vld [vmem:[%s5426 + $0x30] sm:$0xff]
    %v5434 = vld [vmem:[%s5426 + $0x38] sm:$0xff]
    %v5443 = vunpack.c.l.b16 %v5427
    %v5444 = vunpack.c.h.b16 %v5427
    %v5445 = vunpack.c.l.b16 %v5428
    %v5446 = vunpack.c.h.b16 %v5428
    %v5447 = vunpack.c.l.b16 %v5429
    %v5448 = vunpack.c.h.b16 %v5429
    %v5449 = vunpack.c.l.b16 %v5430
    %v5450 = vunpack.c.h.b16 %v5430
    %v5451 = vunpack.c.l.b16 %v5431
    %v5452 = vunpack.c.h.b16 %v5431
    %v5453 = vunpack.c.l.b16 %v5432
    %v5454 = vunpack.c.h.b16 %v5432
    %v5455 = vunpack.c.l.b16 %v5433
    %v5456 = vunpack.c.h.b16 %v5433
    %v5457 = vunpack.c.l.b16 %v5434
    %v5458 = vunpack.c.h.b16 %v5434
    %v5459 = vpack.c.b16 %v5445, %v5443
    %v5460 = vpack.c.b16 %v5446, %v5444
    %v5461 = vpack.c.b16 %v5449, %v5447
    %v5462 = vpack.c.b16 %v5450, %v5448
    %v5463 = vpack.c.b16 %v5453, %v5451
    %v5464 = vpack.c.b16 %v5454, %v5452
    %v5465 = vpack.c.b16 %v5457, %v5455
    %v5466 = vpack.c.b16 %v5458, %v5456
    %v5476 = vsel %vm1256, %v4662, 0
    %5478 = vmatprep.subr.bf16.mxu0 %v5460
    %5479 = vmatpush1.bf16.msra.mxu0 %v5459
    %5480 = vmatprep.subr.bf16.mxu0 %v5462
    %5481 = vmatpush1.bf16.msra.mxu0 %v5461
    %5482 = vmatprep.subr.bf16.mxu0 %v5464
    %5483 = vmatpush1.bf16.msra.mxu0 %v5463
    %5484 = vmatprep.subr.bf16.mxu0 %v5466
    %5485 = vmatpush1.bf16.msra.mxu0 %v5465
    %5486 = vmatprep.subr.bf16.mxu0 0
    %5487 = vmatpush1.bf16.msra.mxu0 0
    %5488 = vmatprep.subr.bf16.mxu0 0
    %5489 = vmatpush1.bf16.msra.mxu0 0
    %5490 = vmatprep.subr.bf16.mxu0 0
    %5491 = vmatpush1.bf16.msra.mxu0 0
    %5492 = vmatprep.subr.bf16.mxu0 0
    %5493 = vmatpush1.bf16.msra.mxu0 0
    %5494 = vmatprep.subr.bf16.mxu0 0
    %5495 = vmatpush1.bf16.msra.mxu0 0
    %5496 = vmatprep.subr.bf16.mxu0 0
    %5497 = vmatpush1.bf16.msra.mxu0 0
    %5498 = vmatprep.subr.bf16.mxu0 0
    %5499 = vmatpush1.bf16.msra.mxu0 0
    %5500 = vmatprep.subr.bf16.mxu0 0
    %5501 = vmatpush1.bf16.msra.mxu0 0
    %5502 = vmatprep.subr.bf16.mxu0 0
    %5503 = vmatpush1.bf16.msra.mxu0 0
    %5504 = vmatprep.subr.bf16.mxu0 0
    %5505 = vmatpush1.bf16.msra.mxu0 0
    %5506 = vmatprep.subr.bf16.mxu0 0
    %5507 = vmatpush1.bf16.msra.mxu0 0
    %5508 = vmatprep.subr.bf16.mxu0 0
    %5509 = vmatpush1.bf16.msra.mxu0 0
    %5510 = vmatprep.mubr.bf16.mxu0 0
    %5511 = vmatmul.mubr.bf16.gmra.mrb[0].mxu0 %v5476
    %v5512 = vpop.f32.mrb[0].mxu0
    %v5513 = vadd.f32 0.0, %v5512
    %v5514 = vpop.f32.mrb[0].mxu0
    %v5515 = vadd.f32 0.0, %v5514
    %v5516 = vpop.f32.mrb[0].mxu0
    %v5517 = vpop.f32.mrb[0].mxu0
    %5518 = vdwg.mxu0
    %v5519 = vadd.f32 %v5424, %v5513
    %v5520 = vadd.f32 %v5425, %v5515
    %v5521 = vld [vmem:[%s18] sm:$0xf]
    %5523 = vset.pattern.permute.xlu0 0
    %5524 = vperm.xlu0 %5523, %v5521
    %v5525 = vpop.permute.xlu0 %5524
    %v5527 = vadd.f32 %v5519, %v5525
    %v5528 = vadd.f32 %v5520, %v5525
    %v5531 = vcombine.low %v5527, %v5528
    %5533 = vst [vmem:[%s19] sm:$0xff] %v5531
    // Predicated region
    $region82: #{unet_forward.1} parent=1 // pred_check
      _
    $region83: #{unet_forward.1} parent=1 // pred_check_branch
      %5535 = sbr.rel (0) target = $region85
    $region84: #{unet_forward.1} parent=1 // pred_region
      _
    $region85: #{unet_forward.1} parent=1 // pred_fallthru
      _
    // Predicated region
    $region86: #{unet_forward.1} parent=1 // pred_check
      _
    $region87: #{unet_forward.1} parent=1 // pred_check_branch
      %5537 = sbr.rel (0) target = $region89
    $region88: #{unet_forward.1} parent=1 // pred_region
      _
    $region89: #{unet_forward.1} parent=1 // pred_fallthru
      _
    %5538 = vsyncpa [#allocation3], 1

</llo_original>
